<compile_context>
chip_gen: v7x
topology: tpu7x:2x2x1
jax: 0.10.0
libtpu: 0.0.40
codegen_flags: <defaults>
</compile_context>

<pallas_src>
import jax
import jax.numpy as jnp
import numpy as np
from jax.experimental import pallas as pl
from jax.experimental.pallas import tpu as pltpu

_BN_EPS = 1e-5
_LANE = 128


def _round_up(x, m):
    return (x + m - 1) // m * m


# ---------------------------------------------------------------------------
# 3x3 conv (stride 1, pad 1) on a flattened zero-padded plane.
#   input  : (L, cin)  where L = (H+3)*(W+2), valid pixels at rows 1..H / cols 1..W
#   output : (L, cout) in the same zero-padded flattened layout (consumable by
#            the next conv directly), plus per-plane BN partial sums.
# Optionally fuses a per-channel affine + relu prologue on the *input*
# (used to fold BN1 + relu into conv2).
# ---------------------------------------------------------------------------
def _make_conv_kernel(H, W, cin, cout, fuse_prologue):
    Wp = W + 2           # padded width  (1 left + 1 right)
    Hp = H + 3           # padded height (1 top + 2 bottom; the extra zero row
                         # keeps every flattened tap slice in-bounds)
    L = Hp * Wp          # flattened padded plane length
    M = H * Wp           # accumulator rows (carries 2 junk columns per row)

    def kernel(*refs):
        if fuse_prologue:
            (x_ref, w_ref, cmask_ref, imask_ref, sc_ref, sh_ref,
             y_ref, s_ref, q_ref, acc_ref, z_ref) = refs
        else:
            (x_ref, w_ref, cmask_ref,
             y_ref, s_ref, q_ref, acc_ref) = refs

        # Optional fused prologue: BN1 affine + relu on the flattened padded
        # input. The interior mask forces the zero-padding border back to zero
        # (relu(shift) != 0 in general).
        if fuse_prologue:
            xz = x_ref[...].astype(jnp.float32)                     # (L, cin)
            z = jnp.maximum(xz * sc_ref[...] + sh_ref[...], 0.0)
            z_ref[...] = (z * imask_ref[...]).astype(jnp.bfloat16)

        def tap(dy, dx):
            start = dy * Wp + dx
            src = z_ref if fuse_prologue else x_ref
            return src[start:start + M, :]                          # (M, cin) bf16

        # 3 K-packed bf16 MXU matmuls (K = 3*cin): the three dx-taps of kernel
        # row dy are concatenated channel-wise to match w_ref[dy] of shape
        # (3*cin, cout). First row assigns the f32 accumulator, the rest add.
        for dy in range(3):
            patch = jnp.concatenate([tap(dy, 0), tap(dy, 1), tap(dy, 2)],
                                    axis=-1)                        # (M, 3*cin)
            part = jnp.dot(patch, w_ref[dy],
                           preferred_element_type=jnp.float32)      # (M, cout)
            if dy == 0:
                acc_ref[...] = part
            else:
                acc_ref[...] += part

        # Fused BN batch-statistic partials over valid output pixels only
        # (cmask zeroes the 2 junk columns the flattened layout carries).
        acc = acc_ref[...]                                          # (M, cout) f32
        accv = acc * cmask_ref[...]
        s_ref[...] = jnp.sum(accv, axis=0, keepdims=True)           # (1, cout)
        q_ref[...] = jnp.sum(accv * acc, axis=0, keepdims=True)

        # Store as a zero-padded flattened plane: interior pixel m lands at flat
        # index m + Wp + 1; the masked junk columns land exactly on border
        # positions that must be zero, the head/tail rows are explicit zeros.
        yv = accv.astype(jnp.bfloat16)
        y_ref[0:Wp + 1, :] = jnp.zeros((Wp + 1, cout), jnp.bfloat16)
        y_ref[Wp + 1:Wp + 1 + M, :] = yv
        y_ref[Wp + 1 + M:L, :] = jnp.zeros((L - Wp - 1 - M, cout), jnp.bfloat16)

    return kernel


def _conv3x3_flat(x_flat, wk, cmask, *, H, W,
                  in_scale=None, in_shift=None, imask=None):
    """x_flat: (N, L, cin) bf16 zero-padded flat planes; wk: (3, 3*cin, cout) bf16."""
    N, L, cin = x_flat.shape
    cout = wk.shape[-1]
    Wp = W + 2
    M = H * Wp
    fuse = in_scale is not None

    kernel = _make_conv_kernel(H, W, cin, cout, fuse)

    in_specs = [
        pl.BlockSpec((None, L, cin), lambda n: (n, 0, 0)),
        pl.BlockSpec((3, 3 * cin, cout), lambda n: (0, 0, 0)),
        pl.BlockSpec((M, 1), lambda n: (0, 0)),
    ]
    args = [x_flat, wk, cmask]
    if fuse:
        in_specs += [
            pl.BlockSpec((L, 1), lambda n: (0, 0)),
            pl.BlockSpec((1, cin), lambda n: (0, 0)),
            pl.BlockSpec((1, cin), lambda n: (0, 0)),
        ]
        args += [imask, in_scale, in_shift]

    scratch = [pltpu.VMEM((M, cout), jnp.float32)]       # matmul accumulator
    if fuse:
        scratch.append(pltpu.VMEM((L, cin), jnp.bfloat16))   # prologue output

    return pl.pallas_call(
        kernel,
        out_shape=(jax.ShapeDtypeStruct((N, L, cout), jnp.bfloat16),
                   jax.ShapeDtypeStruct((N, 1, cout), jnp.float32),
                   jax.ShapeDtypeStruct((N, 1, cout), jnp.float32)),
        grid=(N,),
        in_specs=in_specs,
        out_specs=(pl.BlockSpec((None, L, cout), lambda n: (n, 0, 0)),
                   pl.BlockSpec((None, 1, cout), lambda n: (n, 0, 0)),
                   pl.BlockSpec((None, 1, cout), lambda n: (n, 0, 0))),
        scratch_shapes=scratch,
        compiler_params=pltpu.CompilerParams(
            dimension_semantics=("parallel",)),
    )(*args)


# ---------------------------------------------------------------------------
# Fused BN2 scale/shift + residual add + relu epilogue (flattened layout).
# ---------------------------------------------------------------------------
def _make_epilogue_kernel(H, W):
    Wp = W + 2
    M = H * Wp

    def kernel(y_ref, x_ref, sc_ref, sh_ref, o_ref):
        y = y_ref[Wp + 1:Wp + 1 + M, :].astype(jnp.float32)   # (M, C)
        r = x_ref[Wp + 1:Wp + 1 + M, :].astype(jnp.float32)   # residual interior
        o_ref[...] = jnp.maximum(y * sc_ref[...] + sh_ref[...] + r, 0.0)

    return kernel


def _bn_add_relu_flat(y2p, x_flat, scale, shift, *, H, W):
    N, L, C = y2p.shape
    Wp = W + 2
    M = H * Wp
    kernel = _make_epilogue_kernel(H, W)
    return pl.pallas_call(
        kernel,
        out_shape=jax.ShapeDtypeStruct((N, M, C), jnp.float32),
        grid=(N,),
        in_specs=[
            pl.BlockSpec((None, L, C), lambda n: (n, 0, 0)),
            pl.BlockSpec((None, L, C), lambda n: (n, 0, 0)),
            pl.BlockSpec((1, C), lambda n: (0, 0)),
            pl.BlockSpec((1, C), lambda n: (0, 0)),
        ],
        out_specs=pl.BlockSpec((None, M, C), lambda n: (n, 0, 0)),
        compiler_params=pltpu.CompilerParams(
            dimension_semantics=("parallel",)),
    )(y2p, x_flat, scale, shift)


# ---------------------------------------------------------------------------
# BasicBlock forward (NCHW in / NCHW out), conv parameters in HWIO.
# ---------------------------------------------------------------------------
def basic_block_forward(x_nchw, w1, w2, alpha, gamma1, beta1, gamma2, beta2,
                        eps=_BN_EPS):
    N, cin, H, W = x_nchw.shape
    cmid = w1.shape[-1]
    cout = w2.shape[-1]
    assert w1.shape[2] == cin and w2.shape[2] == cmid
    assert cin == cout, "downsample=None requires inplanes == planes"

    Wp = W + 2
    Hp = H + 3
    L = Hp * Wp
    M = H * Wp

    cin_p = _round_up(cin, _LANE)
    cmid_p = _round_up(cmid, _LANE)
    cout_p = _round_up(cout, _LANE)
    assert cin_p == cout_p

    # NCHW -> NHWC, zero-pad spatially (1 top / 2 bottom / 1 left / 1 right),
    # lane-pad channels to 128, flatten (Hp, Wp) -> L, store bf16.
    x = jnp.transpose(x_nchw, (0, 2, 3, 1)).astype(jnp.float32)
    x_pad = jnp.pad(x, ((0, 0), (1, 2), (1, 1), (0, cin_p - cin)))
    x_flat = x_pad.astype(jnp.bfloat16).reshape(N, L, cin_p)

    # BinarizeAttention: hard per-channel gate folded exactly into conv1 weights.
    gate = (alpha >= 0).astype(jnp.float32)
    w1_p = jnp.pad(w1.astype(jnp.float32) * gate[None, None, None, :],
                   ((0, 0), (0, 0), (0, cin_p - cin), (0, cmid_p - cmid)))
    w2_p = jnp.pad(w2.astype(jnp.float32),
                   ((0, 0), (0, 0), (0, cmid_p - cmid), (0, cout_p - cout)))
    # K-packed weight layout (ky, kx*cin, cout), kx-major, to match the
    # in-kernel channel concatenation of the 3 dx taps.
    wk1 = w1_p.reshape(3, 3 * cin_p, cmid_p).astype(jnp.bfloat16)
    wk2 = w2_p.reshape(3, 3 * cmid_p, cout_p).astype(jnp.bfloat16)

    g1 = jnp.pad(gamma1.astype(jnp.float32), (0, cmid_p - cmid))
    b1 = jnp.pad(beta1.astype(jnp.float32), (0, cmid_p - cmid))
    g2 = jnp.pad(gamma2.astype(jnp.float32), (0, cout_p - cout))
    b2 = jnp.pad(beta2.astype(jnp.float32), (0, cout_p - cout))

    # Small static masks built once in HBM:
    #   cmask: valid output columns of the flattened accumulator (junk cols = 0)
    #   imask: interior (non-padding) positions of a flattened padded plane
    col_m = jnp.arange(M, dtype=jnp.int32) % Wp
    cmask = (col_m < W).astype(jnp.float32).reshape(M, 1)
    fr = jnp.arange(L, dtype=jnp.int32) // Wp
    fc = jnp.arange(L, dtype=jnp.int32) % Wp
    imask = ((fr >= 1) & (fr <= H) & (fc >= 1) & (fc <= W)
             ).astype(jnp.float32).reshape(L, 1)

    count = N * H * W

    # K1: conv1 (+ gate) with fused BN1 partial statistics.
    y1p, s1, q1 = _conv3x3_flat(x_flat, wk1, cmask, H=H, W=W)
    s1 = jnp.sum(s1, axis=(0, 1))
    q1 = jnp.sum(q1, axis=(0, 1))
    mean1 = s1 / count
    var1 = jnp.maximum(q1 / count - mean1 * mean1, 0.0)
    scale1 = g1 * jax.lax.rsqrt(var1 + eps)
    shift1 = b1 - mean1 * scale1

    # K2: conv2 with fused [BN1 affine + relu] prologue and BN2 partial stats.
    y2p, s2, q2 = _conv3x3_flat(y1p, wk2, cmask, H=H, W=W,
                                in_scale=scale1.reshape(1, cmid_p),
                                in_shift=shift1.reshape(1, cmid_p),
                                imask=imask)
    s2 = jnp.sum(s2, axis=(0, 1))
    q2 = jnp.sum(q2, axis=(0, 1))
    mean2 = s2 / count
    var2 = jnp.maximum(q2 / count - mean2 * mean2, 0.0)
    scale2 = g2 * jax.lax.rsqrt(var2 + eps)
    shift2 = b2 - mean2 * scale2

    # K3: BN2 affine + residual add + relu.
    out_flat = _bn_add_relu_flat(y2p, x_flat,
                                 scale2.reshape(1, cout_p),
                                 shift2.reshape(1, cout_p), H=H, W=W)

    # Drop junk columns / channel padding, back to NCHW (XLA fuses the slice
    # into the final transpose).
    out = out_flat.reshape(N, H, Wp, cout_p)[:, :, :W, :cout]
    return jnp.transpose(out, (0, 3, 1, 2))


# ---------------------------------------------------------------------------
# Pure-JAX reference (same semantics) for correctness checking.
# ---------------------------------------------------------------------------
def _reference_forward(x_nchw, w1, w2, alpha, gamma1, beta1, gamma2, beta2,
                       eps=_BN_EPS):
    x = jnp.transpose(x_nchw, (0, 2, 3, 1)).astype(jnp.float32)
    gate = (alpha >= 0).astype(jnp.float32)

    def conv(z, w):
        dn = jax.lax.conv_dimension_numbers(z.shape, w.shape,
                                            ("NHWC", "HWIO", "NHWC"))
        return jax.lax.conv_general_dilated(
            z, w, window_strides=(1, 1), padding=((1, 1), (1, 1)),
            dimension_numbers=dn, precision=jax.lax.Precision.HIGHEST)

    y1 = conv(x, w1) * gate[None, None, None, :]
    m1 = jnp.mean(y1, axis=(0, 1, 2))
    v1 = jnp.var(y1, axis=(0, 1, 2))
    z1 = jax.nn.relu(gamma1 * (y1 - m1) * jax.lax.rsqrt(v1 + eps) + beta1)
    y2 = conv(z1, w2)
    m2 = jnp.mean(y2, axis=(0, 1, 2))
    v2 = jnp.var(y2, axis=(0, 1, 2))
    z2 = gamma2 * (y2 - m2) * jax.lax.rsqrt(v2 + eps) + beta2
    out = jax.nn.relu(z2 + x)
    return jnp.transpose(out, (0, 3, 1, 2))


if __name__ == "__main__":
    key = jax.random.PRNGKey(0)
    keys = jax.random.split(key, 8)

    N, inplanes, H, W = 2, 4, 16, 16
    cfg0 = 8            # conv1 output channels (cfg[0])
    planes = 4          # conv2 output channels; == inplanes (downsample=None)

    x = jax.random.normal(keys[0], (N, inplanes, H, W), jnp.float32)
    w1 = jax.random.normal(keys[1], (3, 3, inplanes, cfg0), jnp.float32) * 0.2
    w2 = jax.random.normal(keys[2], (3, 3, cfg0, planes), jnp.float32) * 0.2
    alpha = jax.random.normal(keys[3], (cfg0,), jnp.float32)   # gate logits
    gamma1 = 1.0 + 0.1 * jax.random.normal(keys[4], (cfg0,), jnp.float32)
    beta1 = 0.1 * jax.random.normal(keys[5], (cfg0,), jnp.float32)
    gamma2 = 1.0 + 0.1 * jax.random.normal(keys[6], (planes,), jnp.float32)
    beta2 = 0.1 * jax.random.normal(keys[7], (planes,), jnp.float32)

    fwd = jax.jit(basic_block_forward)
    out = jax.block_until_ready(fwd(x, w1, w2, alpha, gamma1, beta1, gamma2, beta2))

    ref = jax.block_until_ready(
        _reference_forward(x, w1, w2, alpha, gamma1, beta1, gamma2, beta2))
    # Tolerance widened slightly vs the f32 reference: the conv matmuls and the
    # inter-kernel intermediates now run in bf16 on the MXU fast path.
    np.testing.assert_allclose(np.asarray(out), np.asarray(ref),
                               rtol=2e-2, atol=2e-2)
    print("KERNEL_OK")
</pallas_src>

<mosaic_0001>
module attributes {stable_mosaic.version = 11 : i64} {
  func.func @kernel(%arg0: i32, %arg1: memref<1x342x128xbf16, #tpu.memory_space<vmem>>, %arg2: memref<3x384x128xbf16, #tpu.memory_space<vmem>>, %arg3: memref<288x1xf32, #tpu.memory_space<vmem>>, %arg4: memref<1x342x128xbf16, #tpu.memory_space<vmem>>, %arg5: memref<1x1x128xf32, #tpu.memory_space<vmem>>, %arg6: memref<1x1x128xf32, #tpu.memory_space<vmem>>, %arg7: memref<288x128xf32, #tpu.memory_space<vmem>>) attributes {dimension_semantics = [#tpu.dimension_semantics<parallel>], iteration_bounds = array<i64: 2>, scalar_prefetch = 0 : i64, scratch_operands = 1 : i64, tpu.core_type = #tpu.core_type<tc>, window_params = [{transform_indices = @transform_0, window_bounds = array<i64: 1, 342, 128>}, {pipeline_mode = #tpu.pipeline_mode<synchronous>, transform_indices = @transform_1, window_bounds = array<i64: 3, 384, 128>}, {pipeline_mode = #tpu.pipeline_mode<synchronous>, transform_indices = @transform_2, window_bounds = array<i64: 288, 1>}, {transform_indices = @transform_3, window_bounds = array<i64: 1, 342, 128>}, {transform_indices = @transform_4, window_bounds = array<i64: 1, 1, 128>}, {transform_indices = @transform_5, window_bounds = array<i64: 1, 1, 128>}]} {
    %c0 = arith.constant 0 : index
    %c0_0 = arith.constant 0 : index
    %c0_1 = arith.constant 0 : index
    %0 = vector.load %arg1[%c0, %c0_0, %c0_1] : memref<1x342x128xbf16, #tpu.memory_space<vmem>>, vector<1x288x128xbf16>
    %1 = vector.shape_cast %0 : vector<1x288x128xbf16> to vector<288x128xbf16>
    %c0_2 = arith.constant 0 : index
    %c1 = arith.constant 1 : index
    %c0_3 = arith.constant 0 : index
    %2 = vector.load %arg1[%c0_2, %c1, %c0_3] : memref<1x342x128xbf16, #tpu.memory_space<vmem>>, vector<1x288x128xbf16>
    %3 = vector.shape_cast %2 : vector<1x288x128xbf16> to vector<288x128xbf16>
    %c0_4 = arith.constant 0 : index
    %c2 = arith.constant 2 : index
    %c0_5 = arith.constant 0 : index
    %4 = vector.load %arg1[%c0_4, %c2, %c0_5] : memref<1x342x128xbf16, #tpu.memory_space<vmem>>, vector<1x288x128xbf16>
    %5 = vector.shape_cast %4 : vector<1x288x128xbf16> to vector<288x128xbf16>
    %6 = tpu.concatenate %1, %3, %5 in 1 : vector<288x128xbf16>, vector<288x128xbf16>, vector<288x128xbf16> -> vector<288x384xbf16>
    %c0_6 = arith.constant 0 : index
    %c0_7 = arith.constant 0 : index
    %c0_8 = arith.constant 0 : index
    %7 = vector.load %arg2[%c0_6, %c0_7, %c0_8] : memref<3x384x128xbf16, #tpu.memory_space<vmem>>, vector<1x384x128xbf16>
    %8 = vector.shape_cast %7 : vector<1x384x128xbf16> to vector<384x128xbf16>
    %cst = arith.constant dense<0.000000e+00> : vector<288x128xf32>
    %9 = tpu.matmul %6, %8, %cst {dimension_numbers = #tpu.dot_dimension_numbers<[1], [0], [0], [1], [0, 0, 1, 1], [], []>} : vector<288x384xbf16>, vector<384x128xbf16>, vector<288x128xf32> -> vector<288x128xf32>
    %c0_9 = arith.constant 0 : index
    %c0_10 = arith.constant 0 : index
    %10 = vector.load %arg7[%c0_9, %c0_10] : memref<288x128xf32, #tpu.memory_space<vmem>>, vector<288x128xf32>
    tpu.vector_store %arg7[%c0_9, %c0_10], %9 {strides = array<i32>} : memref<288x128xf32, #tpu.memory_space<vmem>>, vector<288x128xf32>,
    %c0_11 = arith.constant 0 : index
    %c18 = arith.constant 18 : index
    %c0_12 = arith.constant 0 : index
    %11 = vector.load %arg1[%c0_11, %c18, %c0_12] : memref<1x342x128xbf16, #tpu.memory_space<vmem>>, vector<1x288x128xbf16>
    %12 = vector.shape_cast %11 : vector<1x288x128xbf16> to vector<288x128xbf16>
    %c0_13 = arith.constant 0 : index
    %c19 = arith.constant 19 : index
    %c0_14 = arith.constant 0 : index
    %13 = vector.load %arg1[%c0_13, %c19, %c0_14] : memref<1x342x128xbf16, #tpu.memory_space<vmem>>, vector<1x288x128xbf16>
    %14 = vector.shape_cast %13 : vector<1x288x128xbf16> to vector<288x128xbf16>
    %c0_15 = arith.constant 0 : index
    %c20 = arith.constant 20 : index
    %c0_16 = arith.constant 0 : index
    %15 = vector.load %arg1[%c0_15, %c20, %c0_16] : memref<1x342x128xbf16, #tpu.memory_space<vmem>>, vector<1x288x128xbf16>
    %16 = vector.shape_cast %15 : vector<1x288x128xbf16> to vector<288x128xbf16>
    %17 = tpu.concatenate %12, %14, %16 in 1 : vector<288x128xbf16>, vector<288x128xbf16>, vector<288x128xbf16> -> vector<288x384xbf16>
    %c1_17 = arith.constant 1 : index
    %c0_18 = arith.constant 0 : index
    %c0_19 = arith.constant 0 : index
    %18 = vector.load %arg2[%c1_17, %c0_18, %c0_19] : memref<3x384x128xbf16, #tpu.memory_space<vmem>>, vector<1x384x128xbf16>
    %19 = vector.shape_cast %18 : vector<1x384x128xbf16> to vector<384x128xbf16>
    %cst_20 = arith.constant dense<0.000000e+00> : vector<288x128xf32>
    %20 = tpu.matmul %17, %19, %cst_20 {dimension_numbers = #tpu.dot_dimension_numbers<[1], [0], [0], [1], [0, 0, 1, 1], [], []>} : vector<288x384xbf16>, vector<384x128xbf16>, vector<288x128xf32> -> vector<288x128xf32>
    %c0_21 = arith.constant 0 : index
    %c0_22 = arith.constant 0 : index
    %21 = vector.load %arg7[%c0_21, %c0_22] : memref<288x128xf32, #tpu.memory_space<vmem>>, vector<288x128xf32>
    %22 = arith.addf %21, %20 : vector<288x128xf32>
    %c0_23 = arith.constant 0 : index
    %c0_24 = arith.constant 0 : index
    %23 = vector.load %arg7[%c0_23, %c0_24] : memref<288x128xf32, #tpu.memory_space<vmem>>, vector<288x128xf32>
    tpu.vector_store %arg7[%c0_23, %c0_24], %22 {strides = array<i32>} : memref<288x128xf32, #tpu.memory_space<vmem>>, vector<288x128xf32>,
    %c0_25 = arith.constant 0 : index
    %c36 = arith.constant 36 : index
    %c0_26 = arith.constant 0 : index
    %24 = vector.load %arg1[%c0_25, %c36, %c0_26] : memref<1x342x128xbf16, #tpu.memory_space<vmem>>, vector<1x288x128xbf16>
    %25 = vector.shape_cast %24 : vector<1x288x128xbf16> to vector<288x128xbf16>
    %c0_27 = arith.constant 0 : index
    %c37 = arith.constant 37 : index
    %c0_28 = arith.constant 0 : index
    %26 = vector.load %arg1[%c0_27, %c37, %c0_28] : memref<1x342x128xbf16, #tpu.memory_space<vmem>>, vector<1x288x128xbf16>
    %27 = vector.shape_cast %26 : vector<1x288x128xbf16> to vector<288x128xbf16>
    %c0_29 = arith.constant 0 : index
    %c38 = arith.constant 38 : index
    %c0_30 = arith.constant 0 : index
    %28 = vector.load %arg1[%c0_29, %c38, %c0_30] : memref<1x342x128xbf16, #tpu.memory_space<vmem>>, vector<1x288x128xbf16>
    %29 = vector.shape_cast %28 : vector<1x288x128xbf16> to vector<288x128xbf16>
    %30 = tpu.concatenate %25, %27, %29 in 1 : vector<288x128xbf16>, vector<288x128xbf16>, vector<288x128xbf16> -> vector<288x384xbf16>
    %c2_31 = arith.constant 2 : index
    %c0_32 = arith.constant 0 : index
    %c0_33 = arith.constant 0 : index
    %31 = vector.load %arg2[%c2_31, %c0_32, %c0_33] : memref<3x384x128xbf16, #tpu.memory_space<vmem>>, vector<1x384x128xbf16>
    %32 = vector.shape_cast %31 : vector<1x384x128xbf16> to vector<384x128xbf16>
    %cst_34 = arith.constant dense<0.000000e+00> : vector<288x128xf32>
    %33 = tpu.matmul %30, %32, %cst_34 {dimension_numbers = #tpu.dot_dimension_numbers<[1], [0], [0], [1], [0, 0, 1, 1], [], []>} : vector<288x384xbf16>, vector<384x128xbf16>, vector<288x128xf32> -> vector<288x128xf32>
    %c0_35 = arith.constant 0 : index
    %c0_36 = arith.constant 0 : index
    %34 = vector.load %arg7[%c0_35, %c0_36] : memref<288x128xf32, #tpu.memory_space<vmem>>, vector<288x128xf32>
    %35 = arith.addf %34, %33 : vector<288x128xf32>
    %c0_37 = arith.constant 0 : index
    %c0_38 = arith.constant 0 : index
    %36 = vector.load %arg7[%c0_37, %c0_38] : memref<288x128xf32, #tpu.memory_space<vmem>>, vector<288x128xf32>
    tpu.vector_store %arg7[%c0_37, %c0_38], %35 {strides = array<i32>} : memref<288x128xf32, #tpu.memory_space<vmem>>, vector<288x128xf32>,
    %c0_39 = arith.constant 0 : index
    %c0_40 = arith.constant 0 : index
    %37 = vector.load %arg7[%c0_39, %c0_40] : memref<288x128xf32, #tpu.memory_space<vmem>>, vector<288x128xf32>
    %c0_41 = arith.constant 0 : index
    %c0_42 = arith.constant 0 : index
    %38 = vector.load %arg3[%c0_41, %c0_42] : memref<288x1xf32, #tpu.memory_space<vmem>>, vector<288x1xf32>
    %39 = vector.broadcast %38 : vector<288x1xf32> to vector<288x128xf32>
    %40 = arith.mulf %37, %39 : vector<288x128xf32>
    %cst_43 = arith.constant dense<0.000000e+00> : vector<128xf32>
    %41 = vector.multi_reduction <add>, %40, %cst_43 [0] : vector<288x128xf32> to vector<128xf32>
    %42 = vector.shape_cast %41 : vector<128xf32> to vector<1x128xf32>
    %c0_44 = arith.constant 0 : index
    %c0_45 = arith.constant 0 : index
    %c0_46 = arith.constant 0 : index
    %43 = vector.load %arg5[%c0_44, %c0_45, %c0_46] : memref<1x1x128xf32, #tpu.memory_space<vmem>>, vector<1x1x128xf32>
    %44 = vector.shape_cast %43 : vector<1x1x128xf32> to vector<1x128xf32>
    %45 = vector.shape_cast %42 : vector<1x128xf32> to vector<1x1x128xf32>
    tpu.vector_store %arg5[%c0_44, %c0_45, %c0_46], %45 {strides = array<i32>} : memref<1x1x128xf32, #tpu.memory_space<vmem>>, vector<1x1x128xf32>,
    %46 = arith.mulf %40, %37 : vector<288x128xf32>
    %cst_47 = arith.constant dense<0.000000e+00> : vector<128xf32>
    %47 = vector.multi_reduction <add>, %46, %cst_47 [0] : vector<288x128xf32> to vector<128xf32>
    %48 = vector.shape_cast %47 : vector<128xf32> to vector<1x128xf32>
    %c0_48 = arith.constant 0 : index
    %c0_49 = arith.constant 0 : index
    %c0_50 = arith.constant 0 : index
    %49 = vector.load %arg6[%c0_48, %c0_49, %c0_50] : memref<1x1x128xf32, #tpu.memory_space<vmem>>, vector<1x1x128xf32>
    %50 = vector.shape_cast %49 : vector<1x1x128xf32> to vector<1x128xf32>
    %51 = vector.shape_cast %48 : vector<1x128xf32> to vector<1x1x128xf32>
    tpu.vector_store %arg6[%c0_48, %c0_49, %c0_50], %51 {strides = array<i32>} : memref<1x1x128xf32, #tpu.memory_space<vmem>>, vector<1x1x128xf32>,
    %52 = arith.truncf %40 : vector<288x128xf32> to vector<288x128xbf16>
    %cst_51 = arith.constant 0.000000e+00 : bf16
    %53 = vector.broadcast %cst_51 : bf16 to vector<19x128xbf16>
    %c0_52 = arith.constant 0 : index
    %c0_53 = arith.constant 0 : index
    %c0_54 = arith.constant 0 : index
    %54 = vector.load %arg4[%c0_52, %c0_53, %c0_54] : memref<1x342x128xbf16, #tpu.memory_space<vmem>>, vector<1x19x128xbf16>
    %55 = vector.shape_cast %54 : vector<1x19x128xbf16> to vector<19x128xbf16>
    %56 = vector.shape_cast %53 : vector<19x128xbf16> to vector<1x19x128xbf16>
    tpu.vector_store %arg4[%c0_52, %c0_53, %c0_54], %56 {strides = array<i32>} : memref<1x342x128xbf16, #tpu.memory_space<vmem>>, vector<1x19x128xbf16>,
    %c0_55 = arith.constant 0 : index
    %c19_56 = arith.constant 19 : index
    %c0_57 = arith.constant 0 : index
    %57 = vector.load %arg4[%c0_55, %c19_56, %c0_57] : memref<1x342x128xbf16, #tpu.memory_space<vmem>>, vector<1x288x128xbf16>
    %58 = vector.shape_cast %57 : vector<1x288x128xbf16> to vector<288x128xbf16>
    %59 = vector.shape_cast %52 : vector<288x128xbf16> to vector<1x288x128xbf16>
    tpu.vector_store %arg4[%c0_55, %c19_56, %c0_57], %59 {strides = array<i32>} : memref<1x342x128xbf16, #tpu.memory_space<vmem>>, vector<1x288x128xbf16>,
    %cst_58 = arith.constant 0.000000e+00 : bf16
    %60 = vector.broadcast %cst_58 : bf16 to vector<35x128xbf16>
    %c0_59 = arith.constant 0 : index
    %c307 = arith.constant 307 : index
    %c0_60 = arith.constant 0 : index
    %61 = vector.load %arg4[%c0_59, %c307, %c0_60] : memref<1x342x128xbf16, #tpu.memory_space<vmem>>, vector<1x35x128xbf16>
    %62 = vector.shape_cast %61 : vector<1x35x128xbf16> to vector<35x128xbf16>
    %63 = vector.shape_cast %60 : vector<35x128xbf16> to vector<1x35x128xbf16>
    tpu.vector_store %arg4[%c0_59, %c307, %c0_60], %63 {strides = array<i32>} : memref<1x342x128xbf16, #tpu.memory_space<vmem>>, vector<1x35x128xbf16>,
    return
  }
  func.func @transform_0(%arg0: i32) -> (i32, i32, i32) {
    %c0_i32 = arith.constant 0 : i32
    %c0_i32_0 = arith.constant 0 : i32
    %c0_i32_1 = arith.constant 0 : i32
    return %arg0, %c0_i32, %c0_i32_0 : i32, i32, i32
  }
  func.func @transform_1(%arg0: i32) -> (i32, i32, i32) {
    %c0_i32 = arith.constant 0 : i32
    %c0_i32_0 = arith.constant 0 : i32
    %c0_i32_1 = arith.constant 0 : i32
    %c0_i32_2 = arith.constant 0 : i32
    return %c0_i32, %c0_i32_0, %c0_i32_1 : i32, i32, i32
  }
  func.func @transform_2(%arg0: i32) -> (i32, i32) {
    %c0_i32 = arith.constant 0 : i32
    %c0_i32_0 = arith.constant 0 : i32
    %c0_i32_1 = arith.constant 0 : i32
    return %c0_i32, %c0_i32_0 : i32, i32
  }
  func.func @transform_3(%arg0: i32) -> (i32, i32, i32) {
    %c0_i32 = arith.constant 0 : i32
    %c0_i32_0 = arith.constant 0 : i32
    %c0_i32_1 = arith.constant 0 : i32
    return %arg0, %c0_i32, %c0_i32_0 : i32, i32, i32
  }
  func.func @transform_4(%arg0: i32) -> (i32, i32, i32) {
    %c0_i32 = arith.constant 0 : i32
    %c0_i32_0 = arith.constant 0 : i32
    %c0_i32_1 = arith.constant 0 : i32
    return %arg0, %c0_i32, %c0_i32_0 : i32, i32, i32
  }
  func.func @transform_5(%arg0: i32) -> (i32, i32, i32) {
    %c0_i32 = arith.constant 0 : i32
    %c0_i32_0 = arith.constant 0 : i32
    %c0_i32_1 = arith.constant 0 : i32
    return %arg0, %c0_i32, %c0_i32_0 : i32, i32, i32
  }
}

module attributes {stable_mosaic.version = 11 : i64} {
  func.func @kernel(%arg0: i32, %arg1: memref<1x342x128xbf16, #tpu.memory_space<vmem>>, %arg2: memref<3x384x128xbf16, #tpu.memory_space<vmem>>, %arg3: memref<288x1xf32, #tpu.memory_space<vmem>>, %arg4: memref<342x1xf32, #tpu.memory_space<vmem>>, %arg5: memref<1x128xf32, #tpu.memory_space<vmem>>, %arg6: memref<1x128xf32, #tpu.memory_space<vmem>>, %arg7: memref<1x342x128xbf16, #tpu.memory_space<vmem>>, %arg8: memref<1x1x128xf32, #tpu.memory_space<vmem>>, %arg9: memref<1x1x128xf32, #tpu.memory_space<vmem>>, %arg10: memref<288x128xf32, #tpu.memory_space<vmem>>, %arg11: memref<342x128xbf16, #tpu.memory_space<vmem>>) attributes {dimension_semantics = [#tpu.dimension_semantics<parallel>], iteration_bounds = array<i64: 2>, scalar_prefetch = 0 : i64, scratch_operands = 2 : i64, tpu.core_type = #tpu.core_type<tc>, window_params = [{transform_indices = @transform_0, window_bounds = array<i64: 1, 342, 128>}, {pipeline_mode = #tpu.pipeline_mode<synchronous>, transform_indices = @transform_1, window_bounds = array<i64: 3, 384, 128>}, {pipeline_mode = #tpu.pipeline_mode<synchronous>, transform_indices = @transform_2, window_bounds = array<i64: 288, 1>}, {pipeline_mode = #tpu.pipeline_mode<synchronous>, transform_indices = @transform_3, window_bounds = array<i64: 342, 1>}, {pipeline_mode = #tpu.pipeline_mode<synchronous>, transform_indices = @transform_4, window_bounds = array<i64: 1, 128>}, {pipeline_mode = #tpu.pipeline_mode<synchronous>, transform_indices = @transform_5, window_bounds = array<i64: 1, 128>}, {transform_indices = @transform_6, window_bounds = array<i64: 1, 342, 128>}, {transform_indices = @transform_7, window_bounds = array<i64: 1, 1, 128>}, {transform_indices = @transform_8, window_bounds = array<i64: 1, 1, 128>}]} {
    %c0 = arith.constant 0 : index
    %c0_0 = arith.constant 0 : index
    %c0_1 = arith.constant 0 : index
    %0 = vector.load %arg1[%c0, %c0_0, %c0_1] : memref<1x342x128xbf16, #tpu.memory_space<vmem>>, vector<1x342x128xbf16>
    %1 = vector.shape_cast %0 : vector<1x342x128xbf16> to vector<342x128xbf16>
    %2 = arith.extf %1 : vector<342x128xbf16> to vector<342x128xf32>
    %c0_2 = arith.constant 0 : index
    %c0_3 = arith.constant 0 : index
    %3 = vector.load %arg5[%c0_2, %c0_3] : memref<1x128xf32, #tpu.memory_space<vmem>>, vector<1x128xf32>
    %4 = vector.broadcast %3 : vector<1x128xf32> to vector<342x128xf32>
    %5 = arith.mulf %2, %4 : vector<342x128xf32>
    %c0_4 = arith.constant 0 : index
    %c0_5 = arith.constant 0 : index
    %6 = vector.load %arg6[%c0_4, %c0_5] : memref<1x128xf32, #tpu.memory_space<vmem>>, vector<1x128xf32>
    %7 = vector.broadcast %6 : vector<1x128xf32> to vector<342x128xf32>
    %8 = arith.addf %5, %7 : vector<342x128xf32>
    %cst = arith.constant 0.000000e+00 : f32
    %9 = vector.broadcast %cst : f32 to vector<342x128xf32>
    %10 = arith.maximumf %8, %9 : vector<342x128xf32>
    %c0_6 = arith.constant 0 : index
    %c0_7 = arith.constant 0 : index
    %11 = vector.load %arg4[%c0_6, %c0_7] : memref<342x1xf32, #tpu.memory_space<vmem>>, vector<342x1xf32>
    %12 = vector.broadcast %11 : vector<342x1xf32> to vector<342x128xf32>
    %13 = arith.mulf %10, %12 : vector<342x128xf32>
    %14 = arith.truncf %13 : vector<342x128xf32> to vector<342x128xbf16>
    %c0_8 = arith.constant 0 : index
    %c0_9 = arith.constant 0 : index
    %15 = vector.load %arg11[%c0_8, %c0_9] : memref<342x128xbf16, #tpu.memory_space<vmem>>, vector<342x128xbf16>
    tpu.vector_store %arg11[%c0_8, %c0_9], %14 {strides = array<i32>} : memref<342x128xbf16, #tpu.memory_space<vmem>>, vector<342x128xbf16>,
    %c0_10 = arith.constant 0 : index
    %c0_11 = arith.constant 0 : index
    %16 = vector.load %arg11[%c0_10, %c0_11] : memref<342x128xbf16, #tpu.memory_space<vmem>>, vector<288x128xbf16>
    %c1 = arith.constant 1 : index
    %c0_12 = arith.constant 0 : index
    %17 = vector.load %arg11[%c1, %c0_12] : memref<342x128xbf16, #tpu.memory_space<vmem>>, vector<288x128xbf16>
    %c2 = arith.constant 2 : index
    %c0_13 = arith.constant 0 : index
    %18 = vector.load %arg11[%c2, %c0_13] : memref<342x128xbf16, #tpu.memory_space<vmem>>, vector<288x128xbf16>
    %19 = tpu.concatenate %16, %17, %18 in 1 : vector<288x128xbf16>, vector<288x128xbf16>, vector<288x128xbf16> -> vector<288x384xbf16>
    %c0_14 = arith.constant 0 : index
    %c0_15 = arith.constant 0 : index
    %c0_16 = arith.constant 0 : index
    %20 = vector.load %arg2[%c0_14, %c0_15, %c0_16] : memref<3x384x128xbf16, #tpu.memory_space<vmem>>, vector<1x384x128xbf16>
    %21 = vector.shape_cast %20 : vector<1x384x128xbf16> to vector<384x128xbf16>
    %cst_17 = arith.constant dense<0.000000e+00> : vector<288x128xf32>
    %22 = tpu.matmul %19, %21, %cst_17 {dimension_numbers = #tpu.dot_dimension_numbers<[1], [0], [0], [1], [0, 0, 1, 1], [], []>} : vector<288x384xbf16>, vector<384x128xbf16>, vector<288x128xf32> -> vector<288x128xf32>
    %c0_18 = arith.constant 0 : index
    %c0_19 = arith.constant 0 : index
    %23 = vector.load %arg10[%c0_18, %c0_19] : memref<288x128xf32, #tpu.memory_space<vmem>>, vector<288x128xf32>
    tpu.vector_store %arg10[%c0_18, %c0_19], %22 {strides = array<i32>} : memref<288x128xf32, #tpu.memory_space<vmem>>, vector<288x128xf32>,
    %c18 = arith.constant 18 : index
    %c0_20 = arith.constant 0 : index
    %24 = vector.load %arg11[%c18, %c0_20] : memref<342x128xbf16, #tpu.memory_space<vmem>>, vector<288x128xbf16>
    %c19 = arith.constant 19 : index
    %c0_21 = arith.constant 0 : index
    %25 = vector.load %arg11[%c19, %c0_21] : memref<342x128xbf16, #tpu.memory_space<vmem>>, vector<288x128xbf16>
    %c20 = arith.constant 20 : index
    %c0_22 = arith.constant 0 : index
    %26 = vector.load %arg11[%c20, %c0_22] : memref<342x128xbf16, #tpu.memory_space<vmem>>, vector<288x128xbf16>
    %27 = tpu.concatenate %24, %25, %26 in 1 : vector<288x128xbf16>, vector<288x128xbf16>, vector<288x128xbf16> -> vector<288x384xbf16>
    %c1_23 = arith.constant 1 : index
    %c0_24 = arith.constant 0 : index
    %c0_25 = arith.constant 0 : index
    %28 = vector.load %arg2[%c1_23, %c0_24, %c0_25] : memref<3x384x128xbf16, #tpu.memory_space<vmem>>, vector<1x384x128xbf16>
    %29 = vector.shape_cast %28 : vector<1x384x128xbf16> to vector<384x128xbf16>
    %cst_26 = arith.constant dense<0.000000e+00> : vector<288x128xf32>
    %30 = tpu.matmul %27, %29, %cst_26 {dimension_numbers = #tpu.dot_dimension_numbers<[1], [0], [0], [1], [0, 0, 1, 1], [], []>} : vector<288x384xbf16>, vector<384x128xbf16>, vector<288x128xf32> -> vector<288x128xf32>
    %c0_27 = arith.constant 0 : index
    %c0_28 = arith.constant 0 : index
    %31 = vector.load %arg10[%c0_27, %c0_28] : memref<288x128xf32, #tpu.memory_space<vmem>>, vector<288x128xf32>
    %32 = arith.addf %31, %30 : vector<288x128xf32>
    %c0_29 = arith.constant 0 : index
    %c0_30 = arith.constant 0 : index
    %33 = vector.load %arg10[%c0_29, %c0_30] : memref<288x128xf32, #tpu.memory_space<vmem>>, vector<288x128xf32>
    tpu.vector_store %arg10[%c0_29, %c0_30], %32 {strides = array<i32>} : memref<288x128xf32, #tpu.memory_space<vmem>>, vector<288x128xf32>,
    %c36 = arith.constant 36 : index
    %c0_31 = arith.constant 0 : index
    %34 = vector.load %arg11[%c36, %c0_31] : memref<342x128xbf16, #tpu.memory_space<vmem>>, vector<288x128xbf16>
    %c37 = arith.constant 37 : index
    %c0_32 = arith.constant 0 : index
    %35 = vector.load %arg11[%c37, %c0_32] : memref<342x128xbf16, #tpu.memory_space<vmem>>, vector<288x128xbf16>
    %c38 = arith.constant 38 : index
    %c0_33 = arith.constant 0 : index
    %36 = vector.load %arg11[%c38, %c0_33] : memref<342x128xbf16, #tpu.memory_space<vmem>>, vector<288x128xbf16>
    %37 = tpu.concatenate %34, %35, %36 in 1 : vector<288x128xbf16>, vector<288x128xbf16>, vector<288x128xbf16> -> vector<288x384xbf16>
    %c2_34 = arith.constant 2 : index
    %c0_35 = arith.constant 0 : index
    %c0_36 = arith.constant 0 : index
    %38 = vector.load %arg2[%c2_34, %c0_35, %c0_36] : memref<3x384x128xbf16, #tpu.memory_space<vmem>>, vector<1x384x128xbf16>
    %39 = vector.shape_cast %38 : vector<1x384x128xbf16> to vector<384x128xbf16>
    %cst_37 = arith.constant dense<0.000000e+00> : vector<288x128xf32>
    %40 = tpu.matmul %37, %39, %cst_37 {dimension_numbers = #tpu.dot_dimension_numbers<[1], [0], [0], [1], [0, 0, 1, 1], [], []>} : vector<288x384xbf16>, vector<384x128xbf16>, vector<288x128xf32> -> vector<288x128xf32>
    %c0_38 = arith.constant 0 : index
    %c0_39 = arith.constant 0 : index
    %41 = vector.load %arg10[%c0_38, %c0_39] : memref<288x128xf32, #tpu.memory_space<vmem>>, vector<288x128xf32>
    %42 = arith.addf %41, %40 : vector<288x128xf32>
    %c0_40 = arith.constant 0 : index
    %c0_41 = arith.constant 0 : index
    %43 = vector.load %arg10[%c0_40, %c0_41] : memref<288x128xf32, #tpu.memory_space<vmem>>, vector<288x128xf32>
    tpu.vector_store %arg10[%c0_40, %c0_41], %42 {strides = array<i32>} : memref<288x128xf32, #tpu.memory_space<vmem>>, vector<288x128xf32>,
    %c0_42 = arith.constant 0 : index
    %c0_43 = arith.constant 0 : index
    %44 = vector.load %arg10[%c0_42, %c0_43] : memref<288x128xf32, #tpu.memory_space<vmem>>, vector<288x128xf32>
    %c0_44 = arith.constant 0 : index
    %c0_45 = arith.constant 0 : index
    %45 = vector.load %arg3[%c0_44, %c0_45] : memref<288x1xf32, #tpu.memory_space<vmem>>, vector<288x1xf32>
    %46 = vector.broadcast %45 : vector<288x1xf32> to vector<288x128xf32>
    %47 = arith.mulf %44, %46 : vector<288x128xf32>
    %cst_46 = arith.constant dense<0.000000e+00> : vector<128xf32>
    %48 = vector.multi_reduction <add>, %47, %cst_46 [0] : vector<288x128xf32> to vector<128xf32>
    %49 = vector.shape_cast %48 : vector<128xf32> to vector<1x128xf32>
    %c0_47 = arith.constant 0 : index
    %c0_48 = arith.constant 0 : index
    %c0_49 = arith.constant 0 : index
    %50 = vector.load %arg8[%c0_47, %c0_48, %c0_49] : memref<1x1x128xf32, #tpu.memory_space<vmem>>, vector<1x1x128xf32>
    %51 = vector.shape_cast %50 : vector<1x1x128xf32> to vector<1x128xf32>
    %52 = vector.shape_cast %49 : vector<1x128xf32> to vector<1x1x128xf32>
    tpu.vector_store %arg8[%c0_47, %c0_48, %c0_49], %52 {strides = array<i32>} : memref<1x1x128xf32, #tpu.memory_space<vmem>>, vector<1x1x128xf32>,
    %53 = arith.mulf %47, %44 : vector<288x128xf32>
    %cst_50 = arith.constant dense<0.000000e+00> : vector<128xf32>
    %54 = vector.multi_reduction <add>, %53, %cst_50 [0] : vector<288x128xf32> to vector<128xf32>
    %55 = vector.shape_cast %54 : vector<128xf32> to vector<1x128xf32>
    %c0_51 = arith.constant 0 : index
    %c0_52 = arith.constant 0 : index
    %c0_53 = arith.constant 0 : index
    %56 = vector.load %arg9[%c0_51, %c0_52, %c0_53] : memref<1x1x128xf32, #tpu.memory_space<vmem>>, vector<1x1x128xf32>
    %57 = vector.shape_cast %56 : vector<1x1x128xf32> to vector<1x128xf32>
    %58 = vector.shape_cast %55 : vector<1x128xf32> to vector<1x1x128xf32>
    tpu.vector_store %arg9[%c0_51, %c0_52, %c0_53], %58 {strides = array<i32>} : memref<1x1x128xf32, #tpu.memory_space<vmem>>, vector<1x1x128xf32>,
    %59 = arith.truncf %47 : vector<288x128xf32> to vector<288x128xbf16>
    %cst_54 = arith.constant 0.000000e+00 : bf16
    %60 = vector.broadcast %cst_54 : bf16 to vector<19x128xbf16>
    %c0_55 = arith.constant 0 : index
    %c0_56 = arith.constant 0 : index
    %c0_57 = arith.constant 0 : index
    %61 = vector.load %arg7[%c0_55, %c0_56, %c0_57] : memref<1x342x128xbf16, #tpu.memory_space<vmem>>, vector<1x19x128xbf16>
    %62 = vector.shape_cast %61 : vector<1x19x128xbf16> to vector<19x128xbf16>
    %63 = vector.shape_cast %60 : vector<19x128xbf16> to vector<1x19x128xbf16>
    tpu.vector_store %arg7[%c0_55, %c0_56, %c0_57], %63 {strides = array<i32>} : memref<1x342x128xbf16, #tpu.memory_space<vmem>>, vector<1x19x128xbf16>,
    %c0_58 = arith.constant 0 : index
    %c19_59 = arith.constant 19 : index
    %c0_60 = arith.constant 0 : index
    %64 = vector.load %arg7[%c0_58, %c19_59, %c0_60] : memref<1x342x128xbf16, #tpu.memory_space<vmem>>, vector<1x288x128xbf16>
    %65 = vector.shape_cast %64 : vector<1x288x128xbf16> to vector<288x128xbf16>
    %66 = vector.shape_cast %59 : vector<288x128xbf16> to vector<1x288x128xbf16>
    tpu.vector_store %arg7[%c0_58, %c19_59, %c0_60], %66 {strides = array<i32>} : memref<1x342x128xbf16, #tpu.memory_space<vmem>>, vector<1x288x128xbf16>,
    %cst_61 = arith.constant 0.000000e+00 : bf16
    %67 = vector.broadcast %cst_61 : bf16 to vector<35x128xbf16>
    %c0_62 = arith.constant 0 : index
    %c307 = arith.constant 307 : index
    %c0_63 = arith.constant 0 : index
    %68 = vector.load %arg7[%c0_62, %c307, %c0_63] : memref<1x342x128xbf16, #tpu.memory_space<vmem>>, vector<1x35x128xbf16>
    %69 = vector.shape_cast %68 : vector<1x35x128xbf16> to vector<35x128xbf16>
    %70 = vector.shape_cast %67 : vector<35x128xbf16> to vector<1x35x128xbf16>
    tpu.vector_store %arg7[%c0_62, %c307, %c0_63], %70 {strides = array<i32>} : memref<1x342x128xbf16, #tpu.memory_space<vmem>>, vector<1x35x128xbf16>,
    return
  }
  func.func @transform_0(%arg0: i32) -> (i32, i32, i32) {
    %c0_i32 = arith.constant 0 : i32
    %c0_i32_0 = arith.constant 0 : i32
    %c0_i32_1 = arith.constant 0 : i32
    return %arg0, %c0_i32, %c0_i32_0 : i32, i32, i32
  }
  func.func @transform_1(%arg0: i32) -> (i32, i32, i32) {
    %c0_i32 = arith.constant 0 : i32
    %c0_i32_0 = arith.constant 0 : i32
    %c0_i32_1 = arith.constant 0 : i32
    %c0_i32_2 = arith.constant 0 : i32
    return %c0_i32, %c0_i32_0, %c0_i32_1 : i32, i32, i32
  }
  func.func @transform_2(%arg0: i32) -> (i32, i32) {
    %c0_i32 = arith.constant 0 : i32
    %c0_i32_0 = arith.constant 0 : i32
    %c0_i32_1 = arith.constant 0 : i32
    return %c0_i32, %c0_i32_0 : i32, i32
  }
  func.func @transform_3(%arg0: i32) -> (i32, i32) {
    %c0_i32 = arith.constant 0 : i32
    %c0_i32_0 = arith.constant 0 : i32
    %c0_i32_1 = arith.constant 0 : i32
    return %c0_i32, %c0_i32_0 : i32, i32
  }
  func.func @transform_4(%arg0: i32) -> (i32, i32) {
    %c0_i32 = arith.constant 0 : i32
    %c0_i32_0 = arith.constant 0 : i32
    %c0_i32_1 = arith.constant 0 : i32
    return %c0_i32, %c0_i32_0 : i32, i32
  }
  func.func @transform_5(%arg0: i32) -> (i32, i32) {
    %c0_i32 = arith.constant 0 : i32
    %c0_i32_0 = arith.constant 0 : i32
    %c0_i32_1 = arith.constant 0 : i32
    return %c0_i32, %c0_i32_0 : i32, i32
  }
  func.func @transform_6(%arg0: i32) -> (i32, i32, i32) {
    %c0_i32 = arith.constant 0 : i32
    %c0_i32_0 = arith.constant 0 : i32
    %c0_i32_1 = arith.constant 0 : i32
    return %arg0, %c0_i32, %c0_i32_0 : i32, i32, i32
  }
  func.func @transform_7(%arg0: i32) -> (i32, i32, i32) {
    %c0_i32 = arith.constant 0 : i32
    %c0_i32_0 = arith.constant 0 : i32
    %c0_i32_1 = arith.constant 0 : i32
    return %arg0, %c0_i32, %c0_i32_0 : i32, i32, i32
  }
  func.func @transform_8(%arg0: i32) -> (i32, i32, i32) {
    %c0_i32 = arith.constant 0 : i32
    %c0_i32_0 = arith.constant 0 : i32
    %c0_i32_1 = arith.constant 0 : i32
    return %arg0, %c0_i32, %c0_i32_0 : i32, i32, i32
  }
}

module attributes {stable_mosaic.version = 11 : i64} {
  func.func @kernel(%arg0: i32, %arg1: memref<1x342x128xbf16, #tpu.memory_space<vmem>>, %arg2: memref<1x342x128xbf16, #tpu.memory_space<vmem>>, %arg3: memref<1x128xf32, #tpu.memory_space<vmem>>, %arg4: memref<1x128xf32, #tpu.memory_space<vmem>>, %arg5: memref<1x288x128xf32, #tpu.memory_space<vmem>>) attributes {dimension_semantics = [#tpu.dimension_semantics<parallel>], iteration_bounds = array<i64: 2>, scalar_prefetch = 0 : i64, scratch_operands = 0 : i64, tpu.core_type = #tpu.core_type<tc>, window_params = [{transform_indices = @transform_0, window_bounds = array<i64: 1, 342, 128>}, {transform_indices = @transform_1, window_bounds = array<i64: 1, 342, 128>}, {pipeline_mode = #tpu.pipeline_mode<synchronous>, transform_indices = @transform_2, window_bounds = array<i64: 1, 128>}, {pipeline_mode = #tpu.pipeline_mode<synchronous>, transform_indices = @transform_3, window_bounds = array<i64: 1, 128>}, {transform_indices = @transform_4, window_bounds = array<i64: 1, 288, 128>}]} {
    %c0 = arith.constant 0 : index
    %c19 = arith.constant 19 : index
    %c0_0 = arith.constant 0 : index
    %0 = vector.load %arg1[%c0, %c19, %c0_0] : memref<1x342x128xbf16, #tpu.memory_space<vmem>>, vector<1x288x128xbf16>
    %1 = vector.shape_cast %0 : vector<1x288x128xbf16> to vector<288x128xbf16>
    %2 = arith.extf %1 : vector<288x128xbf16> to vector<288x128xf32>
    %c0_1 = arith.constant 0 : index
    %c19_2 = arith.constant 19 : index
    %c0_3 = arith.constant 0 : index
    %3 = vector.load %arg2[%c0_1, %c19_2, %c0_3] : memref<1x342x128xbf16, #tpu.memory_space<vmem>>, vector<1x288x128xbf16>
    %4 = vector.shape_cast %3 : vector<1x288x128xbf16> to vector<288x128xbf16>
    %5 = arith.extf %4 : vector<288x128xbf16> to vector<288x128xf32>
    %c0_4 = arith.constant 0 : index
    %c0_5 = arith.constant 0 : index
    %6 = vector.load %arg3[%c0_4, %c0_5] : memref<1x128xf32, #tpu.memory_space<vmem>>, vector<1x128xf32>
    %7 = vector.broadcast %6 : vector<1x128xf32> to vector<288x128xf32>
    %8 = arith.mulf %2, %7 : vector<288x128xf32>
    %c0_6 = arith.constant 0 : index
    %c0_7 = arith.constant 0 : index
    %9 = vector.load %arg4[%c0_6, %c0_7] : memref<1x128xf32, #tpu.memory_space<vmem>>, vector<1x128xf32>
    %10 = vector.broadcast %9 : vector<1x128xf32> to vector<288x128xf32>
    %11 = arith.addf %8, %10 : vector<288x128xf32>
    %12 = arith.addf %11, %5 : vector<288x128xf32>
    %cst = arith.constant 0.000000e+00 : f32
    %13 = vector.broadcast %cst : f32 to vector<288x128xf32>
    %14 = arith.maximumf %12, %13 : vector<288x128xf32>
    %c0_8 = arith.constant 0 : index
    %c0_9 = arith.constant 0 : index
    %c0_10 = arith.constant 0 : index
    %15 = vector.load %arg5[%c0_8, %c0_9, %c0_10] : memref<1x288x128xf32, #tpu.memory_space<vmem>>, vector<1x288x128xf32>
    %16 = vector.shape_cast %15 : vector<1x288x128xf32> to vector<288x128xf32>
    %17 = vector.shape_cast %14 : vector<288x128xf32> to vector<1x288x128xf32>
    tpu.vector_store %arg5[%c0_8, %c0_9, %c0_10], %17 {strides = array<i32>} : memref<1x288x128xf32, #tpu.memory_space<vmem>>, vector<1x288x128xf32>,
    return
  }
  func.func @transform_0(%arg0: i32) -> (i32, i32, i32) {
    %c0_i32 = arith.constant 0 : i32
    %c0_i32_0 = arith.constant 0 : i32
    %c0_i32_1 = arith.constant 0 : i32
    return %arg0, %c0_i32, %c0_i32_0 : i32, i32, i32
  }
  func.func @transform_1(%arg0: i32) -> (i32, i32, i32) {
    %c0_i32 = arith.constant 0 : i32
    %c0_i32_0 = arith.constant 0 : i32
    %c0_i32_1 = arith.constant 0 : i32
    return %arg0, %c0_i32, %c0_i32_0 : i32, i32, i32
  }
  func.func @transform_2(%arg0: i32) -> (i32, i32) {
    %c0_i32 = arith.constant 0 : i32
    %c0_i32_0 = arith.constant 0 : i32
    %c0_i32_1 = arith.constant 0 : i32
    return %c0_i32, %c0_i32_0 : i32, i32
  }
  func.func @transform_3(%arg0: i32) -> (i32, i32) {
    %c0_i32 = arith.constant 0 : i32
    %c0_i32_0 = arith.constant 0 : i32
    %c0_i32_1 = arith.constant 0 : i32
    return %c0_i32, %c0_i32_0 : i32, i32
  }
  func.func @transform_4(%arg0: i32) -> (i32, i32, i32) {
    %c0_i32 = arith.constant 0 : i32
    %c0_i32_0 = arith.constant 0 : i32
    %c0_i32_1 = arith.constant 0 : i32
    return %arg0, %c0_i32, %c0_i32_0 : i32, i32, i32
  }
}

</mosaic_0001>

<llo_original>
// kernel: basic_block_forward.5
$region0: #{basic_block_forward.5}
  #allocation0 [shape = 'u32[]', space=smem, size = 0x4, offset = 0x4, fixed_abs, tag = 'smem constant byte address 0x4 - core index']
  #allocation1 [shape = 'u32[144,128]{1,0:T(1,128)}', space=vmem, size = 0x12000, scoped, tag = 'internal scratch']
  %s0 = inlined_call_operand.vmem [shape: bf16[2,342,128], index: 0, kind: input, shape index: {}]
  %s1 = inlined_call_operand.vmem [shape: bf16[2,342,128], index: 1, kind: input, shape index: {}]
  %s2 = inlined_call_operand.vmem [shape: f32[1,128], index: 2, kind: input, shape index: {}]
  %s3 = inlined_call_operand.vmem [shape: f32[1,128], index: 3, kind: input, shape index: {}]
  %s4 = inlined_call_operand.vmem [shape: f32[2,288,128], index: 4, kind: output, shape index: {}]
  %s5 = sld [smem:[#allocation0]]
  $region49: #{basic_block_forward.5} parent=0
    _
  %s7 = ssub.s32 1, %s5
  %s8 = scalar_select 0, %s7, %s5
  loop: start=0, step=1, limit=4
  $region2: #{basic_block_forward.5} parent=0 // loop_pre_header
    _
  $region3: #{basic_block_forward.5} parent=0 // loop_header
    %s10 = sphi 0, %s14
    %p11 = scmp.ge.s32.totalorder %s10, 4
    %s20 = sphi 0, %s22
    %s23 = sphi 0, %s20
    %s24 = sphi 0, %s23
    %s40 = sphi 0, %s24
    %s46 = sphi 0, %s48
    %s49 = sphi 0, %s46
    %s50 = sphi 0, %s49
    %s66 = sphi 0, %s50
    %s70 = sphi 0, %s70
    %s72 = sphi 0, %s70
    %s73 = sphi 0, %s72
    %s87 = sphi 0, %s73
    %s91 = sphi 0, %s91
    %s93 = sphi 0, %s91
    %s94 = sphi 0, %s93
    %s108 = sphi 0, %s94
    %s114 = sphi 0, %s116
    %s117 = sphi 0, %s114
    %s118 = sphi 0, %s117
    %s134 = sphi 0, %s118
  $region4: #{basic_block_forward.5} parent=0 // loop_header_branch
    %13 = sbr.rel (%p11) target = $region8
  $region5: #{basic_block_forward.5} parent=0 // loop_body
    %s15 = ssub.s32 %s10, 1
    %s16 = ssub.s32 %s10, 2
    %s17 = sadd.s32 %s10, 1
    %s18 = ssub.s32 %s10, %s17
    %p19 = scmp.eq.s32.totalorder %s18, 0
    %s21 = sadd.s32 %s20, 1
    %s22 = scalar_select %p19, %s20, %s21
    %p25 = pneg %p19
    %p26 = scmp.eq.s32.totalorder %s10, 1
    %p27 = por %p25, %p26
    %p28 = scmp.ne.s32.totalorder %s20, %s23
    %p29 = scmp.eq.s32.totalorder %s10, 0
    %p30 = por %p28, %p29
    %p31 = scmp.ne.s32.totalorder %s20, %s23
    %p32 = scmp.eq.s32.totalorder %s15, 1
    %p33 = por %p31, %p32
    %p34 = scmp.ne.s32.totalorder %s23, %s24
    %p35 = scmp.eq.s32.totalorder %s15, 0
    %p36 = por %p34, %p35
    %p37 = scmp.ne.s32.totalorder %s23, %s24
    %p38 = scmp.eq.s32.totalorder %s16, 1
    %p39 = por %p37, %p38
    %p41 = scmp.ne.s32.totalorder %s24, %s40
    %p42 = scmp.eq.s32.totalorder %s16, 0
    %p43 = por %p41, %p42
    %s44 = ssub.s32 %s10, %s17
    %p45 = scmp.eq.s32.totalorder %s44, 0
    %s47 = sadd.s32 %s46, 1
    %s48 = scalar_select %p45, %s46, %s47
    %p51 = pneg %p45
    %p52 = scmp.eq.s32.totalorder %s10, 1
    %p53 = por %p51, %p52
    %p54 = scmp.ne.s32.totalorder %s46, %s49
    %p55 = scmp.eq.s32.totalorder %s10, 0
    %p56 = por %p54, %p55
    %p57 = scmp.ne.s32.totalorder %s46, %s49
    %p58 = scmp.eq.s32.totalorder %s15, 1
    %p59 = por %p57, %p58
    %p60 = scmp.ne.s32.totalorder %s49, %s50
    %p61 = scmp.eq.s32.totalorder %s15, 0
    %p62 = por %p60, %p61
    %p63 = scmp.ne.s32.totalorder %s49, %s50
    %p64 = scmp.eq.s32.totalorder %s16, 1
    %p65 = por %p63, %p64
    %p67 = scmp.ne.s32.totalorder %s50, %s66
    %p68 = scmp.eq.s32.totalorder %s16, 0
    %p69 = por %p67, %p68
    %s71 = sadd.s32 %s70, 1
    %p74 = scmp.eq.s32.totalorder %s10, 1
    %p75 = scmp.ne.s32.totalorder %s70, %s72
    %p76 = scmp.eq.s32.totalorder %s10, 0
    %p77 = por %p75, %p76
    %p78 = scmp.ne.s32.totalorder %s70, %s72
    %p79 = scmp.eq.s32.totalorder %s15, 1
    %p80 = por %p78, %p79
    %p81 = scmp.ne.s32.totalorder %s72, %s73
    %p82 = scmp.eq.s32.totalorder %s15, 0
    %p83 = por %p81, %p82
    %p84 = scmp.ne.s32.totalorder %s72, %s73
    %p85 = scmp.eq.s32.totalorder %s16, 1
    %p86 = por %p84, %p85
    %p88 = scmp.ne.s32.totalorder %s73, %s87
    %p89 = scmp.eq.s32.totalorder %s16, 0
    %p90 = por %p88, %p89
    %s92 = sadd.s32 %s91, 1
    %p95 = scmp.eq.s32.totalorder %s10, 1
    %p96 = scmp.ne.s32.totalorder %s91, %s93
    %p97 = scmp.eq.s32.totalorder %s10, 0
    %p98 = por %p96, %p97
    %p99 = scmp.ne.s32.totalorder %s91, %s93
    %p100 = scmp.eq.s32.totalorder %s15, 1
    %p101 = por %p99, %p100
    %p102 = scmp.ne.s32.totalorder %s93, %s94
    %p103 = scmp.eq.s32.totalorder %s15, 0
    %p104 = por %p102, %p103
    %p105 = scmp.ne.s32.totalorder %s93, %s94
    %p106 = scmp.eq.s32.totalorder %s16, 1
    %p107 = por %p105, %p106
    %p109 = scmp.ne.s32.totalorder %s94, %s108
    %p110 = scmp.eq.s32.totalorder %s16, 0
    %p111 = por %p109, %p110
    %s112 = ssub.s32 %s10, %s17
    %p113 = scmp.eq.s32.totalorder %s112, 0
    %s115 = sadd.s32 %s114, 1
    %s116 = scalar_select %p113, %s114, %s115
    %p119 = pneg %p113
    %p120 = scmp.eq.s32.totalorder %s10, 1
    %p121 = por %p119, %p120
    %p122 = scmp.ne.s32.totalorder %s114, %s117
    %p123 = scmp.eq.s32.totalorder %s10, 0
    %p124 = por %p122, %p123
    %p125 = scmp.ne.s32.totalorder %s114, %s117
    %p126 = scmp.eq.s32.totalorder %s15, 1
    %p127 = por %p125, %p126
    %p128 = scmp.ne.s32.totalorder %s117, %s118
    %p129 = scmp.eq.s32.totalorder %s15, 0
    %p130 = por %p128, %p129
    %p131 = scmp.ne.s32.totalorder %s117, %s118
    %p132 = scmp.eq.s32.totalorder %s16, 1
    %p133 = por %p131, %p132
    %p135 = scmp.ne.s32.totalorder %s118, %s134
    %p136 = scmp.eq.s32.totalorder %s16, 0
    %p137 = por %p135, %p136
    %p138 = scmp.le.s32.totalorder 1, %s10
    %p139 = scmp.lt.s32.totalorder %s10, 3
    %p140 = pnand %p138, %p139
    %p141 = pneg %p140
    // Predicated region
    $region9: #{basic_block_forward.5} parent=5 // pred_check
      _
    $region10: #{basic_block_forward.5} parent=5 // pred_check_branch
      %143 = sbr.rel (%p140) target = $region12
    $region11: #{basic_block_forward.5} parent=5 // pred_region
      %s144 = ssub.s32 %s10, 1
      // Predicated region
      $region13: #{basic_block_forward.5} parent=11 // pred_check
        %p145 = pneg %p83
      $region14: #{basic_block_forward.5} parent=11 // pred_check_branch
        %147 = sbr.rel (%p145) target = $region16
      $region15: #{basic_block_forward.5} parent=11 // pred_region
        _
      $region16: #{basic_block_forward.5} parent=11 // pred_fallthru
        _
      // Predicated region
      $region17: #{basic_block_forward.5} parent=11 // pred_check
        %p148 = pneg %p104
      $region18: #{basic_block_forward.5} parent=11 // pred_check_branch
        %150 = sbr.rel (%p148) target = $region20
      $region19: #{basic_block_forward.5} parent=11 // pred_region
        _
      $region20: #{basic_block_forward.5} parent=11 // pred_fallthru
        _
    $region12: #{basic_block_forward.5} parent=5 // pred_fallthru
      _
    %p151 = scmp.lt.s32.totalorder %s10, 2
    // Predicated region
    $region21: #{basic_block_forward.5} parent=5 // pred_check
      %p152 = pneg %p151
    $region22: #{basic_block_forward.5} parent=5 // pred_check_branch
      %154 = sbr.rel (%p152) target = $region24
    $region23: #{basic_block_forward.5} parent=5 // pred_region
      // Predicated region
      $region25: #{basic_block_forward.5} parent=23 // pred_check
        %p155 = pneg %p30
      $region26: #{basic_block_forward.5} parent=23 // pred_check_branch
        %157 = sbr.rel (%p155) target = $region28
      $region27: #{basic_block_forward.5} parent=23 // pred_region
        %p158 = scmp.lt.s32.totalorder %s10, 1
        %s159 = scalar_select %p158, %s10, 1
        %s160 = smul.addr %s159, 43
        %s161 = smul.addr %s160, 4
        %s162 = scalar_lea.vmem %s0, %s161
      $region28: #{basic_block_forward.5} parent=23 // pred_fallthru
        _
      // Predicated region
      $region29: #{basic_block_forward.5} parent=23 // pred_check
        %p163 = pneg %p56
      $region30: #{basic_block_forward.5} parent=23 // pred_check_branch
        %165 = sbr.rel (%p163) target = $region32
      $region31: #{basic_block_forward.5} parent=23 // pred_region
        %p166 = scmp.lt.s32.totalorder %s10, 1
        %s167 = scalar_select %p166, %s10, 1
        %s168 = smul.addr %s167, 43
        %s169 = smul.addr %s168, 4
        %s170 = scalar_lea.vmem %s1, %s169
      $region32: #{basic_block_forward.5} parent=23 // pred_fallthru
        _
    $region24: #{basic_block_forward.5} parent=5 // pred_fallthru
      _
    %p171 = scmp.le.s32.totalorder 1, %s10
    %p172 = scmp.lt.s32.totalorder %s10, 3
    %p173 = pnand %p171, %p172
    %p174 = pneg %p173
    // Predicated region
    $region33: #{basic_block_forward.5} parent=5 // pred_check
      _
    $region34: #{basic_block_forward.5} parent=5 // pred_check_branch
      %176 = sbr.rel (%p173) target = $region36
    $region35: #{basic_block_forward.5} parent=5 // pred_region
      %s177 = ssub.s32 %s10, 1
      %p178 = scmp.lt.s32.totalorder %s15, 1
      %s179 = scalar_select %p178, %s15, 1
      %s180 = smul.addr %s179, 43
      %s181 = smul.addr %s180, 4
      %s182 = scalar_lea.vmem %s0, %s181
      %p183 = pneg %p36
      %p184 = pneg %p33
      %p185 = scmp.lt.s32.totalorder %s15, 1
      %s186 = scalar_select %p185, %s15, 1
      %s187 = smul.addr %s186, 43
      %s188 = smul.addr %s187, 4
      %s189 = scalar_lea.vmem %s1, %s188
      %p190 = pneg %p62
      %p191 = pneg %p59
      %p192 = pneg %p83
      %p193 = pneg %p80
      %p194 = pneg %p104
      %p195 = pneg %p101
      %p196 = pneg %p130
      %p197 = pneg %p127
      %p198 = scmp.lt.s32.totalorder %s15, 1
      %s199 = scalar_select %p198, %s15, 1
      %s200 = smul.addr %s199, 36
      %s201 = smul.addr %s200, 8
      %s202 = scalar_lea.vmem %s4, %s201
      %p203 = scmp.lt.s32.totalorder %s15, 1
      %s204 = scalar_select %p203, %s15, 1
      %s205 = smul.addr %s204, 43
      %s206 = smul.addr %s205, 4
      %s207 = scalar_lea.vmem %s0, %s206
      %p208 = scmp.lt.s32.totalorder %s15, 1
      %s209 = scalar_select %p208, %s15, 1
      %s210 = smul.addr %s209, 43
      %s211 = smul.addr %s210, 4
      %s212 = scalar_lea.vmem %s1, %s211
      %p213 = scmp.lt.s32.totalorder %s15, 1
      %s214 = scalar_select %p213, %s15, 1
      %s215 = smul.addr %s214, 36
      %s216 = smul.addr %s215, 8
      %s217 = scalar_lea.vmem %s4, %s216
      %v218 = vld [vmem:[%s207 + $0x8] sm:$0xe]
      %v219 = vld [vmem:[%s207 + $0xc] sm:$0xf]
      %v220 = vld [vmem:[%s207 + $0x10] sm:$0xf]
      %v221 = vld [vmem:[%s207 + $0x14] sm:$0xf]
      %v222 = vld [vmem:[%s207 + $0x18] sm:$0xf]
      %v223 = vld [vmem:[%s207 + $0x1c] sm:$0xf]
      %v224 = vld [vmem:[%s207 + $0x20] sm:$0xf]
      %v225 = vld [vmem:[%s207 + $0x24] sm:$0xf]
      %v226 = vld [vmem:[%s207 + $0x28] sm:$0xf]
      %v227 = vld [vmem:[%s207 + $0x2c] sm:$0xf]
      %v228 = vld [vmem:[%s207 + $0x30] sm:$0xf]
      %v229 = vld [vmem:[%s207 + $0x34] sm:$0xf]
      %v230 = vld [vmem:[%s207 + $0x38] sm:$0xf]
      %v231 = vld [vmem:[%s207 + $0x3c] sm:$0xf]
      %v232 = vld [vmem:[%s207 + $0x40] sm:$0xf]
      %v233 = vld [vmem:[%s207 + $0x44] sm:$0xf]
      %v234 = vld [vmem:[%s207 + $0x48] sm:$0xf]
      %v235 = vld [vmem:[%s207 + $0x4c] sm:$0xf]
      %v236 = vld [vmem:[%s207 + $0x50] sm:$0xf]
      %v237 = vld [vmem:[%s207 + $0x54] sm:$0xf]
      %v238 = vld [vmem:[%s207 + $0x58] sm:$0xf]
      %v239 = vld [vmem:[%s207 + $0x5c] sm:$0xf]
      %v240 = vld [vmem:[%s207 + $0x60] sm:$0xf]
      %v241 = vld [vmem:[%s207 + $0x64] sm:$0xf]
      %v242 = vld [vmem:[%s207 + $0x68] sm:$0xf]
      %v243 = vld [vmem:[%s207 + $0x6c] sm:$0xf]
      %v244 = vld [vmem:[%s207 + $0x70] sm:$0xf]
      %v245 = vld [vmem:[%s207 + $0x74] sm:$0xf]
      %v246 = vld [vmem:[%s207 + $0x78] sm:$0xf]
      %v247 = vld [vmem:[%s207 + $0x7c] sm:$0xf]
      %v248 = vld [vmem:[%s207 + $0x80] sm:$0xf]
      %v249 = vld [vmem:[%s207 + $0x84] sm:$0xf]
      %v250 = vld [vmem:[%s207 + $0x88] sm:$0xf]
      %v251 = vld [vmem:[%s207 + $0x8c] sm:$0xf]
      %v252 = vld [vmem:[%s207 + $0x90] sm:$0xf]
      %v253 = vld [vmem:[%s207 + $0x94] sm:$0xf]
      %v254 = vld [vmem:[%s207 + $0x98] sm:$0x3]
      %v255 = vunpack.c.l.bf16 %v218
      %v256 = vunpack.c.l.bf16 %v219
      %v257 = vunpack.c.l.bf16 %v220
      %v258 = vunpack.c.l.bf16 %v221
      %v259 = vunpack.c.l.bf16 %v222
      %v260 = vunpack.c.l.bf16 %v223
      %v261 = vunpack.c.l.bf16 %v224
      %v262 = vunpack.c.l.bf16 %v225
      %v263 = vunpack.c.l.bf16 %v226
      %v264 = vunpack.c.l.bf16 %v227
      %v265 = vunpack.c.l.bf16 %v228
      %v266 = vunpack.c.l.bf16 %v229
      %v267 = vunpack.c.l.bf16 %v230
      %v268 = vunpack.c.l.bf16 %v231
      %v269 = vunpack.c.l.bf16 %v232
      %v270 = vunpack.c.l.bf16 %v233
      %v271 = vunpack.c.l.bf16 %v234
      %v272 = vunpack.c.l.bf16 %v235
      %v273 = vunpack.c.l.bf16 %v236
      %v274 = vunpack.c.l.bf16 %v237
      %v275 = vunpack.c.l.bf16 %v238
      %v276 = vunpack.c.l.bf16 %v239
      %v277 = vunpack.c.l.bf16 %v240
      %v278 = vunpack.c.l.bf16 %v241
      %v279 = vunpack.c.l.bf16 %v242
      %v280 = vunpack.c.l.bf16 %v243
      %v281 = vunpack.c.l.bf16 %v244
      %v282 = vunpack.c.l.bf16 %v245
      %v283 = vunpack.c.l.bf16 %v246
      %v284 = vunpack.c.l.bf16 %v247
      %v285 = vunpack.c.l.bf16 %v248
      %v286 = vunpack.c.l.bf16 %v249
      %v287 = vunpack.c.l.bf16 %v250
      %v288 = vunpack.c.l.bf16 %v251
      %v289 = vunpack.c.l.bf16 %v252
      %v290 = vunpack.c.l.bf16 %v253
      %v291 = vunpack.c.l.bf16 %v254
      %v292 = vld [vmem:[%s212 + $0x8] sm:$0xe]
      %v293 = vld [vmem:[%s212 + $0xc] sm:$0xf]
      %v294 = vld [vmem:[%s212 + $0x10] sm:$0xf]
      %v295 = vld [vmem:[%s212 + $0x14] sm:$0xf]
      %v296 = vld [vmem:[%s212 + $0x18] sm:$0xf]
      %v297 = vld [vmem:[%s212 + $0x1c] sm:$0xf]
      %v298 = vld [vmem:[%s212 + $0x20] sm:$0xf]
      %v299 = vld [vmem:[%s212 + $0x24] sm:$0xf]
      %v300 = vld [vmem:[%s212 + $0x28] sm:$0xf]
      %v301 = vld [vmem:[%s212 + $0x2c] sm:$0xf]
      %v302 = vld [vmem:[%s212 + $0x30] sm:$0xf]
      %v303 = vld [vmem:[%s212 + $0x34] sm:$0xf]
      %v304 = vld [vmem:[%s212 + $0x38] sm:$0xf]
      %v305 = vld [vmem:[%s212 + $0x3c] sm:$0xf]
      %v306 = vld [vmem:[%s212 + $0x40] sm:$0xf]
      %v307 = vld [vmem:[%s212 + $0x44] sm:$0xf]
      %v308 = vld [vmem:[%s212 + $0x48] sm:$0xf]
      %v309 = vld [vmem:[%s212 + $0x4c] sm:$0xf]
      %v310 = vld [vmem:[%s212 + $0x50] sm:$0xf]
      %v311 = vld [vmem:[%s212 + $0x54] sm:$0xf]
      %v312 = vld [vmem:[%s212 + $0x58] sm:$0xf]
      %v313 = vld [vmem:[%s212 + $0x5c] sm:$0xf]
      %v314 = vld [vmem:[%s212 + $0x60] sm:$0xf]
      %v315 = vld [vmem:[%s212 + $0x64] sm:$0xf]
      %v316 = vld [vmem:[%s212 + $0x68] sm:$0xf]
      %v317 = vld [vmem:[%s212 + $0x6c] sm:$0xf]
      %v318 = vld [vmem:[%s212 + $0x70] sm:$0xf]
      %v319 = vld [vmem:[%s212 + $0x74] sm:$0xf]
      %v320 = vld [vmem:[%s212 + $0x78] sm:$0xf]
      %v321 = vld [vmem:[%s212 + $0x7c] sm:$0xf]
      %v322 = vld [vmem:[%s212 + $0x80] sm:$0xf]
      %v323 = vld [vmem:[%s212 + $0x84] sm:$0xf]
      %v324 = vld [vmem:[%s212 + $0x88] sm:$0xf]
      %v325 = vld [vmem:[%s212 + $0x8c] sm:$0xf]
      %v326 = vld [vmem:[%s212 + $0x90] sm:$0xf]
      %v327 = vld [vmem:[%s212 + $0x94] sm:$0xf]
      %v328 = vld [vmem:[%s212 + $0x98] sm:$0x3]
      %v329 = vunpack.c.l.bf16 %v292
      %v330 = vunpack.c.l.bf16 %v293
      %v331 = vunpack.c.l.bf16 %v294
      %v332 = vunpack.c.l.bf16 %v295
      %v333 = vunpack.c.l.bf16 %v296
      %v334 = vunpack.c.l.bf16 %v297
      %v335 = vunpack.c.l.bf16 %v298
      %v336 = vunpack.c.l.bf16 %v299
      %v337 = vunpack.c.l.bf16 %v300
      %v338 = vunpack.c.l.bf16 %v301
      %v339 = vunpack.c.l.bf16 %v302
      %v340 = vunpack.c.l.bf16 %v303
      %v341 = vunpack.c.l.bf16 %v304
      %v342 = vunpack.c.l.bf16 %v305
      %v343 = vunpack.c.l.bf16 %v306
      %v344 = vunpack.c.l.bf16 %v307
      %v345 = vunpack.c.l.bf16 %v308
      %v346 = vunpack.c.l.bf16 %v309
      %v347 = vunpack.c.l.bf16 %v310
      %v348 = vunpack.c.l.bf16 %v311
      %v349 = vunpack.c.l.bf16 %v312
      %v350 = vunpack.c.l.bf16 %v313
      %v351 = vunpack.c.l.bf16 %v314
      %v352 = vunpack.c.l.bf16 %v315
      %v353 = vunpack.c.l.bf16 %v316
      %v354 = vunpack.c.l.bf16 %v317
      %v355 = vunpack.c.l.bf16 %v318
      %v356 = vunpack.c.l.bf16 %v319
      %v357 = vunpack.c.l.bf16 %v320
      %v358 = vunpack.c.l.bf16 %v321
      %v359 = vunpack.c.l.bf16 %v322
      %v360 = vunpack.c.l.bf16 %v323
      %v361 = vunpack.c.l.bf16 %v324
      %v362 = vunpack.c.l.bf16 %v325
      %v363 = vunpack.c.l.bf16 %v326
      %v364 = vunpack.c.l.bf16 %v327
      %v365 = vunpack.c.l.bf16 %v328
      %v366 = vld [vmem:[%s2] sm:$0x1]
      %v368 = vlaneseq
      %v369 = vshrl.u32 %v368, 7
      %v370 = vsub.s32 0, %v369
      %v371 = vrot.slane %v366, %v370
      %v373 = vmul.f32 %v255, %v371
      %v374 = vmul.f32 %v256, %v371
      %v375 = vmul.f32 %v257, %v371
      %v376 = vmul.f32 %v258, %v371
      %v377 = vmul.f32 %v259, %v371
      %v378 = vmul.f32 %v260, %v371
      %v379 = vmul.f32 %v261, %v371
      %v380 = vmul.f32 %v262, %v371
      %v381 = vmul.f32 %v263, %v371
      %v382 = vmul.f32 %v264, %v371
      %v383 = vmul.f32 %v265, %v371
      %v384 = vmul.f32 %v266, %v371
      %v385 = vmul.f32 %v267, %v371
      %v386 = vmul.f32 %v268, %v371
      %v387 = vmul.f32 %v269, %v371
      %v388 = vmul.f32 %v270, %v371
      %v389 = vmul.f32 %v271, %v371
      %v390 = vmul.f32 %v272, %v371
      %v391 = vmul.f32 %v273, %v371
      %v392 = vmul.f32 %v274, %v371
      %v393 = vmul.f32 %v275, %v371
      %v394 = vmul.f32 %v276, %v371
      %v395 = vmul.f32 %v277, %v371
      %v396 = vmul.f32 %v278, %v371
      %v397 = vmul.f32 %v279, %v371
      %v398 = vmul.f32 %v280, %v371
      %v399 = vmul.f32 %v281, %v371
      %v400 = vmul.f32 %v282, %v371
      %v401 = vmul.f32 %v283, %v371
      %v402 = vmul.f32 %v284, %v371
      %v403 = vmul.f32 %v285, %v371
      %v404 = vmul.f32 %v286, %v371
      %v405 = vmul.f32 %v287, %v371
      %v406 = vmul.f32 %v288, %v371
      %v407 = vmul.f32 %v289, %v371
      %v408 = vmul.f32 %v290, %v371
      %v409 = vmul.f32 %v291, %v371
      %v410 = vld [vmem:[%s3] sm:$0x1]
      %v412 = vlaneseq
      %v413 = vshrl.u32 %v412, 7
      %v414 = vsub.s32 0, %v413
      %v415 = vrot.slane %v410, %v414
      %v417 = vadd.f32 %v373, %v415
      %v418 = vadd.f32 %v374, %v415
      %v419 = vadd.f32 %v375, %v415
      %v420 = vadd.f32 %v376, %v415
      %v421 = vadd.f32 %v377, %v415
      %v422 = vadd.f32 %v378, %v415
      %v423 = vadd.f32 %v379, %v415
      %v424 = vadd.f32 %v380, %v415
      %v425 = vadd.f32 %v381, %v415
      %v426 = vadd.f32 %v382, %v415
      %v427 = vadd.f32 %v383, %v415
      %v428 = vadd.f32 %v384, %v415
      %v429 = vadd.f32 %v385, %v415
      %v430 = vadd.f32 %v386, %v415
      %v431 = vadd.f32 %v387, %v415
      %v432 = vadd.f32 %v388, %v415
      %v433 = vadd.f32 %v389, %v415
      %v434 = vadd.f32 %v390, %v415
      %v435 = vadd.f32 %v391, %v415
      %v436 = vadd.f32 %v392, %v415
      %v437 = vadd.f32 %v393, %v415
      %v438 = vadd.f32 %v394, %v415
      %v439 = vadd.f32 %v395, %v415
      %v440 = vadd.f32 %v396, %v415
      %v441 = vadd.f32 %v397, %v415
      %v442 = vadd.f32 %v398, %v415
      %v443 = vadd.f32 %v399, %v415
      %v444 = vadd.f32 %v400, %v415
      %v445 = vadd.f32 %v401, %v415
      %v446 = vadd.f32 %v402, %v415
      %v447 = vadd.f32 %v403, %v415
      %v448 = vadd.f32 %v404, %v415
      %v449 = vadd.f32 %v405, %v415
      %v450 = vadd.f32 %v406, %v415
      %v451 = vadd.f32 %v407, %v415
      %v452 = vadd.f32 %v408, %v415
      %v453 = vadd.f32 %v409, %v415
      %v454 = vadd.f32 %v417, %v329
      %v455 = vadd.f32 %v418, %v330
      %v456 = vadd.f32 %v419, %v331
      %v457 = vadd.f32 %v420, %v332
      %v458 = vadd.f32 %v421, %v333
      %v459 = vadd.f32 %v422, %v334
      %v460 = vadd.f32 %v423, %v335
      %v461 = vadd.f32 %v424, %v336
      %v462 = vadd.f32 %v425, %v337
      %v463 = vadd.f32 %v426, %v338
      %v464 = vadd.f32 %v427, %v339
      %v465 = vadd.f32 %v428, %v340
      %v466 = vadd.f32 %v429, %v341
      %v467 = vadd.f32 %v430, %v342
      %v468 = vadd.f32 %v431, %v343
      %v469 = vadd.f32 %v432, %v344
      %v470 = vadd.f32 %v433, %v345
      %v471 = vadd.f32 %v434, %v346
      %v472 = vadd.f32 %v435, %v347
      %v473 = vadd.f32 %v436, %v348
      %v474 = vadd.f32 %v437, %v349
      %v475 = vadd.f32 %v438, %v350
      %v476 = vadd.f32 %v439, %v351
      %v477 = vadd.f32 %v440, %v352
      %v478 = vadd.f32 %v441, %v353
      %v479 = vadd.f32 %v442, %v354
      %v480 = vadd.f32 %v443, %v355
      %v481 = vadd.f32 %v444, %v356
      %v482 = vadd.f32 %v445, %v357
      %v483 = vadd.f32 %v446, %v358
      %v484 = vadd.f32 %v447, %v359
      %v485 = vadd.f32 %v448, %v360
      %v486 = vadd.f32 %v449, %v361
      %v487 = vadd.f32 %v450, %v362
      %v488 = vadd.f32 %v451, %v363
      %v489 = vadd.f32 %v452, %v364
      %v490 = vadd.f32 %v453, %v365
      %v491 = vmax.f32 %v454, 0.0
      %v492 = vmax.f32 %v455, 0.0
      %v493 = vmax.f32 %v456, 0.0
      %v494 = vmax.f32 %v457, 0.0
      %v495 = vmax.f32 %v458, 0.0
      %v496 = vmax.f32 %v459, 0.0
      %v497 = vmax.f32 %v460, 0.0
      %v498 = vmax.f32 %v461, 0.0
      %v499 = vmax.f32 %v462, 0.0
      %v500 = vmax.f32 %v463, 0.0
      %v501 = vmax.f32 %v464, 0.0
      %v502 = vmax.f32 %v465, 0.0
      %v503 = vmax.f32 %v466, 0.0
      %v504 = vmax.f32 %v467, 0.0
      %v505 = vmax.f32 %v468, 0.0
      %v506 = vmax.f32 %v469, 0.0
      %v507 = vmax.f32 %v470, 0.0
      %v508 = vmax.f32 %v471, 0.0
      %v509 = vmax.f32 %v472, 0.0
      %v510 = vmax.f32 %v473, 0.0
      %v511 = vmax.f32 %v474, 0.0
      %v512 = vmax.f32 %v475, 0.0
      %v513 = vmax.f32 %v476, 0.0
      %v514 = vmax.f32 %v477, 0.0
      %v515 = vmax.f32 %v478, 0.0
      %v516 = vmax.f32 %v479, 0.0
      %v517 = vmax.f32 %v480, 0.0
      %v518 = vmax.f32 %v481, 0.0
      %v519 = vmax.f32 %v482, 0.0
      %v520 = vmax.f32 %v483, 0.0
      %v521 = vmax.f32 %v484, 0.0
      %v522 = vmax.f32 %v485, 0.0
      %v523 = vmax.f32 %v486, 0.0
      %v524 = vmax.f32 %v487, 0.0
      %v525 = vmax.f32 %v488, 0.0
      %v526 = vmax.f32 %v489, 0.0
      %v527 = vmax.f32 %v490, 0.0
      %528 = vst [vmem:[%s217 - $0x3] sm:$0xf8] %v491
      %529 = vst [vmem:[%s217 + $0x5] sm:$0xff] %v492
      %530 = vst [vmem:[%s217 + $0xd] sm:$0xff] %v493
      %531 = vst [vmem:[%s217 + $0x15] sm:$0xff] %v494
      %532 = vst [vmem:[%s217 + $0x1d] sm:$0xff] %v495
      %533 = vst [vmem:[%s217 + $0x25] sm:$0xff] %v496
      %534 = vst [vmem:[%s217 + $0x2d] sm:$0xff] %v497
      %535 = vst [vmem:[%s217 + $0x35] sm:$0xff] %v498
      %536 = vst [vmem:[%s217 + $0x3d] sm:$0xff] %v499
      %537 = vst [vmem:[%s217 + $0x45] sm:$0xff] %v500
      %538 = vst [vmem:[%s217 + $0x4d] sm:$0xff] %v501
      %539 = vst [vmem:[%s217 + $0x55] sm:$0xff] %v502
      %540 = vst [vmem:[%s217 + $0x5d] sm:$0xff] %v503
      %541 = vst [vmem:[%s217 + $0x65] sm:$0xff] %v504
      %542 = vst [vmem:[%s217 + $0x6d] sm:$0xff] %v505
      %543 = vst [vmem:[%s217 + $0x75] sm:$0xff] %v506
      %544 = vst [vmem:[%s217 + $0x7d] sm:$0xff] %v507
      %545 = vst [vmem:[%s217 + $0x85] sm:$0xff] %v508
      %546 = vst [vmem:[%s217 + $0x8d] sm:$0xff] %v509
      %547 = vst [vmem:[%s217 + $0x95] sm:$0xff] %v510
      %548 = vst [vmem:[%s217 + $0x9d] sm:$0xff] %v511
      %549 = vst [vmem:[%s217 + $0xa5] sm:$0xff] %v512
      %550 = vst [vmem:[%s217 + $0xad] sm:$0xff] %v513
      %551 = vst [vmem:[%s217 + $0xb5] sm:$0xff] %v514
      %552 = vst [vmem:[%s217 + $0xbd] sm:$0xff] %v515
      %553 = vst [vmem:[%s217 + $0xc5] sm:$0xff] %v516
      %554 = vst [vmem:[%s217 + $0xcd] sm:$0xff] %v517
      %555 = vst [vmem:[%s217 + $0xd5] sm:$0xff] %v518
      %556 = vst [vmem:[%s217 + $0xdd] sm:$0xff] %v519
      %557 = vst [vmem:[%s217 + $0xe5] sm:$0xff] %v520
      %558 = vst [vmem:[%s217 + $0xed] sm:$0xff] %v521
      %559 = vst [vmem:[%s217 + $0xf5] sm:$0xff] %v522
      %560 = vst [vmem:[%s217 + $0xfd] sm:$0xff] %v523
      %561 = vst [vmem:[%s217 + $0x105] sm:$0xff] %v524
      %562 = vst [vmem:[%s217 + $0x10d] sm:$0xff] %v525
      %563 = vst [vmem:[%s217 + $0x115] sm:$0xff] %v526
      %564 = vst [vmem:[%s217 + $0x11d] sm:$0x7] %v527
      %p565 = scmp.lt.s32.totalorder %s15, 1
      %s566 = scalar_select %p565, %s15, 1
      %s567 = smul.addr %s566, 36
      %s568 = smul.addr %s567, 8
      %s569 = scalar_lea.vmem %s4, %s568
      // Predicated region
      $region37: #{basic_block_forward.5} parent=35 // pred_check
        %p570 = pneg %p127
      $region38: #{basic_block_forward.5} parent=35 // pred_check_branch
        %572 = sbr.rel (%p570) target = $region40
      $region39: #{basic_block_forward.5} parent=35 // pred_region
        _
      $region40: #{basic_block_forward.5} parent=35 // pred_fallthru
        _
    $region36: #{basic_block_forward.5} parent=5 // pred_fallthru
      _
    %p573 = scmp.le.s32.totalorder 2, %s10
    // Predicated region
    $region41: #{basic_block_forward.5} parent=5 // pred_check
      %p574 = pneg %p573
    $region42: #{basic_block_forward.5} parent=5 // pred_check_branch
      %576 = sbr.rel (%p574) target = $region44
    $region43: #{basic_block_forward.5} parent=5 // pred_region
      %s577 = ssub.s32 %s10, 2
      // Predicated region
      $region45: #{basic_block_forward.5} parent=43 // pred_check
        %p578 = pneg %p133
      $region46: #{basic_block_forward.5} parent=43 // pred_check_branch
        %580 = sbr.rel (%p578) target = $region48
      $region47: #{basic_block_forward.5} parent=43 // pred_region
        %p581 = scmp.lt.s32.totalorder %s16, 1
        %s582 = scalar_select %p581, %s16, 1
        %s583 = smul.addr %s582, 36
        %s584 = smul.addr %s583, 8
        %s585 = scalar_lea.vmem %s4, %s584
      $region48: #{basic_block_forward.5} parent=43 // pred_fallthru
        _
    $region44: #{basic_block_forward.5} parent=5 // pred_fallthru
      _
  $region6: #{basic_block_forward.5} parent=0 // loop_footer
    %s14 = sadd.s32 1, %s10
  $region7: #{basic_block_forward.5} parent=0 // loop_footer_branch
    %9 = sbr.rel target = $region3
  $region8: #{basic_block_forward.5} parent=0 // loop_exit
    _

// kernel: basic_block_forward.3
$region0: #{basic_block_forward.3}
  #allocation0 [shape = 'u32[]', space=smem, size = 0x4, offset = 0x4, fixed_abs, tag = 'smem constant byte address 0x4 - core index']
  #allocation1 [shape = 'u32[144,128]{1,0:T(1,128)}', space=vmem, size = 0x12000, scoped, tag = 'internal scratch']
  #allocation2 [shape = 'f32[288,128]{1,0:T(8,128)}', space=vmem, size = 0x24000, scoped, tag = 'scratch operand']
  %s0 = inlined_call_operand.vmem [shape: bf16[2,342,128], index: 0, kind: input, shape index: {}]
  %s1 = inlined_call_operand.vmem [shape: bf16[3,384,128], index: 1, kind: input, shape index: {}]
  %s2 = inlined_call_operand.vmem [shape: f32[288,1], index: 2, kind: input, shape index: {}]
  %s3 = inlined_call_operand.vmem [shape: bf16[2,342,128], index: 3, kind: output, shape index: {0}]
  %s4 = inlined_call_operand.vmem [shape: f32[2,1,128], index: 4, kind: output, shape index: {1}]
  %s5 = inlined_call_operand.vmem [shape: f32[2,1,128], index: 5, kind: output, shape index: {2}]
  %6 = xla_tuple %s3, %s4, %s5
  %s7 = sld [smem:[#allocation0]]
  $region61: #{basic_block_forward.3} parent=0
    _
  %s9 = ssub.s32 1, %s7
  %s10 = scalar_select 0, %s9, %s7
  loop: start=0, step=1, limit=4
  $region2: #{basic_block_forward.3} parent=0 // loop_pre_header
    _
  $region3: #{basic_block_forward.3} parent=0 // loop_header
    %s12 = sphi 0, %s16
    %p13 = scmp.ge.s32.totalorder %s12, 4
    %s22 = sphi 0, %s24
    %s25 = sphi 0, %s22
    %s26 = sphi 0, %s25
    %s42 = sphi 0, %s26
    %s46 = sphi 0, %s46
    %s48 = sphi 0, %s46
    %s49 = sphi 0, %s48
    %s63 = sphi 0, %s49
    %s67 = sphi 0, %s67
    %s69 = sphi 0, %s67
    %s70 = sphi 0, %s69
    %s84 = sphi 0, %s70
    %s90 = sphi 0, %s92
    %s93 = sphi 0, %s90
    %s94 = sphi 0, %s93
    %s110 = sphi 0, %s94
    %s116 = sphi 0, %s118
    %s119 = sphi 0, %s116
    %s120 = sphi 0, %s119
    %s136 = sphi 0, %s120
    %s142 = sphi 0, %s144
    %s145 = sphi 0, %s142
    %s146 = sphi 0, %s145
    %s162 = sphi 0, %s146
  $region4: #{basic_block_forward.3} parent=0 // loop_header_branch
    %15 = sbr.rel (%p13) target = $region8
  $region5: #{basic_block_forward.3} parent=0 // loop_body
    %s17 = ssub.s32 %s12, 1
    %s18 = ssub.s32 %s12, 2
    %s19 = sadd.s32 %s12, 1
    %s20 = ssub.s32 %s12, %s19
    %p21 = scmp.eq.s32.totalorder %s20, 0
    %s23 = sadd.s32 %s22, 1
    %s24 = scalar_select %p21, %s22, %s23
    %p27 = pneg %p21
    %p28 = scmp.eq.s32.totalorder %s12, 1
    %p29 = por %p27, %p28
    %p30 = scmp.ne.s32.totalorder %s22, %s25
    %p31 = scmp.eq.s32.totalorder %s12, 0
    %p32 = por %p30, %p31
    %p33 = scmp.ne.s32.totalorder %s22, %s25
    %p34 = scmp.eq.s32.totalorder %s17, 1
    %p35 = por %p33, %p34
    %p36 = scmp.ne.s32.totalorder %s25, %s26
    %p37 = scmp.eq.s32.totalorder %s17, 0
    %p38 = por %p36, %p37
    %p39 = scmp.ne.s32.totalorder %s25, %s26
    %p40 = scmp.eq.s32.totalorder %s18, 1
    %p41 = por %p39, %p40
    %p43 = scmp.ne.s32.totalorder %s26, %s42
    %p44 = scmp.eq.s32.totalorder %s18, 0
    %p45 = por %p43, %p44
    %s47 = sadd.s32 %s46, 1
    %p50 = scmp.eq.s32.totalorder %s12, 1
    %p51 = scmp.ne.s32.totalorder %s46, %s48
    %p52 = scmp.eq.s32.totalorder %s12, 0
    %p53 = por %p51, %p52
    %p54 = scmp.ne.s32.totalorder %s46, %s48
    %p55 = scmp.eq.s32.totalorder %s17, 1
    %p56 = por %p54, %p55
    %p57 = scmp.ne.s32.totalorder %s48, %s49
    %p58 = scmp.eq.s32.totalorder %s17, 0
    %p59 = por %p57, %p58
    %p60 = scmp.ne.s32.totalorder %s48, %s49
    %p61 = scmp.eq.s32.totalorder %s18, 1
    %p62 = por %p60, %p61
    %p64 = scmp.ne.s32.totalorder %s49, %s63
    %p65 = scmp.eq.s32.totalorder %s18, 0
    %p66 = por %p64, %p65
    %s68 = sadd.s32 %s67, 1
    %p71 = scmp.eq.s32.totalorder %s12, 1
    %p72 = scmp.ne.s32.totalorder %s67, %s69
    %p73 = scmp.eq.s32.totalorder %s12, 0
    %p74 = por %p72, %p73
    %p75 = scmp.ne.s32.totalorder %s67, %s69
    %p76 = scmp.eq.s32.totalorder %s17, 1
    %p77 = por %p75, %p76
    %p78 = scmp.ne.s32.totalorder %s69, %s70
    %p79 = scmp.eq.s32.totalorder %s17, 0
    %p80 = por %p78, %p79
    %p81 = scmp.ne.s32.totalorder %s69, %s70
    %p82 = scmp.eq.s32.totalorder %s18, 1
    %p83 = por %p81, %p82
    %p85 = scmp.ne.s32.totalorder %s70, %s84
    %p86 = scmp.eq.s32.totalorder %s18, 0
    %p87 = por %p85, %p86
    %s88 = ssub.s32 %s12, %s19
    %p89 = scmp.eq.s32.totalorder %s88, 0
    %s91 = sadd.s32 %s90, 1
    %s92 = scalar_select %p89, %s90, %s91
    %p95 = pneg %p89
    %p96 = scmp.eq.s32.totalorder %s12, 1
    %p97 = por %p95, %p96
    %p98 = scmp.ne.s32.totalorder %s90, %s93
    %p99 = scmp.eq.s32.totalorder %s12, 0
    %p100 = por %p98, %p99
    %p101 = scmp.ne.s32.totalorder %s90, %s93
    %p102 = scmp.eq.s32.totalorder %s17, 1
    %p103 = por %p101, %p102
    %p104 = scmp.ne.s32.totalorder %s93, %s94
    %p105 = scmp.eq.s32.totalorder %s17, 0
    %p106 = por %p104, %p105
    %p107 = scmp.ne.s32.totalorder %s93, %s94
    %p108 = scmp.eq.s32.totalorder %s18, 1
    %p109 = por %p107, %p108
    %p111 = scmp.ne.s32.totalorder %s94, %s110
    %p112 = scmp.eq.s32.totalorder %s18, 0
    %p113 = por %p111, %p112
    %s114 = ssub.s32 %s12, %s19
    %p115 = scmp.eq.s32.totalorder %s114, 0
    %s117 = sadd.s32 %s116, 1
    %s118 = scalar_select %p115, %s116, %s117
    %p121 = pneg %p115
    %p122 = scmp.eq.s32.totalorder %s12, 1
    %p123 = por %p121, %p122
    %p124 = scmp.ne.s32.totalorder %s116, %s119
    %p125 = scmp.eq.s32.totalorder %s12, 0
    %p126 = por %p124, %p125
    %p127 = scmp.ne.s32.totalorder %s116, %s119
    %p128 = scmp.eq.s32.totalorder %s17, 1
    %p129 = por %p127, %p128
    %p130 = scmp.ne.s32.totalorder %s119, %s120
    %p131 = scmp.eq.s32.totalorder %s17, 0
    %p132 = por %p130, %p131
    %p133 = scmp.ne.s32.totalorder %s119, %s120
    %p134 = scmp.eq.s32.totalorder %s18, 1
    %p135 = por %p133, %p134
    %p137 = scmp.ne.s32.totalorder %s120, %s136
    %p138 = scmp.eq.s32.totalorder %s18, 0
    %p139 = por %p137, %p138
    %s140 = ssub.s32 %s12, %s19
    %p141 = scmp.eq.s32.totalorder %s140, 0
    %s143 = sadd.s32 %s142, 1
    %s144 = scalar_select %p141, %s142, %s143
    %p147 = pneg %p141
    %p148 = scmp.eq.s32.totalorder %s12, 1
    %p149 = por %p147, %p148
    %p150 = scmp.ne.s32.totalorder %s142, %s145
    %p151 = scmp.eq.s32.totalorder %s12, 0
    %p152 = por %p150, %p151
    %p153 = scmp.ne.s32.totalorder %s142, %s145
    %p154 = scmp.eq.s32.totalorder %s17, 1
    %p155 = por %p153, %p154
    %p156 = scmp.ne.s32.totalorder %s145, %s146
    %p157 = scmp.eq.s32.totalorder %s17, 0
    %p158 = por %p156, %p157
    %p159 = scmp.ne.s32.totalorder %s145, %s146
    %p160 = scmp.eq.s32.totalorder %s18, 1
    %p161 = por %p159, %p160
    %p163 = scmp.ne.s32.totalorder %s146, %s162
    %p164 = scmp.eq.s32.totalorder %s18, 0
    %p165 = por %p163, %p164
    %p166 = scmp.le.s32.totalorder 1, %s12
    %p167 = scmp.lt.s32.totalorder %s12, 3
    %p168 = pnand %p166, %p167
    %p169 = pneg %p168
    // Predicated region
    $region9: #{basic_block_forward.3} parent=5 // pred_check
      _
    $region10: #{basic_block_forward.3} parent=5 // pred_check_branch
      %171 = sbr.rel (%p168) target = $region12
    $region11: #{basic_block_forward.3} parent=5 // pred_region
      %s172 = ssub.s32 %s12, 1
      // Predicated region
      $region13: #{basic_block_forward.3} parent=11 // pred_check
        %p173 = pneg %p59
      $region14: #{basic_block_forward.3} parent=11 // pred_check_branch
        %175 = sbr.rel (%p173) target = $region16
      $region15: #{basic_block_forward.3} parent=11 // pred_region
        _
      $region16: #{basic_block_forward.3} parent=11 // pred_fallthru
        _
      // Predicated region
      $region17: #{basic_block_forward.3} parent=11 // pred_check
        %p176 = pneg %p80
      $region18: #{basic_block_forward.3} parent=11 // pred_check_branch
        %178 = sbr.rel (%p176) target = $region20
      $region19: #{basic_block_forward.3} parent=11 // pred_region
        _
      $region20: #{basic_block_forward.3} parent=11 // pred_fallthru
        _
    $region12: #{basic_block_forward.3} parent=5 // pred_fallthru
      _
    %p179 = scmp.lt.s32.totalorder %s12, 2
    // Predicated region
    $region21: #{basic_block_forward.3} parent=5 // pred_check
      %p180 = pneg %p179
    $region22: #{basic_block_forward.3} parent=5 // pred_check_branch
      %182 = sbr.rel (%p180) target = $region24
    $region23: #{basic_block_forward.3} parent=5 // pred_region
      // Predicated region
      $region25: #{basic_block_forward.3} parent=23 // pred_check
        %p183 = pneg %p32
      $region26: #{basic_block_forward.3} parent=23 // pred_check_branch
        %185 = sbr.rel (%p183) target = $region28
      $region27: #{basic_block_forward.3} parent=23 // pred_region
        %p186 = scmp.lt.s32.totalorder %s12, 1
        %s187 = scalar_select %p186, %s12, 1
        %s188 = smul.addr %s187, 43
        %s189 = smul.addr %s188, 4
        %s190 = scalar_lea.vmem %s0, %s189
      $region28: #{basic_block_forward.3} parent=23 // pred_fallthru
        _
    $region24: #{basic_block_forward.3} parent=5 // pred_fallthru
      _
    %p191 = scmp.le.s32.totalorder 1, %s12
    %p192 = scmp.lt.s32.totalorder %s12, 3
    %p193 = pnand %p191, %p192
    %p194 = pneg %p193
    // Predicated region
    $region29: #{basic_block_forward.3} parent=5 // pred_check
      _
    $region30: #{basic_block_forward.3} parent=5 // pred_check_branch
      %196 = sbr.rel (%p193) target = $region32
    $region31: #{basic_block_forward.3} parent=5 // pred_region
      %s197 = ssub.s32 %s12, 1
      %p198 = scmp.lt.s32.totalorder %s17, 1
      %s199 = scalar_select %p198, %s17, 1
      %s200 = smul.addr %s199, 43
      %s201 = smul.addr %s200, 4
      %s202 = scalar_lea.vmem %s0, %s201
      %p203 = pneg %p38
      %p204 = pneg %p35
      %p205 = pneg %p59
      %p206 = pneg %p56
      %p207 = pneg %p80
      %p208 = pneg %p77
      %p209 = pneg %p106
      %p210 = pneg %p103
      %p211 = scmp.lt.s32.totalorder %s17, 1
      %s212 = scalar_select %p211, %s17, 1
      %s213 = smul.addr %s212, 43
      %s214 = smul.addr %s213, 4
      %s215 = scalar_lea.vmem %s3, %s214
      %p216 = pneg %p132
      %p217 = pneg %p129
      %p218 = scmp.lt.s32.totalorder %s17, 1
      %s219 = scalar_select %p218, %s17, 1
      %s220 = scalar_lea.vmem %s4, %s219
      %p221 = pneg %p158
      %p222 = pneg %p155
      %p223 = scmp.lt.s32.totalorder %s17, 1
      %s224 = scalar_select %p223, %s17, 1
      %s225 = scalar_lea.vmem %s5, %s224
      %p226 = scmp.lt.s32.totalorder %s17, 1
      %s227 = scalar_select %p226, %s17, 1
      %s228 = smul.addr %s227, 43
      %s229 = smul.addr %s228, 4
      %s230 = scalar_lea.vmem %s0, %s229
      %p231 = scmp.lt.s32.totalorder %s17, 1
      %s232 = scalar_select %p231, %s17, 1
      %s233 = smul.addr %s232, 43
      %s234 = smul.addr %s233, 4
      %s235 = scalar_lea.vmem %s3, %s234
      %p236 = scmp.lt.s32.totalorder %s17, 1
      %s237 = scalar_select %p236, %s17, 1
      %s238 = scalar_lea.vmem %s4, %s237
      %p239 = scmp.lt.s32.totalorder %s17, 1
      %s240 = scalar_select %p239, %s17, 1
      %s241 = scalar_lea.vmem %s5, %s240
      %v243 = vld [vmem:[%s230] sm:$0xf]
      %v244 = vld [vmem:[%s230 + $0x4] sm:$0xf]
      %v245 = vld [vmem:[%s230 + $0x8] sm:$0xf]
      %v246 = vld [vmem:[%s230 + $0xc] sm:$0xf]
      %v247 = vld [vmem:[%s230 + $0x10] sm:$0xf]
      %v248 = vld [vmem:[%s230 + $0x14] sm:$0xf]
      %v249 = vld [vmem:[%s230 + $0x18] sm:$0xf]
      %v250 = vld [vmem:[%s230 + $0x1c] sm:$0xf]
      %v251 = vld [vmem:[%s230 + $0x20] sm:$0xf]
      %v252 = vld [vmem:[%s230 + $0x24] sm:$0xf]
      %v253 = vld [vmem:[%s230 + $0x28] sm:$0xf]
      %v254 = vld [vmem:[%s230 + $0x2c] sm:$0xf]
      %v255 = vld [vmem:[%s230 + $0x30] sm:$0xf]
      %v256 = vld [vmem:[%s230 + $0x34] sm:$0xf]
      %v257 = vld [vmem:[%s230 + $0x38] sm:$0xf]
      %v258 = vld [vmem:[%s230 + $0x3c] sm:$0xf]
      %v259 = vld [vmem:[%s230 + $0x40] sm:$0xf]
      %v260 = vld [vmem:[%s230 + $0x44] sm:$0xf]
      %v261 = vld [vmem:[%s230 + $0x48] sm:$0xf]
      %v262 = vld [vmem:[%s230 + $0x4c] sm:$0xf]
      %v263 = vld [vmem:[%s230 + $0x50] sm:$0xf]
      %v264 = vld [vmem:[%s230 + $0x54] sm:$0xf]
      %v265 = vld [vmem:[%s230 + $0x58] sm:$0xf]
      %v266 = vld [vmem:[%s230 + $0x5c] sm:$0xf]
      %v267 = vld [vmem:[%s230 + $0x60] sm:$0xf]
      %v268 = vld [vmem:[%s230 + $0x64] sm:$0xf]
      %v269 = vld [vmem:[%s230 + $0x68] sm:$0xf]
      %v270 = vld [vmem:[%s230 + $0x6c] sm:$0xf]
      %v271 = vld [vmem:[%s230 + $0x70] sm:$0xf]
      %v272 = vld [vmem:[%s230 + $0x74] sm:$0xf]
      %v273 = vld [vmem:[%s230 + $0x78] sm:$0xf]
      %v274 = vld [vmem:[%s230 + $0x7c] sm:$0xf]
      %v275 = vld [vmem:[%s230 + $0x80] sm:$0xf]
      %v276 = vld [vmem:[%s230 + $0x84] sm:$0xf]
      %v277 = vld [vmem:[%s230 + $0x88] sm:$0xf]
      %v278 = vld [vmem:[%s230 + $0x8c] sm:$0xf]
      %v279 = vld [vmem:[%s230 + $0x90] sm:$0x1]
      %v280 = vld [vmem:[%s230] sm:$0xe]
      %v317 = vunpack.c.l.b16 %v243
      %v318 = vunpack.c.l.b16 %v244
      %v319 = vunpack.c.l.b16 %v245
      %v320 = vunpack.c.l.b16 %v246
      %v321 = vunpack.c.l.b16 %v247
      %v322 = vunpack.c.l.b16 %v248
      %v323 = vunpack.c.l.b16 %v249
      %v324 = vunpack.c.l.b16 %v250
      %v325 = vunpack.c.l.b16 %v251
      %v326 = vunpack.c.l.b16 %v252
      %v327 = vunpack.c.l.b16 %v253
      %v328 = vunpack.c.l.b16 %v254
      %v329 = vunpack.c.l.b16 %v255
      %v330 = vunpack.c.l.b16 %v256
      %v331 = vunpack.c.l.b16 %v257
      %v332 = vunpack.c.l.b16 %v258
      %v333 = vunpack.c.l.b16 %v259
      %v334 = vunpack.c.l.b16 %v260
      %v335 = vunpack.c.l.b16 %v261
      %v336 = vunpack.c.l.b16 %v262
      %v337 = vunpack.c.l.b16 %v263
      %v338 = vunpack.c.l.b16 %v264
      %v339 = vunpack.c.l.b16 %v265
      %v340 = vunpack.c.l.b16 %v266
      %v341 = vunpack.c.l.b16 %v267
      %v342 = vunpack.c.l.b16 %v268
      %v343 = vunpack.c.l.b16 %v269
      %v344 = vunpack.c.l.b16 %v270
      %v345 = vunpack.c.l.b16 %v271
      %v346 = vunpack.c.l.b16 %v272
      %v347 = vunpack.c.l.b16 %v273
      %v348 = vunpack.c.l.b16 %v274
      %v349 = vunpack.c.l.b16 %v275
      %v350 = vunpack.c.l.b16 %v276
      %v351 = vunpack.c.l.b16 %v277
      %v352 = vunpack.c.l.b16 %v278
      %v353 = vpack.c.b16 %v318, %v317
      %v354 = vpack.c.b16 %v320, %v319
      %v355 = vpack.c.b16 %v322, %v321
      %v356 = vpack.c.b16 %v324, %v323
      %v357 = vpack.c.b16 %v326, %v325
      %v358 = vpack.c.b16 %v328, %v327
      %v359 = vpack.c.b16 %v330, %v329
      %v360 = vpack.c.b16 %v332, %v331
      %v361 = vpack.c.b16 %v334, %v333
      %v362 = vpack.c.b16 %v336, %v335
      %v363 = vpack.c.b16 %v338, %v337
      %v364 = vpack.c.b16 %v340, %v339
      %v365 = vpack.c.b16 %v342, %v341
      %v366 = vpack.c.b16 %v344, %v343
      %v367 = vpack.c.b16 %v346, %v345
      %v368 = vpack.c.b16 %v348, %v347
      %v369 = vpack.c.b16 %v350, %v349
      %v370 = vpack.c.b16 %v352, %v351
      %v390 = vunpack.c.l.b16 %v279
      %v391 = vpack.c.b16 %v390, %v390
      %vm392 = vsmask.f32 7424
      %v394 = vshrl.u32 %v353, 16
      %v396 = vshll.u32 %v353, 16
      %v398 = vrot.slane %v396, 1
      %v399 = vor.u32 %v394, %v398
      %v401 = vshll.u32 %v354, 16
      %v403 = vrot.slane %v401, 1
      %v404 = vsel %vm392, %v399, %v403
      %v405 = vshrl.u32 %v354, 16
      %v407 = vor.u32 %v405, %v403
      %v409 = vshll.u32 %v355, 16
      %v411 = vrot.slane %v409, 1
      %v412 = vsel %vm392, %v407, %v411
      %v413 = vshrl.u32 %v355, 16
      %v415 = vor.u32 %v413, %v411
      %v417 = vshll.u32 %v356, 16
      %v419 = vrot.slane %v417, 1
      %v420 = vsel %vm392, %v415, %v419
      %v421 = vshrl.u32 %v356, 16
      %v423 = vor.u32 %v421, %v419
      %v425 = vshll.u32 %v357, 16
      %v427 = vrot.slane %v425, 1
      %v428 = vsel %vm392, %v423, %v427
      %v429 = vshrl.u32 %v357, 16
      %v431 = vor.u32 %v429, %v427
      %v433 = vshll.u32 %v358, 16
      %v435 = vrot.slane %v433, 1
      %v436 = vsel %vm392, %v431, %v435
      %v437 = vshrl.u32 %v358, 16
      %v439 = vor.u32 %v437, %v435
      %v441 = vshll.u32 %v359, 16
      %v443 = vrot.slane %v441, 1
      %v444 = vsel %vm392, %v439, %v443
      %v445 = vshrl.u32 %v359, 16
      %v447 = vor.u32 %v445, %v443
      %v449 = vshll.u32 %v360, 16
      %v451 = vrot.slane %v449, 1
      %v452 = vsel %vm392, %v447, %v451
      %v453 = vshrl.u32 %v360, 16
      %v455 = vor.u32 %v453, %v451
      %v457 = vshll.u32 %v361, 16
      %v459 = vrot.slane %v457, 1
      %v460 = vsel %vm392, %v455, %v459
      %v461 = vshrl.u32 %v361, 16
      %v463 = vor.u32 %v461, %v459
      %v465 = vshll.u32 %v362, 16
      %v467 = vrot.slane %v465, 1
      %v468 = vsel %vm392, %v463, %v467
      %v469 = vshrl.u32 %v362, 16
      %v471 = vor.u32 %v469, %v467
      %v473 = vshll.u32 %v363, 16
      %v475 = vrot.slane %v473, 1
      %v476 = vsel %vm392, %v471, %v475
      %v477 = vshrl.u32 %v363, 16
      %v479 = vor.u32 %v477, %v475
      %v481 = vshll.u32 %v364, 16
      %v483 = vrot.slane %v481, 1
      %v484 = vsel %vm392, %v479, %v483
      %v485 = vshrl.u32 %v364, 16
      %v487 = vor.u32 %v485, %v483
      %v489 = vshll.u32 %v365, 16
      %v491 = vrot.slane %v489, 1
      %v492 = vsel %vm392, %v487, %v491
      %v493 = vshrl.u32 %v365, 16
      %v495 = vor.u32 %v493, %v491
      %v497 = vshll.u32 %v366, 16
      %v499 = vrot.slane %v497, 1
      %v500 = vsel %vm392, %v495, %v499
      %v501 = vshrl.u32 %v366, 16
      %v503 = vor.u32 %v501, %v499
      %v505 = vshll.u32 %v367, 16
      %v507 = vrot.slane %v505, 1
      %v508 = vsel %vm392, %v503, %v507
      %v509 = vshrl.u32 %v367, 16
      %v511 = vor.u32 %v509, %v507
      %v513 = vshll.u32 %v368, 16
      %v515 = vrot.slane %v513, 1
      %v516 = vsel %vm392, %v511, %v515
      %v517 = vshrl.u32 %v368, 16
      %v519 = vor.u32 %v517, %v515
      %v521 = vshll.u32 %v369, 16
      %v523 = vrot.slane %v521, 1
      %v524 = vsel %vm392, %v519, %v523
      %v525 = vshrl.u32 %v369, 16
      %v527 = vor.u32 %v525, %v523
      %v529 = vshll.u32 %v370, 16
      %v531 = vrot.slane %v529, 1
      %v532 = vsel %vm392, %v527, %v531
      %v533 = vshrl.u32 %v370, 16
      %v535 = vor.u32 %v533, %v531
      %v537 = vshll.u32 %v391, 16
      %v539 = vrot.slane %v537, 1
      %v540 = vsel %vm392, %v535, %v539
      %v560 = vunpack.c.l.b16 %v280
      %v561 = vpack.c.b16 %v318, %v560
      %vm562 = vcmask 1046528
      %v563 = vrot.slane %v561, 1
      %v564 = vrot.slane %v354, 1
      %v565 = vsel %vm562, %v563, %v564
      %v566 = vrot.slane %v355, 1
      %v567 = vsel %vm562, %v564, %v566
      %v568 = vrot.slane %v356, 1
      %v569 = vsel %vm562, %v566, %v568
      %v570 = vrot.slane %v357, 1
      %v571 = vsel %vm562, %v568, %v570
      %v572 = vrot.slane %v358, 1
      %v573 = vsel %vm562, %v570, %v572
      %v574 = vrot.slane %v359, 1
      %v575 = vsel %vm562, %v572, %v574
      %v576 = vrot.slane %v360, 1
      %v577 = vsel %vm562, %v574, %v576
      %v578 = vrot.slane %v361, 1
      %v579 = vsel %vm562, %v576, %v578
      %v580 = vrot.slane %v362, 1
      %v581 = vsel %vm562, %v578, %v580
      %v582 = vrot.slane %v363, 1
      %v583 = vsel %vm562, %v580, %v582
      %v584 = vrot.slane %v364, 1
      %v585 = vsel %vm562, %v582, %v584
      %v586 = vrot.slane %v365, 1
      %v587 = vsel %vm562, %v584, %v586
      %v588 = vrot.slane %v366, 1
      %v589 = vsel %vm562, %v586, %v588
      %v590 = vrot.slane %v367, 1
      %v591 = vsel %vm562, %v588, %v590
      %v592 = vrot.slane %v368, 1
      %v593 = vsel %vm562, %v590, %v592
      %v594 = vrot.slane %v369, 1
      %v595 = vsel %vm562, %v592, %v594
      %v596 = vrot.slane %v370, 1
      %v597 = vsel %vm562, %v594, %v596
      %v598 = vrot.slane %v391, 1
      %v599 = vsel %vm562, %v596, %v598
      %v618 = vld [vmem:[%s1] sm:$0xf]
      %v619 = vld [vmem:[%s1 + $0x4] sm:$0xf]
      %v620 = vld [vmem:[%s1 + $0x8] sm:$0xf]
      %v621 = vld [vmem:[%s1 + $0xc] sm:$0xf]
      %v622 = vld [vmem:[%s1 + $0x10] sm:$0xf]
      %v623 = vld [vmem:[%s1 + $0x14] sm:$0xf]
      %v624 = vld [vmem:[%s1 + $0x18] sm:$0xf]
      %v625 = vld [vmem:[%s1 + $0x1c] sm:$0xf]
      %v626 = vld [vmem:[%s1 + $0x20] sm:$0xf]
      %v627 = vld [vmem:[%s1 + $0x24] sm:$0xf]
      %v628 = vld [vmem:[%s1 + $0x28] sm:$0xf]
      %v629 = vld [vmem:[%s1 + $0x2c] sm:$0xf]
      %v630 = vld [vmem:[%s1 + $0x30] sm:$0xf]
      %v631 = vld [vmem:[%s1 + $0x34] sm:$0xf]
      %v632 = vld [vmem:[%s1 + $0x38] sm:$0xf]
      %v633 = vld [vmem:[%s1 + $0x3c] sm:$0xf]
      %v634 = vld [vmem:[%s1 + $0x40] sm:$0xf]
      %v635 = vld [vmem:[%s1 + $0x44] sm:$0xf]
      %v636 = vld [vmem:[%s1 + $0x48] sm:$0xf]
      %v637 = vld [vmem:[%s1 + $0x4c] sm:$0xf]
      %v638 = vld [vmem:[%s1 + $0x50] sm:$0xf]
      %v639 = vld [vmem:[%s1 + $0x54] sm:$0xf]
      %v640 = vld [vmem:[%s1 + $0x58] sm:$0xf]
      %v641 = vld [vmem:[%s1 + $0x5c] sm:$0xf]
      %v642 = vld [vmem:[%s1 + $0x60] sm:$0xf]
      %v643 = vld [vmem:[%s1 + $0x64] sm:$0xf]
      %v644 = vld [vmem:[%s1 + $0x68] sm:$0xf]
      %v645 = vld [vmem:[%s1 + $0x6c] sm:$0xf]
      %v646 = vld [vmem:[%s1 + $0x70] sm:$0xf]
      %v647 = vld [vmem:[%s1 + $0x74] sm:$0xf]
      %v648 = vld [vmem:[%s1 + $0x78] sm:$0xf]
      %v649 = vld [vmem:[%s1 + $0x7c] sm:$0xf]
      %v650 = vld [vmem:[%s1 + $0x80] sm:$0xf]
      %v651 = vld [vmem:[%s1 + $0x84] sm:$0xf]
      %v652 = vld [vmem:[%s1 + $0x88] sm:$0xf]
      %v653 = vld [vmem:[%s1 + $0x8c] sm:$0xf]
      %v654 = vld [vmem:[%s1 + $0x90] sm:$0xf]
      %v655 = vld [vmem:[%s1 + $0x94] sm:$0xf]
      %v656 = vld [vmem:[%s1 + $0x98] sm:$0xf]
      %v657 = vld [vmem:[%s1 + $0x9c] sm:$0xf]
      %v658 = vld [vmem:[%s1 + $0xa0] sm:$0xf]
      %v659 = vld [vmem:[%s1 + $0xa4] sm:$0xf]
      %v660 = vld [vmem:[%s1 + $0xa8] sm:$0xf]
      %v661 = vld [vmem:[%s1 + $0xac] sm:$0xf]
      %v662 = vld [vmem:[%s1 + $0xb0] sm:$0xf]
      %v663 = vld [vmem:[%s1 + $0xb4] sm:$0xf]
      %v664 = vld [vmem:[%s1 + $0xb8] sm:$0xf]
      %v665 = vld [vmem:[%s1 + $0xbc] sm:$0xf]
      %v714 = vunpack.c.l.b16 %v618
      %v715 = vunpack.c.l.b16 %v619
      %v716 = vunpack.c.l.b16 %v620
      %v717 = vunpack.c.l.b16 %v621
      %v718 = vunpack.c.l.b16 %v622
      %v719 = vunpack.c.l.b16 %v623
      %v720 = vunpack.c.l.b16 %v624
      %v721 = vunpack.c.l.b16 %v625
      %v722 = vunpack.c.l.b16 %v626
      %v723 = vunpack.c.l.b16 %v627
      %v724 = vunpack.c.l.b16 %v628
      %v725 = vunpack.c.l.b16 %v629
      %v726 = vunpack.c.l.b16 %v630
      %v727 = vunpack.c.l.b16 %v631
      %v728 = vunpack.c.l.b16 %v632
      %v729 = vunpack.c.l.b16 %v633
      %v730 = vunpack.c.l.b16 %v634
      %v731 = vunpack.c.l.b16 %v635
      %v732 = vunpack.c.l.b16 %v636
      %v733 = vunpack.c.l.b16 %v637
      %v734 = vunpack.c.l.b16 %v638
      %v735 = vunpack.c.l.b16 %v639
      %v736 = vunpack.c.l.b16 %v640
      %v737 = vunpack.c.l.b16 %v641
      %v738 = vunpack.c.l.b16 %v642
      %v739 = vunpack.c.l.b16 %v643
      %v740 = vunpack.c.l.b16 %v644
      %v741 = vunpack.c.l.b16 %v645
      %v742 = vunpack.c.l.b16 %v646
      %v743 = vunpack.c.l.b16 %v647
      %v744 = vunpack.c.l.b16 %v648
      %v745 = vunpack.c.l.b16 %v649
      %v746 = vunpack.c.l.b16 %v650
      %v747 = vunpack.c.l.b16 %v651
      %v748 = vunpack.c.l.b16 %v652
      %v749 = vunpack.c.l.b16 %v653
      %v750 = vunpack.c.l.b16 %v654
      %v751 = vunpack.c.l.b16 %v655
      %v752 = vunpack.c.l.b16 %v656
      %v753 = vunpack.c.l.b16 %v657
      %v754 = vunpack.c.l.b16 %v658
      %v755 = vunpack.c.l.b16 %v659
      %v756 = vunpack.c.l.b16 %v660
      %v757 = vunpack.c.l.b16 %v661
      %v758 = vunpack.c.l.b16 %v662
      %v759 = vunpack.c.l.b16 %v663
      %v760 = vunpack.c.l.b16 %v664
      %v761 = vunpack.c.l.b16 %v665
      %v762 = vpack.c.b16 %v715, %v714
      %v763 = vpack.c.b16 %v717, %v716
      %v764 = vpack.c.b16 %v719, %v718
      %v765 = vpack.c.b16 %v721, %v720
      %v766 = vpack.c.b16 %v723, %v722
      %v767 = vpack.c.b16 %v725, %v724
      %v768 = vpack.c.b16 %v727, %v726
      %v769 = vpack.c.b16 %v729, %v728
      %v770 = vpack.c.b16 %v731, %v730
      %v771 = vpack.c.b16 %v733, %v732
      %v772 = vpack.c.b16 %v735, %v734
      %v773 = vpack.c.b16 %v737, %v736
      %v774 = vpack.c.b16 %v739, %v738
      %v775 = vpack.c.b16 %v741, %v740
      %v776 = vpack.c.b16 %v743, %v742
      %v777 = vpack.c.b16 %v745, %v744
      %v778 = vpack.c.b16 %v747, %v746
      %v779 = vpack.c.b16 %v749, %v748
      %v780 = vpack.c.b16 %v751, %v750
      %v781 = vpack.c.b16 %v753, %v752
      %v782 = vpack.c.b16 %v755, %v754
      %v783 = vpack.c.b16 %v757, %v756
      %v784 = vpack.c.b16 %v759, %v758
      %v785 = vpack.c.b16 %v761, %v760
      %810 = vmatprep.subr.bf16.mxu0 0
      %811 = vmatpush1.bf16.msra.mxu0 %v762
      %812 = vmatprep.subr.bf16.mxu0 0
      %813 = vmatpush1.bf16.msra.mxu0 %v763
      %814 = vmatprep.subr.bf16.mxu0 0
      %815 = vmatpush1.bf16.msra.mxu0 %v764
      %816 = vmatprep.subr.bf16.mxu0 0
      %817 = vmatpush1.bf16.msra.mxu0 %v765
      %818 = vmatprep.subr.bf16.mxu0 0
      %819 = vmatpush1.bf16.msra.mxu0 %v766
      %820 = vmatprep.subr.bf16.mxu0 0
      %821 = vmatpush1.bf16.msra.mxu0 %v767
      %822 = vmatprep.subr.bf16.mxu0 0
      %823 = vmatpush1.bf16.msra.mxu0 %v768
      %824 = vmatprep.subr.bf16.mxu0 0
      %825 = vmatpush1.bf16.msra.mxu0 %v769
      %826 = vmatprep.subr.bf16.mxu0 0
      %827 = vmatpush1.bf16.msra.mxu0 %v770
      %828 = vmatprep.subr.bf16.mxu0 0
      %829 = vmatpush1.bf16.msra.mxu0 %v771
      %830 = vmatprep.subr.bf16.mxu0 0
      %831 = vmatpush1.bf16.msra.mxu0 %v772
      %832 = vmatprep.subr.bf16.mxu0 0
      %833 = vmatpush1.bf16.msra.mxu0 %v773
      %834 = vmatprep.subr.bf16.mxu0 0
      %835 = vmatpush1.bf16.msra.mxu0 %v774
      %836 = vmatprep.subr.bf16.mxu0 0
      %837 = vmatpush1.bf16.msra.mxu0 %v775
      %838 = vmatprep.subr.bf16.mxu0 0
      %839 = vmatpush1.bf16.msra.mxu0 %v776
      %840 = vmatprep.subr.bf16.mxu0 0
      %841 = vmatpush1.bf16.msra.mxu0 %v777
      %842 = vmatprep.mubr.bf16.mxu0 %v404
      %843 = vmatmul.mubr.bf16.gmra.mrb[0].mxu0 %v353
      %v844 = vpop.f32.mrb[0].mxu0
      %v845 = vadd.f32 0.0, %v844
      %v846 = vpop.f32.mrb[0].mxu0
      %v847 = vpop.f32.mrb[0].mxu0
      %v848 = vadd.f32 0.0, %v847
      %v849 = vpop.f32.mrb[0].mxu0
      %850 = vmatprep.mubr.bf16.mxu0 %v412
      %851 = vmatmul.mubr.bf16.gmra.mrb[0].mxu0 %v354
      %v852 = vpop.f32.mrb[0].mxu0
      %v853 = vadd.f32 0.0, %v852
      %v854 = vpop.f32.mrb[0].mxu0
      %v855 = vpop.f32.mrb[0].mxu0
      %v856 = vadd.f32 0.0, %v855
      %v857 = vpop.f32.mrb[0].mxu0
      %858 = vmatprep.mubr.bf16.mxu0 %v420
      %859 = vmatmul.mubr.bf16.gmra.mrb[0].mxu0 %v355
      %v860 = vpop.f32.mrb[0].mxu0
      %v861 = vadd.f32 0.0, %v860
      %v862 = vpop.f32.mrb[0].mxu0
      %v863 = vpop.f32.mrb[0].mxu0
      %v864 = vadd.f32 0.0, %v863
      %v865 = vpop.f32.mrb[0].mxu0
      %866 = vmatprep.mubr.bf16.mxu0 %v428
      %867 = vmatmul.mubr.bf16.gmra.mrb[0].mxu0 %v356
      %v868 = vpop.f32.mrb[0].mxu0
      %v869 = vadd.f32 0.0, %v868
      %v870 = vpop.f32.mrb[0].mxu0
      %v871 = vpop.f32.mrb[0].mxu0
      %v872 = vadd.f32 0.0, %v871
      %v873 = vpop.f32.mrb[0].mxu0
      %874 = vmatprep.mubr.bf16.mxu0 %v436
      %875 = vmatmul.mubr.bf16.gmra.mrb[0].mxu0 %v357
      %v876 = vpop.f32.mrb[0].mxu0
      %v877 = vadd.f32 0.0, %v876
      %v878 = vpop.f32.mrb[0].mxu0
      %v879 = vpop.f32.mrb[0].mxu0
      %v880 = vadd.f32 0.0, %v879
      %v881 = vpop.f32.mrb[0].mxu0
      %882 = vmatprep.mubr.bf16.mxu0 %v444
      %883 = vmatmul.mubr.bf16.gmra.mrb[0].mxu0 %v358
      %v884 = vpop.f32.mrb[0].mxu0
      %v885 = vadd.f32 0.0, %v884
      %v886 = vpop.f32.mrb[0].mxu0
      %v887 = vpop.f32.mrb[0].mxu0
      %v888 = vadd.f32 0.0, %v887
      %v889 = vpop.f32.mrb[0].mxu0
      %890 = vmatprep.mubr.bf16.mxu0 %v452
      %891 = vmatmul.mubr.bf16.gmra.mrb[0].mxu0 %v359
      %v892 = vpop.f32.mrb[0].mxu0
      %v893 = vadd.f32 0.0, %v892
      %v894 = vpop.f32.mrb[0].mxu0
      %v895 = vpop.f32.mrb[0].mxu0
      %v896 = vadd.f32 0.0, %v895
      %v897 = vpop.f32.mrb[0].mxu0
      %898 = vmatprep.mubr.bf16.mxu0 %v460
      %899 = vmatmul.mubr.bf16.gmra.mrb[0].mxu0 %v360
      %v900 = vpop.f32.mrb[0].mxu0
      %v901 = vadd.f32 0.0, %v900
      %v902 = vpop.f32.mrb[0].mxu0
      %v903 = vpop.f32.mrb[0].mxu0
      %v904 = vadd.f32 0.0, %v903
      %v905 = vpop.f32.mrb[0].mxu0
      %906 = vmatprep.mubr.bf16.mxu0 %v468
      %907 = vmatmul.mubr.bf16.gmra.mrb[0].mxu0 %v361
      %v908 = vpop.f32.mrb[0].mxu0
      %v909 = vadd.f32 0.0, %v908
      %v910 = vpop.f32.mrb[0].mxu0
      %v911 = vpop.f32.mrb[0].mxu0
      %v912 = vadd.f32 0.0, %v911
      %v913 = vpop.f32.mrb[0].mxu0
      %914 = vmatprep.mubr.bf16.mxu0 %v476
      %915 = vmatmul.mubr.bf16.gmra.mrb[0].mxu0 %v362
      %v916 = vpop.f32.mrb[0].mxu0
      %v917 = vadd.f32 0.0, %v916
      %v918 = vpop.f32.mrb[0].mxu0
      %v919 = vpop.f32.mrb[0].mxu0
      %v920 = vadd.f32 0.0, %v919
      %v921 = vpop.f32.mrb[0].mxu0
      %922 = vmatprep.mubr.bf16.mxu0 %v484
      %923 = vmatmul.mubr.bf16.gmra.mrb[0].mxu0 %v363
      %v924 = vpop.f32.mrb[0].mxu0
      %v925 = vadd.f32 0.0, %v924
      %v926 = vpop.f32.mrb[0].mxu0
      %v927 = vpop.f32.mrb[0].mxu0
      %v928 = vadd.f32 0.0, %v927
      %v929 = vpop.f32.mrb[0].mxu0
      %930 = vmatprep.mubr.bf16.mxu0 %v492
      %931 = vmatmul.mubr.bf16.gmra.mrb[0].mxu0 %v364
      %v932 = vpop.f32.mrb[0].mxu0
      %v933 = vadd.f32 0.0, %v932
      %v934 = vpop.f32.mrb[0].mxu0
      %v935 = vpop.f32.mrb[0].mxu0
      %v936 = vadd.f32 0.0, %v935
      %v937 = vpop.f32.mrb[0].mxu0
      %938 = vmatprep.mubr.bf16.mxu0 %v500
      %939 = vmatmul.mubr.bf16.gmra.mrb[0].mxu0 %v365
      %v940 = vpop.f32.mrb[0].mxu0
      %v941 = vadd.f32 0.0, %v940
      %v942 = vpop.f32.mrb[0].mxu0
      %v943 = vpop.f32.mrb[0].mxu0
      %v944 = vadd.f32 0.0, %v943
      %v945 = vpop.f32.mrb[0].mxu0
      %946 = vmatprep.mubr.bf16.mxu0 %v508
      %947 = vmatmul.mubr.bf16.gmra.mrb[0].mxu0 %v366
      %v948 = vpop.f32.mrb[0].mxu0
      %v949 = vadd.f32 0.0, %v948
      %v950 = vpop.f32.mrb[0].mxu0
      %v951 = vpop.f32.mrb[0].mxu0
      %v952 = vadd.f32 0.0, %v951
      %v953 = vpop.f32.mrb[0].mxu0
      %954 = vmatprep.mubr.bf16.mxu0 %v516
      %955 = vmatmul.mubr.bf16.gmra.mrb[0].mxu0 %v367
      %v956 = vpop.f32.mrb[0].mxu0
      %v957 = vadd.f32 0.0, %v956
      %v958 = vpop.f32.mrb[0].mxu0
      %v959 = vpop.f32.mrb[0].mxu0
      %v960 = vadd.f32 0.0, %v959
      %v961 = vpop.f32.mrb[0].mxu0
      %962 = vmatprep.mubr.bf16.mxu0 %v524
      %963 = vmatmul.mubr.bf16.gmra.mrb[0].mxu0 %v368
      %v964 = vpop.f32.mrb[0].mxu0
      %v965 = vadd.f32 0.0, %v964
      %v966 = vpop.f32.mrb[0].mxu0
      %v967 = vpop.f32.mrb[0].mxu0
      %v968 = vadd.f32 0.0, %v967
      %v969 = vpop.f32.mrb[0].mxu0
      %970 = vmatprep.mubr.bf16.mxu0 %v532
      %971 = vmatmul.mubr.bf16.gmra.mrb[0].mxu0 %v369
      %v972 = vpop.f32.mrb[0].mxu0
      %v973 = vadd.f32 0.0, %v972
      %v974 = vpop.f32.mrb[0].mxu0
      %v975 = vpop.f32.mrb[0].mxu0
      %v976 = vadd.f32 0.0, %v975
      %v977 = vpop.f32.mrb[0].mxu0
      %978 = vmatprep.mubr.bf16.mxu0 %v540
      %979 = vmatmul.mubr.bf16.gmra.mrb[0].mxu0 %v370
      %v980 = vpop.f32.mrb[0].mxu0
      %v981 = vadd.f32 0.0, %v980
      %v982 = vpop.f32.mrb[0].mxu0
      %v983 = vpop.f32.mrb[0].mxu0
      %v984 = vadd.f32 0.0, %v983
      %v985 = vpop.f32.mrb[0].mxu0
      %986 = vdwg.mxu0
      %987 = vmatprep.subr.bf16.mxu0 0
      %988 = vmatpush1.bf16.msra.mxu0 %v778
      %989 = vmatprep.subr.bf16.mxu0 0
      %990 = vmatpush1.bf16.msra.mxu0 %v779
      %991 = vmatprep.subr.bf16.mxu0 0
      %992 = vmatpush1.bf16.msra.mxu0 %v780
      %993 = vmatprep.subr.bf16.mxu0 0
      %994 = vmatpush1.bf16.msra.mxu0 %v781
      %995 = vmatprep.subr.bf16.mxu0 0
      %996 = vmatpush1.bf16.msra.mxu0 %v782
      %997 = vmatprep.subr.bf16.mxu0 0
      %998 = vmatpush1.bf16.msra.mxu0 %v783
      %999 = vmatprep.subr.bf16.mxu0 0
      %1000 = vmatpush1.bf16.msra.mxu0 %v784
      %1001 = vmatprep.subr.bf16.mxu0 0
      %1002 = vmatpush1.bf16.msra.mxu0 %v785
      %1003 = vmatprep.subr.bf16.mxu0 0
      %1004 = vmatpush1.bf16.msra.mxu0 0
      %1005 = vmatprep.subr.bf16.mxu0 0
      %1006 = vmatpush1.bf16.msra.mxu0 0
      %1007 = vmatprep.subr.bf16.mxu0 0
      %1008 = vmatpush1.bf16.msra.mxu0 0
      %1009 = vmatprep.subr.bf16.mxu0 0
      %1010 = vmatpush1.bf16.msra.mxu0 0
      %1011 = vmatprep.subr.bf16.mxu0 0
      %1012 = vmatpush1.bf16.msra.mxu0 0
      %1013 = vmatprep.subr.bf16.mxu0 0
      %1014 = vmatpush1.bf16.msra.mxu0 0
      %1015 = vmatprep.subr.bf16.mxu0 0
      %1016 = vmatpush1.bf16.msra.mxu0 0
      %1017 = vmatprep.subr.bf16.mxu0 0
      %1018 = vmatpush1.bf16.msra.mxu0 0
      %1019 = vmatprep.mubr.bf16.mxu0 0
      %1020 = vmatmul.mubr.bf16.gmra.mrb[0].mxu0 %v565
      %v1021 = vpop.f32.mrb[0].mxu0
      %v1022 = vadd.f32 %v845, %v1021
      %v1023 = vpop.f32.mrb[0].mxu0
      %v1024 = vpop.f32.mrb[0].mxu0
      %v1025 = vadd.f32 %v848, %v1024
      %v1026 = vpop.f32.mrb[0].mxu0
      %1027 = vmatprep.mubr.bf16.mxu0 0
      %1028 = vmatmul.mubr.bf16.gmra.mrb[0].mxu0 %v567
      %v1029 = vpop.f32.mrb[0].mxu0
      %v1030 = vadd.f32 %v853, %v1029
      %v1031 = vpop.f32.mrb[0].mxu0
      %v1032 = vpop.f32.mrb[0].mxu0
      %v1033 = vadd.f32 %v856, %v1032
      %v1034 = vpop.f32.mrb[0].mxu0
      %1035 = vmatprep.mubr.bf16.mxu0 0
      %1036 = vmatmul.mubr.bf16.gmra.mrb[0].mxu0 %v569
      %v1037 = vpop.f32.mrb[0].mxu0
      %v1038 = vadd.f32 %v861, %v1037
      %v1039 = vpop.f32.mrb[0].mxu0
      %v1040 = vpop.f32.mrb[0].mxu0
      %v1041 = vadd.f32 %v864, %v1040
      %v1042 = vpop.f32.mrb[0].mxu0
      %1043 = vmatprep.mubr.bf16.mxu0 0
      %1044 = vmatmul.mubr.bf16.gmra.mrb[0].mxu0 %v571
      %v1045 = vpop.f32.mrb[0].mxu0
      %v1046 = vadd.f32 %v869, %v1045
      %v1047 = vpop.f32.mrb[0].mxu0
      %v1048 = vpop.f32.mrb[0].mxu0
      %v1049 = vadd.f32 %v872, %v1048
      %v1050 = vpop.f32.mrb[0].mxu0
      %1051 = vmatprep.mubr.bf16.mxu0 0
      %1052 = vmatmul.mubr.bf16.gmra.mrb[0].mxu0 %v573
      %v1053 = vpop.f32.mrb[0].mxu0
      %v1054 = vadd.f32 %v877, %v1053
      %v1055 = vpop.f32.mrb[0].mxu0
      %v1056 = vpop.f32.mrb[0].mxu0
      %v1057 = vadd.f32 %v880, %v1056
      %v1058 = vpop.f32.mrb[0].mxu0
      %1059 = vmatprep.mubr.bf16.mxu0 0
      %1060 = vmatmul.mubr.bf16.gmra.mrb[0].mxu0 %v575
      %v1061 = vpop.f32.mrb[0].mxu0
      %v1062 = vadd.f32 %v885, %v1061
      %v1063 = vpop.f32.mrb[0].mxu0
      %v1064 = vpop.f32.mrb[0].mxu0
      %v1065 = vadd.f32 %v888, %v1064
      %v1066 = vpop.f32.mrb[0].mxu0
      %1067 = vmatprep.mubr.bf16.mxu0 0
      %1068 = vmatmul.mubr.bf16.gmra.mrb[0].mxu0 %v577
      %v1069 = vpop.f32.mrb[0].mxu0
      %v1070 = vadd.f32 %v893, %v1069
      %v1071 = vpop.f32.mrb[0].mxu0
      %v1072 = vpop.f32.mrb[0].mxu0
      %v1073 = vadd.f32 %v896, %v1072
      %v1074 = vpop.f32.mrb[0].mxu0
      %1075 = vmatprep.mubr.bf16.mxu0 0
      %1076 = vmatmul.mubr.bf16.gmra.mrb[0].mxu0 %v579
      %v1077 = vpop.f32.mrb[0].mxu0
      %v1078 = vadd.f32 %v901, %v1077
      %v1079 = vpop.f32.mrb[0].mxu0
      %v1080 = vpop.f32.mrb[0].mxu0
      %v1081 = vadd.f32 %v904, %v1080
      %v1082 = vpop.f32.mrb[0].mxu0
      %1083 = vmatprep.mubr.bf16.mxu0 0
      %1084 = vmatmul.mubr.bf16.gmra.mrb[0].mxu0 %v581
      %v1085 = vpop.f32.mrb[0].mxu0
      %v1086 = vadd.f32 %v909, %v1085
      %v1087 = vpop.f32.mrb[0].mxu0
      %v1088 = vpop.f32.mrb[0].mxu0
      %v1089 = vadd.f32 %v912, %v1088
      %v1090 = vpop.f32.mrb[0].mxu0
      %1091 = vmatprep.mubr.bf16.mxu0 0
      %1092 = vmatmul.mubr.bf16.gmra.mrb[0].mxu0 %v583
      %v1093 = vpop.f32.mrb[0].mxu0
      %v1094 = vadd.f32 %v917, %v1093
      %v1095 = vpop.f32.mrb[0].mxu0
      %v1096 = vpop.f32.mrb[0].mxu0
      %v1097 = vadd.f32 %v920, %v1096
      %v1098 = vpop.f32.mrb[0].mxu0
      %1099 = vmatprep.mubr.bf16.mxu0 0
      %1100 = vmatmul.mubr.bf16.gmra.mrb[0].mxu0 %v585
      %v1101 = vpop.f32.mrb[0].mxu0
      %v1102 = vadd.f32 %v925, %v1101
      %v1103 = vpop.f32.mrb[0].mxu0
      %v1104 = vpop.f32.mrb[0].mxu0
      %v1105 = vadd.f32 %v928, %v1104
      %v1106 = vpop.f32.mrb[0].mxu0
      %1107 = vmatprep.mubr.bf16.mxu0 0
      %1108 = vmatmul.mubr.bf16.gmra.mrb[0].mxu0 %v587
      %v1109 = vpop.f32.mrb[0].mxu0
      %v1110 = vadd.f32 %v933, %v1109
      %v1111 = vpop.f32.mrb[0].mxu0
      %v1112 = vpop.f32.mrb[0].mxu0
      %v1113 = vadd.f32 %v936, %v1112
      %v1114 = vpop.f32.mrb[0].mxu0
      %1115 = vmatprep.mubr.bf16.mxu0 0
      %1116 = vmatmul.mubr.bf16.gmra.mrb[0].mxu0 %v589
      %v1117 = vpop.f32.mrb[0].mxu0
      %v1118 = vadd.f32 %v941, %v1117
      %v1119 = vpop.f32.mrb[0].mxu0
      %v1120 = vpop.f32.mrb[0].mxu0
      %v1121 = vadd.f32 %v944, %v1120
      %v1122 = vpop.f32.mrb[0].mxu0
      %1123 = vmatprep.mubr.bf16.mxu0 0
      %1124 = vmatmul.mubr.bf16.gmra.mrb[0].mxu0 %v591
      %v1125 = vpop.f32.mrb[0].mxu0
      %v1126 = vadd.f32 %v949, %v1125
      %v1127 = vpop.f32.mrb[0].mxu0
      %v1128 = vpop.f32.mrb[0].mxu0
      %v1129 = vadd.f32 %v952, %v1128
      %v1130 = vpop.f32.mrb[0].mxu0
      %1131 = vmatprep.mubr.bf16.mxu0 0
      %1132 = vmatmul.mubr.bf16.gmra.mrb[0].mxu0 %v593
      %v1133 = vpop.f32.mrb[0].mxu0
      %v1134 = vadd.f32 %v957, %v1133
      %v1135 = vpop.f32.mrb[0].mxu0
      %v1136 = vpop.f32.mrb[0].mxu0
      %v1137 = vadd.f32 %v960, %v1136
      %v1138 = vpop.f32.mrb[0].mxu0
      %1139 = vmatprep.mubr.bf16.mxu0 0
      %1140 = vmatmul.mubr.bf16.gmra.mrb[0].mxu0 %v595
      %v1141 = vpop.f32.mrb[0].mxu0
      %v1142 = vadd.f32 %v965, %v1141
      %v1143 = vpop.f32.mrb[0].mxu0
      %v1144 = vpop.f32.mrb[0].mxu0
      %v1145 = vadd.f32 %v968, %v1144
      %v1146 = vpop.f32.mrb[0].mxu0
      %1147 = vmatprep.mubr.bf16.mxu0 0
      %1148 = vmatmul.mubr.bf16.gmra.mrb[0].mxu0 %v597
      %v1149 = vpop.f32.mrb[0].mxu0
      %v1150 = vadd.f32 %v973, %v1149
      %v1151 = vpop.f32.mrb[0].mxu0
      %v1152 = vpop.f32.mrb[0].mxu0
      %v1153 = vadd.f32 %v976, %v1152
      %v1154 = vpop.f32.mrb[0].mxu0
      %1155 = vmatprep.mubr.bf16.mxu0 0
      %1156 = vmatmul.mubr.bf16.gmra.mrb[0].mxu0 %v599
      %v1157 = vpop.f32.mrb[0].mxu0
      %v1158 = vadd.f32 %v981, %v1157
      %v1159 = vpop.f32.mrb[0].mxu0
      %v1160 = vpop.f32.mrb[0].mxu0
      %v1161 = vadd.f32 %v984, %v1160
      %v1162 = vpop.f32.mrb[0].mxu0
      %1163 = vdwg.mxu0
      %1164 = vst [vmem:[#allocation2] sm:$0xff] %v1022
      %1165 = vst [vmem:[#allocation2 + $0x8] sm:$0xff] %v1025
      %1166 = vst [vmem:[#allocation2 + $0x10] sm:$0xff] %v1030
      %1167 = vst [vmem:[#allocation2 + $0x18] sm:$0xff] %v1033
      %1168 = vst [vmem:[#allocation2 + $0x20] sm:$0xff] %v1038
      %1169 = vst [vmem:[#allocation2 + $0x28] sm:$0xff] %v1041
      %1170 = vst [vmem:[#allocation2 + $0x30] sm:$0xff] %v1046
      %1171 = vst [vmem:[#allocation2 + $0x38] sm:$0xff] %v1049
      %1172 = vst [vmem:[#allocation2 + $0x40] sm:$0xff] %v1054
      %1173 = vst [vmem:[#allocation2 + $0x48] sm:$0xff] %v1057
      %1174 = vst [vmem:[#allocation2 + $0x50] sm:$0xff] %v1062
      %1175 = vst [vmem:[#allocation2 + $0x58] sm:$0xff] %v1065
      %1176 = vst [vmem:[#allocation2 + $0x60] sm:$0xff] %v1070
      %1177 = vst [vmem:[#allocation2 + $0x68] sm:$0xff] %v1073
      %1178 = vst [vmem:[#allocation2 + $0x70] sm:$0xff] %v1078
      %1179 = vst [vmem:[#allocation2 + $0x78] sm:$0xff] %v1081
      %1180 = vst [vmem:[#allocation2 + $0x80] sm:$0xff] %v1086
      %1181 = vst [vmem:[#allocation2 + $0x88] sm:$0xff] %v1089
      %1182 = vst [vmem:[#allocation2 + $0x90] sm:$0xff] %v1094
      %1183 = vst [vmem:[#allocation2 + $0x98] sm:$0xff] %v1097
      %1184 = vst [vmem:[#allocation2 + $0xa0] sm:$0xff] %v1102
      %1185 = vst [vmem:[#allocation2 + $0xa8] sm:$0xff] %v1105
      %1186 = vst [vmem:[#allocation2 + $0xb0] sm:$0xff] %v1110
      %1187 = vst [vmem:[#allocation2 + $0xb8] sm:$0xff] %v1113
      %1188 = vst [vmem:[#allocation2 + $0xc0] sm:$0xff] %v1118
      %1189 = vst [vmem:[#allocation2 + $0xc8] sm:$0xff] %v1121
      %1190 = vst [vmem:[#allocation2 + $0xd0] sm:$0xff] %v1126
      %1191 = vst [vmem:[#allocation2 + $0xd8] sm:$0xff] %v1129
      %1192 = vst [vmem:[#allocation2 + $0xe0] sm:$0xff] %v1134
      %1193 = vst [vmem:[#allocation2 + $0xe8] sm:$0xff] %v1137
      %1194 = vst [vmem:[#allocation2 + $0xf0] sm:$0xff] %v1142
      %1195 = vst [vmem:[#allocation2 + $0xf8] sm:$0xff] %v1145
      %1196 = vst [vmem:[#allocation2 + $0x100] sm:$0xff] %v1150
      %1197 = vst [vmem:[#allocation2 + $0x108] sm:$0xff] %v1153
      %1198 = vst [vmem:[#allocation2 + $0x110] sm:$0xff] %v1158
      %1199 = vst [vmem:[#allocation2 + $0x118] sm:$0xff] %v1161
      %v1200 = vld [vmem:[%s230 + $0x8] sm:$0xe]
      %v1201 = vld [vmem:[%s230 + $0xc] sm:$0xf]
      %v1202 = vld [vmem:[%s230 + $0x10] sm:$0xf]
      %v1203 = vld [vmem:[%s230 + $0x14] sm:$0xf]
      %v1204 = vld [vmem:[%s230 + $0x18] sm:$0xf]
      %v1205 = vld [vmem:[%s230 + $0x1c] sm:$0xf]
      %v1206 = vld [vmem:[%s230 + $0x20] sm:$0xf]
      %v1207 = vld [vmem:[%s230 + $0x24] sm:$0xf]
      %v1208 = vld [vmem:[%s230 + $0x28] sm:$0xf]
      %v1209 = vld [vmem:[%s230 + $0x2c] sm:$0xf]
      %v1210 = vld [vmem:[%s230 + $0x30] sm:$0xf]
      %v1211 = vld [vmem:[%s230 + $0x34] sm:$0xf]
      %v1212 = vld [vmem:[%s230 + $0x38] sm:$0xf]
      %v1213 = vld [vmem:[%s230 + $0x3c] sm:$0xf]
      %v1214 = vld [vmem:[%s230 + $0x40] sm:$0xf]
      %v1215 = vld [vmem:[%s230 + $0x44] sm:$0xf]
      %v1216 = vld [vmem:[%s230 + $0x48] sm:$0xf]
      %v1217 = vld [vmem:[%s230 + $0x4c] sm:$0xf]
      %v1218 = vld [vmem:[%s230 + $0x50] sm:$0xf]
      %v1219 = vld [vmem:[%s230 + $0x54] sm:$0xf]
      %v1220 = vld [vmem:[%s230 + $0x58] sm:$0xf]
      %v1221 = vld [vmem:[%s230 + $0x5c] sm:$0xf]
      %v1222 = vld [vmem:[%s230 + $0x60] sm:$0xf]
      %v1223 = vld [vmem:[%s230 + $0x64] sm:$0xf]
      %v1224 = vld [vmem:[%s230 + $0x68] sm:$0xf]
      %v1225 = vld [vmem:[%s230 + $0x6c] sm:$0xf]
      %v1226 = vld [vmem:[%s230 + $0x70] sm:$0xf]
      %v1227 = vld [vmem:[%s230 + $0x74] sm:$0xf]
      %v1228 = vld [vmem:[%s230 + $0x78] sm:$0xf]
      %v1229 = vld [vmem:[%s230 + $0x7c] sm:$0xf]
      %v1230 = vld [vmem:[%s230 + $0x80] sm:$0xf]
      %v1231 = vld [vmem:[%s230 + $0x84] sm:$0xf]
      %v1232 = vld [vmem:[%s230 + $0x88] sm:$0xf]
      %v1233 = vld [vmem:[%s230 + $0x8c] sm:$0xf]
      %v1234 = vld [vmem:[%s230 + $0x90] sm:$0xf]
      %v1235 = vld [vmem:[%s230 + $0x94] sm:$0xf]
      %v1236 = vld [vmem:[%s230 + $0x98] sm:$0x1]
      %v1237 = vld [vmem:[%s230 + $0x98] sm:$0x3]
      %v1238 = vld [vmem:[%s230 + $0x8] sm:$0xc]
      %v1276 = vunpack.c.l.b16 %v1200
      %v1277 = vunpack.c.l.b16 %v1201
      %v1278 = vunpack.c.l.b16 %v1202
      %v1279 = vunpack.c.l.b16 %v1203
      %v1280 = vunpack.c.l.b16 %v1204
      %v1281 = vunpack.c.l.b16 %v1205
      %v1282 = vunpack.c.l.b16 %v1206
      %v1283 = vunpack.c.l.b16 %v1207
      %v1284 = vunpack.c.l.b16 %v1208
      %v1285 = vunpack.c.l.b16 %v1209
      %v1286 = vunpack.c.l.b16 %v1210
      %v1287 = vunpack.c.l.b16 %v1211
      %v1288 = vunpack.c.l.b16 %v1212
      %v1289 = vunpack.c.l.b16 %v1213
      %v1290 = vunpack.c.l.b16 %v1214
      %v1291 = vunpack.c.l.b16 %v1215
      %v1292 = vunpack.c.l.b16 %v1216
      %v1293 = vunpack.c.l.b16 %v1217
      %v1294 = vunpack.c.l.b16 %v1218
      %v1295 = vunpack.c.l.b16 %v1219
      %v1296 = vunpack.c.l.b16 %v1220
      %v1297 = vunpack.c.l.b16 %v1221
      %v1298 = vunpack.c.l.b16 %v1222
      %v1299 = vunpack.c.l.b16 %v1223
      %v1300 = vunpack.c.l.b16 %v1224
      %v1301 = vunpack.c.l.b16 %v1225
      %v1302 = vunpack.c.l.b16 %v1226
      %v1303 = vunpack.c.l.b16 %v1227
      %v1304 = vunpack.c.l.b16 %v1228
      %v1305 = vunpack.c.l.b16 %v1229
      %v1306 = vunpack.c.l.b16 %v1230
      %v1307 = vunpack.c.l.b16 %v1231
      %v1308 = vunpack.c.l.b16 %v1232
      %v1309 = vunpack.c.l.b16 %v1233
      %v1310 = vunpack.c.l.b16 %v1234
      %v1311 = vunpack.c.l.b16 %v1235
      %v1312 = vunpack.c.l.b16 %v1236
      %v1313 = vpack.c.b16 %v1277, %v1276
      %v1314 = vpack.c.b16 %v1279, %v1278
      %v1315 = vpack.c.b16 %v1281, %v1280
      %v1316 = vpack.c.b16 %v1283, %v1282
      %v1317 = vpack.c.b16 %v1285, %v1284
      %v1318 = vpack.c.b16 %v1287, %v1286
      %v1319 = vpack.c.b16 %v1289, %v1288
      %v1320 = vpack.c.b16 %v1291, %v1290
      %v1321 = vpack.c.b16 %v1293, %v1292
      %v1322 = vpack.c.b16 %v1295, %v1294
      %v1323 = vpack.c.b16 %v1297, %v1296
      %v1324 = vpack.c.b16 %v1299, %v1298
      %v1325 = vpack.c.b16 %v1301, %v1300
      %v1326 = vpack.c.b16 %v1303, %v1302
      %v1327 = vpack.c.b16 %v1305, %v1304
      %v1328 = vpack.c.b16 %v1307, %v1306
      %v1329 = vpack.c.b16 %v1309, %v1308
      %v1330 = vpack.c.b16 %v1311, %v1310
      %v1331 = vpack.c.b16 %v1312, %v1312
      %v1333 = vunpack.c.l.b16 %v1237
      %v1334 = vpack.c.b16 %v1333, %v1333
      %v1336 = vshrl.u32 %v1313, 16
      %v1338 = vshll.u32 %v1313, 16
      %v1340 = vrot.slane %v1338, 1
      %v1341 = vor.u32 %v1336, %v1340
      %v1343 = vshll.u32 %v1314, 16
      %v1345 = vrot.slane %v1343, 1
      %v1346 = vsel %vm392, %v1341, %v1345
      %v1347 = vshrl.u32 %v1314, 16
      %v1349 = vor.u32 %v1347, %v1345
      %v1351 = vshll.u32 %v1315, 16
      %v1353 = vrot.slane %v1351, 1
      %v1354 = vsel %vm392, %v1349, %v1353
      %v1355 = vshrl.u32 %v1315, 16
      %v1357 = vor.u32 %v1355, %v1353
      %v1359 = vshll.u32 %v1316, 16
      %v1361 = vrot.slane %v1359, 1
      %v1362 = vsel %vm392, %v1357, %v1361
      %v1363 = vshrl.u32 %v1316, 16
      %v1365 = vor.u32 %v1363, %v1361
      %v1367 = vshll.u32 %v1317, 16
      %v1369 = vrot.slane %v1367, 1
      %v1370 = vsel %vm392, %v1365, %v1369
      %v1371 = vshrl.u32 %v1317, 16
      %v1373 = vor.u32 %v1371, %v1369
      %v1375 = vshll.u32 %v1318, 16
      %v1377 = vrot.slane %v1375, 1
      %v1378 = vsel %vm392, %v1373, %v1377
      %v1379 = vshrl.u32 %v1318, 16
      %v1381 = vor.u32 %v1379, %v1377
      %v1383 = vshll.u32 %v1319, 16
      %v1385 = vrot.slane %v1383, 1
      %v1386 = vsel %vm392, %v1381, %v1385
      %v1387 = vshrl.u32 %v1319, 16
      %v1389 = vor.u32 %v1387, %v1385
      %v1391 = vshll.u32 %v1320, 16
      %v1393 = vrot.slane %v1391, 1
      %v1394 = vsel %vm392, %v1389, %v1393
      %v1395 = vshrl.u32 %v1320, 16
      %v1397 = vor.u32 %v1395, %v1393
      %v1399 = vshll.u32 %v1321, 16
      %v1401 = vrot.slane %v1399, 1
      %v1402 = vsel %vm392, %v1397, %v1401
      %v1403 = vshrl.u32 %v1321, 16
      %v1405 = vor.u32 %v1403, %v1401
      %v1407 = vshll.u32 %v1322, 16
      %v1409 = vrot.slane %v1407, 1
      %v1410 = vsel %vm392, %v1405, %v1409
      %v1411 = vshrl.u32 %v1322, 16
      %v1413 = vor.u32 %v1411, %v1409
      %v1415 = vshll.u32 %v1323, 16
      %v1417 = vrot.slane %v1415, 1
      %v1418 = vsel %vm392, %v1413, %v1417
      %v1419 = vshrl.u32 %v1323, 16
      %v1421 = vor.u32 %v1419, %v1417
      %v1423 = vshll.u32 %v1324, 16
      %v1425 = vrot.slane %v1423, 1
      %v1426 = vsel %vm392, %v1421, %v1425
      %v1427 = vshrl.u32 %v1324, 16
      %v1429 = vor.u32 %v1427, %v1425
      %v1431 = vshll.u32 %v1325, 16
      %v1433 = vrot.slane %v1431, 1
      %v1434 = vsel %vm392, %v1429, %v1433
      %v1435 = vshrl.u32 %v1325, 16
      %v1437 = vor.u32 %v1435, %v1433
      %v1439 = vshll.u32 %v1326, 16
      %v1441 = vrot.slane %v1439, 1
      %v1442 = vsel %vm392, %v1437, %v1441
      %v1443 = vshrl.u32 %v1326, 16
      %v1445 = vor.u32 %v1443, %v1441
      %v1447 = vshll.u32 %v1327, 16
      %v1449 = vrot.slane %v1447, 1
      %v1450 = vsel %vm392, %v1445, %v1449
      %v1451 = vshrl.u32 %v1327, 16
      %v1453 = vor.u32 %v1451, %v1449
      %v1455 = vshll.u32 %v1328, 16
      %v1457 = vrot.slane %v1455, 1
      %v1458 = vsel %vm392, %v1453, %v1457
      %v1459 = vshrl.u32 %v1328, 16
      %v1461 = vor.u32 %v1459, %v1457
      %v1463 = vshll.u32 %v1329, 16
      %v1465 = vrot.slane %v1463, 1
      %v1466 = vsel %vm392, %v1461, %v1465
      %v1467 = vshrl.u32 %v1329, 16
      %v1469 = vor.u32 %v1467, %v1465
      %v1471 = vshll.u32 %v1330, 16
      %v1473 = vrot.slane %v1471, 1
      %v1474 = vsel %vm392, %v1469, %v1473
      %v1475 = vshrl.u32 %v1330, 16
      %v1477 = vor.u32 %v1475, %v1473
      %v1479 = vshll.u32 %v1334, 16
      %v1481 = vrot.slane %v1479, 1
      %v1482 = vsel %vm392, %v1477, %v1481
      %v1483 = vshrl.u32 %v1334, 16
      %v1485 = vor.u32 %v1483, %v1481
      %v1487 = vunpack.c.l.b16 %v1238
      %v1488 = vpack.c.b16 %v1277, %v1487
      %v1489 = vrot.slane %v1488, 1
      %v1490 = vrot.slane %v1314, 1
      %v1491 = vsel %vm562, %v1489, %v1490
      %v1492 = vrot.slane %v1315, 1
      %v1493 = vsel %vm562, %v1490, %v1492
      %v1494 = vrot.slane %v1316, 1
      %v1495 = vsel %vm562, %v1492, %v1494
      %v1496 = vrot.slane %v1317, 1
      %v1497 = vsel %vm562, %v1494, %v1496
      %v1498 = vrot.slane %v1318, 1
      %v1499 = vsel %vm562, %v1496, %v1498
      %v1500 = vrot.slane %v1319, 1
      %v1501 = vsel %vm562, %v1498, %v1500
      %v1502 = vrot.slane %v1320, 1
      %v1503 = vsel %vm562, %v1500, %v1502
      %v1504 = vrot.slane %v1321, 1
      %v1505 = vsel %vm562, %v1502, %v1504
      %v1506 = vrot.slane %v1322, 1
      %v1507 = vsel %vm562, %v1504, %v1506
      %v1508 = vrot.slane %v1323, 1
      %v1509 = vsel %vm562, %v1506, %v1508
      %v1510 = vrot.slane %v1324, 1
      %v1511 = vsel %vm562, %v1508, %v1510
      %v1512 = vrot.slane %v1325, 1
      %v1513 = vsel %vm562, %v1510, %v1512
      %v1514 = vrot.slane %v1326, 1
      %v1515 = vsel %vm562, %v1512, %v1514
      %v1516 = vrot.slane %v1327, 1
      %v1517 = vsel %vm562, %v1514, %v1516
      %v1518 = vrot.slane %v1328, 1
      %v1519 = vsel %vm562, %v1516, %v1518
      %v1520 = vrot.slane %v1329, 1
      %v1521 = vsel %vm562, %v1518, %v1520
      %v1522 = vrot.slane %v1330, 1
      %v1523 = vsel %vm562, %v1520, %v1522
      %v1524 = vrot.slane %v1334, 1
      %v1525 = vsel %vm562, %v1522, %v1524
      %s1526 = scalar_lea.vmem %s1, 192
      %v1527 = vld [vmem:[%s1526] sm:$0xf]
      %v1528 = vld [vmem:[%s1526 + $0x4] sm:$0xf]
      %v1529 = vld [vmem:[%s1526 + $0x8] sm:$0xf]
      %v1530 = vld [vmem:[%s1526 + $0xc] sm:$0xf]
      %v1531 = vld [vmem:[%s1526 + $0x10] sm:$0xf]
      %v1532 = vld [vmem:[%s1526 + $0x14] sm:$0xf]
      %v1533 = vld [vmem:[%s1526 + $0x18] sm:$0xf]
      %v1534 = vld [vmem:[%s1526 + $0x1c] sm:$0xf]
      %v1535 = vld [vmem:[%s1526 + $0x20] sm:$0xf]
      %v1536 = vld [vmem:[%s1526 + $0x24] sm:$0xf]
      %v1537 = vld [vmem:[%s1526 + $0x28] sm:$0xf]
      %v1538 = vld [vmem:[%s1526 + $0x2c] sm:$0xf]
      %v1539 = vld [vmem:[%s1526 + $0x30] sm:$0xf]
      %v1540 = vld [vmem:[%s1526 + $0x34] sm:$0xf]
      %v1541 = vld [vmem:[%s1526 + $0x38] sm:$0xf]
      %v1542 = vld [vmem:[%s1526 + $0x3c] sm:$0xf]
      %v1543 = vld [vmem:[%s1526 + $0x40] sm:$0xf]
      %v1544 = vld [vmem:[%s1526 + $0x44] sm:$0xf]
      %v1545 = vld [vmem:[%s1526 + $0x48] sm:$0xf]
      %v1546 = vld [vmem:[%s1526 + $0x4c] sm:$0xf]
      %v1547 = vld [vmem:[%s1526 + $0x50] sm:$0xf]
      %v1548 = vld [vmem:[%s1526 + $0x54] sm:$0xf]
      %v1549 = vld [vmem:[%s1526 + $0x58] sm:$0xf]
      %v1550 = vld [vmem:[%s1526 + $0x5c] sm:$0xf]
      %v1551 = vld [vmem:[%s1526 + $0x60] sm:$0xf]
      %v1552 = vld [vmem:[%s1526 + $0x64] sm:$0xf]
      %v1553 = vld [vmem:[%s1526 + $0x68] sm:$0xf]
      %v1554 = vld [vmem:[%s1526 + $0x6c] sm:$0xf]
      %v1555 = vld [vmem:[%s1526 + $0x70] sm:$0xf]
      %v1556 = vld [vmem:[%s1526 + $0x74] sm:$0xf]
      %v1557 = vld [vmem:[%s1526 + $0x78] sm:$0xf]
      %v1558 = vld [vmem:[%s1526 + $0x7c] sm:$0xf]
      %v1559 = vld [vmem:[%s1526 + $0x80] sm:$0xf]
      %v1560 = vld [vmem:[%s1526 + $0x84] sm:$0xf]
      %v1561 = vld [vmem:[%s1526 + $0x88] sm:$0xf]
      %v1562 = vld [vmem:[%s1526 + $0x8c] sm:$0xf]
      %v1563 = vld [vmem:[%s1526 + $0x90] sm:$0xf]
      %v1564 = vld [vmem:[%s1526 + $0x94] sm:$0xf]
      %v1565 = vld [vmem:[%s1526 + $0x98] sm:$0xf]
      %v1566 = vld [vmem:[%s1526 + $0x9c] sm:$0xf]
      %v1567 = vld [vmem:[%s1526 + $0xa0] sm:$0xf]
      %v1568 = vld [vmem:[%s1526 + $0xa4] sm:$0xf]
      %v1569 = vld [vmem:[%s1526 + $0xa8] sm:$0xf]
      %v1570 = vld [vmem:[%s1526 + $0xac] sm:$0xf]
      %v1571 = vld [vmem:[%s1526 + $0xb0] sm:$0xf]
      %v1572 = vld [vmem:[%s1526 + $0xb4] sm:$0xf]
      %v1573 = vld [vmem:[%s1526 + $0xb8] sm:$0xf]
      %v1574 = vld [vmem:[%s1526 + $0xbc] sm:$0xf]
      %v1575 = vrot.slane %v1313, 1
      %v1576 = vsel %vm562, %v1575, %v1490
      %v1577 = vrot.slane %v1346, 1
      %v1578 = vrot.slane %v1354, 1
      %v1579 = vsel %vm562, %v1577, %v1578
      %v1580 = vrot.slane %v1491, 1
      %v1581 = vrot.slane %v1493, 1
      %v1582 = vsel %vm562, %v1580, %v1581
      %v1583 = vrot.slane %v1362, 1
      %v1584 = vsel %vm562, %v1578, %v1583
      %v1585 = vrot.slane %v1495, 1
      %v1586 = vsel %vm562, %v1581, %v1585
      %v1587 = vrot.slane %v1370, 1
      %v1588 = vsel %vm562, %v1583, %v1587
      %v1589 = vrot.slane %v1497, 1
      %v1590 = vsel %vm562, %v1585, %v1589
      %v1591 = vrot.slane %v1378, 1
      %v1592 = vsel %vm562, %v1587, %v1591
      %v1593 = vrot.slane %v1499, 1
      %v1594 = vsel %vm562, %v1589, %v1593
      %v1595 = vrot.slane %v1386, 1
      %v1596 = vsel %vm562, %v1591, %v1595
      %v1597 = vrot.slane %v1501, 1
      %v1598 = vsel %vm562, %v1593, %v1597
      %v1599 = vrot.slane %v1394, 1
      %v1600 = vsel %vm562, %v1595, %v1599
      %v1601 = vrot.slane %v1503, 1
      %v1602 = vsel %vm562, %v1597, %v1601
      %v1603 = vrot.slane %v1402, 1
      %v1604 = vsel %vm562, %v1599, %v1603
      %v1605 = vrot.slane %v1505, 1
      %v1606 = vsel %vm562, %v1601, %v1605
      %v1607 = vrot.slane %v1410, 1
      %v1608 = vsel %vm562, %v1603, %v1607
      %v1609 = vrot.slane %v1507, 1
      %v1610 = vsel %vm562, %v1605, %v1609
      %v1611 = vrot.slane %v1418, 1
      %v1612 = vsel %vm562, %v1607, %v1611
      %v1613 = vrot.slane %v1509, 1
      %v1614 = vsel %vm562, %v1609, %v1613
      %v1615 = vrot.slane %v1426, 1
      %v1616 = vsel %vm562, %v1611, %v1615
      %v1617 = vrot.slane %v1511, 1
      %v1618 = vsel %vm562, %v1613, %v1617
      %v1619 = vrot.slane %v1434, 1
      %v1620 = vsel %vm562, %v1615, %v1619
      %v1621 = vrot.slane %v1513, 1
      %v1622 = vsel %vm562, %v1617, %v1621
      %v1623 = vrot.slane %v1442, 1
      %v1624 = vsel %vm562, %v1619, %v1623
      %v1625 = vrot.slane %v1515, 1
      %v1626 = vsel %vm562, %v1621, %v1625
      %v1627 = vrot.slane %v1450, 1
      %v1628 = vsel %vm562, %v1623, %v1627
      %v1629 = vrot.slane %v1517, 1
      %v1630 = vsel %vm562, %v1625, %v1629
      %v1631 = vrot.slane %v1458, 1
      %v1632 = vsel %vm562, %v1627, %v1631
      %v1633 = vrot.slane %v1519, 1
      %v1634 = vsel %vm562, %v1629, %v1633
      %v1635 = vrot.slane %v1466, 1
      %v1636 = vsel %vm562, %v1631, %v1635
      %v1637 = vrot.slane %v1521, 1
      %v1638 = vsel %vm562, %v1633, %v1637
      %v1639 = vrot.slane %v1474, 1
      %v1640 = vsel %vm562, %v1635, %v1639
      %v1641 = vrot.slane %v1523, 1
      %v1642 = vsel %vm562, %v1637, %v1641
      %v1643 = vrot.slane %v1482, 1
      %v1644 = vsel %vm562, %v1639, %v1643
      %v1645 = vrot.slane %v1525, 1
      %v1646 = vsel %vm562, %v1641, %v1645
      %v1647 = vrot.slane %v1331, 1
      %v1648 = vsel %vm562, %v1522, %v1647
      %v1649 = vrot.slane %v1485, 1
      %v1650 = vsel %vm562, %v1643, %v1649
      %v1651 = vrot.slane %v1524, 1
      %v1652 = vsel %vm562, %v1645, %v1651
      %v1755 = vunpack.c.l.b16 %v1527
      %v1756 = vunpack.c.l.b16 %v1528
      %v1757 = vunpack.c.l.b16 %v1529
      %v1758 = vunpack.c.l.b16 %v1530
      %v1759 = vunpack.c.l.b16 %v1531
      %v1760 = vunpack.c.l.b16 %v1532
      %v1761 = vunpack.c.l.b16 %v1533
      %v1762 = vunpack.c.l.b16 %v1534
      %v1763 = vunpack.c.l.b16 %v1535
      %v1764 = vunpack.c.l.b16 %v1536
      %v1765 = vunpack.c.l.b16 %v1537
      %v1766 = vunpack.c.l.b16 %v1538
      %v1767 = vunpack.c.l.b16 %v1539
      %v1768 = vunpack.c.l.b16 %v1540
      %v1769 = vunpack.c.l.b16 %v1541
      %v1770 = vunpack.c.l.b16 %v1542
      %v1771 = vunpack.c.l.b16 %v1543
      %v1772 = vunpack.c.l.b16 %v1544
      %v1773 = vunpack.c.l.b16 %v1545
      %v1774 = vunpack.c.l.b16 %v1546
      %v1775 = vunpack.c.l.b16 %v1547
      %v1776 = vunpack.c.l.b16 %v1548
      %v1777 = vunpack.c.l.b16 %v1549
      %v1778 = vunpack.c.l.b16 %v1550
      %v1779 = vunpack.c.l.b16 %v1551
      %v1780 = vunpack.c.l.b16 %v1552
      %v1781 = vunpack.c.l.b16 %v1553
      %v1782 = vunpack.c.l.b16 %v1554
      %v1783 = vunpack.c.l.b16 %v1555
      %v1784 = vunpack.c.l.b16 %v1556
      %v1785 = vunpack.c.l.b16 %v1557
      %v1786 = vunpack.c.l.b16 %v1558
      %v1787 = vunpack.c.l.b16 %v1559
      %v1788 = vunpack.c.l.b16 %v1560
      %v1789 = vunpack.c.l.b16 %v1561
      %v1790 = vunpack.c.l.b16 %v1562
      %v1791 = vunpack.c.l.b16 %v1563
      %v1792 = vunpack.c.l.b16 %v1564
      %v1793 = vunpack.c.l.b16 %v1565
      %v1794 = vunpack.c.l.b16 %v1566
      %v1795 = vunpack.c.l.b16 %v1567
      %v1796 = vunpack.c.l.b16 %v1568
      %v1797 = vunpack.c.l.b16 %v1569
      %v1798 = vunpack.c.l.b16 %v1570
      %v1799 = vunpack.c.l.b16 %v1571
      %v1800 = vunpack.c.l.b16 %v1572
      %v1801 = vunpack.c.l.b16 %v1573
      %v1802 = vunpack.c.l.b16 %v1574
      %v1803 = vpack.c.b16 %v1756, %v1755
      %v1804 = vpack.c.b16 %v1758, %v1757
      %v1805 = vpack.c.b16 %v1760, %v1759
      %v1806 = vpack.c.b16 %v1762, %v1761
      %v1807 = vpack.c.b16 %v1764, %v1763
      %v1808 = vpack.c.b16 %v1766, %v1765
      %v1809 = vpack.c.b16 %v1768, %v1767
      %v1810 = vpack.c.b16 %v1770, %v1769
      %v1811 = vpack.c.b16 %v1772, %v1771
      %v1812 = vpack.c.b16 %v1774, %v1773
      %v1813 = vpack.c.b16 %v1776, %v1775
      %v1814 = vpack.c.b16 %v1778, %v1777
      %v1815 = vpack.c.b16 %v1780, %v1779
      %v1816 = vpack.c.b16 %v1782, %v1781
      %v1817 = vpack.c.b16 %v1784, %v1783
      %v1818 = vpack.c.b16 %v1786, %v1785
      %v1819 = vpack.c.b16 %v1788, %v1787
      %v1820 = vpack.c.b16 %v1790, %v1789
      %v1821 = vpack.c.b16 %v1792, %v1791
      %v1822 = vpack.c.b16 %v1794, %v1793
      %v1823 = vpack.c.b16 %v1796, %v1795
      %v1824 = vpack.c.b16 %v1798, %v1797
      %v1825 = vpack.c.b16 %v1800, %v1799
      %v1826 = vpack.c.b16 %v1802, %v1801
      %1851 = vmatprep.subr.bf16.mxu0 0
      %1852 = vmatpush1.bf16.msra.mxu0 %v1803
      %1853 = vmatprep.subr.bf16.mxu0 0
      %1854 = vmatpush1.bf16.msra.mxu0 %v1804
      %1855 = vmatprep.subr.bf16.mxu0 0
      %1856 = vmatpush1.bf16.msra.mxu0 %v1805
      %1857 = vmatprep.subr.bf16.mxu0 0
      %1858 = vmatpush1.bf16.msra.mxu0 %v1806
      %1859 = vmatprep.subr.bf16.mxu0 0
      %1860 = vmatpush1.bf16.msra.mxu0 %v1807
      %1861 = vmatprep.subr.bf16.mxu0 0
      %1862 = vmatpush1.bf16.msra.mxu0 %v1808
      %1863 = vmatprep.subr.bf16.mxu0 0
      %1864 = vmatpush1.bf16.msra.mxu0 %v1809
      %1865 = vmatprep.subr.bf16.mxu0 0
      %1866 = vmatpush1.bf16.msra.mxu0 %v1810
      %1867 = vmatprep.subr.bf16.mxu0 0
      %1868 = vmatpush1.bf16.msra.mxu0 %v1811
      %1869 = vmatprep.subr.bf16.mxu0 0
      %1870 = vmatpush1.bf16.msra.mxu0 %v1812
      %1871 = vmatprep.subr.bf16.mxu0 0
      %1872 = vmatpush1.bf16.msra.mxu0 %v1813
      %1873 = vmatprep.subr.bf16.mxu0 0
      %1874 = vmatpush1.bf16.msra.mxu0 %v1814
      %1875 = vmatprep.subr.bf16.mxu0 0
      %1876 = vmatpush1.bf16.msra.mxu0 %v1815
      %1877 = vmatprep.subr.bf16.mxu0 0
      %1878 = vmatpush1.bf16.msra.mxu0 %v1816
      %1879 = vmatprep.subr.bf16.mxu0 0
      %1880 = vmatpush1.bf16.msra.mxu0 %v1817
      %1881 = vmatprep.subr.bf16.mxu0 0
      %1882 = vmatpush1.bf16.msra.mxu0 %v1818
      %1883 = vmatprep.mubr.bf16.mxu0 %v1579
      %1884 = vmatmul.mubr.bf16.gmra.mrb[0].mxu0 %v1576
      %v1885 = vpop.f32.mrb[0].mxu0
      %v1886 = vadd.f32 0.0, %v1885
      %v1887 = vpop.f32.mrb[0].mxu0
      %v1888 = vpop.f32.mrb[0].mxu0
      %v1889 = vadd.f32 0.0, %v1888
      %v1890 = vpop.f32.mrb[0].mxu0
      %1891 = vmatprep.mubr.bf16.mxu0 %v1584
      %1892 = vmatmul.mubr.bf16.gmra.mrb[0].mxu0 %v1493
      %v1893 = vpop.f32.mrb[0].mxu0
      %v1894 = vadd.f32 0.0, %v1893
      %v1895 = vpop.f32.mrb[0].mxu0
      %v1896 = vpop.f32.mrb[0].mxu0
      %v1897 = vadd.f32 0.0, %v1896
      %v1898 = vpop.f32.mrb[0].mxu0
      %1899 = vmatprep.mubr.bf16.mxu0 %v1588
      %1900 = vmatmul.mubr.bf16.gmra.mrb[0].mxu0 %v1495
      %v1901 = vpop.f32.mrb[0].mxu0
      %v1902 = vadd.f32 0.0, %v1901
      %v1903 = vpop.f32.mrb[0].mxu0
      %v1904 = vpop.f32.mrb[0].mxu0
      %v1905 = vadd.f32 0.0, %v1904
      %v1906 = vpop.f32.mrb[0].mxu0
      %1907 = vmatprep.mubr.bf16.mxu0 %v1592
      %1908 = vmatmul.mubr.bf16.gmra.mrb[0].mxu0 %v1497
      %v1909 = vpop.f32.mrb[0].mxu0
      %v1910 = vadd.f32 0.0, %v1909
      %v1911 = vpop.f32.mrb[0].mxu0
      %v1912 = vpop.f32.mrb[0].mxu0
      %v1913 = vadd.f32 0.0, %v1912
      %v1914 = vpop.f32.mrb[0].mxu0
      %1915 = vmatprep.mubr.bf16.mxu0 %v1596
      %1916 = vmatmul.mubr.bf16.gmra.mrb[0].mxu0 %v1499
      %v1917 = vpop.f32.mrb[0].mxu0
      %v1918 = vadd.f32 0.0, %v1917
      %v1919 = vpop.f32.mrb[0].mxu0
      %v1920 = vpop.f32.mrb[0].mxu0
      %v1921 = vadd.f32 0.0, %v1920
      %v1922 = vpop.f32.mrb[0].mxu0
      %1923 = vmatprep.mubr.bf16.mxu0 %v1600
      %1924 = vmatmul.mubr.bf16.gmra.mrb[0].mxu0 %v1501
      %v1925 = vpop.f32.mrb[0].mxu0
      %v1926 = vadd.f32 0.0, %v1925
      %v1927 = vpop.f32.mrb[0].mxu0
      %v1928 = vpop.f32.mrb[0].mxu0
      %v1929 = vadd.f32 0.0, %v1928
      %v1930 = vpop.f32.mrb[0].mxu0
      %1931 = vmatprep.mubr.bf16.mxu0 %v1604
      %1932 = vmatmul.mubr.bf16.gmra.mrb[0].mxu0 %v1503
      %v1933 = vpop.f32.mrb[0].mxu0
      %v1934 = vadd.f32 0.0, %v1933
      %v1935 = vpop.f32.mrb[0].mxu0
      %v1936 = vpop.f32.mrb[0].mxu0
      %v1937 = vadd.f32 0.0, %v1936
      %v1938 = vpop.f32.mrb[0].mxu0
      %1939 = vmatprep.mubr.bf16.mxu0 %v1608
      %1940 = vmatmul.mubr.bf16.gmra.mrb[0].mxu0 %v1505
      %v1941 = vpop.f32.mrb[0].mxu0
      %v1942 = vadd.f32 0.0, %v1941
      %v1943 = vpop.f32.mrb[0].mxu0
      %v1944 = vpop.f32.mrb[0].mxu0
      %v1945 = vadd.f32 0.0, %v1944
      %v1946 = vpop.f32.mrb[0].mxu0
      %1947 = vmatprep.mubr.bf16.mxu0 %v1612
      %1948 = vmatmul.mubr.bf16.gmra.mrb[0].mxu0 %v1507
      %v1949 = vpop.f32.mrb[0].mxu0
      %v1950 = vadd.f32 0.0, %v1949
      %v1951 = vpop.f32.mrb[0].mxu0
      %v1952 = vpop.f32.mrb[0].mxu0
      %v1953 = vadd.f32 0.0, %v1952
      %v1954 = vpop.f32.mrb[0].mxu0
      %1955 = vmatprep.mubr.bf16.mxu0 %v1616
      %1956 = vmatmul.mubr.bf16.gmra.mrb[0].mxu0 %v1509
      %v1957 = vpop.f32.mrb[0].mxu0
      %v1958 = vadd.f32 0.0, %v1957
      %v1959 = vpop.f32.mrb[0].mxu0
      %v1960 = vpop.f32.mrb[0].mxu0
      %v1961 = vadd.f32 0.0, %v1960
      %v1962 = vpop.f32.mrb[0].mxu0
      %1963 = vmatprep.mubr.bf16.mxu0 %v1620
      %1964 = vmatmul.mubr.bf16.gmra.mrb[0].mxu0 %v1511
      %v1965 = vpop.f32.mrb[0].mxu0
      %v1966 = vadd.f32 0.0, %v1965
      %v1967 = vpop.f32.mrb[0].mxu0
      %v1968 = vpop.f32.mrb[0].mxu0
      %v1969 = vadd.f32 0.0, %v1968
      %v1970 = vpop.f32.mrb[0].mxu0
      %1971 = vmatprep.mubr.bf16.mxu0 %v1624
      %1972 = vmatmul.mubr.bf16.gmra.mrb[0].mxu0 %v1513
      %v1973 = vpop.f32.mrb[0].mxu0
      %v1974 = vadd.f32 0.0, %v1973
      %v1975 = vpop.f32.mrb[0].mxu0
      %v1976 = vpop.f32.mrb[0].mxu0
      %v1977 = vadd.f32 0.0, %v1976
      %v1978 = vpop.f32.mrb[0].mxu0
      %1979 = vmatprep.mubr.bf16.mxu0 %v1628
      %1980 = vmatmul.mubr.bf16.gmra.mrb[0].mxu0 %v1515
      %v1981 = vpop.f32.mrb[0].mxu0
      %v1982 = vadd.f32 0.0, %v1981
      %v1983 = vpop.f32.mrb[0].mxu0
      %v1984 = vpop.f32.mrb[0].mxu0
      %v1985 = vadd.f32 0.0, %v1984
      %v1986 = vpop.f32.mrb[0].mxu0
      %1987 = vmatprep.mubr.bf16.mxu0 %v1632
      %1988 = vmatmul.mubr.bf16.gmra.mrb[0].mxu0 %v1517
      %v1989 = vpop.f32.mrb[0].mxu0
      %v1990 = vadd.f32 0.0, %v1989
      %v1991 = vpop.f32.mrb[0].mxu0
      %v1992 = vpop.f32.mrb[0].mxu0
      %v1993 = vadd.f32 0.0, %v1992
      %v1994 = vpop.f32.mrb[0].mxu0
      %1995 = vmatprep.mubr.bf16.mxu0 %v1636
      %1996 = vmatmul.mubr.bf16.gmra.mrb[0].mxu0 %v1519
      %v1997 = vpop.f32.mrb[0].mxu0
      %v1998 = vadd.f32 0.0, %v1997
      %v1999 = vpop.f32.mrb[0].mxu0
      %v2000 = vpop.f32.mrb[0].mxu0
      %v2001 = vadd.f32 0.0, %v2000
      %v2002 = vpop.f32.mrb[0].mxu0
      %2003 = vmatprep.mubr.bf16.mxu0 %v1640
      %2004 = vmatmul.mubr.bf16.gmra.mrb[0].mxu0 %v1521
      %v2005 = vpop.f32.mrb[0].mxu0
      %v2006 = vadd.f32 0.0, %v2005
      %v2007 = vpop.f32.mrb[0].mxu0
      %v2008 = vpop.f32.mrb[0].mxu0
      %v2009 = vadd.f32 0.0, %v2008
      %v2010 = vpop.f32.mrb[0].mxu0
      %2011 = vmatprep.mubr.bf16.mxu0 %v1644
      %2012 = vmatmul.mubr.bf16.gmra.mrb[0].mxu0 %v1523
      %v2013 = vpop.f32.mrb[0].mxu0
      %v2014 = vadd.f32 0.0, %v2013
      %v2015 = vpop.f32.mrb[0].mxu0
      %v2016 = vpop.f32.mrb[0].mxu0
      %v2017 = vadd.f32 0.0, %v2016
      %v2018 = vpop.f32.mrb[0].mxu0
      %2019 = vmatprep.mubr.bf16.mxu0 %v1650
      %2020 = vmatmul.mubr.bf16.gmra.mrb[0].mxu0 %v1648
      %v2021 = vpop.f32.mrb[0].mxu0
      %v2022 = vadd.f32 0.0, %v2021
      %v2023 = vpop.f32.mrb[0].mxu0
      %v2024 = vpop.f32.mrb[0].mxu0
      %v2025 = vadd.f32 0.0, %v2024
      %v2026 = vpop.f32.mrb[0].mxu0
      %2027 = vdwg.mxu0
      %2028 = vmatprep.subr.bf16.mxu0 0
      %2029 = vmatpush1.bf16.msra.mxu0 %v1819
      %2030 = vmatprep.subr.bf16.mxu0 0
      %2031 = vmatpush1.bf16.msra.mxu0 %v1820
      %2032 = vmatprep.subr.bf16.mxu0 0
      %2033 = vmatpush1.bf16.msra.mxu0 %v1821
      %2034 = vmatprep.subr.bf16.mxu0 0
      %2035 = vmatpush1.bf16.msra.mxu0 %v1822
      %2036 = vmatprep.subr.bf16.mxu0 0
      %2037 = vmatpush1.bf16.msra.mxu0 %v1823
      %2038 = vmatprep.subr.bf16.mxu0 0
      %2039 = vmatpush1.bf16.msra.mxu0 %v1824
      %2040 = vmatprep.subr.bf16.mxu0 0
      %2041 = vmatpush1.bf16.msra.mxu0 %v1825
      %2042 = vmatprep.subr.bf16.mxu0 0
      %2043 = vmatpush1.bf16.msra.mxu0 %v1826
      %2044 = vmatprep.subr.bf16.mxu0 0
      %2045 = vmatpush1.bf16.msra.mxu0 0
      %2046 = vmatprep.subr.bf16.mxu0 0
      %2047 = vmatpush1.bf16.msra.mxu0 0
      %2048 = vmatprep.subr.bf16.mxu0 0
      %2049 = vmatpush1.bf16.msra.mxu0 0
      %2050 = vmatprep.subr.bf16.mxu0 0
      %2051 = vmatpush1.bf16.msra.mxu0 0
      %2052 = vmatprep.subr.bf16.mxu0 0
      %2053 = vmatpush1.bf16.msra.mxu0 0
      %2054 = vmatprep.subr.bf16.mxu0 0
      %2055 = vmatpush1.bf16.msra.mxu0 0
      %2056 = vmatprep.subr.bf16.mxu0 0
      %2057 = vmatpush1.bf16.msra.mxu0 0
      %2058 = vmatprep.subr.bf16.mxu0 0
      %2059 = vmatpush1.bf16.msra.mxu0 0
      %2060 = vmatprep.mubr.bf16.mxu0 0
      %2061 = vmatmul.mubr.bf16.gmra.mrb[0].mxu0 %v1582
      %v2062 = vpop.f32.mrb[0].mxu0
      %v2063 = vadd.f32 %v1886, %v2062
      %v2064 = vpop.f32.mrb[0].mxu0
      %v2065 = vpop.f32.mrb[0].mxu0
      %v2066 = vadd.f32 %v1889, %v2065
      %v2067 = vpop.f32.mrb[0].mxu0
      %2068 = vmatprep.mubr.bf16.mxu0 0
      %2069 = vmatmul.mubr.bf16.gmra.mrb[0].mxu0 %v1586
      %v2070 = vpop.f32.mrb[0].mxu0
      %v2071 = vadd.f32 %v1894, %v2070
      %v2072 = vpop.f32.mrb[0].mxu0
      %v2073 = vpop.f32.mrb[0].mxu0
      %v2074 = vadd.f32 %v1897, %v2073
      %v2075 = vpop.f32.mrb[0].mxu0
      %2076 = vmatprep.mubr.bf16.mxu0 0
      %2077 = vmatmul.mubr.bf16.gmra.mrb[0].mxu0 %v1590
      %v2078 = vpop.f32.mrb[0].mxu0
      %v2079 = vadd.f32 %v1902, %v2078
      %v2080 = vpop.f32.mrb[0].mxu0
      %v2081 = vpop.f32.mrb[0].mxu0
      %v2082 = vadd.f32 %v1905, %v2081
      %v2083 = vpop.f32.mrb[0].mxu0
      %2084 = vmatprep.mubr.bf16.mxu0 0
      %2085 = vmatmul.mubr.bf16.gmra.mrb[0].mxu0 %v1594
      %v2086 = vpop.f32.mrb[0].mxu0
      %v2087 = vadd.f32 %v1910, %v2086
      %v2088 = vpop.f32.mrb[0].mxu0
      %v2089 = vpop.f32.mrb[0].mxu0
      %v2090 = vadd.f32 %v1913, %v2089
      %v2091 = vpop.f32.mrb[0].mxu0
      %2092 = vmatprep.mubr.bf16.mxu0 0
      %2093 = vmatmul.mubr.bf16.gmra.mrb[0].mxu0 %v1598
      %v2094 = vpop.f32.mrb[0].mxu0
      %v2095 = vadd.f32 %v1918, %v2094
      %v2096 = vpop.f32.mrb[0].mxu0
      %v2097 = vpop.f32.mrb[0].mxu0
      %v2098 = vadd.f32 %v1921, %v2097
      %v2099 = vpop.f32.mrb[0].mxu0
      %2100 = vmatprep.mubr.bf16.mxu0 0
      %2101 = vmatmul.mubr.bf16.gmra.mrb[0].mxu0 %v1602
      %v2102 = vpop.f32.mrb[0].mxu0
      %v2103 = vadd.f32 %v1926, %v2102
      %v2104 = vpop.f32.mrb[0].mxu0
      %v2105 = vpop.f32.mrb[0].mxu0
      %v2106 = vadd.f32 %v1929, %v2105
      %v2107 = vpop.f32.mrb[0].mxu0
      %2108 = vmatprep.mubr.bf16.mxu0 0
      %2109 = vmatmul.mubr.bf16.gmra.mrb[0].mxu0 %v1606
      %v2110 = vpop.f32.mrb[0].mxu0
      %v2111 = vadd.f32 %v1934, %v2110
      %v2112 = vpop.f32.mrb[0].mxu0
      %v2113 = vpop.f32.mrb[0].mxu0
      %v2114 = vadd.f32 %v1937, %v2113
      %v2115 = vpop.f32.mrb[0].mxu0
      %2116 = vmatprep.mubr.bf16.mxu0 0
      %2117 = vmatmul.mubr.bf16.gmra.mrb[0].mxu0 %v1610
      %v2118 = vpop.f32.mrb[0].mxu0
      %v2119 = vadd.f32 %v1942, %v2118
      %v2120 = vpop.f32.mrb[0].mxu0
      %v2121 = vpop.f32.mrb[0].mxu0
      %v2122 = vadd.f32 %v1945, %v2121
      %v2123 = vpop.f32.mrb[0].mxu0
      %2124 = vmatprep.mubr.bf16.mxu0 0
      %2125 = vmatmul.mubr.bf16.gmra.mrb[0].mxu0 %v1614
      %v2126 = vpop.f32.mrb[0].mxu0
      %v2127 = vadd.f32 %v1950, %v2126
      %v2128 = vpop.f32.mrb[0].mxu0
      %v2129 = vpop.f32.mrb[0].mxu0
      %v2130 = vadd.f32 %v1953, %v2129
      %v2131 = vpop.f32.mrb[0].mxu0
      %2132 = vmatprep.mubr.bf16.mxu0 0
      %2133 = vmatmul.mubr.bf16.gmra.mrb[0].mxu0 %v1618
      %v2134 = vpop.f32.mrb[0].mxu0
      %v2135 = vadd.f32 %v1958, %v2134
      %v2136 = vpop.f32.mrb[0].mxu0
      %v2137 = vpop.f32.mrb[0].mxu0
      %v2138 = vadd.f32 %v1961, %v2137
      %v2139 = vpop.f32.mrb[0].mxu0
      %2140 = vmatprep.mubr.bf16.mxu0 0
      %2141 = vmatmul.mubr.bf16.gmra.mrb[0].mxu0 %v1622
      %v2142 = vpop.f32.mrb[0].mxu0
      %v2143 = vadd.f32 %v1966, %v2142
      %v2144 = vpop.f32.mrb[0].mxu0
      %v2145 = vpop.f32.mrb[0].mxu0
      %v2146 = vadd.f32 %v1969, %v2145
      %v2147 = vpop.f32.mrb[0].mxu0
      %2148 = vmatprep.mubr.bf16.mxu0 0
      %2149 = vmatmul.mubr.bf16.gmra.mrb[0].mxu0 %v1626
      %v2150 = vpop.f32.mrb[0].mxu0
      %v2151 = vadd.f32 %v1974, %v2150
      %v2152 = vpop.f32.mrb[0].mxu0
      %v2153 = vpop.f32.mrb[0].mxu0
      %v2154 = vadd.f32 %v1977, %v2153
      %v2155 = vpop.f32.mrb[0].mxu0
      %2156 = vmatprep.mubr.bf16.mxu0 0
      %2157 = vmatmul.mubr.bf16.gmra.mrb[0].mxu0 %v1630
      %v2158 = vpop.f32.mrb[0].mxu0
      %v2159 = vadd.f32 %v1982, %v2158
      %v2160 = vpop.f32.mrb[0].mxu0
      %v2161 = vpop.f32.mrb[0].mxu0
      %v2162 = vadd.f32 %v1985, %v2161
      %v2163 = vpop.f32.mrb[0].mxu0
      %2164 = vmatprep.mubr.bf16.mxu0 0
      %2165 = vmatmul.mubr.bf16.gmra.mrb[0].mxu0 %v1634
      %v2166 = vpop.f32.mrb[0].mxu0
      %v2167 = vadd.f32 %v1990, %v2166
      %v2168 = vpop.f32.mrb[0].mxu0
      %v2169 = vpop.f32.mrb[0].mxu0
      %v2170 = vadd.f32 %v1993, %v2169
      %v2171 = vpop.f32.mrb[0].mxu0
      %2172 = vmatprep.mubr.bf16.mxu0 0
      %2173 = vmatmul.mubr.bf16.gmra.mrb[0].mxu0 %v1638
      %v2174 = vpop.f32.mrb[0].mxu0
      %v2175 = vadd.f32 %v1998, %v2174
      %v2176 = vpop.f32.mrb[0].mxu0
      %v2177 = vpop.f32.mrb[0].mxu0
      %v2178 = vadd.f32 %v2001, %v2177
      %v2179 = vpop.f32.mrb[0].mxu0
      %2180 = vmatprep.mubr.bf16.mxu0 0
      %2181 = vmatmul.mubr.bf16.gmra.mrb[0].mxu0 %v1642
      %v2182 = vpop.f32.mrb[0].mxu0
      %v2183 = vadd.f32 %v2006, %v2182
      %v2184 = vpop.f32.mrb[0].mxu0
      %v2185 = vpop.f32.mrb[0].mxu0
      %v2186 = vadd.f32 %v2009, %v2185
      %v2187 = vpop.f32.mrb[0].mxu0
      %2188 = vmatprep.mubr.bf16.mxu0 0
      %2189 = vmatmul.mubr.bf16.gmra.mrb[0].mxu0 %v1646
      %v2190 = vpop.f32.mrb[0].mxu0
      %v2191 = vadd.f32 %v2014, %v2190
      %v2192 = vpop.f32.mrb[0].mxu0
      %v2193 = vpop.f32.mrb[0].mxu0
      %v2194 = vadd.f32 %v2017, %v2193
      %v2195 = vpop.f32.mrb[0].mxu0
      %2196 = vmatprep.mubr.bf16.mxu0 0
      %2197 = vmatmul.mubr.bf16.gmra.mrb[0].mxu0 %v1652
      %v2198 = vpop.f32.mrb[0].mxu0
      %v2199 = vadd.f32 %v2022, %v2198
      %v2200 = vpop.f32.mrb[0].mxu0
      %v2201 = vpop.f32.mrb[0].mxu0
      %v2202 = vadd.f32 %v2025, %v2201
      %v2203 = vpop.f32.mrb[0].mxu0
      %2204 = vdwg.mxu0
      %v2205 = vld [vmem:[#allocation2] sm:$0xff]
      %v2206 = vld [vmem:[#allocation2 + $0x8] sm:$0xff]
      %v2207 = vld [vmem:[#allocation2 + $0x10] sm:$0xff]
      %v2208 = vld [vmem:[#allocation2 + $0x18] sm:$0xff]
      %v2209 = vld [vmem:[#allocation2 + $0x20] sm:$0xff]
      %v2210 = vld [vmem:[#allocation2 + $0x28] sm:$0xff]
      %v2211 = vld [vmem:[#allocation2 + $0x30] sm:$0xff]
      %v2212 = vld [vmem:[#allocation2 + $0x38] sm:$0xff]
      %v2213 = vld [vmem:[#allocation2 + $0x40] sm:$0xff]
      %v2214 = vld [vmem:[#allocation2 + $0x48] sm:$0xff]
      %v2215 = vld [vmem:[#allocation2 + $0x50] sm:$0xff]
      %v2216 = vld [vmem:[#allocation2 + $0x58] sm:$0xff]
      %v2217 = vld [vmem:[#allocation2 + $0x60] sm:$0xff]
      %v2218 = vld [vmem:[#allocation2 + $0x68] sm:$0xff]
      %v2219 = vld [vmem:[#allocation2 + $0x70] sm:$0xff]
      %v2220 = vld [vmem:[#allocation2 + $0x78] sm:$0xff]
      %v2221 = vld [vmem:[#allocation2 + $0x80] sm:$0xff]
      %v2222 = vld [vmem:[#allocation2 + $0x88] sm:$0xff]
      %v2223 = vld [vmem:[#allocation2 + $0x90] sm:$0xff]
      %v2224 = vld [vmem:[#allocation2 + $0x98] sm:$0xff]
      %v2225 = vld [vmem:[#allocation2 + $0xa0] sm:$0xff]
      %v2226 = vld [vmem:[#allocation2 + $0xa8] sm:$0xff]
      %v2227 = vld [vmem:[#allocation2 + $0xb0] sm:$0xff]
      %v2228 = vld [vmem:[#allocation2 + $0xb8] sm:$0xff]
      %v2229 = vld [vmem:[#allocation2 + $0xc0] sm:$0xff]
      %v2230 = vld [vmem:[#allocation2 + $0xc8] sm:$0xff]
      %v2231 = vld [vmem:[#allocation2 + $0xd0] sm:$0xff]
      %v2232 = vld [vmem:[#allocation2 + $0xd8] sm:$0xff]
      %v2233 = vld [vmem:[#allocation2 + $0xe0] sm:$0xff]
      %v2234 = vld [vmem:[#allocation2 + $0xe8] sm:$0xff]
      %v2235 = vld [vmem:[#allocation2 + $0xf0] sm:$0xff]
      %v2236 = vld [vmem:[#allocation2 + $0xf8] sm:$0xff]
      %v2237 = vld [vmem:[#allocation2 + $0x100] sm:$0xff]
      %v2238 = vld [vmem:[#allocation2 + $0x108] sm:$0xff]
      %v2239 = vld [vmem:[#allocation2 + $0x110] sm:$0xff]
      %v2240 = vld [vmem:[#allocation2 + $0x118] sm:$0xff]
      %v2241 = vadd.f32 %v2205, %v2063
      %v2242 = vadd.f32 %v2206, %v2066
      %v2243 = vadd.f32 %v2207, %v2071
      %v2244 = vadd.f32 %v2208, %v2074
      %v2245 = vadd.f32 %v2209, %v2079
      %v2246 = vadd.f32 %v2210, %v2082
      %v2247 = vadd.f32 %v2211, %v2087
      %v2248 = vadd.f32 %v2212, %v2090
      %v2249 = vadd.f32 %v2213, %v2095
      %v2250 = vadd.f32 %v2214, %v2098
      %v2251 = vadd.f32 %v2215, %v2103
      %v2252 = vadd.f32 %v2216, %v2106
      %v2253 = vadd.f32 %v2217, %v2111
      %v2254 = vadd.f32 %v2218, %v2114
      %v2255 = vadd.f32 %v2219, %v2119
      %v2256 = vadd.f32 %v2220, %v2122
      %v2257 = vadd.f32 %v2221, %v2127
      %v2258 = vadd.f32 %v2222, %v2130
      %v2259 = vadd.f32 %v2223, %v2135
      %v2260 = vadd.f32 %v2224, %v2138
      %v2261 = vadd.f32 %v2225, %v2143
      %v2262 = vadd.f32 %v2226, %v2146
      %v2263 = vadd.f32 %v2227, %v2151
      %v2264 = vadd.f32 %v2228, %v2154
      %v2265 = vadd.f32 %v2229, %v2159
      %v2266 = vadd.f32 %v2230, %v2162
      %v2267 = vadd.f32 %v2231, %v2167
      %v2268 = vadd.f32 %v2232, %v2170
      %v2269 = vadd.f32 %v2233, %v2175
      %v2270 = vadd.f32 %v2234, %v2178
      %v2271 = vadd.f32 %v2235, %v2183
      %v2272 = vadd.f32 %v2236, %v2186
      %v2273 = vadd.f32 %v2237, %v2191
      %v2274 = vadd.f32 %v2238, %v2194
      %v2275 = vadd.f32 %v2239, %v2199
      %v2276 = vadd.f32 %v2240, %v2202
      %2277 = vst [vmem:[#allocation2] sm:$0xff] %v2241
      %2278 = vst [vmem:[#allocation2 + $0x8] sm:$0xff] %v2242
      %2279 = vst [vmem:[#allocation2 + $0x10] sm:$0xff] %v2243
      %2280 = vst [vmem:[#allocation2 + $0x18] sm:$0xff] %v2244
      %2281 = vst [vmem:[#allocation2 + $0x20] sm:$0xff] %v2245
      %2282 = vst [vmem:[#allocation2 + $0x28] sm:$0xff] %v2246
      %2283 = vst [vmem:[#allocation2 + $0x30] sm:$0xff] %v2247
      %2284 = vst [vmem:[#allocation2 + $0x38] sm:$0xff] %v2248
      %2285 = vst [vmem:[#allocation2 + $0x40] sm:$0xff] %v2249
      %2286 = vst [vmem:[#allocation2 + $0x48] sm:$0xff] %v2250
      %2287 = vst [vmem:[#allocation2 + $0x50] sm:$0xff] %v2251
      %2288 = vst [vmem:[#allocation2 + $0x58] sm:$0xff] %v2252
      %2289 = vst [vmem:[#allocation2 + $0x60] sm:$0xff] %v2253
      %2290 = vst [vmem:[#allocation2 + $0x68] sm:$0xff] %v2254
      %2291 = vst [vmem:[#allocation2 + $0x70] sm:$0xff] %v2255
      %2292 = vst [vmem:[#allocation2 + $0x78] sm:$0xff] %v2256
      %2293 = vst [vmem:[#allocation2 + $0x80] sm:$0xff] %v2257
      %2294 = vst [vmem:[#allocation2 + $0x88] sm:$0xff] %v2258
      %2295 = vst [vmem:[#allocation2 + $0x90] sm:$0xff] %v2259
      %2296 = vst [vmem:[#allocation2 + $0x98] sm:$0xff] %v2260
      %2297 = vst [vmem:[#allocation2 + $0xa0] sm:$0xff] %v2261
      %2298 = vst [vmem:[#allocation2 + $0xa8] sm:$0xff] %v2262
      %2299 = vst [vmem:[#allocation2 + $0xb0] sm:$0xff] %v2263
      %2300 = vst [vmem:[#allocation2 + $0xb8] sm:$0xff] %v2264
      %2301 = vst [vmem:[#allocation2 + $0xc0] sm:$0xff] %v2265
      %2302 = vst [vmem:[#allocation2 + $0xc8] sm:$0xff] %v2266
      %2303 = vst [vmem:[#allocation2 + $0xd0] sm:$0xff] %v2267
      %2304 = vst [vmem:[#allocation2 + $0xd8] sm:$0xff] %v2268
      %2305 = vst [vmem:[#allocation2 + $0xe0] sm:$0xff] %v2269
      %2306 = vst [vmem:[#allocation2 + $0xe8] sm:$0xff] %v2270
      %2307 = vst [vmem:[#allocation2 + $0xf0] sm:$0xff] %v2271
      %2308 = vst [vmem:[#allocation2 + $0xf8] sm:$0xff] %v2272
      %2309 = vst [vmem:[#allocation2 + $0x100] sm:$0xff] %v2273
      %2310 = vst [vmem:[#allocation2 + $0x108] sm:$0xff] %v2274
      %2311 = vst [vmem:[#allocation2 + $0x110] sm:$0xff] %v2275
      %2312 = vst [vmem:[#allocation2 + $0x118] sm:$0xff] %v2276
      %v2313 = vld [vmem:[%s230 + $0x10] sm:$0xc]
      %v2314 = vld [vmem:[%s230 + $0x14] sm:$0xf]
      %v2315 = vld [vmem:[%s230 + $0x18] sm:$0xf]
      %v2316 = vld [vmem:[%s230 + $0x1c] sm:$0xf]
      %v2317 = vld [vmem:[%s230 + $0x20] sm:$0xf]
      %v2318 = vld [vmem:[%s230 + $0x24] sm:$0xf]
      %v2319 = vld [vmem:[%s230 + $0x28] sm:$0xf]
      %v2320 = vld [vmem:[%s230 + $0x2c] sm:$0xf]
      %v2321 = vld [vmem:[%s230 + $0x30] sm:$0xf]
      %v2322 = vld [vmem:[%s230 + $0x34] sm:$0xf]
      %v2323 = vld [vmem:[%s230 + $0x38] sm:$0xf]
      %v2324 = vld [vmem:[%s230 + $0x3c] sm:$0xf]
      %v2325 = vld [vmem:[%s230 + $0x40] sm:$0xf]
      %v2326 = vld [vmem:[%s230 + $0x44] sm:$0xf]
      %v2327 = vld [vmem:[%s230 + $0x48] sm:$0xf]
      %v2328 = vld [vmem:[%s230 + $0x4c] sm:$0xf]
      %v2329 = vld [vmem:[%s230 + $0x50] sm:$0xf]
      %v2330 = vld [vmem:[%s230 + $0x54] sm:$0xf]
      %v2331 = vld [vmem:[%s230 + $0x58] sm:$0xf]
      %v2332 = vld [vmem:[%s230 + $0x5c] sm:$0xf]
      %v2333 = vld [vmem:[%s230 + $0x60] sm:$0xf]
      %v2334 = vld [vmem:[%s230 + $0x64] sm:$0xf]
      %v2335 = vld [vmem:[%s230 + $0x68] sm:$0xf]
      %v2336 = vld [vmem:[%s230 + $0x6c] sm:$0xf]
      %v2337 = vld [vmem:[%s230 + $0x70] sm:$0xf]
      %v2338 = vld [vmem:[%s230 + $0x74] sm:$0xf]
      %v2339 = vld [vmem:[%s230 + $0x78] sm:$0xf]
      %v2340 = vld [vmem:[%s230 + $0x7c] sm:$0xf]
      %v2341 = vld [vmem:[%s230 + $0x80] sm:$0xf]
      %v2342 = vld [vmem:[%s230 + $0x84] sm:$0xf]
      %v2343 = vld [vmem:[%s230 + $0x88] sm:$0xf]
      %v2344 = vld [vmem:[%s230 + $0x8c] sm:$0xf]
      %v2345 = vld [vmem:[%s230 + $0x90] sm:$0xf]
      %v2346 = vld [vmem:[%s230 + $0x94] sm:$0xf]
      %v2347 = vld [vmem:[%s230 + $0x98] sm:$0xf]
      %v2348 = vld [vmem:[%s230 + $0x9c] sm:$0xf]
      %v2349 = vld [vmem:[%s230 + $0xa0] sm:$0x3]
      %v2350 = vld [vmem:[%s230 + $0xa0] sm:$0x7]
      %v2351 = vld [vmem:[%s230 + $0x10] sm:$0x8]
      %v2389 = vunpack.c.l.b16 %v2313
      %v2390 = vunpack.c.l.b16 %v2314
      %v2391 = vunpack.c.l.b16 %v2315
      %v2392 = vunpack.c.l.b16 %v2316
      %v2393 = vunpack.c.l.b16 %v2317
      %v2394 = vunpack.c.l.b16 %v2318
      %v2395 = vunpack.c.l.b16 %v2319
      %v2396 = vunpack.c.l.b16 %v2320
      %v2397 = vunpack.c.l.b16 %v2321
      %v2398 = vunpack.c.l.b16 %v2322
      %v2399 = vunpack.c.l.b16 %v2323
      %v2400 = vunpack.c.l.b16 %v2324
      %v2401 = vunpack.c.l.b16 %v2325
      %v2402 = vunpack.c.l.b16 %v2326
      %v2403 = vunpack.c.l.b16 %v2327
      %v2404 = vunpack.c.l.b16 %v2328
      %v2405 = vunpack.c.l.b16 %v2329
      %v2406 = vunpack.c.l.b16 %v2330
      %v2407 = vunpack.c.l.b16 %v2331
      %v2408 = vunpack.c.l.b16 %v2332
      %v2409 = vunpack.c.l.b16 %v2333
      %v2410 = vunpack.c.l.b16 %v2334
      %v2411 = vunpack.c.l.b16 %v2335
      %v2412 = vunpack.c.l.b16 %v2336
      %v2413 = vunpack.c.l.b16 %v2337
      %v2414 = vunpack.c.l.b16 %v2338
      %v2415 = vunpack.c.l.b16 %v2339
      %v2416 = vunpack.c.l.b16 %v2340
      %v2417 = vunpack.c.l.b16 %v2341
      %v2418 = vunpack.c.l.b16 %v2342
      %v2419 = vunpack.c.l.b16 %v2343
      %v2420 = vunpack.c.l.b16 %v2344
      %v2421 = vunpack.c.l.b16 %v2345
      %v2422 = vunpack.c.l.b16 %v2346
      %v2423 = vunpack.c.l.b16 %v2347
      %v2424 = vunpack.c.l.b16 %v2348
      %v2425 = vunpack.c.l.b16 %v2349
      %v2426 = vpack.c.b16 %v2390, %v2389
      %v2427 = vpack.c.b16 %v2392, %v2391
      %v2428 = vpack.c.b16 %v2394, %v2393
      %v2429 = vpack.c.b16 %v2396, %v2395
      %v2430 = vpack.c.b16 %v2398, %v2397
      %v2431 = vpack.c.b16 %v2400, %v2399
      %v2432 = vpack.c.b16 %v2402, %v2401
      %v2433 = vpack.c.b16 %v2404, %v2403
      %v2434 = vpack.c.b16 %v2406, %v2405
      %v2435 = vpack.c.b16 %v2408, %v2407
      %v2436 = vpack.c.b16 %v2410, %v2409
      %v2437 = vpack.c.b16 %v2412, %v2411
      %v2438 = vpack.c.b16 %v2414, %v2413
      %v2439 = vpack.c.b16 %v2416, %v2415
      %v2440 = vpack.c.b16 %v2418, %v2417
      %v2441 = vpack.c.b16 %v2420, %v2419
      %v2442 = vpack.c.b16 %v2422, %v2421
      %v2443 = vpack.c.b16 %v2424, %v2423
      %v2444 = vpack.c.b16 %v2425, %v2425
      %v2446 = vunpack.c.l.b16 %v2350
      %v2447 = vpack.c.b16 %v2446, %v2446
      %v2449 = vshrl.u32 %v2426, 16
      %v2451 = vshll.u32 %v2426, 16
      %v2453 = vrot.slane %v2451, 1
      %v2454 = vor.u32 %v2449, %v2453
      %v2456 = vshll.u32 %v2427, 16
      %v2458 = vrot.slane %v2456, 1
      %v2459 = vsel %vm392, %v2454, %v2458
      %v2460 = vshrl.u32 %v2427, 16
      %v2462 = vor.u32 %v2460, %v2458
      %v2464 = vshll.u32 %v2428, 16
      %v2466 = vrot.slane %v2464, 1
      %v2467 = vsel %vm392, %v2462, %v2466
      %v2468 = vshrl.u32 %v2428, 16
      %v2470 = vor.u32 %v2468, %v2466
      %v2472 = vshll.u32 %v2429, 16
      %v2474 = vrot.slane %v2472, 1
      %v2475 = vsel %vm392, %v2470, %v2474
      %v2476 = vshrl.u32 %v2429, 16
      %v2478 = vor.u32 %v2476, %v2474
      %v2480 = vshll.u32 %v2430, 16
      %v2482 = vrot.slane %v2480, 1
      %v2483 = vsel %vm392, %v2478, %v2482
      %v2484 = vshrl.u32 %v2430, 16
      %v2486 = vor.u32 %v2484, %v2482
      %v2488 = vshll.u32 %v2431, 16
      %v2490 = vrot.slane %v2488, 1
      %v2491 = vsel %vm392, %v2486, %v2490
      %v2492 = vshrl.u32 %v2431, 16
      %v2494 = vor.u32 %v2492, %v2490
      %v2496 = vshll.u32 %v2432, 16
      %v2498 = vrot.slane %v2496, 1
      %v2499 = vsel %vm392, %v2494, %v2498
      %v2500 = vshrl.u32 %v2432, 16
      %v2502 = vor.u32 %v2500, %v2498
      %v2504 = vshll.u32 %v2433, 16
      %v2506 = vrot.slane %v2504, 1
      %v2507 = vsel %vm392, %v2502, %v2506
      %v2508 = vshrl.u32 %v2433, 16
      %v2510 = vor.u32 %v2508, %v2506
      %v2512 = vshll.u32 %v2434, 16
      %v2514 = vrot.slane %v2512, 1
      %v2515 = vsel %vm392, %v2510, %v2514
      %v2516 = vshrl.u32 %v2434, 16
      %v2518 = vor.u32 %v2516, %v2514
      %v2520 = vshll.u32 %v2435, 16
      %v2522 = vrot.slane %v2520, 1
      %v2523 = vsel %vm392, %v2518, %v2522
      %v2524 = vshrl.u32 %v2435, 16
      %v2526 = vor.u32 %v2524, %v2522
      %v2528 = vshll.u32 %v2436, 16
      %v2530 = vrot.slane %v2528, 1
      %v2531 = vsel %vm392, %v2526, %v2530
      %v2532 = vshrl.u32 %v2436, 16
      %v2534 = vor.u32 %v2532, %v2530
      %v2536 = vshll.u32 %v2437, 16
      %v2538 = vrot.slane %v2536, 1
      %v2539 = vsel %vm392, %v2534, %v2538
      %v2540 = vshrl.u32 %v2437, 16
      %v2542 = vor.u32 %v2540, %v2538
      %v2544 = vshll.u32 %v2438, 16
      %v2546 = vrot.slane %v2544, 1
      %v2547 = vsel %vm392, %v2542, %v2546
      %v2548 = vshrl.u32 %v2438, 16
      %v2550 = vor.u32 %v2548, %v2546
      %v2552 = vshll.u32 %v2439, 16
      %v2554 = vrot.slane %v2552, 1
      %v2555 = vsel %vm392, %v2550, %v2554
      %v2556 = vshrl.u32 %v2439, 16
      %v2558 = vor.u32 %v2556, %v2554
      %v2560 = vshll.u32 %v2440, 16
      %v2562 = vrot.slane %v2560, 1
      %v2563 = vsel %vm392, %v2558, %v2562
      %v2564 = vshrl.u32 %v2440, 16
      %v2566 = vor.u32 %v2564, %v2562
      %v2568 = vshll.u32 %v2441, 16
      %v2570 = vrot.slane %v2568, 1
      %v2571 = vsel %vm392, %v2566, %v2570
      %v2572 = vshrl.u32 %v2441, 16
      %v2574 = vor.u32 %v2572, %v2570
      %v2576 = vshll.u32 %v2442, 16
      %v2578 = vrot.slane %v2576, 1
      %v2579 = vsel %vm392, %v2574, %v2578
      %v2580 = vshrl.u32 %v2442, 16
      %v2582 = vor.u32 %v2580, %v2578
      %v2584 = vshll.u32 %v2443, 16
      %v2586 = vrot.slane %v2584, 1
      %v2587 = vsel %vm392, %v2582, %v2586
      %v2588 = vshrl.u32 %v2443, 16
      %v2590 = vor.u32 %v2588, %v2586
      %v2592 = vshll.u32 %v2447, 16
      %v2594 = vrot.slane %v2592, 1
      %v2595 = vsel %vm392, %v2590, %v2594
      %v2596 = vshrl.u32 %v2447, 16
      %v2598 = vor.u32 %v2596, %v2594
      %v2600 = vunpack.c.l.b16 %v2351
      %v2601 = vpack.c.b16 %v2390, %v2600
      %v2602 = vrot.slane %v2601, 1
      %v2603 = vrot.slane %v2427, 1
      %v2604 = vsel %vm562, %v2602, %v2603
      %v2605 = vrot.slane %v2428, 1
      %v2606 = vsel %vm562, %v2603, %v2605
      %v2607 = vrot.slane %v2429, 1
      %v2608 = vsel %vm562, %v2605, %v2607
      %v2609 = vrot.slane %v2430, 1
      %v2610 = vsel %vm562, %v2607, %v2609
      %v2611 = vrot.slane %v2431, 1
      %v2612 = vsel %vm562, %v2609, %v2611
      %v2613 = vrot.slane %v2432, 1
      %v2614 = vsel %vm562, %v2611, %v2613
      %v2615 = vrot.slane %v2433, 1
      %v2616 = vsel %vm562, %v2613, %v2615
      %v2617 = vrot.slane %v2434, 1
      %v2618 = vsel %vm562, %v2615, %v2617
      %v2619 = vrot.slane %v2435, 1
      %v2620 = vsel %vm562, %v2617, %v2619
      %v2621 = vrot.slane %v2436, 1
      %v2622 = vsel %vm562, %v2619, %v2621
      %v2623 = vrot.slane %v2437, 1
      %v2624 = vsel %vm562, %v2621, %v2623
      %v2625 = vrot.slane %v2438, 1
      %v2626 = vsel %vm562, %v2623, %v2625
      %v2627 = vrot.slane %v2439, 1
      %v2628 = vsel %vm562, %v2625, %v2627
      %v2629 = vrot.slane %v2440, 1
      %v2630 = vsel %vm562, %v2627, %v2629
      %v2631 = vrot.slane %v2441, 1
      %v2632 = vsel %vm562, %v2629, %v2631
      %v2633 = vrot.slane %v2442, 1
      %v2634 = vsel %vm562, %v2631, %v2633
      %v2635 = vrot.slane %v2443, 1
      %v2636 = vsel %vm562, %v2633, %v2635
      %v2637 = vrot.slane %v2447, 1
      %v2638 = vsel %vm562, %v2635, %v2637
      %s2639 = scalar_lea.vmem %s1, 384
      %v2640 = vld [vmem:[%s2639] sm:$0xf]
      %v2641 = vld [vmem:[%s2639 + $0x4] sm:$0xf]
      %v2642 = vld [vmem:[%s2639 + $0x8] sm:$0xf]
      %v2643 = vld [vmem:[%s2639 + $0xc] sm:$0xf]
      %v2644 = vld [vmem:[%s2639 + $0x10] sm:$0xf]
      %v2645 = vld [vmem:[%s2639 + $0x14] sm:$0xf]
      %v2646 = vld [vmem:[%s2639 + $0x18] sm:$0xf]
      %v2647 = vld [vmem:[%s2639 + $0x1c] sm:$0xf]
      %v2648 = vld [vmem:[%s2639 + $0x20] sm:$0xf]
      %v2649 = vld [vmem:[%s2639 + $0x24] sm:$0xf]
      %v2650 = vld [vmem:[%s2639 + $0x28] sm:$0xf]
      %v2651 = vld [vmem:[%s2639 + $0x2c] sm:$0xf]
      %v2652 = vld [vmem:[%s2639 + $0x30] sm:$0xf]
      %v2653 = vld [vmem:[%s2639 + $0x34] sm:$0xf]
      %v2654 = vld [vmem:[%s2639 + $0x38] sm:$0xf]
      %v2655 = vld [vmem:[%s2639 + $0x3c] sm:$0xf]
      %v2656 = vld [vmem:[%s2639 + $0x40] sm:$0xf]
      %v2657 = vld [vmem:[%s2639 + $0x44] sm:$0xf]
      %v2658 = vld [vmem:[%s2639 + $0x48] sm:$0xf]
      %v2659 = vld [vmem:[%s2639 + $0x4c] sm:$0xf]
      %v2660 = vld [vmem:[%s2639 + $0x50] sm:$0xf]
      %v2661 = vld [vmem:[%s2639 + $0x54] sm:$0xf]
      %v2662 = vld [vmem:[%s2639 + $0x58] sm:$0xf]
      %v2663 = vld [vmem:[%s2639 + $0x5c] sm:$0xf]
      %v2664 = vld [vmem:[%s2639 + $0x60] sm:$0xf]
      %v2665 = vld [vmem:[%s2639 + $0x64] sm:$0xf]
      %v2666 = vld [vmem:[%s2639 + $0x68] sm:$0xf]
      %v2667 = vld [vmem:[%s2639 + $0x6c] sm:$0xf]
      %v2668 = vld [vmem:[%s2639 + $0x70] sm:$0xf]
      %v2669 = vld [vmem:[%s2639 + $0x74] sm:$0xf]
      %v2670 = vld [vmem:[%s2639 + $0x78] sm:$0xf]
      %v2671 = vld [vmem:[%s2639 + $0x7c] sm:$0xf]
      %v2672 = vld [vmem:[%s2639 + $0x80] sm:$0xf]
      %v2673 = vld [vmem:[%s2639 + $0x84] sm:$0xf]
      %v2674 = vld [vmem:[%s2639 + $0x88] sm:$0xf]
      %v2675 = vld [vmem:[%s2639 + $0x8c] sm:$0xf]
      %v2676 = vld [vmem:[%s2639 + $0x90] sm:$0xf]
      %v2677 = vld [vmem:[%s2639 + $0x94] sm:$0xf]
      %v2678 = vld [vmem:[%s2639 + $0x98] sm:$0xf]
      %v2679 = vld [vmem:[%s2639 + $0x9c] sm:$0xf]
      %v2680 = vld [vmem:[%s2639 + $0xa0] sm:$0xf]
      %v2681 = vld [vmem:[%s2639 + $0xa4] sm:$0xf]
      %v2682 = vld [vmem:[%s2639 + $0xa8] sm:$0xf]
      %v2683 = vld [vmem:[%s2639 + $0xac] sm:$0xf]
      %v2684 = vld [vmem:[%s2639 + $0xb0] sm:$0xf]
      %v2685 = vld [vmem:[%s2639 + $0xb4] sm:$0xf]
      %v2686 = vld [vmem:[%s2639 + $0xb8] sm:$0xf]
      %v2687 = vld [vmem:[%s2639 + $0xbc] sm:$0xf]
      %vm2688 = vcmask 1045504
      %v2689 = vrot.slane %v2426, 2
      %v2690 = vrot.slane %v2427, 2
      %v2691 = vsel %vm2688, %v2689, %v2690
      %v2692 = vrot.slane %v2459, 2
      %v2693 = vrot.slane %v2467, 2
      %v2694 = vsel %vm2688, %v2692, %v2693
      %v2695 = vrot.slane %v2604, 2
      %v2696 = vrot.slane %v2606, 2
      %v2697 = vsel %vm2688, %v2695, %v2696
      %v2698 = vrot.slane %v2428, 2
      %v2699 = vsel %vm2688, %v2690, %v2698
      %v2700 = vrot.slane %v2475, 2
      %v2701 = vsel %vm2688, %v2693, %v2700
      %v2702 = vrot.slane %v2608, 2
      %v2703 = vsel %vm2688, %v2696, %v2702
      %v2704 = vrot.slane %v2429, 2
      %v2705 = vsel %vm2688, %v2698, %v2704
      %v2706 = vrot.slane %v2483, 2
      %v2707 = vsel %vm2688, %v2700, %v2706
      %v2708 = vrot.slane %v2610, 2
      %v2709 = vsel %vm2688, %v2702, %v2708
      %v2710 = vrot.slane %v2430, 2
      %v2711 = vsel %vm2688, %v2704, %v2710
      %v2712 = vrot.slane %v2491, 2
      %v2713 = vsel %vm2688, %v2706, %v2712
      %v2714 = vrot.slane %v2612, 2
      %v2715 = vsel %vm2688, %v2708, %v2714
      %v2716 = vrot.slane %v2431, 2
      %v2717 = vsel %vm2688, %v2710, %v2716
      %v2718 = vrot.slane %v2499, 2
      %v2719 = vsel %vm2688, %v2712, %v2718
      %v2720 = vrot.slane %v2614, 2
      %v2721 = vsel %vm2688, %v2714, %v2720
      %v2722 = vrot.slane %v2432, 2
      %v2723 = vsel %vm2688, %v2716, %v2722
      %v2724 = vrot.slane %v2507, 2
      %v2725 = vsel %vm2688, %v2718, %v2724
      %v2726 = vrot.slane %v2616, 2
      %v2727 = vsel %vm2688, %v2720, %v2726
      %v2728 = vrot.slane %v2433, 2
      %v2729 = vsel %vm2688, %v2722, %v2728
      %v2730 = vrot.slane %v2515, 2
      %v2731 = vsel %vm2688, %v2724, %v2730
      %v2732 = vrot.slane %v2618, 2
      %v2733 = vsel %vm2688, %v2726, %v2732
      %v2734 = vrot.slane %v2434, 2
      %v2735 = vsel %vm2688, %v2728, %v2734
      %v2736 = vrot.slane %v2523, 2
      %v2737 = vsel %vm2688, %v2730, %v2736
      %v2738 = vrot.slane %v2620, 2
      %v2739 = vsel %vm2688, %v2732, %v2738
      %v2740 = vrot.slane %v2435, 2
      %v2741 = vsel %vm2688, %v2734, %v2740
      %v2742 = vrot.slane %v2531, 2
      %v2743 = vsel %vm2688, %v2736, %v2742
      %v2744 = vrot.slane %v2622, 2
      %v2745 = vsel %vm2688, %v2738, %v2744
      %v2746 = vrot.slane %v2436, 2
      %v2747 = vsel %vm2688, %v2740, %v2746
      %v2748 = vrot.slane %v2539, 2
      %v2749 = vsel %vm2688, %v2742, %v2748
      %v2750 = vrot.slane %v2624, 2
      %v2751 = vsel %vm2688, %v2744, %v2750
      %v2752 = vrot.slane %v2437, 2
      %v2753 = vsel %vm2688, %v2746, %v2752
      %v2754 = vrot.slane %v2547, 2
      %v2755 = vsel %vm2688, %v2748, %v2754
      %v2756 = vrot.slane %v2626, 2
      %v2757 = vsel %vm2688, %v2750, %v2756
      %v2758 = vrot.slane %v2438, 2
      %v2759 = vsel %vm2688, %v2752, %v2758
      %v2760 = vrot.slane %v2555, 2
      %v2761 = vsel %vm2688, %v2754, %v2760
      %v2762 = vrot.slane %v2628, 2
      %v2763 = vsel %vm2688, %v2756, %v2762
      %v2764 = vrot.slane %v2439, 2
      %v2765 = vsel %vm2688, %v2758, %v2764
      %v2766 = vrot.slane %v2563, 2
      %v2767 = vsel %vm2688, %v2760, %v2766
      %v2768 = vrot.slane %v2630, 2
      %v2769 = vsel %vm2688, %v2762, %v2768
      %v2770 = vrot.slane %v2440, 2
      %v2771 = vsel %vm2688, %v2764, %v2770
      %v2772 = vrot.slane %v2571, 2
      %v2773 = vsel %vm2688, %v2766, %v2772
      %v2774 = vrot.slane %v2632, 2
      %v2775 = vsel %vm2688, %v2768, %v2774
      %v2776 = vrot.slane %v2441, 2
      %v2777 = vsel %vm2688, %v2770, %v2776
      %v2778 = vrot.slane %v2579, 2
      %v2779 = vsel %vm2688, %v2772, %v2778
      %v2780 = vrot.slane %v2634, 2
      %v2781 = vsel %vm2688, %v2774, %v2780
      %v2782 = vrot.slane %v2442, 2
      %v2783 = vsel %vm2688, %v2776, %v2782
      %v2784 = vrot.slane %v2587, 2
      %v2785 = vsel %vm2688, %v2778, %v2784
      %v2786 = vrot.slane %v2636, 2
      %v2787 = vsel %vm2688, %v2780, %v2786
      %v2788 = vrot.slane %v2443, 2
      %v2789 = vsel %vm2688, %v2782, %v2788
      %v2790 = vrot.slane %v2595, 2
      %v2791 = vsel %vm2688, %v2784, %v2790
      %v2792 = vrot.slane %v2638, 2
      %v2793 = vsel %vm2688, %v2786, %v2792
      %v2794 = vrot.slane %v2444, 2
      %v2795 = vsel %vm2688, %v2788, %v2794
      %v2796 = vrot.slane %v2598, 2
      %v2797 = vsel %vm2688, %v2790, %v2796
      %v2798 = vrot.slane %v2637, 2
      %v2799 = vsel %vm2688, %v2792, %v2798
      %v2902 = vunpack.c.l.b16 %v2640
      %v2903 = vunpack.c.l.b16 %v2641
      %v2904 = vunpack.c.l.b16 %v2642
      %v2905 = vunpack.c.l.b16 %v2643
      %v2906 = vunpack.c.l.b16 %v2644
      %v2907 = vunpack.c.l.b16 %v2645
      %v2908 = vunpack.c.l.b16 %v2646
      %v2909 = vunpack.c.l.b16 %v2647
      %v2910 = vunpack.c.l.b16 %v2648
      %v2911 = vunpack.c.l.b16 %v2649
      %v2912 = vunpack.c.l.b16 %v2650
      %v2913 = vunpack.c.l.b16 %v2651
      %v2914 = vunpack.c.l.b16 %v2652
      %v2915 = vunpack.c.l.b16 %v2653
      %v2916 = vunpack.c.l.b16 %v2654
      %v2917 = vunpack.c.l.b16 %v2655
      %v2918 = vunpack.c.l.b16 %v2656
      %v2919 = vunpack.c.l.b16 %v2657
      %v2920 = vunpack.c.l.b16 %v2658
      %v2921 = vunpack.c.l.b16 %v2659
      %v2922 = vunpack.c.l.b16 %v2660
      %v2923 = vunpack.c.l.b16 %v2661
      %v2924 = vunpack.c.l.b16 %v2662
      %v2925 = vunpack.c.l.b16 %v2663
      %v2926 = vunpack.c.l.b16 %v2664
      %v2927 = vunpack.c.l.b16 %v2665
      %v2928 = vunpack.c.l.b16 %v2666
      %v2929 = vunpack.c.l.b16 %v2667
      %v2930 = vunpack.c.l.b16 %v2668
      %v2931 = vunpack.c.l.b16 %v2669
      %v2932 = vunpack.c.l.b16 %v2670
      %v2933 = vunpack.c.l.b16 %v2671
      %v2934 = vunpack.c.l.b16 %v2672
      %v2935 = vunpack.c.l.b16 %v2673
      %v2936 = vunpack.c.l.b16 %v2674
      %v2937 = vunpack.c.l.b16 %v2675
      %v2938 = vunpack.c.l.b16 %v2676
      %v2939 = vunpack.c.l.b16 %v2677
      %v2940 = vunpack.c.l.b16 %v2678
      %v2941 = vunpack.c.l.b16 %v2679
      %v2942 = vunpack.c.l.b16 %v2680
      %v2943 = vunpack.c.l.b16 %v2681
      %v2944 = vunpack.c.l.b16 %v2682
      %v2945 = vunpack.c.l.b16 %v2683
      %v2946 = vunpack.c.l.b16 %v2684
      %v2947 = vunpack.c.l.b16 %v2685
      %v2948 = vunpack.c.l.b16 %v2686
      %v2949 = vunpack.c.l.b16 %v2687
      %v2950 = vpack.c.b16 %v2903, %v2902
      %v2951 = vpack.c.b16 %v2905, %v2904
      %v2952 = vpack.c.b16 %v2907, %v2906
      %v2953 = vpack.c.b16 %v2909, %v2908
      %v2954 = vpack.c.b16 %v2911, %v2910
      %v2955 = vpack.c.b16 %v2913, %v2912
      %v2956 = vpack.c.b16 %v2915, %v2914
      %v2957 = vpack.c.b16 %v2917, %v2916
      %v2958 = vpack.c.b16 %v2919, %v2918
      %v2959 = vpack.c.b16 %v2921, %v2920
      %v2960 = vpack.c.b16 %v2923, %v2922
      %v2961 = vpack.c.b16 %v2925, %v2924
      %v2962 = vpack.c.b16 %v2927, %v2926
      %v2963 = vpack.c.b16 %v2929, %v2928
      %v2964 = vpack.c.b16 %v2931, %v2930
      %v2965 = vpack.c.b16 %v2933, %v2932
      %v2966 = vpack.c.b16 %v2935, %v2934
      %v2967 = vpack.c.b16 %v2937, %v2936
      %v2968 = vpack.c.b16 %v2939, %v2938
      %v2969 = vpack.c.b16 %v2941, %v2940
      %v2970 = vpack.c.b16 %v2943, %v2942
      %v2971 = vpack.c.b16 %v2945, %v2944
      %v2972 = vpack.c.b16 %v2947, %v2946
      %v2973 = vpack.c.b16 %v2949, %v2948
      %2998 = vmatprep.subr.bf16.mxu0 0
      %2999 = vmatpush1.bf16.msra.mxu0 %v2950
      %3000 = vmatprep.subr.bf16.mxu0 0
      %3001 = vmatpush1.bf16.msra.mxu0 %v2951
      %3002 = vmatprep.subr.bf16.mxu0 0
      %3003 = vmatpush1.bf16.msra.mxu0 %v2952
      %3004 = vmatprep.subr.bf16.mxu0 0
      %3005 = vmatpush1.bf16.msra.mxu0 %v2953
      %3006 = vmatprep.subr.bf16.mxu0 0
      %3007 = vmatpush1.bf16.msra.mxu0 %v2954
      %3008 = vmatprep.subr.bf16.mxu0 0
      %3009 = vmatpush1.bf16.msra.mxu0 %v2955
      %3010 = vmatprep.subr.bf16.mxu0 0
      %3011 = vmatpush1.bf16.msra.mxu0 %v2956
      %3012 = vmatprep.subr.bf16.mxu0 0
      %3013 = vmatpush1.bf16.msra.mxu0 %v2957
      %3014 = vmatprep.subr.bf16.mxu0 0
      %3015 = vmatpush1.bf16.msra.mxu0 %v2958
      %3016 = vmatprep.subr.bf16.mxu0 0
      %3017 = vmatpush1.bf16.msra.mxu0 %v2959
      %3018 = vmatprep.subr.bf16.mxu0 0
      %3019 = vmatpush1.bf16.msra.mxu0 %v2960
      %3020 = vmatprep.subr.bf16.mxu0 0
      %3021 = vmatpush1.bf16.msra.mxu0 %v2961
      %3022 = vmatprep.subr.bf16.mxu0 0
      %3023 = vmatpush1.bf16.msra.mxu0 %v2962
      %3024 = vmatprep.subr.bf16.mxu0 0
      %3025 = vmatpush1.bf16.msra.mxu0 %v2963
      %3026 = vmatprep.subr.bf16.mxu0 0
      %3027 = vmatpush1.bf16.msra.mxu0 %v2964
      %3028 = vmatprep.subr.bf16.mxu0 0
      %3029 = vmatpush1.bf16.msra.mxu0 %v2965
      %3030 = vmatprep.mubr.bf16.mxu0 %v2694
      %3031 = vmatmul.mubr.bf16.gmra.mrb[0].mxu0 %v2691
      %v3032 = vpop.f32.mrb[0].mxu0
      %v3033 = vadd.f32 0.0, %v3032
      %v3034 = vpop.f32.mrb[0].mxu0
      %v3035 = vpop.f32.mrb[0].mxu0
      %v3036 = vadd.f32 0.0, %v3035
      %v3037 = vpop.f32.mrb[0].mxu0
      %3038 = vmatprep.mubr.bf16.mxu0 %v2701
      %3039 = vmatmul.mubr.bf16.gmra.mrb[0].mxu0 %v2699
      %v3040 = vpop.f32.mrb[0].mxu0
      %v3041 = vadd.f32 0.0, %v3040
      %v3042 = vpop.f32.mrb[0].mxu0
      %v3043 = vpop.f32.mrb[0].mxu0
      %v3044 = vadd.f32 0.0, %v3043
      %v3045 = vpop.f32.mrb[0].mxu0
      %3046 = vmatprep.mubr.bf16.mxu0 %v2707
      %3047 = vmatmul.mubr.bf16.gmra.mrb[0].mxu0 %v2705
      %v3048 = vpop.f32.mrb[0].mxu0
      %v3049 = vadd.f32 0.0, %v3048
      %v3050 = vpop.f32.mrb[0].mxu0
      %v3051 = vpop.f32.mrb[0].mxu0
      %v3052 = vadd.f32 0.0, %v3051
      %v3053 = vpop.f32.mrb[0].mxu0
      %3054 = vmatprep.mubr.bf16.mxu0 %v2713
      %3055 = vmatmul.mubr.bf16.gmra.mrb[0].mxu0 %v2711
      %v3056 = vpop.f32.mrb[0].mxu0
      %v3057 = vadd.f32 0.0, %v3056
      %v3058 = vpop.f32.mrb[0].mxu0
      %v3059 = vpop.f32.mrb[0].mxu0
      %v3060 = vadd.f32 0.0, %v3059
      %v3061 = vpop.f32.mrb[0].mxu0
      %3062 = vmatprep.mubr.bf16.mxu0 %v2719
      %3063 = vmatmul.mubr.bf16.gmra.mrb[0].mxu0 %v2717
      %v3064 = vpop.f32.mrb[0].mxu0
      %v3065 = vadd.f32 0.0, %v3064
      %v3066 = vpop.f32.mrb[0].mxu0
      %v3067 = vpop.f32.mrb[0].mxu0
      %v3068 = vadd.f32 0.0, %v3067
      %v3069 = vpop.f32.mrb[0].mxu0
      %3070 = vmatprep.mubr.bf16.mxu0 %v2725
      %3071 = vmatmul.mubr.bf16.gmra.mrb[0].mxu0 %v2723
      %v3072 = vpop.f32.mrb[0].mxu0
      %v3073 = vadd.f32 0.0, %v3072
      %v3074 = vpop.f32.mrb[0].mxu0
      %v3075 = vpop.f32.mrb[0].mxu0
      %v3076 = vadd.f32 0.0, %v3075
      %v3077 = vpop.f32.mrb[0].mxu0
      %3078 = vmatprep.mubr.bf16.mxu0 %v2731
      %3079 = vmatmul.mubr.bf16.gmra.mrb[0].mxu0 %v2729
      %v3080 = vpop.f32.mrb[0].mxu0
      %v3081 = vadd.f32 0.0, %v3080
      %v3082 = vpop.f32.mrb[0].mxu0
      %v3083 = vpop.f32.mrb[0].mxu0
      %v3084 = vadd.f32 0.0, %v3083
      %v3085 = vpop.f32.mrb[0].mxu0
      %3086 = vmatprep.mubr.bf16.mxu0 %v2737
      %3087 = vmatmul.mubr.bf16.gmra.mrb[0].mxu0 %v2735
      %v3088 = vpop.f32.mrb[0].mxu0
      %v3089 = vadd.f32 0.0, %v3088
      %v3090 = vpop.f32.mrb[0].mxu0
      %v3091 = vpop.f32.mrb[0].mxu0
      %v3092 = vadd.f32 0.0, %v3091
      %v3093 = vpop.f32.mrb[0].mxu0
      %3094 = vmatprep.mubr.bf16.mxu0 %v2743
      %3095 = vmatmul.mubr.bf16.gmra.mrb[0].mxu0 %v2741
      %v3096 = vpop.f32.mrb[0].mxu0
      %v3097 = vadd.f32 0.0, %v3096
      %v3098 = vpop.f32.mrb[0].mxu0
      %v3099 = vpop.f32.mrb[0].mxu0
      %v3100 = vadd.f32 0.0, %v3099
      %v3101 = vpop.f32.mrb[0].mxu0
      %3102 = vmatprep.mubr.bf16.mxu0 %v2749
      %3103 = vmatmul.mubr.bf16.gmra.mrb[0].mxu0 %v2747
      %v3104 = vpop.f32.mrb[0].mxu0
      %v3105 = vadd.f32 0.0, %v3104
      %v3106 = vpop.f32.mrb[0].mxu0
      %v3107 = vpop.f32.mrb[0].mxu0
      %v3108 = vadd.f32 0.0, %v3107
      %v3109 = vpop.f32.mrb[0].mxu0
      %3110 = vmatprep.mubr.bf16.mxu0 %v2755
      %3111 = vmatmul.mubr.bf16.gmra.mrb[0].mxu0 %v2753
      %v3112 = vpop.f32.mrb[0].mxu0
      %v3113 = vadd.f32 0.0, %v3112
      %v3114 = vpop.f32.mrb[0].mxu0
      %v3115 = vpop.f32.mrb[0].mxu0
      %v3116 = vadd.f32 0.0, %v3115
      %v3117 = vpop.f32.mrb[0].mxu0
      %3118 = vmatprep.mubr.bf16.mxu0 %v2761
      %3119 = vmatmul.mubr.bf16.gmra.mrb[0].mxu0 %v2759
      %v3120 = vpop.f32.mrb[0].mxu0
      %v3121 = vadd.f32 0.0, %v3120
      %v3122 = vpop.f32.mrb[0].mxu0
      %v3123 = vpop.f32.mrb[0].mxu0
      %v3124 = vadd.f32 0.0, %v3123
      %v3125 = vpop.f32.mrb[0].mxu0
      %3126 = vmatprep.mubr.bf16.mxu0 %v2767
      %3127 = vmatmul.mubr.bf16.gmra.mrb[0].mxu0 %v2765
      %v3128 = vpop.f32.mrb[0].mxu0
      %v3129 = vadd.f32 0.0, %v3128
      %v3130 = vpop.f32.mrb[0].mxu0
      %v3131 = vpop.f32.mrb[0].mxu0
      %v3132 = vadd.f32 0.0, %v3131
      %v3133 = vpop.f32.mrb[0].mxu0
      %3134 = vmatprep.mubr.bf16.mxu0 %v2773
      %3135 = vmatmul.mubr.bf16.gmra.mrb[0].mxu0 %v2771
      %v3136 = vpop.f32.mrb[0].mxu0
      %v3137 = vadd.f32 0.0, %v3136
      %v3138 = vpop.f32.mrb[0].mxu0
      %v3139 = vpop.f32.mrb[0].mxu0
      %v3140 = vadd.f32 0.0, %v3139
      %v3141 = vpop.f32.mrb[0].mxu0
      %3142 = vmatprep.mubr.bf16.mxu0 %v2779
      %3143 = vmatmul.mubr.bf16.gmra.mrb[0].mxu0 %v2777
      %v3144 = vpop.f32.mrb[0].mxu0
      %v3145 = vadd.f32 0.0, %v3144
      %v3146 = vpop.f32.mrb[0].mxu0
      %v3147 = vpop.f32.mrb[0].mxu0
      %v3148 = vadd.f32 0.0, %v3147
      %v3149 = vpop.f32.mrb[0].mxu0
      %3150 = vmatprep.mubr.bf16.mxu0 %v2785
      %3151 = vmatmul.mubr.bf16.gmra.mrb[0].mxu0 %v2783
      %v3152 = vpop.f32.mrb[0].mxu0
      %v3153 = vadd.f32 0.0, %v3152
      %v3154 = vpop.f32.mrb[0].mxu0
      %v3155 = vpop.f32.mrb[0].mxu0
      %v3156 = vadd.f32 0.0, %v3155
      %v3157 = vpop.f32.mrb[0].mxu0
      %3158 = vmatprep.mubr.bf16.mxu0 %v2791
      %3159 = vmatmul.mubr.bf16.gmra.mrb[0].mxu0 %v2789
      %v3160 = vpop.f32.mrb[0].mxu0
      %v3161 = vadd.f32 0.0, %v3160
      %v3162 = vpop.f32.mrb[0].mxu0
      %v3163 = vpop.f32.mrb[0].mxu0
      %v3164 = vadd.f32 0.0, %v3163
      %v3165 = vpop.f32.mrb[0].mxu0
      %3166 = vmatprep.mubr.bf16.mxu0 %v2797
      %3167 = vmatmul.mubr.bf16.gmra.mrb[0].mxu0 %v2795
      %v3168 = vpop.f32.mrb[0].mxu0
      %v3169 = vadd.f32 0.0, %v3168
      %v3170 = vpop.f32.mrb[0].mxu0
      %v3171 = vpop.f32.mrb[0].mxu0
      %v3172 = vadd.f32 0.0, %v3171
      %v3173 = vpop.f32.mrb[0].mxu0
      %3174 = vdwg.mxu0
      %3175 = vmatprep.subr.bf16.mxu0 0
      %3176 = vmatpush1.bf16.msra.mxu0 %v2966
      %3177 = vmatprep.subr.bf16.mxu0 0
      %3178 = vmatpush1.bf16.msra.mxu0 %v2967
      %3179 = vmatprep.subr.bf16.mxu0 0
      %3180 = vmatpush1.bf16.msra.mxu0 %v2968
      %3181 = vmatprep.subr.bf16.mxu0 0
      %3182 = vmatpush1.bf16.msra.mxu0 %v2969
      %3183 = vmatprep.subr.bf16.mxu0 0
      %3184 = vmatpush1.bf16.msra.mxu0 %v2970
      %3185 = vmatprep.subr.bf16.mxu0 0
      %3186 = vmatpush1.bf16.msra.mxu0 %v2971
      %3187 = vmatprep.subr.bf16.mxu0 0
      %3188 = vmatpush1.bf16.msra.mxu0 %v2972
      %3189 = vmatprep.subr.bf16.mxu0 0
      %3190 = vmatpush1.bf16.msra.mxu0 %v2973
      %3191 = vmatprep.subr.bf16.mxu0 0
      %3192 = vmatpush1.bf16.msra.mxu0 0
      %3193 = vmatprep.subr.bf16.mxu0 0
      %3194 = vmatpush1.bf16.msra.mxu0 0
      %3195 = vmatprep.subr.bf16.mxu0 0
      %3196 = vmatpush1.bf16.msra.mxu0 0
      %3197 = vmatprep.subr.bf16.mxu0 0
      %3198 = vmatpush1.bf16.msra.mxu0 0
      %3199 = vmatprep.subr.bf16.mxu0 0
      %3200 = vmatpush1.bf16.msra.mxu0 0
      %3201 = vmatprep.subr.bf16.mxu0 0
      %3202 = vmatpush1.bf16.msra.mxu0 0
      %3203 = vmatprep.subr.bf16.mxu0 0
      %3204 = vmatpush1.bf16.msra.mxu0 0
      %3205 = vmatprep.subr.bf16.mxu0 0
      %3206 = vmatpush1.bf16.msra.mxu0 0
      %3207 = vmatprep.mubr.bf16.mxu0 0
      %3208 = vmatmul.mubr.bf16.gmra.mrb[0].mxu0 %v2697
      %v3209 = vpop.f32.mrb[0].mxu0
      %v3210 = vadd.f32 %v3033, %v3209
      %v3211 = vpop.f32.mrb[0].mxu0
      %v3212 = vpop.f32.mrb[0].mxu0
      %v3213 = vadd.f32 %v3036, %v3212
      %v3214 = vpop.f32.mrb[0].mxu0
      %3215 = vmatprep.mubr.bf16.mxu0 0
      %3216 = vmatmul.mubr.bf16.gmra.mrb[0].mxu0 %v2703
      %v3217 = vpop.f32.mrb[0].mxu0
      %v3218 = vadd.f32 %v3041, %v3217
      %v3219 = vpop.f32.mrb[0].mxu0
      %v3220 = vpop.f32.mrb[0].mxu0
      %v3221 = vadd.f32 %v3044, %v3220
      %v3222 = vpop.f32.mrb[0].mxu0
      %3223 = vmatprep.mubr.bf16.mxu0 0
      %3224 = vmatmul.mubr.bf16.gmra.mrb[0].mxu0 %v2709
      %v3225 = vpop.f32.mrb[0].mxu0
      %v3226 = vadd.f32 %v3049, %v3225
      %v3227 = vpop.f32.mrb[0].mxu0
      %v3228 = vpop.f32.mrb[0].mxu0
      %v3229 = vadd.f32 %v3052, %v3228
      %v3230 = vpop.f32.mrb[0].mxu0
      %3231 = vmatprep.mubr.bf16.mxu0 0
      %3232 = vmatmul.mubr.bf16.gmra.mrb[0].mxu0 %v2715
      %v3233 = vpop.f32.mrb[0].mxu0
      %v3234 = vadd.f32 %v3057, %v3233
      %v3235 = vpop.f32.mrb[0].mxu0
      %v3236 = vpop.f32.mrb[0].mxu0
      %v3237 = vadd.f32 %v3060, %v3236
      %v3238 = vpop.f32.mrb[0].mxu0
      %3239 = vmatprep.mubr.bf16.mxu0 0
      %3240 = vmatmul.mubr.bf16.gmra.mrb[0].mxu0 %v2721
      %v3241 = vpop.f32.mrb[0].mxu0
      %v3242 = vadd.f32 %v3065, %v3241
      %v3243 = vpop.f32.mrb[0].mxu0
      %v3244 = vpop.f32.mrb[0].mxu0
      %v3245 = vadd.f32 %v3068, %v3244
      %v3246 = vpop.f32.mrb[0].mxu0
      %3247 = vmatprep.mubr.bf16.mxu0 0
      %3248 = vmatmul.mubr.bf16.gmra.mrb[0].mxu0 %v2727
      %v3249 = vpop.f32.mrb[0].mxu0
      %v3250 = vadd.f32 %v3073, %v3249
      %v3251 = vpop.f32.mrb[0].mxu0
      %v3252 = vpop.f32.mrb[0].mxu0
      %v3253 = vadd.f32 %v3076, %v3252
      %v3254 = vpop.f32.mrb[0].mxu0
      %3255 = vmatprep.mubr.bf16.mxu0 0
      %3256 = vmatmul.mubr.bf16.gmra.mrb[0].mxu0 %v2733
      %v3257 = vpop.f32.mrb[0].mxu0
      %v3258 = vadd.f32 %v3081, %v3257
      %v3259 = vpop.f32.mrb[0].mxu0
      %v3260 = vpop.f32.mrb[0].mxu0
      %v3261 = vadd.f32 %v3084, %v3260
      %v3262 = vpop.f32.mrb[0].mxu0
      %3263 = vmatprep.mubr.bf16.mxu0 0
      %3264 = vmatmul.mubr.bf16.gmra.mrb[0].mxu0 %v2739
      %v3265 = vpop.f32.mrb[0].mxu0
      %v3266 = vadd.f32 %v3089, %v3265
      %v3267 = vpop.f32.mrb[0].mxu0
      %v3268 = vpop.f32.mrb[0].mxu0
      %v3269 = vadd.f32 %v3092, %v3268
      %v3270 = vpop.f32.mrb[0].mxu0
      %3271 = vmatprep.mubr.bf16.mxu0 0
      %3272 = vmatmul.mubr.bf16.gmra.mrb[0].mxu0 %v2745
      %v3273 = vpop.f32.mrb[0].mxu0
      %v3274 = vadd.f32 %v3097, %v3273
      %v3275 = vpop.f32.mrb[0].mxu0
      %v3276 = vpop.f32.mrb[0].mxu0
      %v3277 = vadd.f32 %v3100, %v3276
      %v3278 = vpop.f32.mrb[0].mxu0
      %3279 = vmatprep.mubr.bf16.mxu0 0
      %3280 = vmatmul.mubr.bf16.gmra.mrb[0].mxu0 %v2751
      %v3281 = vpop.f32.mrb[0].mxu0
      %v3282 = vadd.f32 %v3105, %v3281
      %v3283 = vpop.f32.mrb[0].mxu0
      %v3284 = vpop.f32.mrb[0].mxu0
      %v3285 = vadd.f32 %v3108, %v3284
      %v3286 = vpop.f32.mrb[0].mxu0
      %3287 = vmatprep.mubr.bf16.mxu0 0
      %3288 = vmatmul.mubr.bf16.gmra.mrb[0].mxu0 %v2757
      %v3289 = vpop.f32.mrb[0].mxu0
      %v3290 = vadd.f32 %v3113, %v3289
      %v3291 = vpop.f32.mrb[0].mxu0
      %v3292 = vpop.f32.mrb[0].mxu0
      %v3293 = vadd.f32 %v3116, %v3292
      %v3294 = vpop.f32.mrb[0].mxu0
      %3295 = vmatprep.mubr.bf16.mxu0 0
      %3296 = vmatmul.mubr.bf16.gmra.mrb[0].mxu0 %v2763
      %v3297 = vpop.f32.mrb[0].mxu0
      %v3298 = vadd.f32 %v3121, %v3297
      %v3299 = vpop.f32.mrb[0].mxu0
      %v3300 = vpop.f32.mrb[0].mxu0
      %v3301 = vadd.f32 %v3124, %v3300
      %v3302 = vpop.f32.mrb[0].mxu0
      %3303 = vmatprep.mubr.bf16.mxu0 0
      %3304 = vmatmul.mubr.bf16.gmra.mrb[0].mxu0 %v2769
      %v3305 = vpop.f32.mrb[0].mxu0
      %v3306 = vadd.f32 %v3129, %v3305
      %v3307 = vpop.f32.mrb[0].mxu0
      %v3308 = vpop.f32.mrb[0].mxu0
      %v3309 = vadd.f32 %v3132, %v3308
      %v3310 = vpop.f32.mrb[0].mxu0
      %3311 = vmatprep.mubr.bf16.mxu0 0
      %3312 = vmatmul.mubr.bf16.gmra.mrb[0].mxu0 %v2775
      %v3313 = vpop.f32.mrb[0].mxu0
      %v3314 = vadd.f32 %v3137, %v3313
      %v3315 = vpop.f32.mrb[0].mxu0
      %v3316 = vpop.f32.mrb[0].mxu0
      %v3317 = vadd.f32 %v3140, %v3316
      %v3318 = vpop.f32.mrb[0].mxu0
      %3319 = vmatprep.mubr.bf16.mxu0 0
      %3320 = vmatmul.mubr.bf16.gmra.mrb[0].mxu0 %v2781
      %v3321 = vpop.f32.mrb[0].mxu0
      %v3322 = vadd.f32 %v3145, %v3321
      %v3323 = vpop.f32.mrb[0].mxu0
      %v3324 = vpop.f32.mrb[0].mxu0
      %v3325 = vadd.f32 %v3148, %v3324
      %v3326 = vpop.f32.mrb[0].mxu0
      %3327 = vmatprep.mubr.bf16.mxu0 0
      %3328 = vmatmul.mubr.bf16.gmra.mrb[0].mxu0 %v2787
      %v3329 = vpop.f32.mrb[0].mxu0
      %v3330 = vadd.f32 %v3153, %v3329
      %v3331 = vpop.f32.mrb[0].mxu0
      %v3332 = vpop.f32.mrb[0].mxu0
      %v3333 = vadd.f32 %v3156, %v3332
      %v3334 = vpop.f32.mrb[0].mxu0
      %3335 = vmatprep.mubr.bf16.mxu0 0
      %3336 = vmatmul.mubr.bf16.gmra.mrb[0].mxu0 %v2793
      %v3337 = vpop.f32.mrb[0].mxu0
      %v3338 = vadd.f32 %v3161, %v3337
      %v3339 = vpop.f32.mrb[0].mxu0
      %v3340 = vpop.f32.mrb[0].mxu0
      %v3341 = vadd.f32 %v3164, %v3340
      %v3342 = vpop.f32.mrb[0].mxu0
      %3343 = vmatprep.mubr.bf16.mxu0 0
      %3344 = vmatmul.mubr.bf16.gmra.mrb[0].mxu0 %v2799
      %v3345 = vpop.f32.mrb[0].mxu0
      %v3346 = vadd.f32 %v3169, %v3345
      %v3347 = vpop.f32.mrb[0].mxu0
      %v3348 = vpop.f32.mrb[0].mxu0
      %v3349 = vadd.f32 %v3172, %v3348
      %v3350 = vpop.f32.mrb[0].mxu0
      %3351 = vdwg.mxu0
      %v3352 = vld [vmem:[#allocation2] sm:$0xff]
      %v3353 = vld [vmem:[#allocation2 + $0x8] sm:$0xff]
      %v3354 = vld [vmem:[#allocation2 + $0x10] sm:$0xff]
      %v3355 = vld [vmem:[#allocation2 + $0x18] sm:$0xff]
      %v3356 = vld [vmem:[#allocation2 + $0x20] sm:$0xff]
      %v3357 = vld [vmem:[#allocation2 + $0x28] sm:$0xff]
      %v3358 = vld [vmem:[#allocation2 + $0x30] sm:$0xff]
      %v3359 = vld [vmem:[#allocation2 + $0x38] sm:$0xff]
      %v3360 = vld [vmem:[#allocation2 + $0x40] sm:$0xff]
      %v3361 = vld [vmem:[#allocation2 + $0x48] sm:$0xff]
      %v3362 = vld [vmem:[#allocation2 + $0x50] sm:$0xff]
      %v3363 = vld [vmem:[#allocation2 + $0x58] sm:$0xff]
      %v3364 = vld [vmem:[#allocation2 + $0x60] sm:$0xff]
      %v3365 = vld [vmem:[#allocation2 + $0x68] sm:$0xff]
      %v3366 = vld [vmem:[#allocation2 + $0x70] sm:$0xff]
      %v3367 = vld [vmem:[#allocation2 + $0x78] sm:$0xff]
      %v3368 = vld [vmem:[#allocation2 + $0x80] sm:$0xff]
      %v3369 = vld [vmem:[#allocation2 + $0x88] sm:$0xff]
      %v3370 = vld [vmem:[#allocation2 + $0x90] sm:$0xff]
      %v3371 = vld [vmem:[#allocation2 + $0x98] sm:$0xff]
      %v3372 = vld [vmem:[#allocation2 + $0xa0] sm:$0xff]
      %v3373 = vld [vmem:[#allocation2 + $0xa8] sm:$0xff]
      %v3374 = vld [vmem:[#allocation2 + $0xb0] sm:$0xff]
      %v3375 = vld [vmem:[#allocation2 + $0xb8] sm:$0xff]
      %v3376 = vld [vmem:[#allocation2 + $0xc0] sm:$0xff]
      %v3377 = vld [vmem:[#allocation2 + $0xc8] sm:$0xff]
      %v3378 = vld [vmem:[#allocation2 + $0xd0] sm:$0xff]
      %v3379 = vld [vmem:[#allocation2 + $0xd8] sm:$0xff]
      %v3380 = vld [vmem:[#allocation2 + $0xe0] sm:$0xff]
      %v3381 = vld [vmem:[#allocation2 + $0xe8] sm:$0xff]
      %v3382 = vld [vmem:[#allocation2 + $0xf0] sm:$0xff]
      %v3383 = vld [vmem:[#allocation2 + $0xf8] sm:$0xff]
      %v3384 = vld [vmem:[#allocation2 + $0x100] sm:$0xff]
      %v3385 = vld [vmem:[#allocation2 + $0x108] sm:$0xff]
      %v3386 = vld [vmem:[#allocation2 + $0x110] sm:$0xff]
      %v3387 = vld [vmem:[#allocation2 + $0x118] sm:$0xff]
      %v3388 = vadd.f32 %v3352, %v3210
      %v3389 = vadd.f32 %v3353, %v3213
      %v3390 = vadd.f32 %v3354, %v3218
      %v3391 = vadd.f32 %v3355, %v3221
      %v3392 = vadd.f32 %v3356, %v3226
      %v3393 = vadd.f32 %v3357, %v3229
      %v3394 = vadd.f32 %v3358, %v3234
      %v3395 = vadd.f32 %v3359, %v3237
      %v3396 = vadd.f32 %v3360, %v3242
      %v3397 = vadd.f32 %v3361, %v3245
      %v3398 = vadd.f32 %v3362, %v3250
      %v3399 = vadd.f32 %v3363, %v3253
      %v3400 = vadd.f32 %v3364, %v3258
      %v3401 = vadd.f32 %v3365, %v3261
      %v3402 = vadd.f32 %v3366, %v3266
      %v3403 = vadd.f32 %v3367, %v3269
      %v3404 = vadd.f32 %v3368, %v3274
      %v3405 = vadd.f32 %v3369, %v3277
      %v3406 = vadd.f32 %v3370, %v3282
      %v3407 = vadd.f32 %v3371, %v3285
      %v3408 = vadd.f32 %v3372, %v3290
      %v3409 = vadd.f32 %v3373, %v3293
      %v3410 = vadd.f32 %v3374, %v3298
      %v3411 = vadd.f32 %v3375, %v3301
      %v3412 = vadd.f32 %v3376, %v3306
      %v3413 = vadd.f32 %v3377, %v3309
      %v3414 = vadd.f32 %v3378, %v3314
      %v3415 = vadd.f32 %v3379, %v3317
      %v3416 = vadd.f32 %v3380, %v3322
      %v3417 = vadd.f32 %v3381, %v3325
      %v3418 = vadd.f32 %v3382, %v3330
      %v3419 = vadd.f32 %v3383, %v3333
      %v3420 = vadd.f32 %v3384, %v3338
      %v3421 = vadd.f32 %v3385, %v3341
      %v3422 = vadd.f32 %v3386, %v3346
      %v3423 = vadd.f32 %v3387, %v3349
      %3424 = vst [vmem:[#allocation2] sm:$0xff] %v3388
      %3425 = vst [vmem:[#allocation2 + $0x8] sm:$0xff] %v3389
      %3426 = vst [vmem:[#allocation2 + $0x10] sm:$0xff] %v3390
      %3427 = vst [vmem:[#allocation2 + $0x18] sm:$0xff] %v3391
      %3428 = vst [vmem:[#allocation2 + $0x20] sm:$0xff] %v3392
      %3429 = vst [vmem:[#allocation2 + $0x28] sm:$0xff] %v3393
      %3430 = vst [vmem:[#allocation2 + $0x30] sm:$0xff] %v3394
      %3431 = vst [vmem:[#allocation2 + $0x38] sm:$0xff] %v3395
      %3432 = vst [vmem:[#allocation2 + $0x40] sm:$0xff] %v3396
      %3433 = vst [vmem:[#allocation2 + $0x48] sm:$0xff] %v3397
      %3434 = vst [vmem:[#allocation2 + $0x50] sm:$0xff] %v3398
      %3435 = vst [vmem:[#allocation2 + $0x58] sm:$0xff] %v3399
      %3436 = vst [vmem:[#allocation2 + $0x60] sm:$0xff] %v3400
      %3437 = vst [vmem:[#allocation2 + $0x68] sm:$0xff] %v3401
      %3438 = vst [vmem:[#allocation2 + $0x70] sm:$0xff] %v3402
      %3439 = vst [vmem:[#allocation2 + $0x78] sm:$0xff] %v3403
      %3440 = vst [vmem:[#allocation2 + $0x80] sm:$0xff] %v3404
      %3441 = vst [vmem:[#allocation2 + $0x88] sm:$0xff] %v3405
      %3442 = vst [vmem:[#allocation2 + $0x90] sm:$0xff] %v3406
      %3443 = vst [vmem:[#allocation2 + $0x98] sm:$0xff] %v3407
      %3444 = vst [vmem:[#allocation2 + $0xa0] sm:$0xff] %v3408
      %3445 = vst [vmem:[#allocation2 + $0xa8] sm:$0xff] %v3409
      %3446 = vst [vmem:[#allocation2 + $0xb0] sm:$0xff] %v3410
      %3447 = vst [vmem:[#allocation2 + $0xb8] sm:$0xff] %v3411
      %3448 = vst [vmem:[#allocation2 + $0xc0] sm:$0xff] %v3412
      %3449 = vst [vmem:[#allocation2 + $0xc8] sm:$0xff] %v3413
      %3450 = vst [vmem:[#allocation2 + $0xd0] sm:$0xff] %v3414
      %3451 = vst [vmem:[#allocation2 + $0xd8] sm:$0xff] %v3415
      %3452 = vst [vmem:[#allocation2 + $0xe0] sm:$0xff] %v3416
      %3453 = vst [vmem:[#allocation2 + $0xe8] sm:$0xff] %v3417
      %3454 = vst [vmem:[#allocation2 + $0xf0] sm:$0xff] %v3418
      %3455 = vst [vmem:[#allocation2 + $0xf8] sm:$0xff] %v3419
      %3456 = vst [vmem:[#allocation2 + $0x100] sm:$0xff] %v3420
      %3457 = vst [vmem:[#allocation2 + $0x108] sm:$0xff] %v3421
      %3458 = vst [vmem:[#allocation2 + $0x110] sm:$0xff] %v3422
      %3459 = vst [vmem:[#allocation2 + $0x118] sm:$0xff] %v3423
      %v3460 = vld [vmem:[#allocation2] sm:$0xff]
      %v3461 = vld [vmem:[#allocation2 + $0x8] sm:$0xff]
      %v3462 = vld [vmem:[#allocation2 + $0x10] sm:$0xff]
      %v3463 = vld [vmem:[#allocation2 + $0x18] sm:$0xff]
      %v3464 = vld [vmem:[#allocation2 + $0x20] sm:$0xff]
      %v3465 = vld [vmem:[#allocation2 + $0x28] sm:$0xff]
      %v3466 = vld [vmem:[#allocation2 + $0x30] sm:$0xff]
      %v3467 = vld [vmem:[#allocation2 + $0x38] sm:$0xff]
      %v3468 = vld [vmem:[#allocation2 + $0x40] sm:$0xff]
      %v3469 = vld [vmem:[#allocation2 + $0x48] sm:$0xff]
      %v3470 = vld [vmem:[#allocation2 + $0x50] sm:$0xff]
      %v3471 = vld [vmem:[#allocation2 + $0x58] sm:$0xff]
      %v3472 = vld [vmem:[#allocation2 + $0x60] sm:$0xff]
      %v3473 = vld [vmem:[#allocation2 + $0x68] sm:$0xff]
      %v3474 = vld [vmem:[#allocation2 + $0x70] sm:$0xff]
      %v3475 = vld [vmem:[#allocation2 + $0x78] sm:$0xff]
      %v3476 = vld [vmem:[#allocation2 + $0x80] sm:$0xff]
      %v3477 = vld [vmem:[#allocation2 + $0x88] sm:$0xff]
      %v3478 = vld [vmem:[#allocation2 + $0x90] sm:$0xff]
      %v3479 = vld [vmem:[#allocation2 + $0x98] sm:$0xff]
      %v3480 = vld [vmem:[#allocation2 + $0xa0] sm:$0xff]
      %v3481 = vld [vmem:[#allocation2 + $0xa8] sm:$0xff]
      %v3482 = vld [vmem:[#allocation2 + $0xb0] sm:$0xff]
      %v3483 = vld [vmem:[#allocation2 + $0xb8] sm:$0xff]
      %v3484 = vld [vmem:[#allocation2 + $0xc0] sm:$0xff]
      %v3485 = vld [vmem:[#allocation2 + $0xc8] sm:$0xff]
      %v3486 = vld [vmem:[#allocation2 + $0xd0] sm:$0xff]
      %v3487 = vld [vmem:[#allocation2 + $0xd8] sm:$0xff]
      %v3488 = vld [vmem:[#allocation2 + $0xe0] sm:$0xff]
      %v3489 = vld [vmem:[#allocation2 + $0xe8] sm:$0xff]
      %v3490 = vld [vmem:[#allocation2 + $0xf0] sm:$0xff]
      %v3491 = vld [vmem:[#allocation2 + $0xf8] sm:$0xff]
      %v3492 = vld [vmem:[#allocation2 + $0x100] sm:$0xff]
      %v3493 = vld [vmem:[#allocation2 + $0x108] sm:$0xff]
      %v3494 = vld [vmem:[#allocation2 + $0x110] sm:$0xff]
      %v3495 = vld [vmem:[#allocation2 + $0x118] sm:$0xff]
      %v3496 = vld [vmem:[%s2] sm:$0xff]
      %v3497 = vld [vmem:[%s2 + $0x8] sm:$0xff]
      %v3498 = vld [vmem:[%s2 + $0x10] sm:$0xff]
      %v3499 = vld [vmem:[%s2 + $0x18] sm:$0xff]
      %v3500 = vld [vmem:[%s2 + $0x20] sm:$0xff]
      %v3501 = vld [vmem:[%s2 + $0x28] sm:$0xff]
      %v3502 = vld [vmem:[%s2 + $0x30] sm:$0xff]
      %v3503 = vld [vmem:[%s2 + $0x38] sm:$0xff]
      %v3504 = vld [vmem:[%s2 + $0x40] sm:$0xff]
      %v3505 = vld [vmem:[%s2 + $0x48] sm:$0xff]
      %v3506 = vld [vmem:[%s2 + $0x50] sm:$0xff]
      %v3507 = vld [vmem:[%s2 + $0x58] sm:$0xff]
      %v3508 = vld [vmem:[%s2 + $0x60] sm:$0xff]
      %v3509 = vld [vmem:[%s2 + $0x68] sm:$0xff]
      %v3510 = vld [vmem:[%s2 + $0x70] sm:$0xff]
      %v3511 = vld [vmem:[%s2 + $0x78] sm:$0xff]
      %v3512 = vld [vmem:[%s2 + $0x80] sm:$0xff]
      %v3513 = vld [vmem:[%s2 + $0x88] sm:$0xff]
      %v3514 = vld [vmem:[%s2 + $0x90] sm:$0xff]
      %v3515 = vld [vmem:[%s2 + $0x98] sm:$0xff]
      %v3516 = vld [vmem:[%s2 + $0xa0] sm:$0xff]
      %v3517 = vld [vmem:[%s2 + $0xa8] sm:$0xff]
      %v3518 = vld [vmem:[%s2 + $0xb0] sm:$0xff]
      %v3519 = vld [vmem:[%s2 + $0xb8] sm:$0xff]
      %v3520 = vld [vmem:[%s2 + $0xc0] sm:$0xff]
      %v3521 = vld [vmem:[%s2 + $0xc8] sm:$0xff]
      %v3522 = vld [vmem:[%s2 + $0xd0] sm:$0xff]
      %v3523 = vld [vmem:[%s2 + $0xd8] sm:$0xff]
      %v3524 = vld [vmem:[%s2 + $0xe0] sm:$0xff]
      %v3525 = vld [vmem:[%s2 + $0xe8] sm:$0xff]
      %v3526 = vld [vmem:[%s2 + $0xf0] sm:$0xff]
      %v3527 = vld [vmem:[%s2 + $0xf8] sm:$0xff]
      %v3528 = vld [vmem:[%s2 + $0x100] sm:$0xff]
      %v3529 = vld [vmem:[%s2 + $0x108] sm:$0xff]
      %v3530 = vld [vmem:[%s2 + $0x110] sm:$0xff]
      %v3531 = vld [vmem:[%s2 + $0x118] sm:$0xff]
      %3533 = vset.pattern.permute.xlu0 0
      %3534 = vperm.xlu0 %3533, %v3496
      %v3535 = vpop.permute.xlu0 %3534
      %3538 = vset.pattern.permute.xlu0 0
      %3539 = vperm.xlu0 %3538, %v3497
      %v3540 = vpop.permute.xlu0 %3539
      %3543 = vset.pattern.permute.xlu0 0
      %3544 = vperm.xlu0 %3543, %v3498
      %v3545 = vpop.permute.xlu0 %3544
      %3548 = vset.pattern.permute.xlu0 0
      %3549 = vperm.xlu0 %3548, %v3499
      %v3550 = vpop.permute.xlu0 %3549
      %3553 = vset.pattern.permute.xlu0 0
      %3554 = vperm.xlu0 %3553, %v3500
      %v3555 = vpop.permute.xlu0 %3554
      %3558 = vset.pattern.permute.xlu0 0
      %3559 = vperm.xlu0 %3558, %v3501
      %v3560 = vpop.permute.xlu0 %3559
      %3563 = vset.pattern.permute.xlu0 0
      %3564 = vperm.xlu0 %3563, %v3502
      %v3565 = vpop.permute.xlu0 %3564
      %3568 = vset.pattern.permute.xlu0 0
      %3569 = vperm.xlu0 %3568, %v3503
      %v3570 = vpop.permute.xlu0 %3569
      %3573 = vset.pattern.permute.xlu0 0
      %3574 = vperm.xlu0 %3573, %v3504
      %v3575 = vpop.permute.xlu0 %3574
      %3578 = vset.pattern.permute.xlu0 0
      %3579 = vperm.xlu0 %3578, %v3505
      %v3580 = vpop.permute.xlu0 %3579
      %3583 = vset.pattern.permute.xlu0 0
      %3584 = vperm.xlu0 %3583, %v3506
      %v3585 = vpop.permute.xlu0 %3584
      %3588 = vset.pattern.permute.xlu0 0
      %3589 = vperm.xlu0 %3588, %v3507
      %v3590 = vpop.permute.xlu0 %3589
      %3593 = vset.pattern.permute.xlu0 0
      %3594 = vperm.xlu0 %3593, %v3508
      %v3595 = vpop.permute.xlu0 %3594
      %3598 = vset.pattern.permute.xlu0 0
      %3599 = vperm.xlu0 %3598, %v3509
      %v3600 = vpop.permute.xlu0 %3599
      %3603 = vset.pattern.permute.xlu0 0
      %3604 = vperm.xlu0 %3603, %v3510
      %v3605 = vpop.permute.xlu0 %3604
      %3608 = vset.pattern.permute.xlu0 0
      %3609 = vperm.xlu0 %3608, %v3511
      %v3610 = vpop.permute.xlu0 %3609
      %3613 = vset.pattern.permute.xlu0 0
      %3614 = vperm.xlu0 %3613, %v3512
      %v3615 = vpop.permute.xlu0 %3614
      %3618 = vset.pattern.permute.xlu0 0
      %3619 = vperm.xlu0 %3618, %v3513
      %v3620 = vpop.permute.xlu0 %3619
      %3623 = vset.pattern.permute.xlu0 0
      %3624 = vperm.xlu0 %3623, %v3514
      %v3625 = vpop.permute.xlu0 %3624
      %3628 = vset.pattern.permute.xlu0 0
      %3629 = vperm.xlu0 %3628, %v3515
      %v3630 = vpop.permute.xlu0 %3629
      %3633 = vset.pattern.permute.xlu0 0
      %3634 = vperm.xlu0 %3633, %v3516
      %v3635 = vpop.permute.xlu0 %3634
      %3638 = vset.pattern.permute.xlu0 0
      %3639 = vperm.xlu0 %3638, %v3517
      %v3640 = vpop.permute.xlu0 %3639
      %3643 = vset.pattern.permute.xlu0 0
      %3644 = vperm.xlu0 %3643, %v3518
      %v3645 = vpop.permute.xlu0 %3644
      %3648 = vset.pattern.permute.xlu0 0
      %3649 = vperm.xlu0 %3648, %v3519
      %v3650 = vpop.permute.xlu0 %3649
      %3653 = vset.pattern.permute.xlu0 0
      %3654 = vperm.xlu0 %3653, %v3520
      %v3655 = vpop.permute.xlu0 %3654
      %3658 = vset.pattern.permute.xlu0 0
      %3659 = vperm.xlu0 %3658, %v3521
      %v3660 = vpop.permute.xlu0 %3659
      %3663 = vset.pattern.permute.xlu0 0
      %3664 = vperm.xlu0 %3663, %v3522
      %v3665 = vpop.permute.xlu0 %3664
      %3668 = vset.pattern.permute.xlu0 0
      %3669 = vperm.xlu0 %3668, %v3523
      %v3670 = vpop.permute.xlu0 %3669
      %3673 = vset.pattern.permute.xlu0 0
      %3674 = vperm.xlu0 %3673, %v3524
      %v3675 = vpop.permute.xlu0 %3674
      %3678 = vset.pattern.permute.xlu0 0
      %3679 = vperm.xlu0 %3678, %v3525
      %v3680 = vpop.permute.xlu0 %3679
      %3683 = vset.pattern.permute.xlu0 0
      %3684 = vperm.xlu0 %3683, %v3526
      %v3685 = vpop.permute.xlu0 %3684
      %3688 = vset.pattern.permute.xlu0 0
      %3689 = vperm.xlu0 %3688, %v3527
      %v3690 = vpop.permute.xlu0 %3689
      %3693 = vset.pattern.permute.xlu0 0
      %3694 = vperm.xlu0 %3693, %v3528
      %v3695 = vpop.permute.xlu0 %3694
      %3698 = vset.pattern.permute.xlu0 0
      %3699 = vperm.xlu0 %3698, %v3529
      %v3700 = vpop.permute.xlu0 %3699
      %3703 = vset.pattern.permute.xlu0 0
      %3704 = vperm.xlu0 %3703, %v3530
      %v3705 = vpop.permute.xlu0 %3704
      %3708 = vset.pattern.permute.xlu0 0
      %3709 = vperm.xlu0 %3708, %v3531
      %v3710 = vpop.permute.xlu0 %3709
      %v3712 = vmul.f32 %v3460, %v3535
      %v3713 = vmul.f32 %v3461, %v3540
      %v3714 = vmul.f32 %v3462, %v3545
      %v3715 = vmul.f32 %v3463, %v3550
      %v3716 = vmul.f32 %v3464, %v3555
      %v3717 = vmul.f32 %v3465, %v3560
      %v3718 = vmul.f32 %v3466, %v3565
      %v3719 = vmul.f32 %v3467, %v3570
      %v3720 = vmul.f32 %v3468, %v3575
      %v3721 = vmul.f32 %v3469, %v3580
      %v3722 = vmul.f32 %v3470, %v3585
      %v3723 = vmul.f32 %v3471, %v3590
      %v3724 = vmul.f32 %v3472, %v3595
      %v3725 = vmul.f32 %v3473, %v3600
      %v3726 = vmul.f32 %v3474, %v3605
      %v3727 = vmul.f32 %v3475, %v3610
      %v3728 = vmul.f32 %v3476, %v3615
      %v3729 = vmul.f32 %v3477, %v3620
      %v3730 = vmul.f32 %v3478, %v3625
      %v3731 = vmul.f32 %v3479, %v3630
      %v3732 = vmul.f32 %v3480, %v3635
      %v3733 = vmul.f32 %v3481, %v3640
      %v3734 = vmul.f32 %v3482, %v3645
      %v3735 = vmul.f32 %v3483, %v3650
      %v3736 = vmul.f32 %v3484, %v3655
      %v3737 = vmul.f32 %v3485, %v3660
      %v3738 = vmul.f32 %v3486, %v3665
      %v3739 = vmul.f32 %v3487, %v3670
      %v3740 = vmul.f32 %v3488, %v3675
      %v3741 = vmul.f32 %v3489, %v3680
      %v3742 = vmul.f32 %v3490, %v3685
      %v3743 = vmul.f32 %v3491, %v3690
      %v3744 = vmul.f32 %v3492, %v3695
      %v3745 = vmul.f32 %v3493, %v3700
      %v3746 = vmul.f32 %v3494, %v3705
      %v3747 = vmul.f32 %v3495, %v3710
      %v3748 = vadd.f32 %v3712, %v3713
      %v3749 = vadd.f32 %v3748, %v3714
      %v3750 = vadd.f32 %v3749, %v3715
      %v3751 = vadd.f32 %v3750, %v3716
      %v3752 = vadd.f32 %v3751, %v3717
      %v3753 = vadd.f32 %v3752, %v3718
      %v3754 = vadd.f32 %v3753, %v3719
      %v3755 = vadd.f32 %v3754, %v3720
      %v3756 = vadd.f32 %v3755, %v3721
      %v3757 = vadd.f32 %v3756, %v3722
      %v3758 = vadd.f32 %v3757, %v3723
      %v3759 = vadd.f32 %v3758, %v3724
      %v3760 = vadd.f32 %v3759, %v3725
      %v3761 = vadd.f32 %v3760, %v3726
      %v3762 = vadd.f32 %v3761, %v3727
      %v3763 = vadd.f32 %v3762, %v3728
      %v3764 = vadd.f32 %v3763, %v3729
      %v3765 = vadd.f32 %v3764, %v3730
      %v3766 = vadd.f32 %v3765, %v3731
      %v3767 = vadd.f32 %v3766, %v3732
      %v3768 = vadd.f32 %v3767, %v3733
      %v3769 = vadd.f32 %v3768, %v3734
      %v3770 = vadd.f32 %v3769, %v3735
      %v3771 = vadd.f32 %v3770, %v3736
      %v3772 = vadd.f32 %v3771, %v3737
      %v3773 = vadd.f32 %v3772, %v3738
      %v3774 = vadd.f32 %v3773, %v3739
      %v3775 = vadd.f32 %v3774, %v3740
      %v3776 = vadd.f32 %v3775, %v3741
      %v3777 = vadd.f32 %v3776, %v3742
      %v3778 = vadd.f32 %v3777, %v3743
      %v3779 = vadd.f32 %v3778, %v3744
      %v3780 = vadd.f32 %v3779, %v3745
      %v3781 = vadd.f32 %v3780, %v3746
      %v3782 = vadd.f32 %v3781, %v3747
      %v3783 = vrot.slane %v3782, 4
      %v3784 = vadd.f32 %v3782, %v3783
      %v3785 = vrot.slane %v3784, 2
      %v3786 = vadd.f32 %v3784, %v3785
      %v3787 = vrot.slane %v3786, 1
      %v3788 = vadd.f32 %v3786, %v3787
      %3789 = vst [vmem:[%s238] sm:$0x1] %v3788
      %v3790 = vmul.f32 %v3712, %v3460
      %v3791 = vmul.f32 %v3713, %v3461
      %v3792 = vmul.f32 %v3714, %v3462
      %v3793 = vmul.f32 %v3715, %v3463
      %v3794 = vmul.f32 %v3716, %v3464
      %v3795 = vmul.f32 %v3717, %v3465
      %v3796 = vmul.f32 %v3718, %v3466
      %v3797 = vmul.f32 %v3719, %v3467
      %v3798 = vmul.f32 %v3720, %v3468
      %v3799 = vmul.f32 %v3721, %v3469
      %v3800 = vmul.f32 %v3722, %v3470
      %v3801 = vmul.f32 %v3723, %v3471
      %v3802 = vmul.f32 %v3724, %v3472
      %v3803 = vmul.f32 %v3725, %v3473
      %v3804 = vmul.f32 %v3726, %v3474
      %v3805 = vmul.f32 %v3727, %v3475
      %v3806 = vmul.f32 %v3728, %v3476
      %v3807 = vmul.f32 %v3729, %v3477
      %v3808 = vmul.f32 %v3730, %v3478
      %v3809 = vmul.f32 %v3731, %v3479
      %v3810 = vmul.f32 %v3732, %v3480
      %v3811 = vmul.f32 %v3733, %v3481
      %v3812 = vmul.f32 %v3734, %v3482
      %v3813 = vmul.f32 %v3735, %v3483
      %v3814 = vmul.f32 %v3736, %v3484
      %v3815 = vmul.f32 %v3737, %v3485
      %v3816 = vmul.f32 %v3738, %v3486
      %v3817 = vmul.f32 %v3739, %v3487
      %v3818 = vmul.f32 %v3740, %v3488
      %v3819 = vmul.f32 %v3741, %v3489
      %v3820 = vmul.f32 %v3742, %v3490
      %v3821 = vmul.f32 %v3743, %v3491
      %v3822 = vmul.f32 %v3744, %v3492
      %v3823 = vmul.f32 %v3745, %v3493
      %v3824 = vmul.f32 %v3746, %v3494
      %v3825 = vmul.f32 %v3747, %v3495
      %v3826 = vadd.f32 %v3790, %v3791
      %v3827 = vadd.f32 %v3826, %v3792
      %v3828 = vadd.f32 %v3827, %v3793
      %v3829 = vadd.f32 %v3828, %v3794
      %v3830 = vadd.f32 %v3829, %v3795
      %v3831 = vadd.f32 %v3830, %v3796
      %v3832 = vadd.f32 %v3831, %v3797
      %v3833 = vadd.f32 %v3832, %v3798
      %v3834 = vadd.f32 %v3833, %v3799
      %v3835 = vadd.f32 %v3834, %v3800
      %v3836 = vadd.f32 %v3835, %v3801
      %v3837 = vadd.f32 %v3836, %v3802
      %v3838 = vadd.f32 %v3837, %v3803
      %v3839 = vadd.f32 %v3838, %v3804
      %v3840 = vadd.f32 %v3839, %v3805
      %v3841 = vadd.f32 %v3840, %v3806
      %v3842 = vadd.f32 %v3841, %v3807
      %v3843 = vadd.f32 %v3842, %v3808
      %v3844 = vadd.f32 %v3843, %v3809
      %v3845 = vadd.f32 %v3844, %v3810
      %v3846 = vadd.f32 %v3845, %v3811
      %v3847 = vadd.f32 %v3846, %v3812
      %v3848 = vadd.f32 %v3847, %v3813
      %v3849 = vadd.f32 %v3848, %v3814
      %v3850 = vadd.f32 %v3849, %v3815
      %v3851 = vadd.f32 %v3850, %v3816
      %v3852 = vadd.f32 %v3851, %v3817
      %v3853 = vadd.f32 %v3852, %v3818
      %v3854 = vadd.f32 %v3853, %v3819
      %v3855 = vadd.f32 %v3854, %v3820
      %v3856 = vadd.f32 %v3855, %v3821
      %v3857 = vadd.f32 %v3856, %v3822
      %v3858 = vadd.f32 %v3857, %v3823
      %v3859 = vadd.f32 %v3858, %v3824
      %v3860 = vadd.f32 %v3859, %v3825
      %v3861 = vrot.slane %v3860, 4
      %v3862 = vadd.f32 %v3860, %v3861
      %v3863 = vrot.slane %v3862, 2
      %v3864 = vadd.f32 %v3862, %v3863
      %v3865 = vrot.slane %v3864, 1
      %v3866 = vadd.f32 %v3864, %v3865
      %3867 = vst [vmem:[%s241] sm:$0x1] %v3866
      %v3868 = vpack.c.bf16 %v3713, %v3712
      %v3869 = vpack.c.bf16 %v3715, %v3714
      %v3870 = vpack.c.bf16 %v3717, %v3716
      %v3871 = vpack.c.bf16 %v3719, %v3718
      %v3872 = vpack.c.bf16 %v3721, %v3720
      %v3873 = vpack.c.bf16 %v3723, %v3722
      %v3874 = vpack.c.bf16 %v3725, %v3724
      %v3875 = vpack.c.bf16 %v3727, %v3726
      %v3876 = vpack.c.bf16 %v3729, %v3728
      %v3877 = vpack.c.bf16 %v3731, %v3730
      %v3878 = vpack.c.bf16 %v3733, %v3732
      %v3879 = vpack.c.bf16 %v3735, %v3734
      %v3880 = vpack.c.bf16 %v3737, %v3736
      %v3881 = vpack.c.bf16 %v3739, %v3738
      %v3882 = vpack.c.bf16 %v3741, %v3740
      %v3883 = vpack.c.bf16 %v3743, %v3742
      %v3884 = vpack.c.bf16 %v3745, %v3744
      %v3885 = vpack.c.bf16 %v3747, %v3746
      %3886 = vst [vmem:[%s235] sm:$0xf] 0
      %3887 = vst [vmem:[%s235 + $0x4] sm:$0xf] 0
      %vm3888 = vcmask 1041408
      %vm3889 = vsmask.f32 1280
      %vm3890 = vmand %vm3888, %vm3889
      %v3891 = vld [vmem:[%s235 + $0x8] sm:$0x3]
      %v3892 = vsel %vm3890, 0, %v3891
      %3893 = vst [vmem:[%s235 + $0x8] sm:$0x3] %v3892
      %v3912 = vunpack.c.l.b16 %v3868
      %v3913 = vunpack.c.h.b16 %v3868
      %v3914 = vunpack.c.l.b16 %v3869
      %v3915 = vunpack.c.h.b16 %v3869
      %v3916 = vunpack.c.l.b16 %v3870
      %v3917 = vunpack.c.h.b16 %v3870
      %v3918 = vunpack.c.l.b16 %v3871
      %v3919 = vunpack.c.h.b16 %v3871
      %v3920 = vunpack.c.l.b16 %v3872
      %v3921 = vunpack.c.h.b16 %v3872
      %v3922 = vunpack.c.l.b16 %v3873
      %v3923 = vunpack.c.h.b16 %v3873
      %v3924 = vunpack.c.l.b16 %v3874
      %v3925 = vunpack.c.h.b16 %v3874
      %v3926 = vunpack.c.l.b16 %v3875
      %v3927 = vunpack.c.h.b16 %v3875
      %v3928 = vunpack.c.l.b16 %v3876
      %v3929 = vunpack.c.h.b16 %v3876
      %v3930 = vunpack.c.l.b16 %v3877
      %v3931 = vunpack.c.h.b16 %v3877
      %v3932 = vunpack.c.l.b16 %v3878
      %v3933 = vunpack.c.h.b16 %v3878
      %v3934 = vunpack.c.l.b16 %v3879
      %v3935 = vunpack.c.h.b16 %v3879
      %v3936 = vunpack.c.l.b16 %v3880
      %v3937 = vunpack.c.h.b16 %v3880
      %v3938 = vunpack.c.l.b16 %v3881
      %v3939 = vunpack.c.h.b16 %v3881
      %v3940 = vunpack.c.l.b16 %v3882
      %v3941 = vunpack.c.h.b16 %v3882
      %v3942 = vunpack.c.l.b16 %v3883
      %v3943 = vunpack.c.h.b16 %v3883
      %v3944 = vunpack.c.l.b16 %v3884
      %v3945 = vunpack.c.h.b16 %v3884
      %v3946 = vunpack.c.l.b16 %v3885
      %v3947 = vunpack.c.h.b16 %v3885
      %v3948 = vpack.c.b16 %v3912, %v3912
      %v3949 = vpack.c.b16 %v3913, %v3913
      %v3950 = vpack.c.b16 %v3914, %v3914
      %v3951 = vpack.c.b16 %v3915, %v3915
      %v3952 = vpack.c.b16 %v3916, %v3916
      %v3953 = vpack.c.b16 %v3917, %v3917
      %v3954 = vpack.c.b16 %v3918, %v3918
      %v3955 = vpack.c.b16 %v3919, %v3919
      %v3956 = vpack.c.b16 %v3920, %v3920
      %v3957 = vpack.c.b16 %v3921, %v3921
      %v3958 = vpack.c.b16 %v3922, %v3922
      %v3959 = vpack.c.b16 %v3923, %v3923
      %v3960 = vpack.c.b16 %v3924, %v3924
      %v3961 = vpack.c.b16 %v3925, %v3925
      %v3962 = vpack.c.b16 %v3926, %v3926
      %v3963 = vpack.c.b16 %v3927, %v3927
      %v3964 = vpack.c.b16 %v3928, %v3928
      %v3965 = vpack.c.b16 %v3929, %v3929
      %v3966 = vpack.c.b16 %v3930, %v3930
      %v3967 = vpack.c.b16 %v3931, %v3931
      %v3968 = vpack.c.b16 %v3932, %v3932
      %v3969 = vpack.c.b16 %v3933, %v3933
      %v3970 = vpack.c.b16 %v3934, %v3934
      %v3971 = vpack.c.b16 %v3935, %v3935
      %v3972 = vpack.c.b16 %v3936, %v3936
      %v3973 = vpack.c.b16 %v3937, %v3937
      %v3974 = vpack.c.b16 %v3938, %v3938
      %v3975 = vpack.c.b16 %v3939, %v3939
      %v3976 = vpack.c.b16 %v3940, %v3940
      %v3977 = vpack.c.b16 %v3941, %v3941
      %v3978 = vpack.c.b16 %v3942, %v3942
      %v3979 = vpack.c.b16 %v3943, %v3943
      %v3980 = vpack.c.b16 %v3944, %v3944
      %v3981 = vpack.c.b16 %v3945, %v3945
      %v3982 = vpack.c.b16 %v3946, %v3946
      %v3983 = vpack.c.b16 %v3947, %v3947
      %vm3984 = vsmask.f32 5392
      %vm3985 = vmor %vm3889, %vm3984
      %v3987 = vshrl.u32 %v3948, 16
      %v3989 = vrot.slane %v3987, 6
      %v3990 = vshll.u32 %v3948, 16
      %v3992 = vrot.slane %v3990, 7
      %v3993 = vor.u32 %v3989, %v3992
      %v3994 = vrot.slane %v3993, 4
      %v3996 = vshrl.u32 %v3949, 16
      %v3998 = vrot.slane %v3996, 6
      %v3999 = vshll.u32 %v3949, 16
      %v4001 = vrot.slane %v3999, 7
      %v4002 = vor.u32 %v3998, %v4001
      %v4003 = vsel %vm3985, %v3994, %v4002
      %v4004 = vrot.slane %v4002, 4
      %v4006 = vshrl.u32 %v3950, 16
      %v4008 = vrot.slane %v4006, 6
      %v4009 = vshll.u32 %v3950, 16
      %v4011 = vrot.slane %v4009, 7
      %v4012 = vor.u32 %v4008, %v4011
      %v4013 = vsel %vm3985, %v4004, %v4012
      %v4014 = vrot.slane %v4012, 4
      %v4016 = vshrl.u32 %v3951, 16
      %v4018 = vrot.slane %v4016, 6
      %v4019 = vshll.u32 %v3951, 16
      %v4021 = vrot.slane %v4019, 7
      %v4022 = vor.u32 %v4018, %v4021
      %v4023 = vsel %vm3985, %v4014, %v4022
      %v4024 = vrot.slane %v4022, 4
      %v4026 = vshrl.u32 %v3952, 16
      %v4028 = vrot.slane %v4026, 6
      %v4029 = vshll.u32 %v3952, 16
      %v4031 = vrot.slane %v4029, 7
      %v4032 = vor.u32 %v4028, %v4031
      %v4033 = vsel %vm3985, %v4024, %v4032
      %v4034 = vrot.slane %v4032, 4
      %v4036 = vshrl.u32 %v3953, 16
      %v4038 = vrot.slane %v4036, 6
      %v4039 = vshll.u32 %v3953, 16
      %v4041 = vrot.slane %v4039, 7
      %v4042 = vor.u32 %v4038, %v4041
      %v4043 = vsel %vm3985, %v4034, %v4042
      %v4044 = vrot.slane %v4042, 4
      %v4046 = vshrl.u32 %v3954, 16
      %v4048 = vrot.slane %v4046, 6
      %v4049 = vshll.u32 %v3954, 16
      %v4051 = vrot.slane %v4049, 7
      %v4052 = vor.u32 %v4048, %v4051
      %v4053 = vsel %vm3985, %v4044, %v4052
      %v4054 = vrot.slane %v4052, 4
      %v4056 = vshrl.u32 %v3955, 16
      %v4058 = vrot.slane %v4056, 6
      %v4059 = vshll.u32 %v3955, 16
      %v4061 = vrot.slane %v4059, 7
      %v4062 = vor.u32 %v4058, %v4061
      %v4063 = vsel %vm3985, %v4054, %v4062
      %v4064 = vrot.slane %v4062, 4
      %v4066 = vshrl.u32 %v3956, 16
      %v4068 = vrot.slane %v4066, 6
      %v4069 = vshll.u32 %v3956, 16
      %v4071 = vrot.slane %v4069, 7
      %v4072 = vor.u32 %v4068, %v4071
      %v4073 = vsel %vm3985, %v4064, %v4072
      %v4074 = vrot.slane %v4072, 4
      %v4076 = vshrl.u32 %v3957, 16
      %v4078 = vrot.slane %v4076, 6
      %v4079 = vshll.u32 %v3957, 16
      %v4081 = vrot.slane %v4079, 7
      %v4082 = vor.u32 %v4078, %v4081
      %v4083 = vsel %vm3985, %v4074, %v4082
      %v4084 = vrot.slane %v4082, 4
      %v4086 = vshrl.u32 %v3958, 16
      %v4088 = vrot.slane %v4086, 6
      %v4089 = vshll.u32 %v3958, 16
      %v4091 = vrot.slane %v4089, 7
      %v4092 = vor.u32 %v4088, %v4091
      %v4093 = vsel %vm3985, %v4084, %v4092
      %v4094 = vrot.slane %v4092, 4
      %v4096 = vshrl.u32 %v3959, 16
      %v4098 = vrot.slane %v4096, 6
      %v4099 = vshll.u32 %v3959, 16
      %v4101 = vrot.slane %v4099, 7
      %v4102 = vor.u32 %v4098, %v4101
      %v4103 = vsel %vm3985, %v4094, %v4102
      %v4104 = vrot.slane %v4102, 4
      %v4106 = vshrl.u32 %v3960, 16
      %v4108 = vrot.slane %v4106, 6
      %v4109 = vshll.u32 %v3960, 16
      %v4111 = vrot.slane %v4109, 7
      %v4112 = vor.u32 %v4108, %v4111
      %v4113 = vsel %vm3985, %v4104, %v4112
      %v4114 = vrot.slane %v4112, 4
      %v4116 = vshrl.u32 %v3961, 16
      %v4118 = vrot.slane %v4116, 6
      %v4119 = vshll.u32 %v3961, 16
      %v4121 = vrot.slane %v4119, 7
      %v4122 = vor.u32 %v4118, %v4121
      %v4123 = vsel %vm3985, %v4114, %v4122
      %v4124 = vrot.slane %v4122, 4
      %v4126 = vshrl.u32 %v3962, 16
      %v4128 = vrot.slane %v4126, 6
      %v4129 = vshll.u32 %v3962, 16
      %v4131 = vrot.slane %v4129, 7
      %v4132 = vor.u32 %v4128, %v4131
      %v4133 = vsel %vm3985, %v4124, %v4132
      %v4134 = vrot.slane %v4132, 4
      %v4136 = vshrl.u32 %v3963, 16
      %v4138 = vrot.slane %v4136, 6
      %v4139 = vshll.u32 %v3963, 16
      %v4141 = vrot.slane %v4139, 7
      %v4142 = vor.u32 %v4138, %v4141
      %v4143 = vsel %vm3985, %v4134, %v4142
      %v4144 = vrot.slane %v4142, 4
      %v4146 = vshrl.u32 %v3964, 16
      %v4148 = vrot.slane %v4146, 6
      %v4149 = vshll.u32 %v3964, 16
      %v4151 = vrot.slane %v4149, 7
      %v4152 = vor.u32 %v4148, %v4151
      %v4153 = vsel %vm3985, %v4144, %v4152
      %v4154 = vrot.slane %v4152, 4
      %v4156 = vshrl.u32 %v3965, 16
      %v4158 = vrot.slane %v4156, 6
      %v4159 = vshll.u32 %v3965, 16
      %v4161 = vrot.slane %v4159, 7
      %v4162 = vor.u32 %v4158, %v4161
      %v4163 = vsel %vm3985, %v4154, %v4162
      %v4164 = vrot.slane %v4162, 4
      %v4166 = vshrl.u32 %v3966, 16
      %v4168 = vrot.slane %v4166, 6
      %v4169 = vshll.u32 %v3966, 16
      %v4171 = vrot.slane %v4169, 7
      %v4172 = vor.u32 %v4168, %v4171
      %v4173 = vsel %vm3985, %v4164, %v4172
      %v4174 = vrot.slane %v4172, 4
      %v4176 = vshrl.u32 %v3967, 16
      %v4178 = vrot.slane %v4176, 6
      %v4179 = vshll.u32 %v3967, 16
      %v4181 = vrot.slane %v4179, 7
      %v4182 = vor.u32 %v4178, %v4181
      %v4183 = vsel %vm3985, %v4174, %v4182
      %v4184 = vrot.slane %v4182, 4
      %v4186 = vshrl.u32 %v3968, 16
      %v4188 = vrot.slane %v4186, 6
      %v4189 = vshll.u32 %v3968, 16
      %v4191 = vrot.slane %v4189, 7
      %v4192 = vor.u32 %v4188, %v4191
      %v4193 = vsel %vm3985, %v4184, %v4192
      %v4194 = vrot.slane %v4192, 4
      %v4196 = vshrl.u32 %v3969, 16
      %v4198 = vrot.slane %v4196, 6
      %v4199 = vshll.u32 %v3969, 16
      %v4201 = vrot.slane %v4199, 7
      %v4202 = vor.u32 %v4198, %v4201
      %v4203 = vsel %vm3985, %v4194, %v4202
      %v4204 = vrot.slane %v4202, 4
      %v4206 = vshrl.u32 %v3970, 16
      %v4208 = vrot.slane %v4206, 6
      %v4209 = vshll.u32 %v3970, 16
      %v4211 = vrot.slane %v4209, 7
      %v4212 = vor.u32 %v4208, %v4211
      %v4213 = vsel %vm3985, %v4204, %v4212
      %v4214 = vrot.slane %v4212, 4
      %v4216 = vshrl.u32 %v3971, 16
      %v4218 = vrot.slane %v4216, 6
      %v4219 = vshll.u32 %v3971, 16
      %v4221 = vrot.slane %v4219, 7
      %v4222 = vor.u32 %v4218, %v4221
      %v4223 = vsel %vm3985, %v4214, %v4222
      %v4224 = vrot.slane %v4222, 4
      %v4226 = vshrl.u32 %v3972, 16
      %v4228 = vrot.slane %v4226, 6
      %v4229 = vshll.u32 %v3972, 16
      %v4231 = vrot.slane %v4229, 7
      %v4232 = vor.u32 %v4228, %v4231
      %v4233 = vsel %vm3985, %v4224, %v4232
      %v4234 = vrot.slane %v4232, 4
      %v4236 = vshrl.u32 %v3973, 16
      %v4238 = vrot.slane %v4236, 6
      %v4239 = vshll.u32 %v3973, 16
      %v4241 = vrot.slane %v4239, 7
      %v4242 = vor.u32 %v4238, %v4241
      %v4243 = vsel %vm3985, %v4234, %v4242
      %v4244 = vrot.slane %v4242, 4
      %v4246 = vshrl.u32 %v3974, 16
      %v4248 = vrot.slane %v4246, 6
      %v4249 = vshll.u32 %v3974, 16
      %v4251 = vrot.slane %v4249, 7
      %v4252 = vor.u32 %v4248, %v4251
      %v4253 = vsel %vm3985, %v4244, %v4252
      %v4254 = vrot.slane %v4252, 4
      %v4256 = vshrl.u32 %v3975, 16
      %v4258 = vrot.slane %v4256, 6
      %v4259 = vshll.u32 %v3975, 16
      %v4261 = vrot.slane %v4259, 7
      %v4262 = vor.u32 %v4258, %v4261
      %v4263 = vsel %vm3985, %v4254, %v4262
      %v4264 = vrot.slane %v4262, 4
      %v4266 = vshrl.u32 %v3976, 16
      %v4268 = vrot.slane %v4266, 6
      %v4269 = vshll.u32 %v3976, 16
      %v4271 = vrot.slane %v4269, 7
      %v4272 = vor.u32 %v4268, %v4271
      %v4273 = vsel %vm3985, %v4264, %v4272
      %v4274 = vrot.slane %v4272, 4
      %v4276 = vshrl.u32 %v3977, 16
      %v4278 = vrot.slane %v4276, 6
      %v4279 = vshll.u32 %v3977, 16
      %v4281 = vrot.slane %v4279, 7
      %v4282 = vor.u32 %v4278, %v4281
      %v4283 = vsel %vm3985, %v4274, %v4282
      %v4284 = vrot.slane %v4282, 4
      %v4286 = vshrl.u32 %v3978, 16
      %v4288 = vrot.slane %v4286, 6
      %v4289 = vshll.u32 %v3978, 16
      %v4291 = vrot.slane %v4289, 7
      %v4292 = vor.u32 %v4288, %v4291
      %v4293 = vsel %vm3985, %v4284, %v4292
      %v4294 = vrot.slane %v4292, 4
      %v4296 = vshrl.u32 %v3979, 16
      %v4298 = vrot.slane %v4296, 6
      %v4299 = vshll.u32 %v3979, 16
      %v4301 = vrot.slane %v4299, 7
      %v4302 = vor.u32 %v4298, %v4301
      %v4303 = vsel %vm3985, %v4294, %v4302
      %v4304 = vrot.slane %v4302, 4
      %v4306 = vshrl.u32 %v3980, 16
      %v4308 = vrot.slane %v4306, 6
      %v4309 = vshll.u32 %v3980, 16
      %v4311 = vrot.slane %v4309, 7
      %v4312 = vor.u32 %v4308, %v4311
      %v4313 = vsel %vm3985, %v4304, %v4312
      %v4314 = vrot.slane %v4312, 4
      %v4316 = vshrl.u32 %v3981, 16
      %v4318 = vrot.slane %v4316, 6
      %v4319 = vshll.u32 %v3981, 16
      %v4321 = vrot.slane %v4319, 7
      %v4322 = vor.u32 %v4318, %v4321
      %v4323 = vsel %vm3985, %v4314, %v4322
      %v4324 = vrot.slane %v4322, 4
      %v4326 = vshrl.u32 %v3982, 16
      %v4328 = vrot.slane %v4326, 6
      %v4329 = vshll.u32 %v3982, 16
      %v4331 = vrot.slane %v4329, 7
      %v4332 = vor.u32 %v4328, %v4331
      %v4333 = vsel %vm3985, %v4324, %v4332
      %v4334 = vrot.slane %v4332, 4
      %v4336 = vshrl.u32 %v3983, 16
      %v4338 = vrot.slane %v4336, 6
      %v4339 = vshll.u32 %v3983, 16
      %v4341 = vrot.slane %v4339, 7
      %v4342 = vor.u32 %v4338, %v4341
      %v4343 = vsel %vm3985, %v4334, %v4342
      %v4344 = vrot.slane %v4342, 4
      %vm4382 = vcmask 1043457
      %vm4383 = vsmask.f32 7942
      %vm4384 = vmand %vm4382, %vm4383
      %v4385 = vld [vmem:[%s235 + $0x8] sm:$0xe]
      %v4386 = vsel %vm4384, %v3993, %v4385
      %4387 = vst [vmem:[%s235 + $0x8] sm:$0xe] %v4386
      %4388 = vst [vmem:[%s235 + $0xc] sm:$0xf] %v4003
      %4389 = vst [vmem:[%s235 + $0x10] sm:$0xf] %v4013
      %4390 = vst [vmem:[%s235 + $0x14] sm:$0xf] %v4023
      %4391 = vst [vmem:[%s235 + $0x18] sm:$0xf] %v4033
      %4392 = vst [vmem:[%s235 + $0x1c] sm:$0xf] %v4043
      %4393 = vst [vmem:[%s235 + $0x20] sm:$0xf] %v4053
      %4394 = vst [vmem:[%s235 + $0x24] sm:$0xf] %v4063
      %4395 = vst [vmem:[%s235 + $0x28] sm:$0xf] %v4073
      %4396 = vst [vmem:[%s235 + $0x2c] sm:$0xf] %v4083
      %4397 = vst [vmem:[%s235 + $0x30] sm:$0xf] %v4093
      %4398 = vst [vmem:[%s235 + $0x34] sm:$0xf] %v4103
      %4399 = vst [vmem:[%s235 + $0x38] sm:$0xf] %v4113
      %4400 = vst [vmem:[%s235 + $0x3c] sm:$0xf] %v4123
      %4401 = vst [vmem:[%s235 + $0x40] sm:$0xf] %v4133
      %4402 = vst [vmem:[%s235 + $0x44] sm:$0xf] %v4143
      %4403 = vst [vmem:[%s235 + $0x48] sm:$0xf] %v4153
      %4404 = vst [vmem:[%s235 + $0x4c] sm:$0xf] %v4163
      %4405 = vst [vmem:[%s235 + $0x50] sm:$0xf] %v4173
      %4406 = vst [vmem:[%s235 + $0x54] sm:$0xf] %v4183
      %4407 = vst [vmem:[%s235 + $0x58] sm:$0xf] %v4193
      %4408 = vst [vmem:[%s235 + $0x5c] sm:$0xf] %v4203
      %4409 = vst [vmem:[%s235 + $0x60] sm:$0xf] %v4213
      %4410 = vst [vmem:[%s235 + $0x64] sm:$0xf] %v4223
      %4411 = vst [vmem:[%s235 + $0x68] sm:$0xf] %v4233
      %4412 = vst [vmem:[%s235 + $0x6c] sm:$0xf] %v4243
      %4413 = vst [vmem:[%s235 + $0x70] sm:$0xf] %v4253
      %4414 = vst [vmem:[%s235 + $0x74] sm:$0xf] %v4263
      %4415 = vst [vmem:[%s235 + $0x78] sm:$0xf] %v4273
      %4416 = vst [vmem:[%s235 + $0x7c] sm:$0xf] %v4283
      %4417 = vst [vmem:[%s235 + $0x80] sm:$0xf] %v4293
      %4418 = vst [vmem:[%s235 + $0x84] sm:$0xf] %v4303
      %4419 = vst [vmem:[%s235 + $0x88] sm:$0xf] %v4313
      %4420 = vst [vmem:[%s235 + $0x8c] sm:$0xf] %v4323
      %4421 = vst [vmem:[%s235 + $0x90] sm:$0xf] %v4333
      %4422 = vst [vmem:[%s235 + $0x94] sm:$0xf] %v4343
      %v4423 = vld [vmem:[%s235 + $0x98] sm:$0x3]
      %v4424 = vsel %vm3890, %v4344, %v4423
      %4425 = vst [vmem:[%s235 + $0x98] sm:$0x3] %v4424
      %v4426 = vld [vmem:[%s235 + $0x98] sm:$0xe]
      %v4427 = vsel %vm4384, 0, %v4426
      %4428 = vst [vmem:[%s235 + $0x98] sm:$0xe] %v4427
      %4429 = vst [vmem:[%s235 + $0x9c] sm:$0xf] 0
      %4430 = vst [vmem:[%s235 + $0xa0] sm:$0xf] 0
      %4431 = vst [vmem:[%s235 + $0xa4] sm:$0xf] 0
      %4432 = vst [vmem:[%s235 + $0xa8] sm:$0x7] 0
      %p4433 = scmp.lt.s32.totalorder %s17, 1
      %s4434 = scalar_select %p4433, %s17, 1
      %s4435 = smul.addr %s4434, 43
      %s4436 = smul.addr %s4435, 4
      %s4437 = scalar_lea.vmem %s3, %s4436
      %p4438 = scmp.lt.s32.totalorder %s17, 1
      %s4439 = scalar_select %p4438, %s17, 1
      %s4440 = scalar_lea.vmem %s4, %s4439
      %p4441 = scmp.lt.s32.totalorder %s17, 1
      %s4442 = scalar_select %p4441, %s17, 1
      %s4443 = scalar_lea.vmem %s5, %s4442
      // Predicated region
      $region33: #{basic_block_forward.3} parent=31 // pred_check
        %p4444 = pneg %p103
      $region34: #{basic_block_forward.3} parent=31 // pred_check_branch
        %4446 = sbr.rel (%p4444) target = $region36
      $region35: #{basic_block_forward.3} parent=31 // pred_region
        _
      $region36: #{basic_block_forward.3} parent=31 // pred_fallthru
        _
      // Predicated region
      $region37: #{basic_block_forward.3} parent=31 // pred_check
        %p4447 = pneg %p129
      $region38: #{basic_block_forward.3} parent=31 // pred_check_branch
        %4449 = sbr.rel (%p4447) target = $region40
      $region39: #{basic_block_forward.3} parent=31 // pred_region
        _
      $region40: #{basic_block_forward.3} parent=31 // pred_fallthru
        _
      // Predicated region
      $region41: #{basic_block_forward.3} parent=31 // pred_check
        %p4450 = pneg %p155
      $region42: #{basic_block_forward.3} parent=31 // pred_check_branch
        %4452 = sbr.rel (%p4450) target = $region44
      $region43: #{basic_block_forward.3} parent=31 // pred_region
        _
      $region44: #{basic_block_forward.3} parent=31 // pred_fallthru
        _
    $region32: #{basic_block_forward.3} parent=5 // pred_fallthru
      _
    %p4453 = scmp.le.s32.totalorder 2, %s12
    // Predicated region
    $region45: #{basic_block_forward.3} parent=5 // pred_check
      %p4454 = pneg %p4453
    $region46: #{basic_block_forward.3} parent=5 // pred_check_branch
      %4456 = sbr.rel (%p4454) target = $region48
    $region47: #{basic_block_forward.3} parent=5 // pred_region
      %s4457 = ssub.s32 %s12, 2
      // Predicated region
      $region49: #{basic_block_forward.3} parent=47 // pred_check
        %p4458 = pneg %p109
      $region50: #{basic_block_forward.3} parent=47 // pred_check_branch
        %4460 = sbr.rel (%p4458) target = $region52
      $region51: #{basic_block_forward.3} parent=47 // pred_region
        %p4461 = scmp.lt.s32.totalorder %s18, 1
        %s4462 = scalar_select %p4461, %s18, 1
        %s4463 = smul.addr %s4462, 43
        %s4464 = smul.addr %s4463, 4
        %s4465 = scalar_lea.vmem %s3, %s4464
      $region52: #{basic_block_forward.3} parent=47 // pred_fallthru
        _
      // Predicated region
      $region53: #{basic_block_forward.3} parent=47 // pred_check
        %p4466 = pneg %p135
      $region54: #{basic_block_forward.3} parent=47 // pred_check_branch
        %4468 = sbr.rel (%p4466) target = $region56
      $region55: #{basic_block_forward.3} parent=47 // pred_region
        %p4469 = scmp.lt.s32.totalorder %s18, 1
        %s4470 = scalar_select %p4469, %s18, 1
        %s4471 = scalar_lea.vmem %s4, %s4470
      $region56: #{basic_block_forward.3} parent=47 // pred_fallthru
        _
      // Predicated region
      $region57: #{basic_block_forward.3} parent=47 // pred_check
        %p4472 = pneg %p161
      $region58: #{basic_block_forward.3} parent=47 // pred_check_branch
        %4474 = sbr.rel (%p4472) target = $region60
      $region59: #{basic_block_forward.3} parent=47 // pred_region
        %p4475 = scmp.lt.s32.totalorder %s18, 1
        %s4476 = scalar_select %p4475, %s18, 1
        %s4477 = scalar_lea.vmem %s5, %s4476
      $region60: #{basic_block_forward.3} parent=47 // pred_fallthru
        _
    $region48: #{basic_block_forward.3} parent=5 // pred_fallthru
      _
  $region6: #{basic_block_forward.3} parent=0 // loop_footer
    %s16 = sadd.s32 1, %s12
  $region7: #{basic_block_forward.3} parent=0 // loop_footer_branch
    %11 = sbr.rel target = $region3
  $region8: #{basic_block_forward.3} parent=0 // loop_exit
    _

// kernel: basic_block_forward.4
$region0: #{basic_block_forward.4}
  #allocation0 [shape = 'u32[]', space=smem, size = 0x4, offset = 0x4, fixed_abs, tag = 'smem constant byte address 0x4 - core index']
  #allocation1 [shape = 'u32[144,128]{1,0:T(1,128)}', space=vmem, size = 0x12000, scoped, tag = 'internal scratch']
  #allocation2 [shape = 'f32[288,128]{1,0:T(8,128)}', space=vmem, size = 0x24000, scoped, tag = 'scratch operand']
  #allocation3 [shape = 'bf16[342,128]{1,0:T(8,128)(2,1)}', space=vmem, size = 0x15800, scoped, tag = 'scratch operand']
  %s0 = inlined_call_operand.vmem [shape: bf16[2,342,128], index: 0, kind: input, shape index: {}]
  %s1 = inlined_call_operand.vmem [shape: bf16[3,384,128], index: 1, kind: input, shape index: {}]
  %s2 = inlined_call_operand.vmem [shape: f32[288,1], index: 2, kind: input, shape index: {}]
  %s3 = inlined_call_operand.vmem [shape: f32[342,1], index: 3, kind: input, shape index: {}]
  %s4 = inlined_call_operand.vmem [shape: f32[1,128], index: 4, kind: input, shape index: {}]
  %s5 = inlined_call_operand.vmem [shape: f32[1,128], index: 5, kind: input, shape index: {}]
  %s6 = inlined_call_operand.vmem [shape: bf16[2,342,128], index: 6, kind: output, shape index: {0}]
  %s7 = inlined_call_operand.vmem [shape: f32[2,1,128], index: 7, kind: output, shape index: {1}]
  %s8 = inlined_call_operand.vmem [shape: f32[2,1,128], index: 8, kind: output, shape index: {2}]
  %9 = xla_tuple %s6, %s7, %s8
  %s10 = sld [smem:[#allocation0]]
  $region73: #{basic_block_forward.4} parent=0
    _
  %s12 = ssub.s32 1, %s10
  %s13 = scalar_select 0, %s12, %s10
  loop: start=0, step=1, limit=4
  $region2: #{basic_block_forward.4} parent=0 // loop_pre_header
    _
  $region3: #{basic_block_forward.4} parent=0 // loop_header
    %s15 = sphi 0, %s19
    %p16 = scmp.ge.s32.totalorder %s15, 4
    %s25 = sphi 0, %s27
    %s28 = sphi 0, %s25
    %s29 = sphi 0, %s28
    %s45 = sphi 0, %s29
    %s49 = sphi 0, %s49
    %s51 = sphi 0, %s49
    %s52 = sphi 0, %s51
    %s66 = sphi 0, %s52
    %s70 = sphi 0, %s70
    %s72 = sphi 0, %s70
    %s73 = sphi 0, %s72
    %s87 = sphi 0, %s73
    %s91 = sphi 0, %s91
    %s93 = sphi 0, %s91
    %s94 = sphi 0, %s93
    %s108 = sphi 0, %s94
    %s112 = sphi 0, %s112
    %s114 = sphi 0, %s112
    %s115 = sphi 0, %s114
    %s129 = sphi 0, %s115
    %s133 = sphi 0, %s133
    %s135 = sphi 0, %s133
    %s136 = sphi 0, %s135
    %s150 = sphi 0, %s136
    %s156 = sphi 0, %s158
    %s159 = sphi 0, %s156
    %s160 = sphi 0, %s159
    %s176 = sphi 0, %s160
    %s182 = sphi 0, %s184
    %s185 = sphi 0, %s182
    %s186 = sphi 0, %s185
    %s202 = sphi 0, %s186
    %s208 = sphi 0, %s210
    %s211 = sphi 0, %s208
    %s212 = sphi 0, %s211
    %s228 = sphi 0, %s212
  $region4: #{basic_block_forward.4} parent=0 // loop_header_branch
    %18 = sbr.rel (%p16) target = $region8
  $region5: #{basic_block_forward.4} parent=0 // loop_body
    %s20 = ssub.s32 %s15, 1
    %s21 = ssub.s32 %s15, 2
    %s22 = sadd.s32 %s15, 1
    %s23 = ssub.s32 %s15, %s22
    %p24 = scmp.eq.s32.totalorder %s23, 0
    %s26 = sadd.s32 %s25, 1
    %s27 = scalar_select %p24, %s25, %s26
    %p30 = pneg %p24
    %p31 = scmp.eq.s32.totalorder %s15, 1
    %p32 = por %p30, %p31
    %p33 = scmp.ne.s32.totalorder %s25, %s28
    %p34 = scmp.eq.s32.totalorder %s15, 0
    %p35 = por %p33, %p34
    %p36 = scmp.ne.s32.totalorder %s25, %s28
    %p37 = scmp.eq.s32.totalorder %s20, 1
    %p38 = por %p36, %p37
    %p39 = scmp.ne.s32.totalorder %s28, %s29
    %p40 = scmp.eq.s32.totalorder %s20, 0
    %p41 = por %p39, %p40
    %p42 = scmp.ne.s32.totalorder %s28, %s29
    %p43 = scmp.eq.s32.totalorder %s21, 1
    %p44 = por %p42, %p43
    %p46 = scmp.ne.s32.totalorder %s29, %s45
    %p47 = scmp.eq.s32.totalorder %s21, 0
    %p48 = por %p46, %p47
    %s50 = sadd.s32 %s49, 1
    %p53 = scmp.eq.s32.totalorder %s15, 1
    %p54 = scmp.ne.s32.totalorder %s49, %s51
    %p55 = scmp.eq.s32.totalorder %s15, 0
    %p56 = por %p54, %p55
    %p57 = scmp.ne.s32.totalorder %s49, %s51
    %p58 = scmp.eq.s32.totalorder %s20, 1
    %p59 = por %p57, %p58
    %p60 = scmp.ne.s32.totalorder %s51, %s52
    %p61 = scmp.eq.s32.totalorder %s20, 0
    %p62 = por %p60, %p61
    %p63 = scmp.ne.s32.totalorder %s51, %s52
    %p64 = scmp.eq.s32.totalorder %s21, 1
    %p65 = por %p63, %p64
    %p67 = scmp.ne.s32.totalorder %s52, %s66
    %p68 = scmp.eq.s32.totalorder %s21, 0
    %p69 = por %p67, %p68
    %s71 = sadd.s32 %s70, 1
    %p74 = scmp.eq.s32.totalorder %s15, 1
    %p75 = scmp.ne.s32.totalorder %s70, %s72
    %p76 = scmp.eq.s32.totalorder %s15, 0
    %p77 = por %p75, %p76
    %p78 = scmp.ne.s32.totalorder %s70, %s72
    %p79 = scmp.eq.s32.totalorder %s20, 1
    %p80 = por %p78, %p79
    %p81 = scmp.ne.s32.totalorder %s72, %s73
    %p82 = scmp.eq.s32.totalorder %s20, 0
    %p83 = por %p81, %p82
    %p84 = scmp.ne.s32.totalorder %s72, %s73
    %p85 = scmp.eq.s32.totalorder %s21, 1
    %p86 = por %p84, %p85
    %p88 = scmp.ne.s32.totalorder %s73, %s87
    %p89 = scmp.eq.s32.totalorder %s21, 0
    %p90 = por %p88, %p89
    %s92 = sadd.s32 %s91, 1
    %p95 = scmp.eq.s32.totalorder %s15, 1
    %p96 = scmp.ne.s32.totalorder %s91, %s93
    %p97 = scmp.eq.s32.totalorder %s15, 0
    %p98 = por %p96, %p97
    %p99 = scmp.ne.s32.totalorder %s91, %s93
    %p100 = scmp.eq.s32.totalorder %s20, 1
    %p101 = por %p99, %p100
    %p102 = scmp.ne.s32.totalorder %s93, %s94
    %p103 = scmp.eq.s32.totalorder %s20, 0
    %p104 = por %p102, %p103
    %p105 = scmp.ne.s32.totalorder %s93, %s94
    %p106 = scmp.eq.s32.totalorder %s21, 1
    %p107 = por %p105, %p106
    %p109 = scmp.ne.s32.totalorder %s94, %s108
    %p110 = scmp.eq.s32.totalorder %s21, 0
    %p111 = por %p109, %p110
    %s113 = sadd.s32 %s112, 1
    %p116 = scmp.eq.s32.totalorder %s15, 1
    %p117 = scmp.ne.s32.totalorder %s112, %s114
    %p118 = scmp.eq.s32.totalorder %s15, 0
    %p119 = por %p117, %p118
    %p120 = scmp.ne.s32.totalorder %s112, %s114
    %p121 = scmp.eq.s32.totalorder %s20, 1
    %p122 = por %p120, %p121
    %p123 = scmp.ne.s32.totalorder %s114, %s115
    %p124 = scmp.eq.s32.totalorder %s20, 0
    %p125 = por %p123, %p124
    %p126 = scmp.ne.s32.totalorder %s114, %s115
    %p127 = scmp.eq.s32.totalorder %s21, 1
    %p128 = por %p126, %p127
    %p130 = scmp.ne.s32.totalorder %s115, %s129
    %p131 = scmp.eq.s32.totalorder %s21, 0
    %p132 = por %p130, %p131
    %s134 = sadd.s32 %s133, 1
    %p137 = scmp.eq.s32.totalorder %s15, 1
    %p138 = scmp.ne.s32.totalorder %s133, %s135
    %p139 = scmp.eq.s32.totalorder %s15, 0
    %p140 = por %p138, %p139
    %p141 = scmp.ne.s32.totalorder %s133, %s135
    %p142 = scmp.eq.s32.totalorder %s20, 1
    %p143 = por %p141, %p142
    %p144 = scmp.ne.s32.totalorder %s135, %s136
    %p145 = scmp.eq.s32.totalorder %s20, 0
    %p146 = por %p144, %p145
    %p147 = scmp.ne.s32.totalorder %s135, %s136
    %p148 = scmp.eq.s32.totalorder %s21, 1
    %p149 = por %p147, %p148
    %p151 = scmp.ne.s32.totalorder %s136, %s150
    %p152 = scmp.eq.s32.totalorder %s21, 0
    %p153 = por %p151, %p152
    %s154 = ssub.s32 %s15, %s22
    %p155 = scmp.eq.s32.totalorder %s154, 0
    %s157 = sadd.s32 %s156, 1
    %s158 = scalar_select %p155, %s156, %s157
    %p161 = pneg %p155
    %p162 = scmp.eq.s32.totalorder %s15, 1
    %p163 = por %p161, %p162
    %p164 = scmp.ne.s32.totalorder %s156, %s159
    %p165 = scmp.eq.s32.totalorder %s15, 0
    %p166 = por %p164, %p165
    %p167 = scmp.ne.s32.totalorder %s156, %s159
    %p168 = scmp.eq.s32.totalorder %s20, 1
    %p169 = por %p167, %p168
    %p170 = scmp.ne.s32.totalorder %s159, %s160
    %p171 = scmp.eq.s32.totalorder %s20, 0
    %p172 = por %p170, %p171
    %p173 = scmp.ne.s32.totalorder %s159, %s160
    %p174 = scmp.eq.s32.totalorder %s21, 1
    %p175 = por %p173, %p174
    %p177 = scmp.ne.s32.totalorder %s160, %s176
    %p178 = scmp.eq.s32.totalorder %s21, 0
    %p179 = por %p177, %p178
    %s180 = ssub.s32 %s15, %s22
    %p181 = scmp.eq.s32.totalorder %s180, 0
    %s183 = sadd.s32 %s182, 1
    %s184 = scalar_select %p181, %s182, %s183
    %p187 = pneg %p181
    %p188 = scmp.eq.s32.totalorder %s15, 1
    %p189 = por %p187, %p188
    %p190 = scmp.ne.s32.totalorder %s182, %s185
    %p191 = scmp.eq.s32.totalorder %s15, 0
    %p192 = por %p190, %p191
    %p193 = scmp.ne.s32.totalorder %s182, %s185
    %p194 = scmp.eq.s32.totalorder %s20, 1
    %p195 = por %p193, %p194
    %p196 = scmp.ne.s32.totalorder %s185, %s186
    %p197 = scmp.eq.s32.totalorder %s20, 0
    %p198 = por %p196, %p197
    %p199 = scmp.ne.s32.totalorder %s185, %s186
    %p200 = scmp.eq.s32.totalorder %s21, 1
    %p201 = por %p199, %p200
    %p203 = scmp.ne.s32.totalorder %s186, %s202
    %p204 = scmp.eq.s32.totalorder %s21, 0
    %p205 = por %p203, %p204
    %s206 = ssub.s32 %s15, %s22
    %p207 = scmp.eq.s32.totalorder %s206, 0
    %s209 = sadd.s32 %s208, 1
    %s210 = scalar_select %p207, %s208, %s209
    %p213 = pneg %p207
    %p214 = scmp.eq.s32.totalorder %s15, 1
    %p215 = por %p213, %p214
    %p216 = scmp.ne.s32.totalorder %s208, %s211
    %p217 = scmp.eq.s32.totalorder %s15, 0
    %p218 = por %p216, %p217
    %p219 = scmp.ne.s32.totalorder %s208, %s211
    %p220 = scmp.eq.s32.totalorder %s20, 1
    %p221 = por %p219, %p220
    %p222 = scmp.ne.s32.totalorder %s211, %s212
    %p223 = scmp.eq.s32.totalorder %s20, 0
    %p224 = por %p222, %p223
    %p225 = scmp.ne.s32.totalorder %s211, %s212
    %p226 = scmp.eq.s32.totalorder %s21, 1
    %p227 = por %p225, %p226
    %p229 = scmp.ne.s32.totalorder %s212, %s228
    %p230 = scmp.eq.s32.totalorder %s21, 0
    %p231 = por %p229, %p230
    %p232 = scmp.le.s32.totalorder 1, %s15
    %p233 = scmp.lt.s32.totalorder %s15, 3
    %p234 = pnand %p232, %p233
    %p235 = pneg %p234
    // Predicated region
    $region9: #{basic_block_forward.4} parent=5 // pred_check
      _
    $region10: #{basic_block_forward.4} parent=5 // pred_check_branch
      %237 = sbr.rel (%p234) target = $region12
    $region11: #{basic_block_forward.4} parent=5 // pred_region
      %s238 = ssub.s32 %s15, 1
      // Predicated region
      $region13: #{basic_block_forward.4} parent=11 // pred_check
        %p239 = pneg %p62
      $region14: #{basic_block_forward.4} parent=11 // pred_check_branch
        %241 = sbr.rel (%p239) target = $region16
      $region15: #{basic_block_forward.4} parent=11 // pred_region
        _
      $region16: #{basic_block_forward.4} parent=11 // pred_fallthru
        _
      // Predicated region
      $region17: #{basic_block_forward.4} parent=11 // pred_check
        %p242 = pneg %p83
      $region18: #{basic_block_forward.4} parent=11 // pred_check_branch
        %244 = sbr.rel (%p242) target = $region20
      $region19: #{basic_block_forward.4} parent=11 // pred_region
        _
      $region20: #{basic_block_forward.4} parent=11 // pred_fallthru
        _
      // Predicated region
      $region21: #{basic_block_forward.4} parent=11 // pred_check
        %p245 = pneg %p104
      $region22: #{basic_block_forward.4} parent=11 // pred_check_branch
        %247 = sbr.rel (%p245) target = $region24
      $region23: #{basic_block_forward.4} parent=11 // pred_region
        _
      $region24: #{basic_block_forward.4} parent=11 // pred_fallthru
        _
      // Predicated region
      $region25: #{basic_block_forward.4} parent=11 // pred_check
        %p248 = pneg %p125
      $region26: #{basic_block_forward.4} parent=11 // pred_check_branch
        %250 = sbr.rel (%p248) target = $region28
      $region27: #{basic_block_forward.4} parent=11 // pred_region
        _
      $region28: #{basic_block_forward.4} parent=11 // pred_fallthru
        _
      // Predicated region
      $region29: #{basic_block_forward.4} parent=11 // pred_check
        %p251 = pneg %p146
      $region30: #{basic_block_forward.4} parent=11 // pred_check_branch
        %253 = sbr.rel (%p251) target = $region32
      $region31: #{basic_block_forward.4} parent=11 // pred_region
        _
      $region32: #{basic_block_forward.4} parent=11 // pred_fallthru
        _
    $region12: #{basic_block_forward.4} parent=5 // pred_fallthru
      _
    %p254 = scmp.lt.s32.totalorder %s15, 2
    // Predicated region
    $region33: #{basic_block_forward.4} parent=5 // pred_check
      %p255 = pneg %p254
    $region34: #{basic_block_forward.4} parent=5 // pred_check_branch
      %257 = sbr.rel (%p255) target = $region36
    $region35: #{basic_block_forward.4} parent=5 // pred_region
      // Predicated region
      $region37: #{basic_block_forward.4} parent=35 // pred_check
        %p258 = pneg %p35
      $region38: #{basic_block_forward.4} parent=35 // pred_check_branch
        %260 = sbr.rel (%p258) target = $region40
      $region39: #{basic_block_forward.4} parent=35 // pred_region
        %p261 = scmp.lt.s32.totalorder %s15, 1
        %s262 = scalar_select %p261, %s15, 1
        %s263 = smul.addr %s262, 43
        %s264 = smul.addr %s263, 4
        %s265 = scalar_lea.vmem %s0, %s264
      $region40: #{basic_block_forward.4} parent=35 // pred_fallthru
        _
    $region36: #{basic_block_forward.4} parent=5 // pred_fallthru
      _
    %p266 = scmp.le.s32.totalorder 1, %s15
    %p267 = scmp.lt.s32.totalorder %s15, 3
    %p268 = pnand %p266, %p267
    %p269 = pneg %p268
    // Predicated region
    $region41: #{basic_block_forward.4} parent=5 // pred_check
      _
    $region42: #{basic_block_forward.4} parent=5 // pred_check_branch
      %271 = sbr.rel (%p268) target = $region44
    $region43: #{basic_block_forward.4} parent=5 // pred_region
      %s272 = ssub.s32 %s15, 1
      %p273 = scmp.lt.s32.totalorder %s20, 1
      %s274 = scalar_select %p273, %s20, 1
      %s275 = smul.addr %s274, 43
      %s276 = smul.addr %s275, 4
      %s277 = scalar_lea.vmem %s0, %s276
      %p278 = pneg %p41
      %p279 = pneg %p38
      %p280 = pneg %p62
      %p281 = pneg %p59
      %p282 = pneg %p83
      %p283 = pneg %p80
      %p284 = pneg %p104
      %p285 = pneg %p101
      %p286 = pneg %p125
      %p287 = pneg %p122
      %p288 = pneg %p146
      %p289 = pneg %p143
      %p290 = pneg %p172
      %p291 = pneg %p169
      %p292 = scmp.lt.s32.totalorder %s20, 1
      %s293 = scalar_select %p292, %s20, 1
      %s294 = smul.addr %s293, 43
      %s295 = smul.addr %s294, 4
      %s296 = scalar_lea.vmem %s6, %s295
      %p297 = pneg %p198
      %p298 = pneg %p195
      %p299 = scmp.lt.s32.totalorder %s20, 1
      %s300 = scalar_select %p299, %s20, 1
      %s301 = scalar_lea.vmem %s7, %s300
      %p302 = pneg %p224
      %p303 = pneg %p221
      %p304 = scmp.lt.s32.totalorder %s20, 1
      %s305 = scalar_select %p304, %s20, 1
      %s306 = scalar_lea.vmem %s8, %s305
      %p307 = scmp.lt.s32.totalorder %s20, 1
      %s308 = scalar_select %p307, %s20, 1
      %s309 = smul.addr %s308, 43
      %s310 = smul.addr %s309, 4
      %s311 = scalar_lea.vmem %s0, %s310
      %p312 = scmp.lt.s32.totalorder %s20, 1
      %s313 = scalar_select %p312, %s20, 1
      %s314 = smul.addr %s313, 43
      %s315 = smul.addr %s314, 4
      %s316 = scalar_lea.vmem %s6, %s315
      %p317 = scmp.lt.s32.totalorder %s20, 1
      %s318 = scalar_select %p317, %s20, 1
      %s319 = scalar_lea.vmem %s7, %s318
      %p320 = scmp.lt.s32.totalorder %s20, 1
      %s321 = scalar_select %p320, %s20, 1
      %s322 = scalar_lea.vmem %s8, %s321
      %v324 = vld [vmem:[%s311] sm:$0xf]
      %v325 = vld [vmem:[%s311 + $0x4] sm:$0xf]
      %v326 = vld [vmem:[%s311 + $0x8] sm:$0xf]
      %v327 = vld [vmem:[%s311 + $0xc] sm:$0xf]
      %v328 = vld [vmem:[%s311 + $0x10] sm:$0xf]
      %v329 = vld [vmem:[%s311 + $0x14] sm:$0xf]
      %v330 = vld [vmem:[%s311 + $0x18] sm:$0xf]
      %v331 = vld [vmem:[%s311 + $0x1c] sm:$0xf]
      %v332 = vld [vmem:[%s311 + $0x20] sm:$0xf]
      %v333 = vld [vmem:[%s311 + $0x24] sm:$0xf]
      %v334 = vld [vmem:[%s311 + $0x28] sm:$0xf]
      %v335 = vld [vmem:[%s311 + $0x2c] sm:$0xf]
      %v336 = vld [vmem:[%s311 + $0x30] sm:$0xf]
      %v337 = vld [vmem:[%s311 + $0x34] sm:$0xf]
      %v338 = vld [vmem:[%s311 + $0x38] sm:$0xf]
      %v339 = vld [vmem:[%s311 + $0x3c] sm:$0xf]
      %v340 = vld [vmem:[%s311 + $0x40] sm:$0xf]
      %v341 = vld [vmem:[%s311 + $0x44] sm:$0xf]
      %v342 = vld [vmem:[%s311 + $0x48] sm:$0xf]
      %v343 = vld [vmem:[%s311 + $0x4c] sm:$0xf]
      %v344 = vld [vmem:[%s311 + $0x50] sm:$0xf]
      %v345 = vld [vmem:[%s311 + $0x54] sm:$0xf]
      %v346 = vld [vmem:[%s311 + $0x58] sm:$0xf]
      %v347 = vld [vmem:[%s311 + $0x5c] sm:$0xf]
      %v348 = vld [vmem:[%s311 + $0x60] sm:$0xf]
      %v349 = vld [vmem:[%s311 + $0x64] sm:$0xf]
      %v350 = vld [vmem:[%s311 + $0x68] sm:$0xf]
      %v351 = vld [vmem:[%s311 + $0x6c] sm:$0xf]
      %v352 = vld [vmem:[%s311 + $0x70] sm:$0xf]
      %v353 = vld [vmem:[%s311 + $0x74] sm:$0xf]
      %v354 = vld [vmem:[%s311 + $0x78] sm:$0xf]
      %v355 = vld [vmem:[%s311 + $0x7c] sm:$0xf]
      %v356 = vld [vmem:[%s311 + $0x80] sm:$0xf]
      %v357 = vld [vmem:[%s311 + $0x84] sm:$0xf]
      %v358 = vld [vmem:[%s311 + $0x88] sm:$0xf]
      %v359 = vld [vmem:[%s311 + $0x8c] sm:$0xf]
      %v360 = vld [vmem:[%s311 + $0x90] sm:$0xf]
      %v361 = vld [vmem:[%s311 + $0x94] sm:$0xf]
      %v362 = vld [vmem:[%s311 + $0x98] sm:$0xf]
      %v363 = vld [vmem:[%s311 + $0x9c] sm:$0xf]
      %v364 = vld [vmem:[%s311 + $0xa0] sm:$0xf]
      %v365 = vld [vmem:[%s311 + $0xa4] sm:$0xf]
      %v366 = vld [vmem:[%s311 + $0xa8] sm:$0x7]
      %v367 = vunpack.c.l.bf16 %v324
      %v368 = vunpack.c.l.bf16 %v325
      %v369 = vunpack.c.l.bf16 %v326
      %v370 = vunpack.c.l.bf16 %v327
      %v371 = vunpack.c.l.bf16 %v328
      %v372 = vunpack.c.l.bf16 %v329
      %v373 = vunpack.c.l.bf16 %v330
      %v374 = vunpack.c.l.bf16 %v331
      %v375 = vunpack.c.l.bf16 %v332
      %v376 = vunpack.c.l.bf16 %v333
      %v377 = vunpack.c.l.bf16 %v334
      %v378 = vunpack.c.l.bf16 %v335
      %v379 = vunpack.c.l.bf16 %v336
      %v380 = vunpack.c.l.bf16 %v337
      %v381 = vunpack.c.l.bf16 %v338
      %v382 = vunpack.c.l.bf16 %v339
      %v383 = vunpack.c.l.bf16 %v340
      %v384 = vunpack.c.l.bf16 %v341
      %v385 = vunpack.c.l.bf16 %v342
      %v386 = vunpack.c.l.bf16 %v343
      %v387 = vunpack.c.l.bf16 %v344
      %v388 = vunpack.c.l.bf16 %v345
      %v389 = vunpack.c.l.bf16 %v346
      %v390 = vunpack.c.l.bf16 %v347
      %v391 = vunpack.c.l.bf16 %v348
      %v392 = vunpack.c.l.bf16 %v349
      %v393 = vunpack.c.l.bf16 %v350
      %v394 = vunpack.c.l.bf16 %v351
      %v395 = vunpack.c.l.bf16 %v352
      %v396 = vunpack.c.l.bf16 %v353
      %v397 = vunpack.c.l.bf16 %v354
      %v398 = vunpack.c.l.bf16 %v355
      %v399 = vunpack.c.l.bf16 %v356
      %v400 = vunpack.c.l.bf16 %v357
      %v401 = vunpack.c.l.bf16 %v358
      %v402 = vunpack.c.l.bf16 %v359
      %v403 = vunpack.c.l.bf16 %v360
      %v404 = vunpack.c.l.bf16 %v361
      %v405 = vunpack.c.l.bf16 %v362
      %v406 = vunpack.c.l.bf16 %v363
      %v407 = vunpack.c.l.bf16 %v364
      %v408 = vunpack.c.l.bf16 %v365
      %v409 = vunpack.c.l.bf16 %v366
      %v410 = vld [vmem:[%s4] sm:$0x1]
      %v412 = vlaneseq
      %v413 = vshrl.u32 %v412, 7
      %v414 = vsub.s32 0, %v413
      %v415 = vrot.slane %v410, %v414
      %v417 = vmul.f32 %v367, %v415
      %v418 = vmul.f32 %v368, %v415
      %v419 = vmul.f32 %v369, %v415
      %v420 = vmul.f32 %v370, %v415
      %v421 = vmul.f32 %v371, %v415
      %v422 = vmul.f32 %v372, %v415
      %v423 = vmul.f32 %v373, %v415
      %v424 = vmul.f32 %v374, %v415
      %v425 = vmul.f32 %v375, %v415
      %v426 = vmul.f32 %v376, %v415
      %v427 = vmul.f32 %v377, %v415
      %v428 = vmul.f32 %v378, %v415
      %v429 = vmul.f32 %v379, %v415
      %v430 = vmul.f32 %v380, %v415
      %v431 = vmul.f32 %v381, %v415
      %v432 = vmul.f32 %v382, %v415
      %v433 = vmul.f32 %v383, %v415
      %v434 = vmul.f32 %v384, %v415
      %v435 = vmul.f32 %v385, %v415
      %v436 = vmul.f32 %v386, %v415
      %v437 = vmul.f32 %v387, %v415
      %v438 = vmul.f32 %v388, %v415
      %v439 = vmul.f32 %v389, %v415
      %v440 = vmul.f32 %v390, %v415
      %v441 = vmul.f32 %v391, %v415
      %v442 = vmul.f32 %v392, %v415
      %v443 = vmul.f32 %v393, %v415
      %v444 = vmul.f32 %v394, %v415
      %v445 = vmul.f32 %v395, %v415
      %v446 = vmul.f32 %v396, %v415
      %v447 = vmul.f32 %v397, %v415
      %v448 = vmul.f32 %v398, %v415
      %v449 = vmul.f32 %v399, %v415
      %v450 = vmul.f32 %v400, %v415
      %v451 = vmul.f32 %v401, %v415
      %v452 = vmul.f32 %v402, %v415
      %v453 = vmul.f32 %v403, %v415
      %v454 = vmul.f32 %v404, %v415
      %v455 = vmul.f32 %v405, %v415
      %v456 = vmul.f32 %v406, %v415
      %v457 = vmul.f32 %v407, %v415
      %v458 = vmul.f32 %v408, %v415
      %v459 = vmul.f32 %v409, %v415
      %v460 = vld [vmem:[%s5] sm:$0x1]
      %v462 = vlaneseq
      %v463 = vshrl.u32 %v462, 7
      %v464 = vsub.s32 0, %v463
      %v465 = vrot.slane %v460, %v464
      %v467 = vadd.f32 %v417, %v465
      %v468 = vadd.f32 %v418, %v465
      %v469 = vadd.f32 %v419, %v465
      %v470 = vadd.f32 %v420, %v465
      %v471 = vadd.f32 %v421, %v465
      %v472 = vadd.f32 %v422, %v465
      %v473 = vadd.f32 %v423, %v465
      %v474 = vadd.f32 %v424, %v465
      %v475 = vadd.f32 %v425, %v465
      %v476 = vadd.f32 %v426, %v465
      %v477 = vadd.f32 %v427, %v465
      %v478 = vadd.f32 %v428, %v465
      %v479 = vadd.f32 %v429, %v465
      %v480 = vadd.f32 %v430, %v465
      %v481 = vadd.f32 %v431, %v465
      %v482 = vadd.f32 %v432, %v465
      %v483 = vadd.f32 %v433, %v465
      %v484 = vadd.f32 %v434, %v465
      %v485 = vadd.f32 %v435, %v465
      %v486 = vadd.f32 %v436, %v465
      %v487 = vadd.f32 %v437, %v465
      %v488 = vadd.f32 %v438, %v465
      %v489 = vadd.f32 %v439, %v465
      %v490 = vadd.f32 %v440, %v465
      %v491 = vadd.f32 %v441, %v465
      %v492 = vadd.f32 %v442, %v465
      %v493 = vadd.f32 %v443, %v465
      %v494 = vadd.f32 %v444, %v465
      %v495 = vadd.f32 %v445, %v465
      %v496 = vadd.f32 %v446, %v465
      %v497 = vadd.f32 %v447, %v465
      %v498 = vadd.f32 %v448, %v465
      %v499 = vadd.f32 %v449, %v465
      %v500 = vadd.f32 %v450, %v465
      %v501 = vadd.f32 %v451, %v465
      %v502 = vadd.f32 %v452, %v465
      %v503 = vadd.f32 %v453, %v465
      %v504 = vadd.f32 %v454, %v465
      %v505 = vadd.f32 %v455, %v465
      %v506 = vadd.f32 %v456, %v465
      %v507 = vadd.f32 %v457, %v465
      %v508 = vadd.f32 %v458, %v465
      %v509 = vadd.f32 %v459, %v465
      %v510 = vmax.f32 %v467, 0.0
      %v511 = vmax.f32 %v468, 0.0
      %v512 = vmax.f32 %v469, 0.0
      %v513 = vmax.f32 %v470, 0.0
      %v514 = vmax.f32 %v471, 0.0
      %v515 = vmax.f32 %v472, 0.0
      %v516 = vmax.f32 %v473, 0.0
      %v517 = vmax.f32 %v474, 0.0
      %v518 = vmax.f32 %v475, 0.0
      %v519 = vmax.f32 %v476, 0.0
      %v520 = vmax.f32 %v477, 0.0
      %v521 = vmax.f32 %v478, 0.0
      %v522 = vmax.f32 %v479, 0.0
      %v523 = vmax.f32 %v480, 0.0
      %v524 = vmax.f32 %v481, 0.0
      %v525 = vmax.f32 %v482, 0.0
      %v526 = vmax.f32 %v483, 0.0
      %v527 = vmax.f32 %v484, 0.0
      %v528 = vmax.f32 %v485, 0.0
      %v529 = vmax.f32 %v486, 0.0
      %v530 = vmax.f32 %v487, 0.0
      %v531 = vmax.f32 %v488, 0.0
      %v532 = vmax.f32 %v489, 0.0
      %v533 = vmax.f32 %v490, 0.0
      %v534 = vmax.f32 %v491, 0.0
      %v535 = vmax.f32 %v492, 0.0
      %v536 = vmax.f32 %v493, 0.0
      %v537 = vmax.f32 %v494, 0.0
      %v538 = vmax.f32 %v495, 0.0
      %v539 = vmax.f32 %v496, 0.0
      %v540 = vmax.f32 %v497, 0.0
      %v541 = vmax.f32 %v498, 0.0
      %v542 = vmax.f32 %v499, 0.0
      %v543 = vmax.f32 %v500, 0.0
      %v544 = vmax.f32 %v501, 0.0
      %v545 = vmax.f32 %v502, 0.0
      %v546 = vmax.f32 %v503, 0.0
      %v547 = vmax.f32 %v504, 0.0
      %v548 = vmax.f32 %v505, 0.0
      %v549 = vmax.f32 %v506, 0.0
      %v550 = vmax.f32 %v507, 0.0
      %v551 = vmax.f32 %v508, 0.0
      %v552 = vmax.f32 %v509, 0.0
      %v553 = vld [vmem:[%s3] sm:$0xff]
      %v554 = vld [vmem:[%s3 + $0x8] sm:$0xff]
      %v555 = vld [vmem:[%s3 + $0x10] sm:$0xff]
      %v556 = vld [vmem:[%s3 + $0x18] sm:$0xff]
      %v557 = vld [vmem:[%s3 + $0x20] sm:$0xff]
      %v558 = vld [vmem:[%s3 + $0x28] sm:$0xff]
      %v559 = vld [vmem:[%s3 + $0x30] sm:$0xff]
      %v560 = vld [vmem:[%s3 + $0x38] sm:$0xff]
      %v561 = vld [vmem:[%s3 + $0x40] sm:$0xff]
      %v562 = vld [vmem:[%s3 + $0x48] sm:$0xff]
      %v563 = vld [vmem:[%s3 + $0x50] sm:$0xff]
      %v564 = vld [vmem:[%s3 + $0x58] sm:$0xff]
      %v565 = vld [vmem:[%s3 + $0x60] sm:$0xff]
      %v566 = vld [vmem:[%s3 + $0x68] sm:$0xff]
      %v567 = vld [vmem:[%s3 + $0x70] sm:$0xff]
      %v568 = vld [vmem:[%s3 + $0x78] sm:$0xff]
      %v569 = vld [vmem:[%s3 + $0x80] sm:$0xff]
      %v570 = vld [vmem:[%s3 + $0x88] sm:$0xff]
      %v571 = vld [vmem:[%s3 + $0x90] sm:$0xff]
      %v572 = vld [vmem:[%s3 + $0x98] sm:$0xff]
      %v573 = vld [vmem:[%s3 + $0xa0] sm:$0xff]
      %v574 = vld [vmem:[%s3 + $0xa8] sm:$0xff]
      %v575 = vld [vmem:[%s3 + $0xb0] sm:$0xff]
      %v576 = vld [vmem:[%s3 + $0xb8] sm:$0xff]
      %v577 = vld [vmem:[%s3 + $0xc0] sm:$0xff]
      %v578 = vld [vmem:[%s3 + $0xc8] sm:$0xff]
      %v579 = vld [vmem:[%s3 + $0xd0] sm:$0xff]
      %v580 = vld [vmem:[%s3 + $0xd8] sm:$0xff]
      %v581 = vld [vmem:[%s3 + $0xe0] sm:$0xff]
      %v582 = vld [vmem:[%s3 + $0xe8] sm:$0xff]
      %v583 = vld [vmem:[%s3 + $0xf0] sm:$0xff]
      %v584 = vld [vmem:[%s3 + $0xf8] sm:$0xff]
      %v585 = vld [vmem:[%s3 + $0x100] sm:$0xff]
      %v586 = vld [vmem:[%s3 + $0x108] sm:$0xff]
      %v587 = vld [vmem:[%s3 + $0x110] sm:$0xff]
      %v588 = vld [vmem:[%s3 + $0x118] sm:$0xff]
      %v589 = vld [vmem:[%s3 + $0x120] sm:$0xff]
      %v590 = vld [vmem:[%s3 + $0x128] sm:$0xff]
      %v591 = vld [vmem:[%s3 + $0x130] sm:$0xff]
      %v592 = vld [vmem:[%s3 + $0x138] sm:$0xff]
      %v593 = vld [vmem:[%s3 + $0x140] sm:$0xff]
      %v594 = vld [vmem:[%s3 + $0x148] sm:$0xff]
      %v595 = vld [vmem:[%s3 + $0x150] sm:$0x3f]
      %597 = vset.pattern.permute.xlu0 0
      %598 = vperm.xlu0 %597, %v553
      %v599 = vpop.permute.xlu0 %598
      %602 = vset.pattern.permute.xlu0 0
      %603 = vperm.xlu0 %602, %v554
      %v604 = vpop.permute.xlu0 %603
      %607 = vset.pattern.permute.xlu0 0
      %608 = vperm.xlu0 %607, %v555
      %v609 = vpop.permute.xlu0 %608
      %612 = vset.pattern.permute.xlu0 0
      %613 = vperm.xlu0 %612, %v556
      %v614 = vpop.permute.xlu0 %613
      %617 = vset.pattern.permute.xlu0 0
      %618 = vperm.xlu0 %617, %v557
      %v619 = vpop.permute.xlu0 %618
      %622 = vset.pattern.permute.xlu0 0
      %623 = vperm.xlu0 %622, %v558
      %v624 = vpop.permute.xlu0 %623
      %627 = vset.pattern.permute.xlu0 0
      %628 = vperm.xlu0 %627, %v559
      %v629 = vpop.permute.xlu0 %628
      %632 = vset.pattern.permute.xlu0 0
      %633 = vperm.xlu0 %632, %v560
      %v634 = vpop.permute.xlu0 %633
      %637 = vset.pattern.permute.xlu0 0
      %638 = vperm.xlu0 %637, %v561
      %v639 = vpop.permute.xlu0 %638
      %642 = vset.pattern.permute.xlu0 0
      %643 = vperm.xlu0 %642, %v562
      %v644 = vpop.permute.xlu0 %643
      %647 = vset.pattern.permute.xlu0 0
      %648 = vperm.xlu0 %647, %v563
      %v649 = vpop.permute.xlu0 %648
      %652 = vset.pattern.permute.xlu0 0
      %653 = vperm.xlu0 %652, %v564
      %v654 = vpop.permute.xlu0 %653
      %657 = vset.pattern.permute.xlu0 0
      %658 = vperm.xlu0 %657, %v565
      %v659 = vpop.permute.xlu0 %658
      %662 = vset.pattern.permute.xlu0 0
      %663 = vperm.xlu0 %662, %v566
      %v664 = vpop.permute.xlu0 %663
      %667 = vset.pattern.permute.xlu0 0
      %668 = vperm.xlu0 %667, %v567
      %v669 = vpop.permute.xlu0 %668
      %672 = vset.pattern.permute.xlu0 0
      %673 = vperm.xlu0 %672, %v568
      %v674 = vpop.permute.xlu0 %673
      %677 = vset.pattern.permute.xlu0 0
      %678 = vperm.xlu0 %677, %v569
      %v679 = vpop.permute.xlu0 %678
      %682 = vset.pattern.permute.xlu0 0
      %683 = vperm.xlu0 %682, %v570
      %v684 = vpop.permute.xlu0 %683
      %687 = vset.pattern.permute.xlu0 0
      %688 = vperm.xlu0 %687, %v571
      %v689 = vpop.permute.xlu0 %688
      %692 = vset.pattern.permute.xlu0 0
      %693 = vperm.xlu0 %692, %v572
      %v694 = vpop.permute.xlu0 %693
      %697 = vset.pattern.permute.xlu0 0
      %698 = vperm.xlu0 %697, %v573
      %v699 = vpop.permute.xlu0 %698
      %702 = vset.pattern.permute.xlu0 0
      %703 = vperm.xlu0 %702, %v574
      %v704 = vpop.permute.xlu0 %703
      %707 = vset.pattern.permute.xlu0 0
      %708 = vperm.xlu0 %707, %v575
      %v709 = vpop.permute.xlu0 %708
      %712 = vset.pattern.permute.xlu0 0
      %713 = vperm.xlu0 %712, %v576
      %v714 = vpop.permute.xlu0 %713
      %717 = vset.pattern.permute.xlu0 0
      %718 = vperm.xlu0 %717, %v577
      %v719 = vpop.permute.xlu0 %718
      %722 = vset.pattern.permute.xlu0 0
      %723 = vperm.xlu0 %722, %v578
      %v724 = vpop.permute.xlu0 %723
      %727 = vset.pattern.permute.xlu0 0
      %728 = vperm.xlu0 %727, %v579
      %v729 = vpop.permute.xlu0 %728
      %732 = vset.pattern.permute.xlu0 0
      %733 = vperm.xlu0 %732, %v580
      %v734 = vpop.permute.xlu0 %733
      %737 = vset.pattern.permute.xlu0 0
      %738 = vperm.xlu0 %737, %v581
      %v739 = vpop.permute.xlu0 %738
      %742 = vset.pattern.permute.xlu0 0
      %743 = vperm.xlu0 %742, %v582
      %v744 = vpop.permute.xlu0 %743
      %747 = vset.pattern.permute.xlu0 0
      %748 = vperm.xlu0 %747, %v583
      %v749 = vpop.permute.xlu0 %748
      %752 = vset.pattern.permute.xlu0 0
      %753 = vperm.xlu0 %752, %v584
      %v754 = vpop.permute.xlu0 %753
      %757 = vset.pattern.permute.xlu0 0
      %758 = vperm.xlu0 %757, %v585
      %v759 = vpop.permute.xlu0 %758
      %762 = vset.pattern.permute.xlu0 0
      %763 = vperm.xlu0 %762, %v586
      %v764 = vpop.permute.xlu0 %763
      %767 = vset.pattern.permute.xlu0 0
      %768 = vperm.xlu0 %767, %v587
      %v769 = vpop.permute.xlu0 %768
      %772 = vset.pattern.permute.xlu0 0
      %773 = vperm.xlu0 %772, %v588
      %v774 = vpop.permute.xlu0 %773
      %777 = vset.pattern.permute.xlu0 0
      %778 = vperm.xlu0 %777, %v589
      %v779 = vpop.permute.xlu0 %778
      %782 = vset.pattern.permute.xlu0 0
      %783 = vperm.xlu0 %782, %v590
      %v784 = vpop.permute.xlu0 %783
      %787 = vset.pattern.permute.xlu0 0
      %788 = vperm.xlu0 %787, %v591
      %v789 = vpop.permute.xlu0 %788
      %792 = vset.pattern.permute.xlu0 0
      %793 = vperm.xlu0 %792, %v592
      %v794 = vpop.permute.xlu0 %793
      %797 = vset.pattern.permute.xlu0 0
      %798 = vperm.xlu0 %797, %v593
      %v799 = vpop.permute.xlu0 %798
      %802 = vset.pattern.permute.xlu0 0
      %803 = vperm.xlu0 %802, %v594
      %v804 = vpop.permute.xlu0 %803
      %807 = vset.pattern.permute.xlu0 0
      %808 = vperm.xlu0 %807, %v595
      %v809 = vpop.permute.xlu0 %808
      %v811 = vmul.f32 %v510, %v599
      %v812 = vmul.f32 %v511, %v604
      %v813 = vmul.f32 %v512, %v609
      %v814 = vmul.f32 %v513, %v614
      %v815 = vmul.f32 %v514, %v619
      %v816 = vmul.f32 %v515, %v624
      %v817 = vmul.f32 %v516, %v629
      %v818 = vmul.f32 %v517, %v634
      %v819 = vmul.f32 %v518, %v639
      %v820 = vmul.f32 %v519, %v644
      %v821 = vmul.f32 %v520, %v649
      %v822 = vmul.f32 %v521, %v654
      %v823 = vmul.f32 %v522, %v659
      %v824 = vmul.f32 %v523, %v664
      %v825 = vmul.f32 %v524, %v669
      %v826 = vmul.f32 %v525, %v674
      %v827 = vmul.f32 %v526, %v679
      %v828 = vmul.f32 %v527, %v684
      %v829 = vmul.f32 %v528, %v689
      %v830 = vmul.f32 %v529, %v694
      %v831 = vmul.f32 %v530, %v699
      %v832 = vmul.f32 %v531, %v704
      %v833 = vmul.f32 %v532, %v709
      %v834 = vmul.f32 %v533, %v714
      %v835 = vmul.f32 %v534, %v719
      %v836 = vmul.f32 %v535, %v724
      %v837 = vmul.f32 %v536, %v729
      %v838 = vmul.f32 %v537, %v734
      %v839 = vmul.f32 %v538, %v739
      %v840 = vmul.f32 %v539, %v744
      %v841 = vmul.f32 %v540, %v749
      %v842 = vmul.f32 %v541, %v754
      %v843 = vmul.f32 %v542, %v759
      %v844 = vmul.f32 %v543, %v764
      %v845 = vmul.f32 %v544, %v769
      %v846 = vmul.f32 %v545, %v774
      %v847 = vmul.f32 %v546, %v779
      %v848 = vmul.f32 %v547, %v784
      %v849 = vmul.f32 %v548, %v789
      %v850 = vmul.f32 %v549, %v794
      %v851 = vmul.f32 %v550, %v799
      %v852 = vmul.f32 %v551, %v804
      %v853 = vmul.f32 %v552, %v809
      %v854 = vpack.c.bf16 %v812, %v811
      %v855 = vpack.c.bf16 %v814, %v813
      %v856 = vpack.c.bf16 %v816, %v815
      %v857 = vpack.c.bf16 %v818, %v817
      %v858 = vpack.c.bf16 %v820, %v819
      %v859 = vpack.c.bf16 %v822, %v821
      %v860 = vpack.c.bf16 %v824, %v823
      %v861 = vpack.c.bf16 %v826, %v825
      %v862 = vpack.c.bf16 %v828, %v827
      %v863 = vpack.c.bf16 %v830, %v829
      %v864 = vpack.c.bf16 %v832, %v831
      %v865 = vpack.c.bf16 %v834, %v833
      %v866 = vpack.c.bf16 %v836, %v835
      %v867 = vpack.c.bf16 %v838, %v837
      %v868 = vpack.c.bf16 %v840, %v839
      %v869 = vpack.c.bf16 %v842, %v841
      %v870 = vpack.c.bf16 %v844, %v843
      %v871 = vpack.c.bf16 %v846, %v845
      %v872 = vpack.c.bf16 %v848, %v847
      %v873 = vpack.c.bf16 %v850, %v849
      %v874 = vpack.c.bf16 %v852, %v851
      %v875 = vpack.c.bf16 %v853, %v853
      %v898 = vunpack.c.l.b16 %v854
      %v899 = vunpack.c.h.b16 %v854
      %v900 = vunpack.c.l.b16 %v855
      %v901 = vunpack.c.h.b16 %v855
      %v902 = vunpack.c.l.b16 %v856
      %v903 = vunpack.c.h.b16 %v856
      %v904 = vunpack.c.l.b16 %v857
      %v905 = vunpack.c.h.b16 %v857
      %v906 = vunpack.c.l.b16 %v858
      %v907 = vunpack.c.h.b16 %v858
      %v908 = vunpack.c.l.b16 %v859
      %v909 = vunpack.c.h.b16 %v859
      %v910 = vunpack.c.l.b16 %v860
      %v911 = vunpack.c.h.b16 %v860
      %v912 = vunpack.c.l.b16 %v861
      %v913 = vunpack.c.h.b16 %v861
      %v914 = vunpack.c.l.b16 %v862
      %v915 = vunpack.c.h.b16 %v862
      %v916 = vunpack.c.l.b16 %v863
      %v917 = vunpack.c.h.b16 %v863
      %v918 = vunpack.c.l.b16 %v864
      %v919 = vunpack.c.h.b16 %v864
      %v920 = vunpack.c.l.b16 %v865
      %v921 = vunpack.c.h.b16 %v865
      %v922 = vunpack.c.l.b16 %v866
      %v923 = vunpack.c.h.b16 %v866
      %v924 = vunpack.c.l.b16 %v867
      %v925 = vunpack.c.h.b16 %v867
      %v926 = vunpack.c.l.b16 %v868
      %v927 = vunpack.c.h.b16 %v868
      %v928 = vunpack.c.l.b16 %v869
      %v929 = vunpack.c.h.b16 %v869
      %v930 = vunpack.c.l.b16 %v870
      %v931 = vunpack.c.h.b16 %v870
      %v932 = vunpack.c.l.b16 %v871
      %v933 = vunpack.c.h.b16 %v871
      %v934 = vunpack.c.l.b16 %v872
      %v935 = vunpack.c.h.b16 %v872
      %v936 = vunpack.c.l.b16 %v873
      %v937 = vunpack.c.h.b16 %v873
      %v938 = vunpack.c.l.b16 %v874
      %v939 = vunpack.c.h.b16 %v874
      %v940 = vunpack.c.l.b16 %v875
      %v941 = vpack.c.b16 %v898, %v898
      %v942 = vpack.c.b16 %v899, %v899
      %v943 = vpack.c.b16 %v900, %v900
      %v944 = vpack.c.b16 %v901, %v901
      %v945 = vpack.c.b16 %v902, %v902
      %v946 = vpack.c.b16 %v903, %v903
      %v947 = vpack.c.b16 %v904, %v904
      %v948 = vpack.c.b16 %v905, %v905
      %v949 = vpack.c.b16 %v906, %v906
      %v950 = vpack.c.b16 %v907, %v907
      %v951 = vpack.c.b16 %v908, %v908
      %v952 = vpack.c.b16 %v909, %v909
      %v953 = vpack.c.b16 %v910, %v910
      %v954 = vpack.c.b16 %v911, %v911
      %v955 = vpack.c.b16 %v912, %v912
      %v956 = vpack.c.b16 %v913, %v913
      %v957 = vpack.c.b16 %v914, %v914
      %v958 = vpack.c.b16 %v915, %v915
      %v959 = vpack.c.b16 %v916, %v916
      %v960 = vpack.c.b16 %v917, %v917
      %v961 = vpack.c.b16 %v918, %v918
      %v962 = vpack.c.b16 %v919, %v919
      %v963 = vpack.c.b16 %v920, %v920
      %v964 = vpack.c.b16 %v921, %v921
      %v965 = vpack.c.b16 %v922, %v922
      %v966 = vpack.c.b16 %v923, %v923
      %v967 = vpack.c.b16 %v924, %v924
      %v968 = vpack.c.b16 %v925, %v925
      %v969 = vpack.c.b16 %v926, %v926
      %v970 = vpack.c.b16 %v927, %v927
      %v971 = vpack.c.b16 %v928, %v928
      %v972 = vpack.c.b16 %v929, %v929
      %v973 = vpack.c.b16 %v930, %v930
      %v974 = vpack.c.b16 %v931, %v931
      %v975 = vpack.c.b16 %v932, %v932
      %v976 = vpack.c.b16 %v933, %v933
      %v977 = vpack.c.b16 %v934, %v934
      %v978 = vpack.c.b16 %v935, %v935
      %v979 = vpack.c.b16 %v936, %v936
      %v980 = vpack.c.b16 %v937, %v937
      %v981 = vpack.c.b16 %v938, %v938
      %v982 = vpack.c.b16 %v939, %v939
      %v983 = vpack.c.b16 %v940, %v940
      %1027 = vst [vmem:[#allocation3] sm:$0xf] %v941
      %1028 = vst [vmem:[#allocation3 + $0x4] sm:$0xf] %v942
      %1029 = vst [vmem:[#allocation3 + $0x8] sm:$0xf] %v943
      %1030 = vst [vmem:[#allocation3 + $0xc] sm:$0xf] %v944
      %1031 = vst [vmem:[#allocation3 + $0x10] sm:$0xf] %v945
      %1032 = vst [vmem:[#allocation3 + $0x14] sm:$0xf] %v946
      %1033 = vst [vmem:[#allocation3 + $0x18] sm:$0xf] %v947
      %1034 = vst [vmem:[#allocation3 + $0x1c] sm:$0xf] %v948
      %1035 = vst [vmem:[#allocation3 + $0x20] sm:$0xf] %v949
      %1036 = vst [vmem:[#allocation3 + $0x24] sm:$0xf] %v950
      %1037 = vst [vmem:[#allocation3 + $0x28] sm:$0xf] %v951
      %1038 = vst [vmem:[#allocation3 + $0x2c] sm:$0xf] %v952
      %1039 = vst [vmem:[#allocation3 + $0x30] sm:$0xf] %v953
      %1040 = vst [vmem:[#allocation3 + $0x34] sm:$0xf] %v954
      %1041 = vst [vmem:[#allocation3 + $0x38] sm:$0xf] %v955
      %1042 = vst [vmem:[#allocation3 + $0x3c] sm:$0xf] %v956
      %1043 = vst [vmem:[#allocation3 + $0x40] sm:$0xf] %v957
      %1044 = vst [vmem:[#allocation3 + $0x44] sm:$0xf] %v958
      %1045 = vst [vmem:[#allocation3 + $0x48] sm:$0xf] %v959
      %1046 = vst [vmem:[#allocation3 + $0x4c] sm:$0xf] %v960
      %1047 = vst [vmem:[#allocation3 + $0x50] sm:$0xf] %v961
      %1048 = vst [vmem:[#allocation3 + $0x54] sm:$0xf] %v962
      %1049 = vst [vmem:[#allocation3 + $0x58] sm:$0xf] %v963
      %1050 = vst [vmem:[#allocation3 + $0x5c] sm:$0xf] %v964
      %1051 = vst [vmem:[#allocation3 + $0x60] sm:$0xf] %v965
      %1052 = vst [vmem:[#allocation3 + $0x64] sm:$0xf] %v966
      %1053 = vst [vmem:[#allocation3 + $0x68] sm:$0xf] %v967
      %1054 = vst [vmem:[#allocation3 + $0x6c] sm:$0xf] %v968
      %1055 = vst [vmem:[#allocation3 + $0x70] sm:$0xf] %v969
      %1056 = vst [vmem:[#allocation3 + $0x74] sm:$0xf] %v970
      %1057 = vst [vmem:[#allocation3 + $0x78] sm:$0xf] %v971
      %1058 = vst [vmem:[#allocation3 + $0x7c] sm:$0xf] %v972
      %1059 = vst [vmem:[#allocation3 + $0x80] sm:$0xf] %v973
      %1060 = vst [vmem:[#allocation3 + $0x84] sm:$0xf] %v974
      %1061 = vst [vmem:[#allocation3 + $0x88] sm:$0xf] %v975
      %1062 = vst [vmem:[#allocation3 + $0x8c] sm:$0xf] %v976
      %1063 = vst [vmem:[#allocation3 + $0x90] sm:$0xf] %v977
      %1064 = vst [vmem:[#allocation3 + $0x94] sm:$0xf] %v978
      %1065 = vst [vmem:[#allocation3 + $0x98] sm:$0xf] %v979
      %1066 = vst [vmem:[#allocation3 + $0x9c] sm:$0xf] %v980
      %1067 = vst [vmem:[#allocation3 + $0xa0] sm:$0xf] %v981
      %1068 = vst [vmem:[#allocation3 + $0xa4] sm:$0xf] %v982
      %1069 = vst [vmem:[#allocation3 + $0xa8] sm:$0x7] %v983
      %v1070 = vld [vmem:[#allocation3] sm:$0xf]
      %v1071 = vld [vmem:[#allocation3 + $0x4] sm:$0xf]
      %v1072 = vld [vmem:[#allocation3 + $0x8] sm:$0xf]
      %v1073 = vld [vmem:[#allocation3 + $0xc] sm:$0xf]
      %v1074 = vld [vmem:[#allocation3 + $0x10] sm:$0xf]
      %v1075 = vld [vmem:[#allocation3 + $0x14] sm:$0xf]
      %v1076 = vld [vmem:[#allocation3 + $0x18] sm:$0xf]
      %v1077 = vld [vmem:[#allocation3 + $0x1c] sm:$0xf]
      %v1078 = vld [vmem:[#allocation3 + $0x20] sm:$0xf]
      %v1079 = vld [vmem:[#allocation3 + $0x24] sm:$0xf]
      %v1080 = vld [vmem:[#allocation3 + $0x28] sm:$0xf]
      %v1081 = vld [vmem:[#allocation3 + $0x2c] sm:$0xf]
      %v1082 = vld [vmem:[#allocation3 + $0x30] sm:$0xf]
      %v1083 = vld [vmem:[#allocation3 + $0x34] sm:$0xf]
      %v1084 = vld [vmem:[#allocation3 + $0x38] sm:$0xf]
      %v1085 = vld [vmem:[#allocation3 + $0x3c] sm:$0xf]
      %v1086 = vld [vmem:[#allocation3 + $0x40] sm:$0xf]
      %v1087 = vld [vmem:[#allocation3 + $0x44] sm:$0xf]
      %v1088 = vld [vmem:[#allocation3 + $0x48] sm:$0xf]
      %v1089 = vld [vmem:[#allocation3 + $0x4c] sm:$0xf]
      %v1090 = vld [vmem:[#allocation3 + $0x50] sm:$0xf]
      %v1091 = vld [vmem:[#allocation3 + $0x54] sm:$0xf]
      %v1092 = vld [vmem:[#allocation3 + $0x58] sm:$0xf]
      %v1093 = vld [vmem:[#allocation3 + $0x5c] sm:$0xf]
      %v1094 = vld [vmem:[#allocation3 + $0x60] sm:$0xf]
      %v1095 = vld [vmem:[#allocation3 + $0x64] sm:$0xf]
      %v1096 = vld [vmem:[#allocation3 + $0x68] sm:$0xf]
      %v1097 = vld [vmem:[#allocation3 + $0x6c] sm:$0xf]
      %v1098 = vld [vmem:[#allocation3 + $0x70] sm:$0xf]
      %v1099 = vld [vmem:[#allocation3 + $0x74] sm:$0xf]
      %v1100 = vld [vmem:[#allocation3 + $0x78] sm:$0xf]
      %v1101 = vld [vmem:[#allocation3 + $0x7c] sm:$0xf]
      %v1102 = vld [vmem:[#allocation3 + $0x80] sm:$0xf]
      %v1103 = vld [vmem:[#allocation3 + $0x84] sm:$0xf]
      %v1104 = vld [vmem:[#allocation3 + $0x88] sm:$0xf]
      %v1105 = vld [vmem:[#allocation3 + $0x8c] sm:$0xf]
      %v1106 = vld [vmem:[#allocation3 + $0x90] sm:$0x1]
      %v1107 = vld [vmem:[#allocation3] sm:$0xe]
      %v1144 = vunpack.c.l.b16 %v1070
      %v1145 = vunpack.c.l.b16 %v1071
      %v1146 = vunpack.c.l.b16 %v1072
      %v1147 = vunpack.c.l.b16 %v1073
      %v1148 = vunpack.c.l.b16 %v1074
      %v1149 = vunpack.c.l.b16 %v1075
      %v1150 = vunpack.c.l.b16 %v1076
      %v1151 = vunpack.c.l.b16 %v1077
      %v1152 = vunpack.c.l.b16 %v1078
      %v1153 = vunpack.c.l.b16 %v1079
      %v1154 = vunpack.c.l.b16 %v1080
      %v1155 = vunpack.c.l.b16 %v1081
      %v1156 = vunpack.c.l.b16 %v1082
      %v1157 = vunpack.c.l.b16 %v1083
      %v1158 = vunpack.c.l.b16 %v1084
      %v1159 = vunpack.c.l.b16 %v1085
      %v1160 = vunpack.c.l.b16 %v1086
      %v1161 = vunpack.c.l.b16 %v1087
      %v1162 = vunpack.c.l.b16 %v1088
      %v1163 = vunpack.c.l.b16 %v1089
      %v1164 = vunpack.c.l.b16 %v1090
      %v1165 = vunpack.c.l.b16 %v1091
      %v1166 = vunpack.c.l.b16 %v1092
      %v1167 = vunpack.c.l.b16 %v1093
      %v1168 = vunpack.c.l.b16 %v1094
      %v1169 = vunpack.c.l.b16 %v1095
      %v1170 = vunpack.c.l.b16 %v1096
      %v1171 = vunpack.c.l.b16 %v1097
      %v1172 = vunpack.c.l.b16 %v1098
      %v1173 = vunpack.c.l.b16 %v1099
      %v1174 = vunpack.c.l.b16 %v1100
      %v1175 = vunpack.c.l.b16 %v1101
      %v1176 = vunpack.c.l.b16 %v1102
      %v1177 = vunpack.c.l.b16 %v1103
      %v1178 = vunpack.c.l.b16 %v1104
      %v1179 = vunpack.c.l.b16 %v1105
      %v1180 = vpack.c.b16 %v1145, %v1144
      %v1181 = vpack.c.b16 %v1147, %v1146
      %v1182 = vpack.c.b16 %v1149, %v1148
      %v1183 = vpack.c.b16 %v1151, %v1150
      %v1184 = vpack.c.b16 %v1153, %v1152
      %v1185 = vpack.c.b16 %v1155, %v1154
      %v1186 = vpack.c.b16 %v1157, %v1156
      %v1187 = vpack.c.b16 %v1159, %v1158
      %v1188 = vpack.c.b16 %v1161, %v1160
      %v1189 = vpack.c.b16 %v1163, %v1162
      %v1190 = vpack.c.b16 %v1165, %v1164
      %v1191 = vpack.c.b16 %v1167, %v1166
      %v1192 = vpack.c.b16 %v1169, %v1168
      %v1193 = vpack.c.b16 %v1171, %v1170
      %v1194 = vpack.c.b16 %v1173, %v1172
      %v1195 = vpack.c.b16 %v1175, %v1174
      %v1196 = vpack.c.b16 %v1177, %v1176
      %v1197 = vpack.c.b16 %v1179, %v1178
      %v1217 = vunpack.c.l.b16 %v1106
      %v1218 = vpack.c.b16 %v1217, %v1217
      %vm1219 = vsmask.f32 7424
      %v1221 = vshrl.u32 %v1180, 16
      %v1223 = vshll.u32 %v1180, 16
      %v1225 = vrot.slane %v1223, 1
      %v1226 = vor.u32 %v1221, %v1225
      %v1228 = vshll.u32 %v1181, 16
      %v1230 = vrot.slane %v1228, 1
      %v1231 = vsel %vm1219, %v1226, %v1230
      %v1232 = vshrl.u32 %v1181, 16
      %v1234 = vor.u32 %v1232, %v1230
      %v1236 = vshll.u32 %v1182, 16
      %v1238 = vrot.slane %v1236, 1
      %v1239 = vsel %vm1219, %v1234, %v1238
      %v1240 = vshrl.u32 %v1182, 16
      %v1242 = vor.u32 %v1240, %v1238
      %v1244 = vshll.u32 %v1183, 16
      %v1246 = vrot.slane %v1244, 1
      %v1247 = vsel %vm1219, %v1242, %v1246
      %v1248 = vshrl.u32 %v1183, 16
      %v1250 = vor.u32 %v1248, %v1246
      %v1252 = vshll.u32 %v1184, 16
      %v1254 = vrot.slane %v1252, 1
      %v1255 = vsel %vm1219, %v1250, %v1254
      %v1256 = vshrl.u32 %v1184, 16
      %v1258 = vor.u32 %v1256, %v1254
      %v1260 = vshll.u32 %v1185, 16
      %v1262 = vrot.slane %v1260, 1
      %v1263 = vsel %vm1219, %v1258, %v1262
      %v1264 = vshrl.u32 %v1185, 16
      %v1266 = vor.u32 %v1264, %v1262
      %v1268 = vshll.u32 %v1186, 16
      %v1270 = vrot.slane %v1268, 1
      %v1271 = vsel %vm1219, %v1266, %v1270
      %v1272 = vshrl.u32 %v1186, 16
      %v1274 = vor.u32 %v1272, %v1270
      %v1276 = vshll.u32 %v1187, 16
      %v1278 = vrot.slane %v1276, 1
      %v1279 = vsel %vm1219, %v1274, %v1278
      %v1280 = vshrl.u32 %v1187, 16
      %v1282 = vor.u32 %v1280, %v1278
      %v1284 = vshll.u32 %v1188, 16
      %v1286 = vrot.slane %v1284, 1
      %v1287 = vsel %vm1219, %v1282, %v1286
      %v1288 = vshrl.u32 %v1188, 16
      %v1290 = vor.u32 %v1288, %v1286
      %v1292 = vshll.u32 %v1189, 16
      %v1294 = vrot.slane %v1292, 1
      %v1295 = vsel %vm1219, %v1290, %v1294
      %v1296 = vshrl.u32 %v1189, 16
      %v1298 = vor.u32 %v1296, %v1294
      %v1300 = vshll.u32 %v1190, 16
      %v1302 = vrot.slane %v1300, 1
      %v1303 = vsel %vm1219, %v1298, %v1302
      %v1304 = vshrl.u32 %v1190, 16
      %v1306 = vor.u32 %v1304, %v1302
      %v1308 = vshll.u32 %v1191, 16
      %v1310 = vrot.slane %v1308, 1
      %v1311 = vsel %vm1219, %v1306, %v1310
      %v1312 = vshrl.u32 %v1191, 16
      %v1314 = vor.u32 %v1312, %v1310
      %v1316 = vshll.u32 %v1192, 16
      %v1318 = vrot.slane %v1316, 1
      %v1319 = vsel %vm1219, %v1314, %v1318
      %v1320 = vshrl.u32 %v1192, 16
      %v1322 = vor.u32 %v1320, %v1318
      %v1324 = vshll.u32 %v1193, 16
      %v1326 = vrot.slane %v1324, 1
      %v1327 = vsel %vm1219, %v1322, %v1326
      %v1328 = vshrl.u32 %v1193, 16
      %v1330 = vor.u32 %v1328, %v1326
      %v1332 = vshll.u32 %v1194, 16
      %v1334 = vrot.slane %v1332, 1
      %v1335 = vsel %vm1219, %v1330, %v1334
      %v1336 = vshrl.u32 %v1194, 16
      %v1338 = vor.u32 %v1336, %v1334
      %v1340 = vshll.u32 %v1195, 16
      %v1342 = vrot.slane %v1340, 1
      %v1343 = vsel %vm1219, %v1338, %v1342
      %v1344 = vshrl.u32 %v1195, 16
      %v1346 = vor.u32 %v1344, %v1342
      %v1348 = vshll.u32 %v1196, 16
      %v1350 = vrot.slane %v1348, 1
      %v1351 = vsel %vm1219, %v1346, %v1350
      %v1352 = vshrl.u32 %v1196, 16
      %v1354 = vor.u32 %v1352, %v1350
      %v1356 = vshll.u32 %v1197, 16
      %v1358 = vrot.slane %v1356, 1
      %v1359 = vsel %vm1219, %v1354, %v1358
      %v1360 = vshrl.u32 %v1197, 16
      %v1362 = vor.u32 %v1360, %v1358
      %v1364 = vshll.u32 %v1218, 16
      %v1366 = vrot.slane %v1364, 1
      %v1367 = vsel %vm1219, %v1362, %v1366
      %v1387 = vunpack.c.l.b16 %v1107
      %v1388 = vpack.c.b16 %v1145, %v1387
      %vm1389 = vcmask 1046528
      %v1390 = vrot.slane %v1388, 1
      %v1391 = vrot.slane %v1181, 1
      %v1392 = vsel %vm1389, %v1390, %v1391
      %v1393 = vrot.slane %v1182, 1
      %v1394 = vsel %vm1389, %v1391, %v1393
      %v1395 = vrot.slane %v1183, 1
      %v1396 = vsel %vm1389, %v1393, %v1395
      %v1397 = vrot.slane %v1184, 1
      %v1398 = vsel %vm1389, %v1395, %v1397
      %v1399 = vrot.slane %v1185, 1
      %v1400 = vsel %vm1389, %v1397, %v1399
      %v1401 = vrot.slane %v1186, 1
      %v1402 = vsel %vm1389, %v1399, %v1401
      %v1403 = vrot.slane %v1187, 1
      %v1404 = vsel %vm1389, %v1401, %v1403
      %v1405 = vrot.slane %v1188, 1
      %v1406 = vsel %vm1389, %v1403, %v1405
      %v1407 = vrot.slane %v1189, 1
      %v1408 = vsel %vm1389, %v1405, %v1407
      %v1409 = vrot.slane %v1190, 1
      %v1410 = vsel %vm1389, %v1407, %v1409
      %v1411 = vrot.slane %v1191, 1
      %v1412 = vsel %vm1389, %v1409, %v1411
      %v1413 = vrot.slane %v1192, 1
      %v1414 = vsel %vm1389, %v1411, %v1413
      %v1415 = vrot.slane %v1193, 1
      %v1416 = vsel %vm1389, %v1413, %v1415
      %v1417 = vrot.slane %v1194, 1
      %v1418 = vsel %vm1389, %v1415, %v1417
      %v1419 = vrot.slane %v1195, 1
      %v1420 = vsel %vm1389, %v1417, %v1419
      %v1421 = vrot.slane %v1196, 1
      %v1422 = vsel %vm1389, %v1419, %v1421
      %v1423 = vrot.slane %v1197, 1
      %v1424 = vsel %vm1389, %v1421, %v1423
      %v1425 = vrot.slane %v1218, 1
      %v1426 = vsel %vm1389, %v1423, %v1425
      %v1445 = vld [vmem:[%s1] sm:$0xf]
      %v1446 = vld [vmem:[%s1 + $0x4] sm:$0xf]
      %v1447 = vld [vmem:[%s1 + $0x8] sm:$0xf]
      %v1448 = vld [vmem:[%s1 + $0xc] sm:$0xf]
      %v1449 = vld [vmem:[%s1 + $0x10] sm:$0xf]
      %v1450 = vld [vmem:[%s1 + $0x14] sm:$0xf]
      %v1451 = vld [vmem:[%s1 + $0x18] sm:$0xf]
      %v1452 = vld [vmem:[%s1 + $0x1c] sm:$0xf]
      %v1453 = vld [vmem:[%s1 + $0x20] sm:$0xf]
      %v1454 = vld [vmem:[%s1 + $0x24] sm:$0xf]
      %v1455 = vld [vmem:[%s1 + $0x28] sm:$0xf]
      %v1456 = vld [vmem:[%s1 + $0x2c] sm:$0xf]
      %v1457 = vld [vmem:[%s1 + $0x30] sm:$0xf]
      %v1458 = vld [vmem:[%s1 + $0x34] sm:$0xf]
      %v1459 = vld [vmem:[%s1 + $0x38] sm:$0xf]
      %v1460 = vld [vmem:[%s1 + $0x3c] sm:$0xf]
      %v1461 = vld [vmem:[%s1 + $0x40] sm:$0xf]
      %v1462 = vld [vmem:[%s1 + $0x44] sm:$0xf]
      %v1463 = vld [vmem:[%s1 + $0x48] sm:$0xf]
      %v1464 = vld [vmem:[%s1 + $0x4c] sm:$0xf]
      %v1465 = vld [vmem:[%s1 + $0x50] sm:$0xf]
      %v1466 = vld [vmem:[%s1 + $0x54] sm:$0xf]
      %v1467 = vld [vmem:[%s1 + $0x58] sm:$0xf]
      %v1468 = vld [vmem:[%s1 + $0x5c] sm:$0xf]
      %v1469 = vld [vmem:[%s1 + $0x60] sm:$0xf]
      %v1470 = vld [vmem:[%s1 + $0x64] sm:$0xf]
      %v1471 = vld [vmem:[%s1 + $0x68] sm:$0xf]
      %v1472 = vld [vmem:[%s1 + $0x6c] sm:$0xf]
      %v1473 = vld [vmem:[%s1 + $0x70] sm:$0xf]
      %v1474 = vld [vmem:[%s1 + $0x74] sm:$0xf]
      %v1475 = vld [vmem:[%s1 + $0x78] sm:$0xf]
      %v1476 = vld [vmem:[%s1 + $0x7c] sm:$0xf]
      %v1477 = vld [vmem:[%s1 + $0x80] sm:$0xf]
      %v1478 = vld [vmem:[%s1 + $0x84] sm:$0xf]
      %v1479 = vld [vmem:[%s1 + $0x88] sm:$0xf]
      %v1480 = vld [vmem:[%s1 + $0x8c] sm:$0xf]
      %v1481 = vld [vmem:[%s1 + $0x90] sm:$0xf]
      %v1482 = vld [vmem:[%s1 + $0x94] sm:$0xf]
      %v1483 = vld [vmem:[%s1 + $0x98] sm:$0xf]
      %v1484 = vld [vmem:[%s1 + $0x9c] sm:$0xf]
      %v1485 = vld [vmem:[%s1 + $0xa0] sm:$0xf]
      %v1486 = vld [vmem:[%s1 + $0xa4] sm:$0xf]
      %v1487 = vld [vmem:[%s1 + $0xa8] sm:$0xf]
      %v1488 = vld [vmem:[%s1 + $0xac] sm:$0xf]
      %v1489 = vld [vmem:[%s1 + $0xb0] sm:$0xf]
      %v1490 = vld [vmem:[%s1 + $0xb4] sm:$0xf]
      %v1491 = vld [vmem:[%s1 + $0xb8] sm:$0xf]
      %v1492 = vld [vmem:[%s1 + $0xbc] sm:$0xf]
      %v1541 = vunpack.c.l.b16 %v1445
      %v1542 = vunpack.c.l.b16 %v1446
      %v1543 = vunpack.c.l.b16 %v1447
      %v1544 = vunpack.c.l.b16 %v1448
      %v1545 = vunpack.c.l.b16 %v1449
      %v1546 = vunpack.c.l.b16 %v1450
      %v1547 = vunpack.c.l.b16 %v1451
      %v1548 = vunpack.c.l.b16 %v1452
      %v1549 = vunpack.c.l.b16 %v1453
      %v1550 = vunpack.c.l.b16 %v1454
      %v1551 = vunpack.c.l.b16 %v1455
      %v1552 = vunpack.c.l.b16 %v1456
      %v1553 = vunpack.c.l.b16 %v1457
      %v1554 = vunpack.c.l.b16 %v1458
      %v1555 = vunpack.c.l.b16 %v1459
      %v1556 = vunpack.c.l.b16 %v1460
      %v1557 = vunpack.c.l.b16 %v1461
      %v1558 = vunpack.c.l.b16 %v1462
      %v1559 = vunpack.c.l.b16 %v1463
      %v1560 = vunpack.c.l.b16 %v1464
      %v1561 = vunpack.c.l.b16 %v1465
      %v1562 = vunpack.c.l.b16 %v1466
      %v1563 = vunpack.c.l.b16 %v1467
      %v1564 = vunpack.c.l.b16 %v1468
      %v1565 = vunpack.c.l.b16 %v1469
      %v1566 = vunpack.c.l.b16 %v1470
      %v1567 = vunpack.c.l.b16 %v1471
      %v1568 = vunpack.c.l.b16 %v1472
      %v1569 = vunpack.c.l.b16 %v1473
      %v1570 = vunpack.c.l.b16 %v1474
      %v1571 = vunpack.c.l.b16 %v1475
      %v1572 = vunpack.c.l.b16 %v1476
      %v1573 = vunpack.c.l.b16 %v1477
      %v1574 = vunpack.c.l.b16 %v1478
      %v1575 = vunpack.c.l.b16 %v1479
      %v1576 = vunpack.c.l.b16 %v1480
      %v1577 = vunpack.c.l.b16 %v1481
      %v1578 = vunpack.c.l.b16 %v1482
      %v1579 = vunpack.c.l.b16 %v1483
      %v1580 = vunpack.c.l.b16 %v1484
      %v1581 = vunpack.c.l.b16 %v1485
      %v1582 = vunpack.c.l.b16 %v1486
      %v1583 = vunpack.c.l.b16 %v1487
      %v1584 = vunpack.c.l.b16 %v1488
      %v1585 = vunpack.c.l.b16 %v1489
      %v1586 = vunpack.c.l.b16 %v1490
      %v1587 = vunpack.c.l.b16 %v1491
      %v1588 = vunpack.c.l.b16 %v1492
      %v1589 = vpack.c.b16 %v1542, %v1541
      %v1590 = vpack.c.b16 %v1544, %v1543
      %v1591 = vpack.c.b16 %v1546, %v1545
      %v1592 = vpack.c.b16 %v1548, %v1547
      %v1593 = vpack.c.b16 %v1550, %v1549
      %v1594 = vpack.c.b16 %v1552, %v1551
      %v1595 = vpack.c.b16 %v1554, %v1553
      %v1596 = vpack.c.b16 %v1556, %v1555
      %v1597 = vpack.c.b16 %v1558, %v1557
      %v1598 = vpack.c.b16 %v1560, %v1559
      %v1599 = vpack.c.b16 %v1562, %v1561
      %v1600 = vpack.c.b16 %v1564, %v1563
      %v1601 = vpack.c.b16 %v1566, %v1565
      %v1602 = vpack.c.b16 %v1568, %v1567
      %v1603 = vpack.c.b16 %v1570, %v1569
      %v1604 = vpack.c.b16 %v1572, %v1571
      %v1605 = vpack.c.b16 %v1574, %v1573
      %v1606 = vpack.c.b16 %v1576, %v1575
      %v1607 = vpack.c.b16 %v1578, %v1577
      %v1608 = vpack.c.b16 %v1580, %v1579
      %v1609 = vpack.c.b16 %v1582, %v1581
      %v1610 = vpack.c.b16 %v1584, %v1583
      %v1611 = vpack.c.b16 %v1586, %v1585
      %v1612 = vpack.c.b16 %v1588, %v1587
      %1637 = vmatprep.subr.bf16.mxu0 0
      %1638 = vmatpush1.bf16.msra.mxu0 %v1589
      %1639 = vmatprep.subr.bf16.mxu0 0
      %1640 = vmatpush1.bf16.msra.mxu0 %v1590
      %1641 = vmatprep.subr.bf16.mxu0 0
      %1642 = vmatpush1.bf16.msra.mxu0 %v1591
      %1643 = vmatprep.subr.bf16.mxu0 0
      %1644 = vmatpush1.bf16.msra.mxu0 %v1592
      %1645 = vmatprep.subr.bf16.mxu0 0
      %1646 = vmatpush1.bf16.msra.mxu0 %v1593
      %1647 = vmatprep.subr.bf16.mxu0 0
      %1648 = vmatpush1.bf16.msra.mxu0 %v1594
      %1649 = vmatprep.subr.bf16.mxu0 0
      %1650 = vmatpush1.bf16.msra.mxu0 %v1595
      %1651 = vmatprep.subr.bf16.mxu0 0
      %1652 = vmatpush1.bf16.msra.mxu0 %v1596
      %1653 = vmatprep.subr.bf16.mxu0 0
      %1654 = vmatpush1.bf16.msra.mxu0 %v1597
      %1655 = vmatprep.subr.bf16.mxu0 0
      %1656 = vmatpush1.bf16.msra.mxu0 %v1598
      %1657 = vmatprep.subr.bf16.mxu0 0
      %1658 = vmatpush1.bf16.msra.mxu0 %v1599
      %1659 = vmatprep.subr.bf16.mxu0 0
      %1660 = vmatpush1.bf16.msra.mxu0 %v1600
      %1661 = vmatprep.subr.bf16.mxu0 0
      %1662 = vmatpush1.bf16.msra.mxu0 %v1601
      %1663 = vmatprep.subr.bf16.mxu0 0
      %1664 = vmatpush1.bf16.msra.mxu0 %v1602
      %1665 = vmatprep.subr.bf16.mxu0 0
      %1666 = vmatpush1.bf16.msra.mxu0 %v1603
      %1667 = vmatprep.subr.bf16.mxu0 0
      %1668 = vmatpush1.bf16.msra.mxu0 %v1604
      %1669 = vmatprep.mubr.bf16.mxu0 %v1231
      %1670 = vmatmul.mubr.bf16.gmra.mrb[0].mxu0 %v1180
      %v1671 = vpop.f32.mrb[0].mxu0
      %v1672 = vadd.f32 0.0, %v1671
      %v1673 = vpop.f32.mrb[0].mxu0
      %v1674 = vpop.f32.mrb[0].mxu0
      %v1675 = vadd.f32 0.0, %v1674
      %v1676 = vpop.f32.mrb[0].mxu0
      %1677 = vmatprep.mubr.bf16.mxu0 %v1239
      %1678 = vmatmul.mubr.bf16.gmra.mrb[0].mxu0 %v1181
      %v1679 = vpop.f32.mrb[0].mxu0
      %v1680 = vadd.f32 0.0, %v1679
      %v1681 = vpop.f32.mrb[0].mxu0
      %v1682 = vpop.f32.mrb[0].mxu0
      %v1683 = vadd.f32 0.0, %v1682
      %v1684 = vpop.f32.mrb[0].mxu0
      %1685 = vmatprep.mubr.bf16.mxu0 %v1247
      %1686 = vmatmul.mubr.bf16.gmra.mrb[0].mxu0 %v1182
      %v1687 = vpop.f32.mrb[0].mxu0
      %v1688 = vadd.f32 0.0, %v1687
      %v1689 = vpop.f32.mrb[0].mxu0
      %v1690 = vpop.f32.mrb[0].mxu0
      %v1691 = vadd.f32 0.0, %v1690
      %v1692 = vpop.f32.mrb[0].mxu0
      %1693 = vmatprep.mubr.bf16.mxu0 %v1255
      %1694 = vmatmul.mubr.bf16.gmra.mrb[0].mxu0 %v1183
      %v1695 = vpop.f32.mrb[0].mxu0
      %v1696 = vadd.f32 0.0, %v1695
      %v1697 = vpop.f32.mrb[0].mxu0
      %v1698 = vpop.f32.mrb[0].mxu0
      %v1699 = vadd.f32 0.0, %v1698
      %v1700 = vpop.f32.mrb[0].mxu0
      %1701 = vmatprep.mubr.bf16.mxu0 %v1263
      %1702 = vmatmul.mubr.bf16.gmra.mrb[0].mxu0 %v1184
      %v1703 = vpop.f32.mrb[0].mxu0
      %v1704 = vadd.f32 0.0, %v1703
      %v1705 = vpop.f32.mrb[0].mxu0
      %v1706 = vpop.f32.mrb[0].mxu0
      %v1707 = vadd.f32 0.0, %v1706
      %v1708 = vpop.f32.mrb[0].mxu0
      %1709 = vmatprep.mubr.bf16.mxu0 %v1271
      %1710 = vmatmul.mubr.bf16.gmra.mrb[0].mxu0 %v1185
      %v1711 = vpop.f32.mrb[0].mxu0
      %v1712 = vadd.f32 0.0, %v1711
      %v1713 = vpop.f32.mrb[0].mxu0
      %v1714 = vpop.f32.mrb[0].mxu0
      %v1715 = vadd.f32 0.0, %v1714
      %v1716 = vpop.f32.mrb[0].mxu0
      %1717 = vmatprep.mubr.bf16.mxu0 %v1279
      %1718 = vmatmul.mubr.bf16.gmra.mrb[0].mxu0 %v1186
      %v1719 = vpop.f32.mrb[0].mxu0
      %v1720 = vadd.f32 0.0, %v1719
      %v1721 = vpop.f32.mrb[0].mxu0
      %v1722 = vpop.f32.mrb[0].mxu0
      %v1723 = vadd.f32 0.0, %v1722
      %v1724 = vpop.f32.mrb[0].mxu0
      %1725 = vmatprep.mubr.bf16.mxu0 %v1287
      %1726 = vmatmul.mubr.bf16.gmra.mrb[0].mxu0 %v1187
      %v1727 = vpop.f32.mrb[0].mxu0
      %v1728 = vadd.f32 0.0, %v1727
      %v1729 = vpop.f32.mrb[0].mxu0
      %v1730 = vpop.f32.mrb[0].mxu0
      %v1731 = vadd.f32 0.0, %v1730
      %v1732 = vpop.f32.mrb[0].mxu0
      %1733 = vmatprep.mubr.bf16.mxu0 %v1295
      %1734 = vmatmul.mubr.bf16.gmra.mrb[0].mxu0 %v1188
      %v1735 = vpop.f32.mrb[0].mxu0
      %v1736 = vadd.f32 0.0, %v1735
      %v1737 = vpop.f32.mrb[0].mxu0
      %v1738 = vpop.f32.mrb[0].mxu0
      %v1739 = vadd.f32 0.0, %v1738
      %v1740 = vpop.f32.mrb[0].mxu0
      %1741 = vmatprep.mubr.bf16.mxu0 %v1303
      %1742 = vmatmul.mubr.bf16.gmra.mrb[0].mxu0 %v1189
      %v1743 = vpop.f32.mrb[0].mxu0
      %v1744 = vadd.f32 0.0, %v1743
      %v1745 = vpop.f32.mrb[0].mxu0
      %v1746 = vpop.f32.mrb[0].mxu0
      %v1747 = vadd.f32 0.0, %v1746
      %v1748 = vpop.f32.mrb[0].mxu0
      %1749 = vmatprep.mubr.bf16.mxu0 %v1311
      %1750 = vmatmul.mubr.bf16.gmra.mrb[0].mxu0 %v1190
      %v1751 = vpop.f32.mrb[0].mxu0
      %v1752 = vadd.f32 0.0, %v1751
      %v1753 = vpop.f32.mrb[0].mxu0
      %v1754 = vpop.f32.mrb[0].mxu0
      %v1755 = vadd.f32 0.0, %v1754
      %v1756 = vpop.f32.mrb[0].mxu0
      %1757 = vmatprep.mubr.bf16.mxu0 %v1319
      %1758 = vmatmul.mubr.bf16.gmra.mrb[0].mxu0 %v1191
      %v1759 = vpop.f32.mrb[0].mxu0
      %v1760 = vadd.f32 0.0, %v1759
      %v1761 = vpop.f32.mrb[0].mxu0
      %v1762 = vpop.f32.mrb[0].mxu0
      %v1763 = vadd.f32 0.0, %v1762
      %v1764 = vpop.f32.mrb[0].mxu0
      %1765 = vmatprep.mubr.bf16.mxu0 %v1327
      %1766 = vmatmul.mubr.bf16.gmra.mrb[0].mxu0 %v1192
      %v1767 = vpop.f32.mrb[0].mxu0
      %v1768 = vadd.f32 0.0, %v1767
      %v1769 = vpop.f32.mrb[0].mxu0
      %v1770 = vpop.f32.mrb[0].mxu0
      %v1771 = vadd.f32 0.0, %v1770
      %v1772 = vpop.f32.mrb[0].mxu0
      %1773 = vmatprep.mubr.bf16.mxu0 %v1335
      %1774 = vmatmul.mubr.bf16.gmra.mrb[0].mxu0 %v1193
      %v1775 = vpop.f32.mrb[0].mxu0
      %v1776 = vadd.f32 0.0, %v1775
      %v1777 = vpop.f32.mrb[0].mxu0
      %v1778 = vpop.f32.mrb[0].mxu0
      %v1779 = vadd.f32 0.0, %v1778
      %v1780 = vpop.f32.mrb[0].mxu0
      %1781 = vmatprep.mubr.bf16.mxu0 %v1343
      %1782 = vmatmul.mubr.bf16.gmra.mrb[0].mxu0 %v1194
      %v1783 = vpop.f32.mrb[0].mxu0
      %v1784 = vadd.f32 0.0, %v1783
      %v1785 = vpop.f32.mrb[0].mxu0
      %v1786 = vpop.f32.mrb[0].mxu0
      %v1787 = vadd.f32 0.0, %v1786
      %v1788 = vpop.f32.mrb[0].mxu0
      %1789 = vmatprep.mubr.bf16.mxu0 %v1351
      %1790 = vmatmul.mubr.bf16.gmra.mrb[0].mxu0 %v1195
      %v1791 = vpop.f32.mrb[0].mxu0
      %v1792 = vadd.f32 0.0, %v1791
      %v1793 = vpop.f32.mrb[0].mxu0
      %v1794 = vpop.f32.mrb[0].mxu0
      %v1795 = vadd.f32 0.0, %v1794
      %v1796 = vpop.f32.mrb[0].mxu0
      %1797 = vmatprep.mubr.bf16.mxu0 %v1359
      %1798 = vmatmul.mubr.bf16.gmra.mrb[0].mxu0 %v1196
      %v1799 = vpop.f32.mrb[0].mxu0
      %v1800 = vadd.f32 0.0, %v1799
      %v1801 = vpop.f32.mrb[0].mxu0
      %v1802 = vpop.f32.mrb[0].mxu0
      %v1803 = vadd.f32 0.0, %v1802
      %v1804 = vpop.f32.mrb[0].mxu0
      %1805 = vmatprep.mubr.bf16.mxu0 %v1367
      %1806 = vmatmul.mubr.bf16.gmra.mrb[0].mxu0 %v1197
      %v1807 = vpop.f32.mrb[0].mxu0
      %v1808 = vadd.f32 0.0, %v1807
      %v1809 = vpop.f32.mrb[0].mxu0
      %v1810 = vpop.f32.mrb[0].mxu0
      %v1811 = vadd.f32 0.0, %v1810
      %v1812 = vpop.f32.mrb[0].mxu0
      %1813 = vdwg.mxu0
      %1814 = vmatprep.subr.bf16.mxu0 0
      %1815 = vmatpush1.bf16.msra.mxu0 %v1605
      %1816 = vmatprep.subr.bf16.mxu0 0
      %1817 = vmatpush1.bf16.msra.mxu0 %v1606
      %1818 = vmatprep.subr.bf16.mxu0 0
      %1819 = vmatpush1.bf16.msra.mxu0 %v1607
      %1820 = vmatprep.subr.bf16.mxu0 0
      %1821 = vmatpush1.bf16.msra.mxu0 %v1608
      %1822 = vmatprep.subr.bf16.mxu0 0
      %1823 = vmatpush1.bf16.msra.mxu0 %v1609
      %1824 = vmatprep.subr.bf16.mxu0 0
      %1825 = vmatpush1.bf16.msra.mxu0 %v1610
      %1826 = vmatprep.subr.bf16.mxu0 0
      %1827 = vmatpush1.bf16.msra.mxu0 %v1611
      %1828 = vmatprep.subr.bf16.mxu0 0
      %1829 = vmatpush1.bf16.msra.mxu0 %v1612
      %1830 = vmatprep.subr.bf16.mxu0 0
      %1831 = vmatpush1.bf16.msra.mxu0 0
      %1832 = vmatprep.subr.bf16.mxu0 0
      %1833 = vmatpush1.bf16.msra.mxu0 0
      %1834 = vmatprep.subr.bf16.mxu0 0
      %1835 = vmatpush1.bf16.msra.mxu0 0
      %1836 = vmatprep.subr.bf16.mxu0 0
      %1837 = vmatpush1.bf16.msra.mxu0 0
      %1838 = vmatprep.subr.bf16.mxu0 0
      %1839 = vmatpush1.bf16.msra.mxu0 0
      %1840 = vmatprep.subr.bf16.mxu0 0
      %1841 = vmatpush1.bf16.msra.mxu0 0
      %1842 = vmatprep.subr.bf16.mxu0 0
      %1843 = vmatpush1.bf16.msra.mxu0 0
      %1844 = vmatprep.subr.bf16.mxu0 0
      %1845 = vmatpush1.bf16.msra.mxu0 0
      %1846 = vmatprep.mubr.bf16.mxu0 0
      %1847 = vmatmul.mubr.bf16.gmra.mrb[0].mxu0 %v1392
      %v1848 = vpop.f32.mrb[0].mxu0
      %v1849 = vadd.f32 %v1672, %v1848
      %v1850 = vpop.f32.mrb[0].mxu0
      %v1851 = vpop.f32.mrb[0].mxu0
      %v1852 = vadd.f32 %v1675, %v1851
      %v1853 = vpop.f32.mrb[0].mxu0
      %1854 = vmatprep.mubr.bf16.mxu0 0
      %1855 = vmatmul.mubr.bf16.gmra.mrb[0].mxu0 %v1394
      %v1856 = vpop.f32.mrb[0].mxu0
      %v1857 = vadd.f32 %v1680, %v1856
      %v1858 = vpop.f32.mrb[0].mxu0
      %v1859 = vpop.f32.mrb[0].mxu0
      %v1860 = vadd.f32 %v1683, %v1859
      %v1861 = vpop.f32.mrb[0].mxu0
      %1862 = vmatprep.mubr.bf16.mxu0 0
      %1863 = vmatmul.mubr.bf16.gmra.mrb[0].mxu0 %v1396
      %v1864 = vpop.f32.mrb[0].mxu0
      %v1865 = vadd.f32 %v1688, %v1864
      %v1866 = vpop.f32.mrb[0].mxu0
      %v1867 = vpop.f32.mrb[0].mxu0
      %v1868 = vadd.f32 %v1691, %v1867
      %v1869 = vpop.f32.mrb[0].mxu0
      %1870 = vmatprep.mubr.bf16.mxu0 0
      %1871 = vmatmul.mubr.bf16.gmra.mrb[0].mxu0 %v1398
      %v1872 = vpop.f32.mrb[0].mxu0
      %v1873 = vadd.f32 %v1696, %v1872
      %v1874 = vpop.f32.mrb[0].mxu0
      %v1875 = vpop.f32.mrb[0].mxu0
      %v1876 = vadd.f32 %v1699, %v1875
      %v1877 = vpop.f32.mrb[0].mxu0
      %1878 = vmatprep.mubr.bf16.mxu0 0
      %1879 = vmatmul.mubr.bf16.gmra.mrb[0].mxu0 %v1400
      %v1880 = vpop.f32.mrb[0].mxu0
      %v1881 = vadd.f32 %v1704, %v1880
      %v1882 = vpop.f32.mrb[0].mxu0
      %v1883 = vpop.f32.mrb[0].mxu0
      %v1884 = vadd.f32 %v1707, %v1883
      %v1885 = vpop.f32.mrb[0].mxu0
      %1886 = vmatprep.mubr.bf16.mxu0 0
      %1887 = vmatmul.mubr.bf16.gmra.mrb[0].mxu0 %v1402
      %v1888 = vpop.f32.mrb[0].mxu0
      %v1889 = vadd.f32 %v1712, %v1888
      %v1890 = vpop.f32.mrb[0].mxu0
      %v1891 = vpop.f32.mrb[0].mxu0
      %v1892 = vadd.f32 %v1715, %v1891
      %v1893 = vpop.f32.mrb[0].mxu0
      %1894 = vmatprep.mubr.bf16.mxu0 0
      %1895 = vmatmul.mubr.bf16.gmra.mrb[0].mxu0 %v1404
      %v1896 = vpop.f32.mrb[0].mxu0
      %v1897 = vadd.f32 %v1720, %v1896
      %v1898 = vpop.f32.mrb[0].mxu0
      %v1899 = vpop.f32.mrb[0].mxu0
      %v1900 = vadd.f32 %v1723, %v1899
      %v1901 = vpop.f32.mrb[0].mxu0
      %1902 = vmatprep.mubr.bf16.mxu0 0
      %1903 = vmatmul.mubr.bf16.gmra.mrb[0].mxu0 %v1406
      %v1904 = vpop.f32.mrb[0].mxu0
      %v1905 = vadd.f32 %v1728, %v1904
      %v1906 = vpop.f32.mrb[0].mxu0
      %v1907 = vpop.f32.mrb[0].mxu0
      %v1908 = vadd.f32 %v1731, %v1907
      %v1909 = vpop.f32.mrb[0].mxu0
      %1910 = vmatprep.mubr.bf16.mxu0 0
      %1911 = vmatmul.mubr.bf16.gmra.mrb[0].mxu0 %v1408
      %v1912 = vpop.f32.mrb[0].mxu0
      %v1913 = vadd.f32 %v1736, %v1912
      %v1914 = vpop.f32.mrb[0].mxu0
      %v1915 = vpop.f32.mrb[0].mxu0
      %v1916 = vadd.f32 %v1739, %v1915
      %v1917 = vpop.f32.mrb[0].mxu0
      %1918 = vmatprep.mubr.bf16.mxu0 0
      %1919 = vmatmul.mubr.bf16.gmra.mrb[0].mxu0 %v1410
      %v1920 = vpop.f32.mrb[0].mxu0
      %v1921 = vadd.f32 %v1744, %v1920
      %v1922 = vpop.f32.mrb[0].mxu0
      %v1923 = vpop.f32.mrb[0].mxu0
      %v1924 = vadd.f32 %v1747, %v1923
      %v1925 = vpop.f32.mrb[0].mxu0
      %1926 = vmatprep.mubr.bf16.mxu0 0
      %1927 = vmatmul.mubr.bf16.gmra.mrb[0].mxu0 %v1412
      %v1928 = vpop.f32.mrb[0].mxu0
      %v1929 = vadd.f32 %v1752, %v1928
      %v1930 = vpop.f32.mrb[0].mxu0
      %v1931 = vpop.f32.mrb[0].mxu0
      %v1932 = vadd.f32 %v1755, %v1931
      %v1933 = vpop.f32.mrb[0].mxu0
      %1934 = vmatprep.mubr.bf16.mxu0 0
      %1935 = vmatmul.mubr.bf16.gmra.mrb[0].mxu0 %v1414
      %v1936 = vpop.f32.mrb[0].mxu0
      %v1937 = vadd.f32 %v1760, %v1936
      %v1938 = vpop.f32.mrb[0].mxu0
      %v1939 = vpop.f32.mrb[0].mxu0
      %v1940 = vadd.f32 %v1763, %v1939
      %v1941 = vpop.f32.mrb[0].mxu0
      %1942 = vmatprep.mubr.bf16.mxu0 0
      %1943 = vmatmul.mubr.bf16.gmra.mrb[0].mxu0 %v1416
      %v1944 = vpop.f32.mrb[0].mxu0
      %v1945 = vadd.f32 %v1768, %v1944
      %v1946 = vpop.f32.mrb[0].mxu0
      %v1947 = vpop.f32.mrb[0].mxu0
      %v1948 = vadd.f32 %v1771, %v1947
      %v1949 = vpop.f32.mrb[0].mxu0
      %1950 = vmatprep.mubr.bf16.mxu0 0
      %1951 = vmatmul.mubr.bf16.gmra.mrb[0].mxu0 %v1418
      %v1952 = vpop.f32.mrb[0].mxu0
      %v1953 = vadd.f32 %v1776, %v1952
      %v1954 = vpop.f32.mrb[0].mxu0
      %v1955 = vpop.f32.mrb[0].mxu0
      %v1956 = vadd.f32 %v1779, %v1955
      %v1957 = vpop.f32.mrb[0].mxu0
      %1958 = vmatprep.mubr.bf16.mxu0 0
      %1959 = vmatmul.mubr.bf16.gmra.mrb[0].mxu0 %v1420
      %v1960 = vpop.f32.mrb[0].mxu0
      %v1961 = vadd.f32 %v1784, %v1960
      %v1962 = vpop.f32.mrb[0].mxu0
      %v1963 = vpop.f32.mrb[0].mxu0
      %v1964 = vadd.f32 %v1787, %v1963
      %v1965 = vpop.f32.mrb[0].mxu0
      %1966 = vmatprep.mubr.bf16.mxu0 0
      %1967 = vmatmul.mubr.bf16.gmra.mrb[0].mxu0 %v1422
      %v1968 = vpop.f32.mrb[0].mxu0
      %v1969 = vadd.f32 %v1792, %v1968
      %v1970 = vpop.f32.mrb[0].mxu0
      %v1971 = vpop.f32.mrb[0].mxu0
      %v1972 = vadd.f32 %v1795, %v1971
      %v1973 = vpop.f32.mrb[0].mxu0
      %1974 = vmatprep.mubr.bf16.mxu0 0
      %1975 = vmatmul.mubr.bf16.gmra.mrb[0].mxu0 %v1424
      %v1976 = vpop.f32.mrb[0].mxu0
      %v1977 = vadd.f32 %v1800, %v1976
      %v1978 = vpop.f32.mrb[0].mxu0
      %v1979 = vpop.f32.mrb[0].mxu0
      %v1980 = vadd.f32 %v1803, %v1979
      %v1981 = vpop.f32.mrb[0].mxu0
      %1982 = vmatprep.mubr.bf16.mxu0 0
      %1983 = vmatmul.mubr.bf16.gmra.mrb[0].mxu0 %v1426
      %v1984 = vpop.f32.mrb[0].mxu0
      %v1985 = vadd.f32 %v1808, %v1984
      %v1986 = vpop.f32.mrb[0].mxu0
      %v1987 = vpop.f32.mrb[0].mxu0
      %v1988 = vadd.f32 %v1811, %v1987
      %v1989 = vpop.f32.mrb[0].mxu0
      %1990 = vdwg.mxu0
      %1991 = vst [vmem:[#allocation2] sm:$0xff] %v1849
      %1992 = vst [vmem:[#allocation2 + $0x8] sm:$0xff] %v1852
      %1993 = vst [vmem:[#allocation2 + $0x10] sm:$0xff] %v1857
      %1994 = vst [vmem:[#allocation2 + $0x18] sm:$0xff] %v1860
      %1995 = vst [vmem:[#allocation2 + $0x20] sm:$0xff] %v1865
      %1996 = vst [vmem:[#allocation2 + $0x28] sm:$0xff] %v1868
      %1997 = vst [vmem:[#allocation2 + $0x30] sm:$0xff] %v1873
      %1998 = vst [vmem:[#allocation2 + $0x38] sm:$0xff] %v1876
      %1999 = vst [vmem:[#allocation2 + $0x40] sm:$0xff] %v1881
      %2000 = vst [vmem:[#allocation2 + $0x48] sm:$0xff] %v1884
      %2001 = vst [vmem:[#allocation2 + $0x50] sm:$0xff] %v1889
      %2002 = vst [vmem:[#allocation2 + $0x58] sm:$0xff] %v1892
      %2003 = vst [vmem:[#allocation2 + $0x60] sm:$0xff] %v1897
      %2004 = vst [vmem:[#allocation2 + $0x68] sm:$0xff] %v1900
      %2005 = vst [vmem:[#allocation2 + $0x70] sm:$0xff] %v1905
      %2006 = vst [vmem:[#allocation2 + $0x78] sm:$0xff] %v1908
      %2007 = vst [vmem:[#allocation2 + $0x80] sm:$0xff] %v1913
      %2008 = vst [vmem:[#allocation2 + $0x88] sm:$0xff] %v1916
      %2009 = vst [vmem:[#allocation2 + $0x90] sm:$0xff] %v1921
      %2010 = vst [vmem:[#allocation2 + $0x98] sm:$0xff] %v1924
      %2011 = vst [vmem:[#allocation2 + $0xa0] sm:$0xff] %v1929
      %2012 = vst [vmem:[#allocation2 + $0xa8] sm:$0xff] %v1932
      %2013 = vst [vmem:[#allocation2 + $0xb0] sm:$0xff] %v1937
      %2014 = vst [vmem:[#allocation2 + $0xb8] sm:$0xff] %v1940
      %2015 = vst [vmem:[#allocation2 + $0xc0] sm:$0xff] %v1945
      %2016 = vst [vmem:[#allocation2 + $0xc8] sm:$0xff] %v1948
      %2017 = vst [vmem:[#allocation2 + $0xd0] sm:$0xff] %v1953
      %2018 = vst [vmem:[#allocation2 + $0xd8] sm:$0xff] %v1956
      %2019 = vst [vmem:[#allocation2 + $0xe0] sm:$0xff] %v1961
      %2020 = vst [vmem:[#allocation2 + $0xe8] sm:$0xff] %v1964
      %2021 = vst [vmem:[#allocation2 + $0xf0] sm:$0xff] %v1969
      %2022 = vst [vmem:[#allocation2 + $0xf8] sm:$0xff] %v1972
      %2023 = vst [vmem:[#allocation2 + $0x100] sm:$0xff] %v1977
      %2024 = vst [vmem:[#allocation2 + $0x108] sm:$0xff] %v1980
      %2025 = vst [vmem:[#allocation2 + $0x110] sm:$0xff] %v1985
      %2026 = vst [vmem:[#allocation2 + $0x118] sm:$0xff] %v1988
      %v2027 = vld [vmem:[#allocation3 + $0x8] sm:$0xe]
      %v2028 = vld [vmem:[#allocation3 + $0xc] sm:$0xf]
      %v2029 = vld [vmem:[#allocation3 + $0x10] sm:$0xf]
      %v2030 = vld [vmem:[#allocation3 + $0x14] sm:$0xf]
      %v2031 = vld [vmem:[#allocation3 + $0x18] sm:$0xf]
      %v2032 = vld [vmem:[#allocation3 + $0x1c] sm:$0xf]
      %v2033 = vld [vmem:[#allocation3 + $0x20] sm:$0xf]
      %v2034 = vld [vmem:[#allocation3 + $0x24] sm:$0xf]
      %v2035 = vld [vmem:[#allocation3 + $0x28] sm:$0xf]
      %v2036 = vld [vmem:[#allocation3 + $0x2c] sm:$0xf]
      %v2037 = vld [vmem:[#allocation3 + $0x30] sm:$0xf]
      %v2038 = vld [vmem:[#allocation3 + $0x34] sm:$0xf]
      %v2039 = vld [vmem:[#allocation3 + $0x38] sm:$0xf]
      %v2040 = vld [vmem:[#allocation3 + $0x3c] sm:$0xf]
      %v2041 = vld [vmem:[#allocation3 + $0x40] sm:$0xf]
      %v2042 = vld [vmem:[#allocation3 + $0x44] sm:$0xf]
      %v2043 = vld [vmem:[#allocation3 + $0x48] sm:$0xf]
      %v2044 = vld [vmem:[#allocation3 + $0x4c] sm:$0xf]
      %v2045 = vld [vmem:[#allocation3 + $0x50] sm:$0xf]
      %v2046 = vld [vmem:[#allocation3 + $0x54] sm:$0xf]
      %v2047 = vld [vmem:[#allocation3 + $0x58] sm:$0xf]
      %v2048 = vld [vmem:[#allocation3 + $0x5c] sm:$0xf]
      %v2049 = vld [vmem:[#allocation3 + $0x60] sm:$0xf]
      %v2050 = vld [vmem:[#allocation3 + $0x64] sm:$0xf]
      %v2051 = vld [vmem:[#allocation3 + $0x68] sm:$0xf]
      %v2052 = vld [vmem:[#allocation3 + $0x6c] sm:$0xf]
      %v2053 = vld [vmem:[#allocation3 + $0x70] sm:$0xf]
      %v2054 = vld [vmem:[#allocation3 + $0x74] sm:$0xf]
      %v2055 = vld [vmem:[#allocation3 + $0x78] sm:$0xf]
      %v2056 = vld [vmem:[#allocation3 + $0x7c] sm:$0xf]
      %v2057 = vld [vmem:[#allocation3 + $0x80] sm:$0xf]
      %v2058 = vld [vmem:[#allocation3 + $0x84] sm:$0xf]
      %v2059 = vld [vmem:[#allocation3 + $0x88] sm:$0xf]
      %v2060 = vld [vmem:[#allocation3 + $0x8c] sm:$0xf]
      %v2061 = vld [vmem:[#allocation3 + $0x90] sm:$0xf]
      %v2062 = vld [vmem:[#allocation3 + $0x94] sm:$0xf]
      %v2063 = vld [vmem:[#allocation3 + $0x98] sm:$0x1]
      %v2064 = vld [vmem:[#allocation3 + $0x98] sm:$0x3]
      %v2065 = vld [vmem:[#allocation3 + $0x8] sm:$0xc]
      %v2103 = vunpack.c.l.b16 %v2027
      %v2104 = vunpack.c.l.b16 %v2028
      %v2105 = vunpack.c.l.b16 %v2029
      %v2106 = vunpack.c.l.b16 %v2030
      %v2107 = vunpack.c.l.b16 %v2031
      %v2108 = vunpack.c.l.b16 %v2032
      %v2109 = vunpack.c.l.b16 %v2033
      %v2110 = vunpack.c.l.b16 %v2034
      %v2111 = vunpack.c.l.b16 %v2035
      %v2112 = vunpack.c.l.b16 %v2036
      %v2113 = vunpack.c.l.b16 %v2037
      %v2114 = vunpack.c.l.b16 %v2038
      %v2115 = vunpack.c.l.b16 %v2039
      %v2116 = vunpack.c.l.b16 %v2040
      %v2117 = vunpack.c.l.b16 %v2041
      %v2118 = vunpack.c.l.b16 %v2042
      %v2119 = vunpack.c.l.b16 %v2043
      %v2120 = vunpack.c.l.b16 %v2044
      %v2121 = vunpack.c.l.b16 %v2045
      %v2122 = vunpack.c.l.b16 %v2046
      %v2123 = vunpack.c.l.b16 %v2047
      %v2124 = vunpack.c.l.b16 %v2048
      %v2125 = vunpack.c.l.b16 %v2049
      %v2126 = vunpack.c.l.b16 %v2050
      %v2127 = vunpack.c.l.b16 %v2051
      %v2128 = vunpack.c.l.b16 %v2052
      %v2129 = vunpack.c.l.b16 %v2053
      %v2130 = vunpack.c.l.b16 %v2054
      %v2131 = vunpack.c.l.b16 %v2055
      %v2132 = vunpack.c.l.b16 %v2056
      %v2133 = vunpack.c.l.b16 %v2057
      %v2134 = vunpack.c.l.b16 %v2058
      %v2135 = vunpack.c.l.b16 %v2059
      %v2136 = vunpack.c.l.b16 %v2060
      %v2137 = vunpack.c.l.b16 %v2061
      %v2138 = vunpack.c.l.b16 %v2062
      %v2139 = vunpack.c.l.b16 %v2063
      %v2140 = vpack.c.b16 %v2104, %v2103
      %v2141 = vpack.c.b16 %v2106, %v2105
      %v2142 = vpack.c.b16 %v2108, %v2107
      %v2143 = vpack.c.b16 %v2110, %v2109
      %v2144 = vpack.c.b16 %v2112, %v2111
      %v2145 = vpack.c.b16 %v2114, %v2113
      %v2146 = vpack.c.b16 %v2116, %v2115
      %v2147 = vpack.c.b16 %v2118, %v2117
      %v2148 = vpack.c.b16 %v2120, %v2119
      %v2149 = vpack.c.b16 %v2122, %v2121
      %v2150 = vpack.c.b16 %v2124, %v2123
      %v2151 = vpack.c.b16 %v2126, %v2125
      %v2152 = vpack.c.b16 %v2128, %v2127
      %v2153 = vpack.c.b16 %v2130, %v2129
      %v2154 = vpack.c.b16 %v2132, %v2131
      %v2155 = vpack.c.b16 %v2134, %v2133
      %v2156 = vpack.c.b16 %v2136, %v2135
      %v2157 = vpack.c.b16 %v2138, %v2137
      %v2158 = vpack.c.b16 %v2139, %v2139
      %v2160 = vunpack.c.l.b16 %v2064
      %v2161 = vpack.c.b16 %v2160, %v2160
      %v2163 = vshrl.u32 %v2140, 16
      %v2165 = vshll.u32 %v2140, 16
      %v2167 = vrot.slane %v2165, 1
      %v2168 = vor.u32 %v2163, %v2167
      %v2170 = vshll.u32 %v2141, 16
      %v2172 = vrot.slane %v2170, 1
      %v2173 = vsel %vm1219, %v2168, %v2172
      %v2174 = vshrl.u32 %v2141, 16
      %v2176 = vor.u32 %v2174, %v2172
      %v2178 = vshll.u32 %v2142, 16
      %v2180 = vrot.slane %v2178, 1
      %v2181 = vsel %vm1219, %v2176, %v2180
      %v2182 = vshrl.u32 %v2142, 16
      %v2184 = vor.u32 %v2182, %v2180
      %v2186 = vshll.u32 %v2143, 16
      %v2188 = vrot.slane %v2186, 1
      %v2189 = vsel %vm1219, %v2184, %v2188
      %v2190 = vshrl.u32 %v2143, 16
      %v2192 = vor.u32 %v2190, %v2188
      %v2194 = vshll.u32 %v2144, 16
      %v2196 = vrot.slane %v2194, 1
      %v2197 = vsel %vm1219, %v2192, %v2196
      %v2198 = vshrl.u32 %v2144, 16
      %v2200 = vor.u32 %v2198, %v2196
      %v2202 = vshll.u32 %v2145, 16
      %v2204 = vrot.slane %v2202, 1
      %v2205 = vsel %vm1219, %v2200, %v2204
      %v2206 = vshrl.u32 %v2145, 16
      %v2208 = vor.u32 %v2206, %v2204
      %v2210 = vshll.u32 %v2146, 16
      %v2212 = vrot.slane %v2210, 1
      %v2213 = vsel %vm1219, %v2208, %v2212
      %v2214 = vshrl.u32 %v2146, 16
      %v2216 = vor.u32 %v2214, %v2212
      %v2218 = vshll.u32 %v2147, 16
      %v2220 = vrot.slane %v2218, 1
      %v2221 = vsel %vm1219, %v2216, %v2220
      %v2222 = vshrl.u32 %v2147, 16
      %v2224 = vor.u32 %v2222, %v2220
      %v2226 = vshll.u32 %v2148, 16
      %v2228 = vrot.slane %v2226, 1
      %v2229 = vsel %vm1219, %v2224, %v2228
      %v2230 = vshrl.u32 %v2148, 16
      %v2232 = vor.u32 %v2230, %v2228
      %v2234 = vshll.u32 %v2149, 16
      %v2236 = vrot.slane %v2234, 1
      %v2237 = vsel %vm1219, %v2232, %v2236
      %v2238 = vshrl.u32 %v2149, 16
      %v2240 = vor.u32 %v2238, %v2236
      %v2242 = vshll.u32 %v2150, 16
      %v2244 = vrot.slane %v2242, 1
      %v2245 = vsel %vm1219, %v2240, %v2244
      %v2246 = vshrl.u32 %v2150, 16
      %v2248 = vor.u32 %v2246, %v2244
      %v2250 = vshll.u32 %v2151, 16
      %v2252 = vrot.slane %v2250, 1
      %v2253 = vsel %vm1219, %v2248, %v2252
      %v2254 = vshrl.u32 %v2151, 16
      %v2256 = vor.u32 %v2254, %v2252
      %v2258 = vshll.u32 %v2152, 16
      %v2260 = vrot.slane %v2258, 1
      %v2261 = vsel %vm1219, %v2256, %v2260
      %v2262 = vshrl.u32 %v2152, 16
      %v2264 = vor.u32 %v2262, %v2260
      %v2266 = vshll.u32 %v2153, 16
      %v2268 = vrot.slane %v2266, 1
      %v2269 = vsel %vm1219, %v2264, %v2268
      %v2270 = vshrl.u32 %v2153, 16
      %v2272 = vor.u32 %v2270, %v2268
      %v2274 = vshll.u32 %v2154, 16
      %v2276 = vrot.slane %v2274, 1
      %v2277 = vsel %vm1219, %v2272, %v2276
      %v2278 = vshrl.u32 %v2154, 16
      %v2280 = vor.u32 %v2278, %v2276
      %v2282 = vshll.u32 %v2155, 16
      %v2284 = vrot.slane %v2282, 1
      %v2285 = vsel %vm1219, %v2280, %v2284
      %v2286 = vshrl.u32 %v2155, 16
      %v2288 = vor.u32 %v2286, %v2284
      %v2290 = vshll.u32 %v2156, 16
      %v2292 = vrot.slane %v2290, 1
      %v2293 = vsel %vm1219, %v2288, %v2292
      %v2294 = vshrl.u32 %v2156, 16
      %v2296 = vor.u32 %v2294, %v2292
      %v2298 = vshll.u32 %v2157, 16
      %v2300 = vrot.slane %v2298, 1
      %v2301 = vsel %vm1219, %v2296, %v2300
      %v2302 = vshrl.u32 %v2157, 16
      %v2304 = vor.u32 %v2302, %v2300
      %v2306 = vshll.u32 %v2161, 16
      %v2308 = vrot.slane %v2306, 1
      %v2309 = vsel %vm1219, %v2304, %v2308
      %v2310 = vshrl.u32 %v2161, 16
      %v2312 = vor.u32 %v2310, %v2308
      %v2314 = vunpack.c.l.b16 %v2065
      %v2315 = vpack.c.b16 %v2104, %v2314
      %v2316 = vrot.slane %v2315, 1
      %v2317 = vrot.slane %v2141, 1
      %v2318 = vsel %vm1389, %v2316, %v2317
      %v2319 = vrot.slane %v2142, 1
      %v2320 = vsel %vm1389, %v2317, %v2319
      %v2321 = vrot.slane %v2143, 1
      %v2322 = vsel %vm1389, %v2319, %v2321
      %v2323 = vrot.slane %v2144, 1
      %v2324 = vsel %vm1389, %v2321, %v2323
      %v2325 = vrot.slane %v2145, 1
      %v2326 = vsel %vm1389, %v2323, %v2325
      %v2327 = vrot.slane %v2146, 1
      %v2328 = vsel %vm1389, %v2325, %v2327
      %v2329 = vrot.slane %v2147, 1
      %v2330 = vsel %vm1389, %v2327, %v2329
      %v2331 = vrot.slane %v2148, 1
      %v2332 = vsel %vm1389, %v2329, %v2331
      %v2333 = vrot.slane %v2149, 1
      %v2334 = vsel %vm1389, %v2331, %v2333
      %v2335 = vrot.slane %v2150, 1
      %v2336 = vsel %vm1389, %v2333, %v2335
      %v2337 = vrot.slane %v2151, 1
      %v2338 = vsel %vm1389, %v2335, %v2337
      %v2339 = vrot.slane %v2152, 1
      %v2340 = vsel %vm1389, %v2337, %v2339
      %v2341 = vrot.slane %v2153, 1
      %v2342 = vsel %vm1389, %v2339, %v2341
      %v2343 = vrot.slane %v2154, 1
      %v2344 = vsel %vm1389, %v2341, %v2343
      %v2345 = vrot.slane %v2155, 1
      %v2346 = vsel %vm1389, %v2343, %v2345
      %v2347 = vrot.slane %v2156, 1
      %v2348 = vsel %vm1389, %v2345, %v2347
      %v2349 = vrot.slane %v2157, 1
      %v2350 = vsel %vm1389, %v2347, %v2349
      %v2351 = vrot.slane %v2161, 1
      %v2352 = vsel %vm1389, %v2349, %v2351
      %s2353 = scalar_lea.vmem %s1, 192
      %v2354 = vld [vmem:[%s2353] sm:$0xf]
      %v2355 = vld [vmem:[%s2353 + $0x4] sm:$0xf]
      %v2356 = vld [vmem:[%s2353 + $0x8] sm:$0xf]
      %v2357 = vld [vmem:[%s2353 + $0xc] sm:$0xf]
      %v2358 = vld [vmem:[%s2353 + $0x10] sm:$0xf]
      %v2359 = vld [vmem:[%s2353 + $0x14] sm:$0xf]
      %v2360 = vld [vmem:[%s2353 + $0x18] sm:$0xf]
      %v2361 = vld [vmem:[%s2353 + $0x1c] sm:$0xf]
      %v2362 = vld [vmem:[%s2353 + $0x20] sm:$0xf]
      %v2363 = vld [vmem:[%s2353 + $0x24] sm:$0xf]
      %v2364 = vld [vmem:[%s2353 + $0x28] sm:$0xf]
      %v2365 = vld [vmem:[%s2353 + $0x2c] sm:$0xf]
      %v2366 = vld [vmem:[%s2353 + $0x30] sm:$0xf]
      %v2367 = vld [vmem:[%s2353 + $0x34] sm:$0xf]
      %v2368 = vld [vmem:[%s2353 + $0x38] sm:$0xf]
      %v2369 = vld [vmem:[%s2353 + $0x3c] sm:$0xf]
      %v2370 = vld [vmem:[%s2353 + $0x40] sm:$0xf]
      %v2371 = vld [vmem:[%s2353 + $0x44] sm:$0xf]
      %v2372 = vld [vmem:[%s2353 + $0x48] sm:$0xf]
      %v2373 = vld [vmem:[%s2353 + $0x4c] sm:$0xf]
      %v2374 = vld [vmem:[%s2353 + $0x50] sm:$0xf]
      %v2375 = vld [vmem:[%s2353 + $0x54] sm:$0xf]
      %v2376 = vld [vmem:[%s2353 + $0x58] sm:$0xf]
      %v2377 = vld [vmem:[%s2353 + $0x5c] sm:$0xf]
      %v2378 = vld [vmem:[%s2353 + $0x60] sm:$0xf]
      %v2379 = vld [vmem:[%s2353 + $0x64] sm:$0xf]
      %v2380 = vld [vmem:[%s2353 + $0x68] sm:$0xf]
      %v2381 = vld [vmem:[%s2353 + $0x6c] sm:$0xf]
      %v2382 = vld [vmem:[%s2353 + $0x70] sm:$0xf]
      %v2383 = vld [vmem:[%s2353 + $0x74] sm:$0xf]
      %v2384 = vld [vmem:[%s2353 + $0x78] sm:$0xf]
      %v2385 = vld [vmem:[%s2353 + $0x7c] sm:$0xf]
      %v2386 = vld [vmem:[%s2353 + $0x80] sm:$0xf]
      %v2387 = vld [vmem:[%s2353 + $0x84] sm:$0xf]
      %v2388 = vld [vmem:[%s2353 + $0x88] sm:$0xf]
      %v2389 = vld [vmem:[%s2353 + $0x8c] sm:$0xf]
      %v2390 = vld [vmem:[%s2353 + $0x90] sm:$0xf]
      %v2391 = vld [vmem:[%s2353 + $0x94] sm:$0xf]
      %v2392 = vld [vmem:[%s2353 + $0x98] sm:$0xf]
      %v2393 = vld [vmem:[%s2353 + $0x9c] sm:$0xf]
      %v2394 = vld [vmem:[%s2353 + $0xa0] sm:$0xf]
      %v2395 = vld [vmem:[%s2353 + $0xa4] sm:$0xf]
      %v2396 = vld [vmem:[%s2353 + $0xa8] sm:$0xf]
      %v2397 = vld [vmem:[%s2353 + $0xac] sm:$0xf]
      %v2398 = vld [vmem:[%s2353 + $0xb0] sm:$0xf]
      %v2399 = vld [vmem:[%s2353 + $0xb4] sm:$0xf]
      %v2400 = vld [vmem:[%s2353 + $0xb8] sm:$0xf]
      %v2401 = vld [vmem:[%s2353 + $0xbc] sm:$0xf]
      %v2402 = vrot.slane %v2140, 1
      %v2403 = vsel %vm1389, %v2402, %v2317
      %v2404 = vrot.slane %v2173, 1
      %v2405 = vrot.slane %v2181, 1
      %v2406 = vsel %vm1389, %v2404, %v2405
      %v2407 = vrot.slane %v2318, 1
      %v2408 = vrot.slane %v2320, 1
      %v2409 = vsel %vm1389, %v2407, %v2408
      %v2410 = vrot.slane %v2189, 1
      %v2411 = vsel %vm1389, %v2405, %v2410
      %v2412 = vrot.slane %v2322, 1
      %v2413 = vsel %vm1389, %v2408, %v2412
      %v2414 = vrot.slane %v2197, 1
      %v2415 = vsel %vm1389, %v2410, %v2414
      %v2416 = vrot.slane %v2324, 1
      %v2417 = vsel %vm1389, %v2412, %v2416
      %v2418 = vrot.slane %v2205, 1
      %v2419 = vsel %vm1389, %v2414, %v2418
      %v2420 = vrot.slane %v2326, 1
      %v2421 = vsel %vm1389, %v2416, %v2420
      %v2422 = vrot.slane %v2213, 1
      %v2423 = vsel %vm1389, %v2418, %v2422
      %v2424 = vrot.slane %v2328, 1
      %v2425 = vsel %vm1389, %v2420, %v2424
      %v2426 = vrot.slane %v2221, 1
      %v2427 = vsel %vm1389, %v2422, %v2426
      %v2428 = vrot.slane %v2330, 1
      %v2429 = vsel %vm1389, %v2424, %v2428
      %v2430 = vrot.slane %v2229, 1
      %v2431 = vsel %vm1389, %v2426, %v2430
      %v2432 = vrot.slane %v2332, 1
      %v2433 = vsel %vm1389, %v2428, %v2432
      %v2434 = vrot.slane %v2237, 1
      %v2435 = vsel %vm1389, %v2430, %v2434
      %v2436 = vrot.slane %v2334, 1
      %v2437 = vsel %vm1389, %v2432, %v2436
      %v2438 = vrot.slane %v2245, 1
      %v2439 = vsel %vm1389, %v2434, %v2438
      %v2440 = vrot.slane %v2336, 1
      %v2441 = vsel %vm1389, %v2436, %v2440
      %v2442 = vrot.slane %v2253, 1
      %v2443 = vsel %vm1389, %v2438, %v2442
      %v2444 = vrot.slane %v2338, 1
      %v2445 = vsel %vm1389, %v2440, %v2444
      %v2446 = vrot.slane %v2261, 1
      %v2447 = vsel %vm1389, %v2442, %v2446
      %v2448 = vrot.slane %v2340, 1
      %v2449 = vsel %vm1389, %v2444, %v2448
      %v2450 = vrot.slane %v2269, 1
      %v2451 = vsel %vm1389, %v2446, %v2450
      %v2452 = vrot.slane %v2342, 1
      %v2453 = vsel %vm1389, %v2448, %v2452
      %v2454 = vrot.slane %v2277, 1
      %v2455 = vsel %vm1389, %v2450, %v2454
      %v2456 = vrot.slane %v2344, 1
      %v2457 = vsel %vm1389, %v2452, %v2456
      %v2458 = vrot.slane %v2285, 1
      %v2459 = vsel %vm1389, %v2454, %v2458
      %v2460 = vrot.slane %v2346, 1
      %v2461 = vsel %vm1389, %v2456, %v2460
      %v2462 = vrot.slane %v2293, 1
      %v2463 = vsel %vm1389, %v2458, %v2462
      %v2464 = vrot.slane %v2348, 1
      %v2465 = vsel %vm1389, %v2460, %v2464
      %v2466 = vrot.slane %v2301, 1
      %v2467 = vsel %vm1389, %v2462, %v2466
      %v2468 = vrot.slane %v2350, 1
      %v2469 = vsel %vm1389, %v2464, %v2468
      %v2470 = vrot.slane %v2309, 1
      %v2471 = vsel %vm1389, %v2466, %v2470
      %v2472 = vrot.slane %v2352, 1
      %v2473 = vsel %vm1389, %v2468, %v2472
      %v2474 = vrot.slane %v2158, 1
      %v2475 = vsel %vm1389, %v2349, %v2474
      %v2476 = vrot.slane %v2312, 1
      %v2477 = vsel %vm1389, %v2470, %v2476
      %v2478 = vrot.slane %v2351, 1
      %v2479 = vsel %vm1389, %v2472, %v2478
      %v2582 = vunpack.c.l.b16 %v2354
      %v2583 = vunpack.c.l.b16 %v2355
      %v2584 = vunpack.c.l.b16 %v2356
      %v2585 = vunpack.c.l.b16 %v2357
      %v2586 = vunpack.c.l.b16 %v2358
      %v2587 = vunpack.c.l.b16 %v2359
      %v2588 = vunpack.c.l.b16 %v2360
      %v2589 = vunpack.c.l.b16 %v2361
      %v2590 = vunpack.c.l.b16 %v2362
      %v2591 = vunpack.c.l.b16 %v2363
      %v2592 = vunpack.c.l.b16 %v2364
      %v2593 = vunpack.c.l.b16 %v2365
      %v2594 = vunpack.c.l.b16 %v2366
      %v2595 = vunpack.c.l.b16 %v2367
      %v2596 = vunpack.c.l.b16 %v2368
      %v2597 = vunpack.c.l.b16 %v2369
      %v2598 = vunpack.c.l.b16 %v2370
      %v2599 = vunpack.c.l.b16 %v2371
      %v2600 = vunpack.c.l.b16 %v2372
      %v2601 = vunpack.c.l.b16 %v2373
      %v2602 = vunpack.c.l.b16 %v2374
      %v2603 = vunpack.c.l.b16 %v2375
      %v2604 = vunpack.c.l.b16 %v2376
      %v2605 = vunpack.c.l.b16 %v2377
      %v2606 = vunpack.c.l.b16 %v2378
      %v2607 = vunpack.c.l.b16 %v2379
      %v2608 = vunpack.c.l.b16 %v2380
      %v2609 = vunpack.c.l.b16 %v2381
      %v2610 = vunpack.c.l.b16 %v2382
      %v2611 = vunpack.c.l.b16 %v2383
      %v2612 = vunpack.c.l.b16 %v2384
      %v2613 = vunpack.c.l.b16 %v2385
      %v2614 = vunpack.c.l.b16 %v2386
      %v2615 = vunpack.c.l.b16 %v2387
      %v2616 = vunpack.c.l.b16 %v2388
      %v2617 = vunpack.c.l.b16 %v2389
      %v2618 = vunpack.c.l.b16 %v2390
      %v2619 = vunpack.c.l.b16 %v2391
      %v2620 = vunpack.c.l.b16 %v2392
      %v2621 = vunpack.c.l.b16 %v2393
      %v2622 = vunpack.c.l.b16 %v2394
      %v2623 = vunpack.c.l.b16 %v2395
      %v2624 = vunpack.c.l.b16 %v2396
      %v2625 = vunpack.c.l.b16 %v2397
      %v2626 = vunpack.c.l.b16 %v2398
      %v2627 = vunpack.c.l.b16 %v2399
      %v2628 = vunpack.c.l.b16 %v2400
      %v2629 = vunpack.c.l.b16 %v2401
      %v2630 = vpack.c.b16 %v2583, %v2582
      %v2631 = vpack.c.b16 %v2585, %v2584
      %v2632 = vpack.c.b16 %v2587, %v2586
      %v2633 = vpack.c.b16 %v2589, %v2588
      %v2634 = vpack.c.b16 %v2591, %v2590
      %v2635 = vpack.c.b16 %v2593, %v2592
      %v2636 = vpack.c.b16 %v2595, %v2594
      %v2637 = vpack.c.b16 %v2597, %v2596
      %v2638 = vpack.c.b16 %v2599, %v2598
      %v2639 = vpack.c.b16 %v2601, %v2600
      %v2640 = vpack.c.b16 %v2603, %v2602
      %v2641 = vpack.c.b16 %v2605, %v2604
      %v2642 = vpack.c.b16 %v2607, %v2606
      %v2643 = vpack.c.b16 %v2609, %v2608
      %v2644 = vpack.c.b16 %v2611, %v2610
      %v2645 = vpack.c.b16 %v2613, %v2612
      %v2646 = vpack.c.b16 %v2615, %v2614
      %v2647 = vpack.c.b16 %v2617, %v2616
      %v2648 = vpack.c.b16 %v2619, %v2618
      %v2649 = vpack.c.b16 %v2621, %v2620
      %v2650 = vpack.c.b16 %v2623, %v2622
      %v2651 = vpack.c.b16 %v2625, %v2624
      %v2652 = vpack.c.b16 %v2627, %v2626
      %v2653 = vpack.c.b16 %v2629, %v2628
      %2678 = vmatprep.subr.bf16.mxu0 0
      %2679 = vmatpush1.bf16.msra.mxu0 %v2630
      %2680 = vmatprep.subr.bf16.mxu0 0
      %2681 = vmatpush1.bf16.msra.mxu0 %v2631
      %2682 = vmatprep.subr.bf16.mxu0 0
      %2683 = vmatpush1.bf16.msra.mxu0 %v2632
      %2684 = vmatprep.subr.bf16.mxu0 0
      %2685 = vmatpush1.bf16.msra.mxu0 %v2633
      %2686 = vmatprep.subr.bf16.mxu0 0
      %2687 = vmatpush1.bf16.msra.mxu0 %v2634
      %2688 = vmatprep.subr.bf16.mxu0 0
      %2689 = vmatpush1.bf16.msra.mxu0 %v2635
      %2690 = vmatprep.subr.bf16.mxu0 0
      %2691 = vmatpush1.bf16.msra.mxu0 %v2636
      %2692 = vmatprep.subr.bf16.mxu0 0
      %2693 = vmatpush1.bf16.msra.mxu0 %v2637
      %2694 = vmatprep.subr.bf16.mxu0 0
      %2695 = vmatpush1.bf16.msra.mxu0 %v2638
      %2696 = vmatprep.subr.bf16.mxu0 0
      %2697 = vmatpush1.bf16.msra.mxu0 %v2639
      %2698 = vmatprep.subr.bf16.mxu0 0
      %2699 = vmatpush1.bf16.msra.mxu0 %v2640
      %2700 = vmatprep.subr.bf16.mxu0 0
      %2701 = vmatpush1.bf16.msra.mxu0 %v2641
      %2702 = vmatprep.subr.bf16.mxu0 0
      %2703 = vmatpush1.bf16.msra.mxu0 %v2642
      %2704 = vmatprep.subr.bf16.mxu0 0
      %2705 = vmatpush1.bf16.msra.mxu0 %v2643
      %2706 = vmatprep.subr.bf16.mxu0 0
      %2707 = vmatpush1.bf16.msra.mxu0 %v2644
      %2708 = vmatprep.subr.bf16.mxu0 0
      %2709 = vmatpush1.bf16.msra.mxu0 %v2645
      %2710 = vmatprep.mubr.bf16.mxu0 %v2406
      %2711 = vmatmul.mubr.bf16.gmra.mrb[0].mxu0 %v2403
      %v2712 = vpop.f32.mrb[0].mxu0
      %v2713 = vadd.f32 0.0, %v2712
      %v2714 = vpop.f32.mrb[0].mxu0
      %v2715 = vpop.f32.mrb[0].mxu0
      %v2716 = vadd.f32 0.0, %v2715
      %v2717 = vpop.f32.mrb[0].mxu0
      %2718 = vmatprep.mubr.bf16.mxu0 %v2411
      %2719 = vmatmul.mubr.bf16.gmra.mrb[0].mxu0 %v2320
      %v2720 = vpop.f32.mrb[0].mxu0
      %v2721 = vadd.f32 0.0, %v2720
      %v2722 = vpop.f32.mrb[0].mxu0
      %v2723 = vpop.f32.mrb[0].mxu0
      %v2724 = vadd.f32 0.0, %v2723
      %v2725 = vpop.f32.mrb[0].mxu0
      %2726 = vmatprep.mubr.bf16.mxu0 %v2415
      %2727 = vmatmul.mubr.bf16.gmra.mrb[0].mxu0 %v2322
      %v2728 = vpop.f32.mrb[0].mxu0
      %v2729 = vadd.f32 0.0, %v2728
      %v2730 = vpop.f32.mrb[0].mxu0
      %v2731 = vpop.f32.mrb[0].mxu0
      %v2732 = vadd.f32 0.0, %v2731
      %v2733 = vpop.f32.mrb[0].mxu0
      %2734 = vmatprep.mubr.bf16.mxu0 %v2419
      %2735 = vmatmul.mubr.bf16.gmra.mrb[0].mxu0 %v2324
      %v2736 = vpop.f32.mrb[0].mxu0
      %v2737 = vadd.f32 0.0, %v2736
      %v2738 = vpop.f32.mrb[0].mxu0
      %v2739 = vpop.f32.mrb[0].mxu0
      %v2740 = vadd.f32 0.0, %v2739
      %v2741 = vpop.f32.mrb[0].mxu0
      %2742 = vmatprep.mubr.bf16.mxu0 %v2423
      %2743 = vmatmul.mubr.bf16.gmra.mrb[0].mxu0 %v2326
      %v2744 = vpop.f32.mrb[0].mxu0
      %v2745 = vadd.f32 0.0, %v2744
      %v2746 = vpop.f32.mrb[0].mxu0
      %v2747 = vpop.f32.mrb[0].mxu0
      %v2748 = vadd.f32 0.0, %v2747
      %v2749 = vpop.f32.mrb[0].mxu0
      %2750 = vmatprep.mubr.bf16.mxu0 %v2427
      %2751 = vmatmul.mubr.bf16.gmra.mrb[0].mxu0 %v2328
      %v2752 = vpop.f32.mrb[0].mxu0
      %v2753 = vadd.f32 0.0, %v2752
      %v2754 = vpop.f32.mrb[0].mxu0
      %v2755 = vpop.f32.mrb[0].mxu0
      %v2756 = vadd.f32 0.0, %v2755
      %v2757 = vpop.f32.mrb[0].mxu0
      %2758 = vmatprep.mubr.bf16.mxu0 %v2431
      %2759 = vmatmul.mubr.bf16.gmra.mrb[0].mxu0 %v2330
      %v2760 = vpop.f32.mrb[0].mxu0
      %v2761 = vadd.f32 0.0, %v2760
      %v2762 = vpop.f32.mrb[0].mxu0
      %v2763 = vpop.f32.mrb[0].mxu0
      %v2764 = vadd.f32 0.0, %v2763
      %v2765 = vpop.f32.mrb[0].mxu0
      %2766 = vmatprep.mubr.bf16.mxu0 %v2435
      %2767 = vmatmul.mubr.bf16.gmra.mrb[0].mxu0 %v2332
      %v2768 = vpop.f32.mrb[0].mxu0
      %v2769 = vadd.f32 0.0, %v2768
      %v2770 = vpop.f32.mrb[0].mxu0
      %v2771 = vpop.f32.mrb[0].mxu0
      %v2772 = vadd.f32 0.0, %v2771
      %v2773 = vpop.f32.mrb[0].mxu0
      %2774 = vmatprep.mubr.bf16.mxu0 %v2439
      %2775 = vmatmul.mubr.bf16.gmra.mrb[0].mxu0 %v2334
      %v2776 = vpop.f32.mrb[0].mxu0
      %v2777 = vadd.f32 0.0, %v2776
      %v2778 = vpop.f32.mrb[0].mxu0
      %v2779 = vpop.f32.mrb[0].mxu0
      %v2780 = vadd.f32 0.0, %v2779
      %v2781 = vpop.f32.mrb[0].mxu0
      %2782 = vmatprep.mubr.bf16.mxu0 %v2443
      %2783 = vmatmul.mubr.bf16.gmra.mrb[0].mxu0 %v2336
      %v2784 = vpop.f32.mrb[0].mxu0
      %v2785 = vadd.f32 0.0, %v2784
      %v2786 = vpop.f32.mrb[0].mxu0
      %v2787 = vpop.f32.mrb[0].mxu0
      %v2788 = vadd.f32 0.0, %v2787
      %v2789 = vpop.f32.mrb[0].mxu0
      %2790 = vmatprep.mubr.bf16.mxu0 %v2447
      %2791 = vmatmul.mubr.bf16.gmra.mrb[0].mxu0 %v2338
      %v2792 = vpop.f32.mrb[0].mxu0
      %v2793 = vadd.f32 0.0, %v2792
      %v2794 = vpop.f32.mrb[0].mxu0
      %v2795 = vpop.f32.mrb[0].mxu0
      %v2796 = vadd.f32 0.0, %v2795
      %v2797 = vpop.f32.mrb[0].mxu0
      %2798 = vmatprep.mubr.bf16.mxu0 %v2451
      %2799 = vmatmul.mubr.bf16.gmra.mrb[0].mxu0 %v2340
      %v2800 = vpop.f32.mrb[0].mxu0
      %v2801 = vadd.f32 0.0, %v2800
      %v2802 = vpop.f32.mrb[0].mxu0
      %v2803 = vpop.f32.mrb[0].mxu0
      %v2804 = vadd.f32 0.0, %v2803
      %v2805 = vpop.f32.mrb[0].mxu0
      %2806 = vmatprep.mubr.bf16.mxu0 %v2455
      %2807 = vmatmul.mubr.bf16.gmra.mrb[0].mxu0 %v2342
      %v2808 = vpop.f32.mrb[0].mxu0
      %v2809 = vadd.f32 0.0, %v2808
      %v2810 = vpop.f32.mrb[0].mxu0
      %v2811 = vpop.f32.mrb[0].mxu0
      %v2812 = vadd.f32 0.0, %v2811
      %v2813 = vpop.f32.mrb[0].mxu0
      %2814 = vmatprep.mubr.bf16.mxu0 %v2459
      %2815 = vmatmul.mubr.bf16.gmra.mrb[0].mxu0 %v2344
      %v2816 = vpop.f32.mrb[0].mxu0
      %v2817 = vadd.f32 0.0, %v2816
      %v2818 = vpop.f32.mrb[0].mxu0
      %v2819 = vpop.f32.mrb[0].mxu0
      %v2820 = vadd.f32 0.0, %v2819
      %v2821 = vpop.f32.mrb[0].mxu0
      %2822 = vmatprep.mubr.bf16.mxu0 %v2463
      %2823 = vmatmul.mubr.bf16.gmra.mrb[0].mxu0 %v2346
      %v2824 = vpop.f32.mrb[0].mxu0
      %v2825 = vadd.f32 0.0, %v2824
      %v2826 = vpop.f32.mrb[0].mxu0
      %v2827 = vpop.f32.mrb[0].mxu0
      %v2828 = vadd.f32 0.0, %v2827
      %v2829 = vpop.f32.mrb[0].mxu0
      %2830 = vmatprep.mubr.bf16.mxu0 %v2467
      %2831 = vmatmul.mubr.bf16.gmra.mrb[0].mxu0 %v2348
      %v2832 = vpop.f32.mrb[0].mxu0
      %v2833 = vadd.f32 0.0, %v2832
      %v2834 = vpop.f32.mrb[0].mxu0
      %v2835 = vpop.f32.mrb[0].mxu0
      %v2836 = vadd.f32 0.0, %v2835
      %v2837 = vpop.f32.mrb[0].mxu0
      %2838 = vmatprep.mubr.bf16.mxu0 %v2471
      %2839 = vmatmul.mubr.bf16.gmra.mrb[0].mxu0 %v2350
      %v2840 = vpop.f32.mrb[0].mxu0
      %v2841 = vadd.f32 0.0, %v2840
      %v2842 = vpop.f32.mrb[0].mxu0
      %v2843 = vpop.f32.mrb[0].mxu0
      %v2844 = vadd.f32 0.0, %v2843
      %v2845 = vpop.f32.mrb[0].mxu0
      %2846 = vmatprep.mubr.bf16.mxu0 %v2477
      %2847 = vmatmul.mubr.bf16.gmra.mrb[0].mxu0 %v2475
      %v2848 = vpop.f32.mrb[0].mxu0
      %v2849 = vadd.f32 0.0, %v2848
      %v2850 = vpop.f32.mrb[0].mxu0
      %v2851 = vpop.f32.mrb[0].mxu0
      %v2852 = vadd.f32 0.0, %v2851
      %v2853 = vpop.f32.mrb[0].mxu0
      %2854 = vdwg.mxu0
      %2855 = vmatprep.subr.bf16.mxu0 0
      %2856 = vmatpush1.bf16.msra.mxu0 %v2646
      %2857 = vmatprep.subr.bf16.mxu0 0
      %2858 = vmatpush1.bf16.msra.mxu0 %v2647
      %2859 = vmatprep.subr.bf16.mxu0 0
      %2860 = vmatpush1.bf16.msra.mxu0 %v2648
      %2861 = vmatprep.subr.bf16.mxu0 0
      %2862 = vmatpush1.bf16.msra.mxu0 %v2649
      %2863 = vmatprep.subr.bf16.mxu0 0
      %2864 = vmatpush1.bf16.msra.mxu0 %v2650
      %2865 = vmatprep.subr.bf16.mxu0 0
      %2866 = vmatpush1.bf16.msra.mxu0 %v2651
      %2867 = vmatprep.subr.bf16.mxu0 0
      %2868 = vmatpush1.bf16.msra.mxu0 %v2652
      %2869 = vmatprep.subr.bf16.mxu0 0
      %2870 = vmatpush1.bf16.msra.mxu0 %v2653
      %2871 = vmatprep.subr.bf16.mxu0 0
      %2872 = vmatpush1.bf16.msra.mxu0 0
      %2873 = vmatprep.subr.bf16.mxu0 0
      %2874 = vmatpush1.bf16.msra.mxu0 0
      %2875 = vmatprep.subr.bf16.mxu0 0
      %2876 = vmatpush1.bf16.msra.mxu0 0
      %2877 = vmatprep.subr.bf16.mxu0 0
      %2878 = vmatpush1.bf16.msra.mxu0 0
      %2879 = vmatprep.subr.bf16.mxu0 0
      %2880 = vmatpush1.bf16.msra.mxu0 0
      %2881 = vmatprep.subr.bf16.mxu0 0
      %2882 = vmatpush1.bf16.msra.mxu0 0
      %2883 = vmatprep.subr.bf16.mxu0 0
      %2884 = vmatpush1.bf16.msra.mxu0 0
      %2885 = vmatprep.subr.bf16.mxu0 0
      %2886 = vmatpush1.bf16.msra.mxu0 0
      %2887 = vmatprep.mubr.bf16.mxu0 0
      %2888 = vmatmul.mubr.bf16.gmra.mrb[0].mxu0 %v2409
      %v2889 = vpop.f32.mrb[0].mxu0
      %v2890 = vadd.f32 %v2713, %v2889
      %v2891 = vpop.f32.mrb[0].mxu0
      %v2892 = vpop.f32.mrb[0].mxu0
      %v2893 = vadd.f32 %v2716, %v2892
      %v2894 = vpop.f32.mrb[0].mxu0
      %2895 = vmatprep.mubr.bf16.mxu0 0
      %2896 = vmatmul.mubr.bf16.gmra.mrb[0].mxu0 %v2413
      %v2897 = vpop.f32.mrb[0].mxu0
      %v2898 = vadd.f32 %v2721, %v2897
      %v2899 = vpop.f32.mrb[0].mxu0
      %v2900 = vpop.f32.mrb[0].mxu0
      %v2901 = vadd.f32 %v2724, %v2900
      %v2902 = vpop.f32.mrb[0].mxu0
      %2903 = vmatprep.mubr.bf16.mxu0 0
      %2904 = vmatmul.mubr.bf16.gmra.mrb[0].mxu0 %v2417
      %v2905 = vpop.f32.mrb[0].mxu0
      %v2906 = vadd.f32 %v2729, %v2905
      %v2907 = vpop.f32.mrb[0].mxu0
      %v2908 = vpop.f32.mrb[0].mxu0
      %v2909 = vadd.f32 %v2732, %v2908
      %v2910 = vpop.f32.mrb[0].mxu0
      %2911 = vmatprep.mubr.bf16.mxu0 0
      %2912 = vmatmul.mubr.bf16.gmra.mrb[0].mxu0 %v2421
      %v2913 = vpop.f32.mrb[0].mxu0
      %v2914 = vadd.f32 %v2737, %v2913
      %v2915 = vpop.f32.mrb[0].mxu0
      %v2916 = vpop.f32.mrb[0].mxu0
      %v2917 = vadd.f32 %v2740, %v2916
      %v2918 = vpop.f32.mrb[0].mxu0
      %2919 = vmatprep.mubr.bf16.mxu0 0
      %2920 = vmatmul.mubr.bf16.gmra.mrb[0].mxu0 %v2425
      %v2921 = vpop.f32.mrb[0].mxu0
      %v2922 = vadd.f32 %v2745, %v2921
      %v2923 = vpop.f32.mrb[0].mxu0
      %v2924 = vpop.f32.mrb[0].mxu0
      %v2925 = vadd.f32 %v2748, %v2924
      %v2926 = vpop.f32.mrb[0].mxu0
      %2927 = vmatprep.mubr.bf16.mxu0 0
      %2928 = vmatmul.mubr.bf16.gmra.mrb[0].mxu0 %v2429
      %v2929 = vpop.f32.mrb[0].mxu0
      %v2930 = vadd.f32 %v2753, %v2929
      %v2931 = vpop.f32.mrb[0].mxu0
      %v2932 = vpop.f32.mrb[0].mxu0
      %v2933 = vadd.f32 %v2756, %v2932
      %v2934 = vpop.f32.mrb[0].mxu0
      %2935 = vmatprep.mubr.bf16.mxu0 0
      %2936 = vmatmul.mubr.bf16.gmra.mrb[0].mxu0 %v2433
      %v2937 = vpop.f32.mrb[0].mxu0
      %v2938 = vadd.f32 %v2761, %v2937
      %v2939 = vpop.f32.mrb[0].mxu0
      %v2940 = vpop.f32.mrb[0].mxu0
      %v2941 = vadd.f32 %v2764, %v2940
      %v2942 = vpop.f32.mrb[0].mxu0
      %2943 = vmatprep.mubr.bf16.mxu0 0
      %2944 = vmatmul.mubr.bf16.gmra.mrb[0].mxu0 %v2437
      %v2945 = vpop.f32.mrb[0].mxu0
      %v2946 = vadd.f32 %v2769, %v2945
      %v2947 = vpop.f32.mrb[0].mxu0
      %v2948 = vpop.f32.mrb[0].mxu0
      %v2949 = vadd.f32 %v2772, %v2948
      %v2950 = vpop.f32.mrb[0].mxu0
      %2951 = vmatprep.mubr.bf16.mxu0 0
      %2952 = vmatmul.mubr.bf16.gmra.mrb[0].mxu0 %v2441
      %v2953 = vpop.f32.mrb[0].mxu0
      %v2954 = vadd.f32 %v2777, %v2953
      %v2955 = vpop.f32.mrb[0].mxu0
      %v2956 = vpop.f32.mrb[0].mxu0
      %v2957 = vadd.f32 %v2780, %v2956
      %v2958 = vpop.f32.mrb[0].mxu0
      %2959 = vmatprep.mubr.bf16.mxu0 0
      %2960 = vmatmul.mubr.bf16.gmra.mrb[0].mxu0 %v2445
      %v2961 = vpop.f32.mrb[0].mxu0
      %v2962 = vadd.f32 %v2785, %v2961
      %v2963 = vpop.f32.mrb[0].mxu0
      %v2964 = vpop.f32.mrb[0].mxu0
      %v2965 = vadd.f32 %v2788, %v2964
      %v2966 = vpop.f32.mrb[0].mxu0
      %2967 = vmatprep.mubr.bf16.mxu0 0
      %2968 = vmatmul.mubr.bf16.gmra.mrb[0].mxu0 %v2449
      %v2969 = vpop.f32.mrb[0].mxu0
      %v2970 = vadd.f32 %v2793, %v2969
      %v2971 = vpop.f32.mrb[0].mxu0
      %v2972 = vpop.f32.mrb[0].mxu0
      %v2973 = vadd.f32 %v2796, %v2972
      %v2974 = vpop.f32.mrb[0].mxu0
      %2975 = vmatprep.mubr.bf16.mxu0 0
      %2976 = vmatmul.mubr.bf16.gmra.mrb[0].mxu0 %v2453
      %v2977 = vpop.f32.mrb[0].mxu0
      %v2978 = vadd.f32 %v2801, %v2977
      %v2979 = vpop.f32.mrb[0].mxu0
      %v2980 = vpop.f32.mrb[0].mxu0
      %v2981 = vadd.f32 %v2804, %v2980
      %v2982 = vpop.f32.mrb[0].mxu0
      %2983 = vmatprep.mubr.bf16.mxu0 0
      %2984 = vmatmul.mubr.bf16.gmra.mrb[0].mxu0 %v2457
      %v2985 = vpop.f32.mrb[0].mxu0
      %v2986 = vadd.f32 %v2809, %v2985
      %v2987 = vpop.f32.mrb[0].mxu0
      %v2988 = vpop.f32.mrb[0].mxu0
      %v2989 = vadd.f32 %v2812, %v2988
      %v2990 = vpop.f32.mrb[0].mxu0
      %2991 = vmatprep.mubr.bf16.mxu0 0
      %2992 = vmatmul.mubr.bf16.gmra.mrb[0].mxu0 %v2461
      %v2993 = vpop.f32.mrb[0].mxu0
      %v2994 = vadd.f32 %v2817, %v2993
      %v2995 = vpop.f32.mrb[0].mxu0
      %v2996 = vpop.f32.mrb[0].mxu0
      %v2997 = vadd.f32 %v2820, %v2996
      %v2998 = vpop.f32.mrb[0].mxu0
      %2999 = vmatprep.mubr.bf16.mxu0 0
      %3000 = vmatmul.mubr.bf16.gmra.mrb[0].mxu0 %v2465
      %v3001 = vpop.f32.mrb[0].mxu0
      %v3002 = vadd.f32 %v2825, %v3001
      %v3003 = vpop.f32.mrb[0].mxu0
      %v3004 = vpop.f32.mrb[0].mxu0
      %v3005 = vadd.f32 %v2828, %v3004
      %v3006 = vpop.f32.mrb[0].mxu0
      %3007 = vmatprep.mubr.bf16.mxu0 0
      %3008 = vmatmul.mubr.bf16.gmra.mrb[0].mxu0 %v2469
      %v3009 = vpop.f32.mrb[0].mxu0
      %v3010 = vadd.f32 %v2833, %v3009
      %v3011 = vpop.f32.mrb[0].mxu0
      %v3012 = vpop.f32.mrb[0].mxu0
      %v3013 = vadd.f32 %v2836, %v3012
      %v3014 = vpop.f32.mrb[0].mxu0
      %3015 = vmatprep.mubr.bf16.mxu0 0
      %3016 = vmatmul.mubr.bf16.gmra.mrb[0].mxu0 %v2473
      %v3017 = vpop.f32.mrb[0].mxu0
      %v3018 = vadd.f32 %v2841, %v3017
      %v3019 = vpop.f32.mrb[0].mxu0
      %v3020 = vpop.f32.mrb[0].mxu0
      %v3021 = vadd.f32 %v2844, %v3020
      %v3022 = vpop.f32.mrb[0].mxu0
      %3023 = vmatprep.mubr.bf16.mxu0 0
      %3024 = vmatmul.mubr.bf16.gmra.mrb[0].mxu0 %v2479
      %v3025 = vpop.f32.mrb[0].mxu0
      %v3026 = vadd.f32 %v2849, %v3025
      %v3027 = vpop.f32.mrb[0].mxu0
      %v3028 = vpop.f32.mrb[0].mxu0
      %v3029 = vadd.f32 %v2852, %v3028
      %v3030 = vpop.f32.mrb[0].mxu0
      %3031 = vdwg.mxu0
      %v3032 = vld [vmem:[#allocation2] sm:$0xff]
      %v3033 = vld [vmem:[#allocation2 + $0x8] sm:$0xff]
      %v3034 = vld [vmem:[#allocation2 + $0x10] sm:$0xff]
      %v3035 = vld [vmem:[#allocation2 + $0x18] sm:$0xff]
      %v3036 = vld [vmem:[#allocation2 + $0x20] sm:$0xff]
      %v3037 = vld [vmem:[#allocation2 + $0x28] sm:$0xff]
      %v3038 = vld [vmem:[#allocation2 + $0x30] sm:$0xff]
      %v3039 = vld [vmem:[#allocation2 + $0x38] sm:$0xff]
      %v3040 = vld [vmem:[#allocation2 + $0x40] sm:$0xff]
      %v3041 = vld [vmem:[#allocation2 + $0x48] sm:$0xff]
      %v3042 = vld [vmem:[#allocation2 + $0x50] sm:$0xff]
      %v3043 = vld [vmem:[#allocation2 + $0x58] sm:$0xff]
      %v3044 = vld [vmem:[#allocation2 + $0x60] sm:$0xff]
      %v3045 = vld [vmem:[#allocation2 + $0x68] sm:$0xff]
      %v3046 = vld [vmem:[#allocation2 + $0x70] sm:$0xff]
      %v3047 = vld [vmem:[#allocation2 + $0x78] sm:$0xff]
      %v3048 = vld [vmem:[#allocation2 + $0x80] sm:$0xff]
      %v3049 = vld [vmem:[#allocation2 + $0x88] sm:$0xff]
      %v3050 = vld [vmem:[#allocation2 + $0x90] sm:$0xff]
      %v3051 = vld [vmem:[#allocation2 + $0x98] sm:$0xff]
      %v3052 = vld [vmem:[#allocation2 + $0xa0] sm:$0xff]
      %v3053 = vld [vmem:[#allocation2 + $0xa8] sm:$0xff]
      %v3054 = vld [vmem:[#allocation2 + $0xb0] sm:$0xff]
      %v3055 = vld [vmem:[#allocation2 + $0xb8] sm:$0xff]
      %v3056 = vld [vmem:[#allocation2 + $0xc0] sm:$0xff]
      %v3057 = vld [vmem:[#allocation2 + $0xc8] sm:$0xff]
      %v3058 = vld [vmem:[#allocation2 + $0xd0] sm:$0xff]
      %v3059 = vld [vmem:[#allocation2 + $0xd8] sm:$0xff]
      %v3060 = vld [vmem:[#allocation2 + $0xe0] sm:$0xff]
      %v3061 = vld [vmem:[#allocation2 + $0xe8] sm:$0xff]
      %v3062 = vld [vmem:[#allocation2 + $0xf0] sm:$0xff]
      %v3063 = vld [vmem:[#allocation2 + $0xf8] sm:$0xff]
      %v3064 = vld [vmem:[#allocation2 + $0x100] sm:$0xff]
      %v3065 = vld [vmem:[#allocation2 + $0x108] sm:$0xff]
      %v3066 = vld [vmem:[#allocation2 + $0x110] sm:$0xff]
      %v3067 = vld [vmem:[#allocation2 + $0x118] sm:$0xff]
      %v3068 = vadd.f32 %v3032, %v2890
      %v3069 = vadd.f32 %v3033, %v2893
      %v3070 = vadd.f32 %v3034, %v2898
      %v3071 = vadd.f32 %v3035, %v2901
      %v3072 = vadd.f32 %v3036, %v2906
      %v3073 = vadd.f32 %v3037, %v2909
      %v3074 = vadd.f32 %v3038, %v2914
      %v3075 = vadd.f32 %v3039, %v2917
      %v3076 = vadd.f32 %v3040, %v2922
      %v3077 = vadd.f32 %v3041, %v2925
      %v3078 = vadd.f32 %v3042, %v2930
      %v3079 = vadd.f32 %v3043, %v2933
      %v3080 = vadd.f32 %v3044, %v2938
      %v3081 = vadd.f32 %v3045, %v2941
      %v3082 = vadd.f32 %v3046, %v2946
      %v3083 = vadd.f32 %v3047, %v2949
      %v3084 = vadd.f32 %v3048, %v2954
      %v3085 = vadd.f32 %v3049, %v2957
      %v3086 = vadd.f32 %v3050, %v2962
      %v3087 = vadd.f32 %v3051, %v2965
      %v3088 = vadd.f32 %v3052, %v2970
      %v3089 = vadd.f32 %v3053, %v2973
      %v3090 = vadd.f32 %v3054, %v2978
      %v3091 = vadd.f32 %v3055, %v2981
      %v3092 = vadd.f32 %v3056, %v2986
      %v3093 = vadd.f32 %v3057, %v2989
      %v3094 = vadd.f32 %v3058, %v2994
      %v3095 = vadd.f32 %v3059, %v2997
      %v3096 = vadd.f32 %v3060, %v3002
      %v3097 = vadd.f32 %v3061, %v3005
      %v3098 = vadd.f32 %v3062, %v3010
      %v3099 = vadd.f32 %v3063, %v3013
      %v3100 = vadd.f32 %v3064, %v3018
      %v3101 = vadd.f32 %v3065, %v3021
      %v3102 = vadd.f32 %v3066, %v3026
      %v3103 = vadd.f32 %v3067, %v3029
      %3104 = vst [vmem:[#allocation2] sm:$0xff] %v3068
      %3105 = vst [vmem:[#allocation2 + $0x8] sm:$0xff] %v3069
      %3106 = vst [vmem:[#allocation2 + $0x10] sm:$0xff] %v3070
      %3107 = vst [vmem:[#allocation2 + $0x18] sm:$0xff] %v3071
      %3108 = vst [vmem:[#allocation2 + $0x20] sm:$0xff] %v3072
      %3109 = vst [vmem:[#allocation2 + $0x28] sm:$0xff] %v3073
      %3110 = vst [vmem:[#allocation2 + $0x30] sm:$0xff] %v3074
      %3111 = vst [vmem:[#allocation2 + $0x38] sm:$0xff] %v3075
      %3112 = vst [vmem:[#allocation2 + $0x40] sm:$0xff] %v3076
      %3113 = vst [vmem:[#allocation2 + $0x48] sm:$0xff] %v3077
      %3114 = vst [vmem:[#allocation2 + $0x50] sm:$0xff] %v3078
      %3115 = vst [vmem:[#allocation2 + $0x58] sm:$0xff] %v3079
      %3116 = vst [vmem:[#allocation2 + $0x60] sm:$0xff] %v3080
      %3117 = vst [vmem:[#allocation2 + $0x68] sm:$0xff] %v3081
      %3118 = vst [vmem:[#allocation2 + $0x70] sm:$0xff] %v3082
      %3119 = vst [vmem:[#allocation2 + $0x78] sm:$0xff] %v3083
      %3120 = vst [vmem:[#allocation2 + $0x80] sm:$0xff] %v3084
      %3121 = vst [vmem:[#allocation2 + $0x88] sm:$0xff] %v3085
      %3122 = vst [vmem:[#allocation2 + $0x90] sm:$0xff] %v3086
      %3123 = vst [vmem:[#allocation2 + $0x98] sm:$0xff] %v3087
      %3124 = vst [vmem:[#allocation2 + $0xa0] sm:$0xff] %v3088
      %3125 = vst [vmem:[#allocation2 + $0xa8] sm:$0xff] %v3089
      %3126 = vst [vmem:[#allocation2 + $0xb0] sm:$0xff] %v3090
      %3127 = vst [vmem:[#allocation2 + $0xb8] sm:$0xff] %v3091
      %3128 = vst [vmem:[#allocation2 + $0xc0] sm:$0xff] %v3092
      %3129 = vst [vmem:[#allocation2 + $0xc8] sm:$0xff] %v3093
      %3130 = vst [vmem:[#allocation2 + $0xd0] sm:$0xff] %v3094
      %3131 = vst [vmem:[#allocation2 + $0xd8] sm:$0xff] %v3095
      %3132 = vst [vmem:[#allocation2 + $0xe0] sm:$0xff] %v3096
      %3133 = vst [vmem:[#allocation2 + $0xe8] sm:$0xff] %v3097
      %3134 = vst [vmem:[#allocation2 + $0xf0] sm:$0xff] %v3098
      %3135 = vst [vmem:[#allocation2 + $0xf8] sm:$0xff] %v3099
      %3136 = vst [vmem:[#allocation2 + $0x100] sm:$0xff] %v3100
      %3137 = vst [vmem:[#allocation2 + $0x108] sm:$0xff] %v3101
      %3138 = vst [vmem:[#allocation2 + $0x110] sm:$0xff] %v3102
      %3139 = vst [vmem:[#allocation2 + $0x118] sm:$0xff] %v3103
      %v3140 = vld [vmem:[#allocation3 + $0x10] sm:$0xc]
      %v3141 = vld [vmem:[#allocation3 + $0x14] sm:$0xf]
      %v3142 = vld [vmem:[#allocation3 + $0x18] sm:$0xf]
      %v3143 = vld [vmem:[#allocation3 + $0x1c] sm:$0xf]
      %v3144 = vld [vmem:[#allocation3 + $0x20] sm:$0xf]
      %v3145 = vld [vmem:[#allocation3 + $0x24] sm:$0xf]
      %v3146 = vld [vmem:[#allocation3 + $0x28] sm:$0xf]
      %v3147 = vld [vmem:[#allocation3 + $0x2c] sm:$0xf]
      %v3148 = vld [vmem:[#allocation3 + $0x30] sm:$0xf]
      %v3149 = vld [vmem:[#allocation3 + $0x34] sm:$0xf]
      %v3150 = vld [vmem:[#allocation3 + $0x38] sm:$0xf]
      %v3151 = vld [vmem:[#allocation3 + $0x3c] sm:$0xf]
      %v3152 = vld [vmem:[#allocation3 + $0x40] sm:$0xf]
      %v3153 = vld [vmem:[#allocation3 + $0x44] sm:$0xf]
      %v3154 = vld [vmem:[#allocation3 + $0x48] sm:$0xf]
      %v3155 = vld [vmem:[#allocation3 + $0x4c] sm:$0xf]
      %v3156 = vld [vmem:[#allocation3 + $0x50] sm:$0xf]
      %v3157 = vld [vmem:[#allocation3 + $0x54] sm:$0xf]
      %v3158 = vld [vmem:[#allocation3 + $0x58] sm:$0xf]
      %v3159 = vld [vmem:[#allocation3 + $0x5c] sm:$0xf]
      %v3160 = vld [vmem:[#allocation3 + $0x60] sm:$0xf]
      %v3161 = vld [vmem:[#allocation3 + $0x64] sm:$0xf]
      %v3162 = vld [vmem:[#allocation3 + $0x68] sm:$0xf]
      %v3163 = vld [vmem:[#allocation3 + $0x6c] sm:$0xf]
      %v3164 = vld [vmem:[#allocation3 + $0x70] sm:$0xf]
      %v3165 = vld [vmem:[#allocation3 + $0x74] sm:$0xf]
      %v3166 = vld [vmem:[#allocation3 + $0x78] sm:$0xf]
      %v3167 = vld [vmem:[#allocation3 + $0x7c] sm:$0xf]
      %v3168 = vld [vmem:[#allocation3 + $0x80] sm:$0xf]
      %v3169 = vld [vmem:[#allocation3 + $0x84] sm:$0xf]
      %v3170 = vld [vmem:[#allocation3 + $0x88] sm:$0xf]
      %v3171 = vld [vmem:[#allocation3 + $0x8c] sm:$0xf]
      %v3172 = vld [vmem:[#allocation3 + $0x90] sm:$0xf]
      %v3173 = vld [vmem:[#allocation3 + $0x94] sm:$0xf]
      %v3174 = vld [vmem:[#allocation3 + $0x98] sm:$0xf]
      %v3175 = vld [vmem:[#allocation3 + $0x9c] sm:$0xf]
      %v3176 = vld [vmem:[#allocation3 + $0xa0] sm:$0x3]
      %v3177 = vld [vmem:[#allocation3 + $0xa0] sm:$0x7]
      %v3178 = vld [vmem:[#allocation3 + $0x10] sm:$0x8]
      %v3216 = vunpack.c.l.b16 %v3140
      %v3217 = vunpack.c.l.b16 %v3141
      %v3218 = vunpack.c.l.b16 %v3142
      %v3219 = vunpack.c.l.b16 %v3143
      %v3220 = vunpack.c.l.b16 %v3144
      %v3221 = vunpack.c.l.b16 %v3145
      %v3222 = vunpack.c.l.b16 %v3146
      %v3223 = vunpack.c.l.b16 %v3147
      %v3224 = vunpack.c.l.b16 %v3148
      %v3225 = vunpack.c.l.b16 %v3149
      %v3226 = vunpack.c.l.b16 %v3150
      %v3227 = vunpack.c.l.b16 %v3151
      %v3228 = vunpack.c.l.b16 %v3152
      %v3229 = vunpack.c.l.b16 %v3153
      %v3230 = vunpack.c.l.b16 %v3154
      %v3231 = vunpack.c.l.b16 %v3155
      %v3232 = vunpack.c.l.b16 %v3156
      %v3233 = vunpack.c.l.b16 %v3157
      %v3234 = vunpack.c.l.b16 %v3158
      %v3235 = vunpack.c.l.b16 %v3159
      %v3236 = vunpack.c.l.b16 %v3160
      %v3237 = vunpack.c.l.b16 %v3161
      %v3238 = vunpack.c.l.b16 %v3162
      %v3239 = vunpack.c.l.b16 %v3163
      %v3240 = vunpack.c.l.b16 %v3164
      %v3241 = vunpack.c.l.b16 %v3165
      %v3242 = vunpack.c.l.b16 %v3166
      %v3243 = vunpack.c.l.b16 %v3167
      %v3244 = vunpack.c.l.b16 %v3168
      %v3245 = vunpack.c.l.b16 %v3169
      %v3246 = vunpack.c.l.b16 %v3170
      %v3247 = vunpack.c.l.b16 %v3171
      %v3248 = vunpack.c.l.b16 %v3172
      %v3249 = vunpack.c.l.b16 %v3173
      %v3250 = vunpack.c.l.b16 %v3174
      %v3251 = vunpack.c.l.b16 %v3175
      %v3252 = vunpack.c.l.b16 %v3176
      %v3253 = vpack.c.b16 %v3217, %v3216
      %v3254 = vpack.c.b16 %v3219, %v3218
      %v3255 = vpack.c.b16 %v3221, %v3220
      %v3256 = vpack.c.b16 %v3223, %v3222
      %v3257 = vpack.c.b16 %v3225, %v3224
      %v3258 = vpack.c.b16 %v3227, %v3226
      %v3259 = vpack.c.b16 %v3229, %v3228
      %v3260 = vpack.c.b16 %v3231, %v3230
      %v3261 = vpack.c.b16 %v3233, %v3232
      %v3262 = vpack.c.b16 %v3235, %v3234
      %v3263 = vpack.c.b16 %v3237, %v3236
      %v3264 = vpack.c.b16 %v3239, %v3238
      %v3265 = vpack.c.b16 %v3241, %v3240
      %v3266 = vpack.c.b16 %v3243, %v3242
      %v3267 = vpack.c.b16 %v3245, %v3244
      %v3268 = vpack.c.b16 %v3247, %v3246
      %v3269 = vpack.c.b16 %v3249, %v3248
      %v3270 = vpack.c.b16 %v3251, %v3250
      %v3271 = vpack.c.b16 %v3252, %v3252
      %v3273 = vunpack.c.l.b16 %v3177
      %v3274 = vpack.c.b16 %v3273, %v3273
      %v3276 = vshrl.u32 %v3253, 16
      %v3278 = vshll.u32 %v3253, 16
      %v3280 = vrot.slane %v3278, 1
      %v3281 = vor.u32 %v3276, %v3280
      %v3283 = vshll.u32 %v3254, 16
      %v3285 = vrot.slane %v3283, 1
      %v3286 = vsel %vm1219, %v3281, %v3285
      %v3287 = vshrl.u32 %v3254, 16
      %v3289 = vor.u32 %v3287, %v3285
      %v3291 = vshll.u32 %v3255, 16
      %v3293 = vrot.slane %v3291, 1
      %v3294 = vsel %vm1219, %v3289, %v3293
      %v3295 = vshrl.u32 %v3255, 16
      %v3297 = vor.u32 %v3295, %v3293
      %v3299 = vshll.u32 %v3256, 16
      %v3301 = vrot.slane %v3299, 1
      %v3302 = vsel %vm1219, %v3297, %v3301
      %v3303 = vshrl.u32 %v3256, 16
      %v3305 = vor.u32 %v3303, %v3301
      %v3307 = vshll.u32 %v3257, 16
      %v3309 = vrot.slane %v3307, 1
      %v3310 = vsel %vm1219, %v3305, %v3309
      %v3311 = vshrl.u32 %v3257, 16
      %v3313 = vor.u32 %v3311, %v3309
      %v3315 = vshll.u32 %v3258, 16
      %v3317 = vrot.slane %v3315, 1
      %v3318 = vsel %vm1219, %v3313, %v3317
      %v3319 = vshrl.u32 %v3258, 16
      %v3321 = vor.u32 %v3319, %v3317
      %v3323 = vshll.u32 %v3259, 16
      %v3325 = vrot.slane %v3323, 1
      %v3326 = vsel %vm1219, %v3321, %v3325
      %v3327 = vshrl.u32 %v3259, 16
      %v3329 = vor.u32 %v3327, %v3325
      %v3331 = vshll.u32 %v3260, 16
      %v3333 = vrot.slane %v3331, 1
      %v3334 = vsel %vm1219, %v3329, %v3333
      %v3335 = vshrl.u32 %v3260, 16
      %v3337 = vor.u32 %v3335, %v3333
      %v3339 = vshll.u32 %v3261, 16
      %v3341 = vrot.slane %v3339, 1
      %v3342 = vsel %vm1219, %v3337, %v3341
      %v3343 = vshrl.u32 %v3261, 16
      %v3345 = vor.u32 %v3343, %v3341
      %v3347 = vshll.u32 %v3262, 16
      %v3349 = vrot.slane %v3347, 1
      %v3350 = vsel %vm1219, %v3345, %v3349
      %v3351 = vshrl.u32 %v3262, 16
      %v3353 = vor.u32 %v3351, %v3349
      %v3355 = vshll.u32 %v3263, 16
      %v3357 = vrot.slane %v3355, 1
      %v3358 = vsel %vm1219, %v3353, %v3357
      %v3359 = vshrl.u32 %v3263, 16
      %v3361 = vor.u32 %v3359, %v3357
      %v3363 = vshll.u32 %v3264, 16
      %v3365 = vrot.slane %v3363, 1
      %v3366 = vsel %vm1219, %v3361, %v3365
      %v3367 = vshrl.u32 %v3264, 16
      %v3369 = vor.u32 %v3367, %v3365
      %v3371 = vshll.u32 %v3265, 16
      %v3373 = vrot.slane %v3371, 1
      %v3374 = vsel %vm1219, %v3369, %v3373
      %v3375 = vshrl.u32 %v3265, 16
      %v3377 = vor.u32 %v3375, %v3373
      %v3379 = vshll.u32 %v3266, 16
      %v3381 = vrot.slane %v3379, 1
      %v3382 = vsel %vm1219, %v3377, %v3381
      %v3383 = vshrl.u32 %v3266, 16
      %v3385 = vor.u32 %v3383, %v3381
      %v3387 = vshll.u32 %v3267, 16
      %v3389 = vrot.slane %v3387, 1
      %v3390 = vsel %vm1219, %v3385, %v3389
      %v3391 = vshrl.u32 %v3267, 16
      %v3393 = vor.u32 %v3391, %v3389
      %v3395 = vshll.u32 %v3268, 16
      %v3397 = vrot.slane %v3395, 1
      %v3398 = vsel %vm1219, %v3393, %v3397
      %v3399 = vshrl.u32 %v3268, 16
      %v3401 = vor.u32 %v3399, %v3397
      %v3403 = vshll.u32 %v3269, 16
      %v3405 = vrot.slane %v3403, 1
      %v3406 = vsel %vm1219, %v3401, %v3405
      %v3407 = vshrl.u32 %v3269, 16
      %v3409 = vor.u32 %v3407, %v3405
      %v3411 = vshll.u32 %v3270, 16
      %v3413 = vrot.slane %v3411, 1
      %v3414 = vsel %vm1219, %v3409, %v3413
      %v3415 = vshrl.u32 %v3270, 16
      %v3417 = vor.u32 %v3415, %v3413
      %v3419 = vshll.u32 %v3274, 16
      %v3421 = vrot.slane %v3419, 1
      %v3422 = vsel %vm1219, %v3417, %v3421
      %v3423 = vshrl.u32 %v3274, 16
      %v3425 = vor.u32 %v3423, %v3421
      %v3427 = vunpack.c.l.b16 %v3178
      %v3428 = vpack.c.b16 %v3217, %v3427
      %v3429 = vrot.slane %v3428, 1
      %v3430 = vrot.slane %v3254, 1
      %v3431 = vsel %vm1389, %v3429, %v3430
      %v3432 = vrot.slane %v3255, 1
      %v3433 = vsel %vm1389, %v3430, %v3432
      %v3434 = vrot.slane %v3256, 1
      %v3435 = vsel %vm1389, %v3432, %v3434
      %v3436 = vrot.slane %v3257, 1
      %v3437 = vsel %vm1389, %v3434, %v3436
      %v3438 = vrot.slane %v3258, 1
      %v3439 = vsel %vm1389, %v3436, %v3438
      %v3440 = vrot.slane %v3259, 1
      %v3441 = vsel %vm1389, %v3438, %v3440
      %v3442 = vrot.slane %v3260, 1
      %v3443 = vsel %vm1389, %v3440, %v3442
      %v3444 = vrot.slane %v3261, 1
      %v3445 = vsel %vm1389, %v3442, %v3444
      %v3446 = vrot.slane %v3262, 1
      %v3447 = vsel %vm1389, %v3444, %v3446
      %v3448 = vrot.slane %v3263, 1
      %v3449 = vsel %vm1389, %v3446, %v3448
      %v3450 = vrot.slane %v3264, 1
      %v3451 = vsel %vm1389, %v3448, %v3450
      %v3452 = vrot.slane %v3265, 1
      %v3453 = vsel %vm1389, %v3450, %v3452
      %v3454 = vrot.slane %v3266, 1
      %v3455 = vsel %vm1389, %v3452, %v3454
      %v3456 = vrot.slane %v3267, 1
      %v3457 = vsel %vm1389, %v3454, %v3456
      %v3458 = vrot.slane %v3268, 1
      %v3459 = vsel %vm1389, %v3456, %v3458
      %v3460 = vrot.slane %v3269, 1
      %v3461 = vsel %vm1389, %v3458, %v3460
      %v3462 = vrot.slane %v3270, 1
      %v3463 = vsel %vm1389, %v3460, %v3462
      %v3464 = vrot.slane %v3274, 1
      %v3465 = vsel %vm1389, %v3462, %v3464
      %s3466 = scalar_lea.vmem %s1, 384
      %v3467 = vld [vmem:[%s3466] sm:$0xf]
      %v3468 = vld [vmem:[%s3466 + $0x4] sm:$0xf]
      %v3469 = vld [vmem:[%s3466 + $0x8] sm:$0xf]
      %v3470 = vld [vmem:[%s3466 + $0xc] sm:$0xf]
      %v3471 = vld [vmem:[%s3466 + $0x10] sm:$0xf]
      %v3472 = vld [vmem:[%s3466 + $0x14] sm:$0xf]
      %v3473 = vld [vmem:[%s3466 + $0x18] sm:$0xf]
      %v3474 = vld [vmem:[%s3466 + $0x1c] sm:$0xf]
      %v3475 = vld [vmem:[%s3466 + $0x20] sm:$0xf]
      %v3476 = vld [vmem:[%s3466 + $0x24] sm:$0xf]
      %v3477 = vld [vmem:[%s3466 + $0x28] sm:$0xf]
      %v3478 = vld [vmem:[%s3466 + $0x2c] sm:$0xf]
      %v3479 = vld [vmem:[%s3466 + $0x30] sm:$0xf]
      %v3480 = vld [vmem:[%s3466 + $0x34] sm:$0xf]
      %v3481 = vld [vmem:[%s3466 + $0x38] sm:$0xf]
      %v3482 = vld [vmem:[%s3466 + $0x3c] sm:$0xf]
      %v3483 = vld [vmem:[%s3466 + $0x40] sm:$0xf]
      %v3484 = vld [vmem:[%s3466 + $0x44] sm:$0xf]
      %v3485 = vld [vmem:[%s3466 + $0x48] sm:$0xf]
      %v3486 = vld [vmem:[%s3466 + $0x4c] sm:$0xf]
      %v3487 = vld [vmem:[%s3466 + $0x50] sm:$0xf]
      %v3488 = vld [vmem:[%s3466 + $0x54] sm:$0xf]
      %v3489 = vld [vmem:[%s3466 + $0x58] sm:$0xf]
      %v3490 = vld [vmem:[%s3466 + $0x5c] sm:$0xf]
      %v3491 = vld [vmem:[%s3466 + $0x60] sm:$0xf]
      %v3492 = vld [vmem:[%s3466 + $0x64] sm:$0xf]
      %v3493 = vld [vmem:[%s3466 + $0x68] sm:$0xf]
      %v3494 = vld [vmem:[%s3466 + $0x6c] sm:$0xf]
      %v3495 = vld [vmem:[%s3466 + $0x70] sm:$0xf]
      %v3496 = vld [vmem:[%s3466 + $0x74] sm:$0xf]
      %v3497 = vld [vmem:[%s3466 + $0x78] sm:$0xf]
      %v3498 = vld [vmem:[%s3466 + $0x7c] sm:$0xf]
      %v3499 = vld [vmem:[%s3466 + $0x80] sm:$0xf]
      %v3500 = vld [vmem:[%s3466 + $0x84] sm:$0xf]
      %v3501 = vld [vmem:[%s3466 + $0x88] sm:$0xf]
      %v3502 = vld [vmem:[%s3466 + $0x8c] sm:$0xf]
      %v3503 = vld [vmem:[%s3466 + $0x90] sm:$0xf]
      %v3504 = vld [vmem:[%s3466 + $0x94] sm:$0xf]
      %v3505 = vld [vmem:[%s3466 + $0x98] sm:$0xf]
      %v3506 = vld [vmem:[%s3466 + $0x9c] sm:$0xf]
      %v3507 = vld [vmem:[%s3466 + $0xa0] sm:$0xf]
      %v3508 = vld [vmem:[%s3466 + $0xa4] sm:$0xf]
      %v3509 = vld [vmem:[%s3466 + $0xa8] sm:$0xf]
      %v3510 = vld [vmem:[%s3466 + $0xac] sm:$0xf]
      %v3511 = vld [vmem:[%s3466 + $0xb0] sm:$0xf]
      %v3512 = vld [vmem:[%s3466 + $0xb4] sm:$0xf]
      %v3513 = vld [vmem:[%s3466 + $0xb8] sm:$0xf]
      %v3514 = vld [vmem:[%s3466 + $0xbc] sm:$0xf]
      %vm3515 = vcmask 1045504
      %v3516 = vrot.slane %v3253, 2
      %v3517 = vrot.slane %v3254, 2
      %v3518 = vsel %vm3515, %v3516, %v3517
      %v3519 = vrot.slane %v3286, 2
      %v3520 = vrot.slane %v3294, 2
      %v3521 = vsel %vm3515, %v3519, %v3520
      %v3522 = vrot.slane %v3431, 2
      %v3523 = vrot.slane %v3433, 2
      %v3524 = vsel %vm3515, %v3522, %v3523
      %v3525 = vrot.slane %v3255, 2
      %v3526 = vsel %vm3515, %v3517, %v3525
      %v3527 = vrot.slane %v3302, 2
      %v3528 = vsel %vm3515, %v3520, %v3527
      %v3529 = vrot.slane %v3435, 2
      %v3530 = vsel %vm3515, %v3523, %v3529
      %v3531 = vrot.slane %v3256, 2
      %v3532 = vsel %vm3515, %v3525, %v3531
      %v3533 = vrot.slane %v3310, 2
      %v3534 = vsel %vm3515, %v3527, %v3533
      %v3535 = vrot.slane %v3437, 2
      %v3536 = vsel %vm3515, %v3529, %v3535
      %v3537 = vrot.slane %v3257, 2
      %v3538 = vsel %vm3515, %v3531, %v3537
      %v3539 = vrot.slane %v3318, 2
      %v3540 = vsel %vm3515, %v3533, %v3539
      %v3541 = vrot.slane %v3439, 2
      %v3542 = vsel %vm3515, %v3535, %v3541
      %v3543 = vrot.slane %v3258, 2
      %v3544 = vsel %vm3515, %v3537, %v3543
      %v3545 = vrot.slane %v3326, 2
      %v3546 = vsel %vm3515, %v3539, %v3545
      %v3547 = vrot.slane %v3441, 2
      %v3548 = vsel %vm3515, %v3541, %v3547
      %v3549 = vrot.slane %v3259, 2
      %v3550 = vsel %vm3515, %v3543, %v3549
      %v3551 = vrot.slane %v3334, 2
      %v3552 = vsel %vm3515, %v3545, %v3551
      %v3553 = vrot.slane %v3443, 2
      %v3554 = vsel %vm3515, %v3547, %v3553
      %v3555 = vrot.slane %v3260, 2
      %v3556 = vsel %vm3515, %v3549, %v3555
      %v3557 = vrot.slane %v3342, 2
      %v3558 = vsel %vm3515, %v3551, %v3557
      %v3559 = vrot.slane %v3445, 2
      %v3560 = vsel %vm3515, %v3553, %v3559
      %v3561 = vrot.slane %v3261, 2
      %v3562 = vsel %vm3515, %v3555, %v3561
      %v3563 = vrot.slane %v3350, 2
      %v3564 = vsel %vm3515, %v3557, %v3563
      %v3565 = vrot.slane %v3447, 2
      %v3566 = vsel %vm3515, %v3559, %v3565
      %v3567 = vrot.slane %v3262, 2
      %v3568 = vsel %vm3515, %v3561, %v3567
      %v3569 = vrot.slane %v3358, 2
      %v3570 = vsel %vm3515, %v3563, %v3569
      %v3571 = vrot.slane %v3449, 2
      %v3572 = vsel %vm3515, %v3565, %v3571
      %v3573 = vrot.slane %v3263, 2
      %v3574 = vsel %vm3515, %v3567, %v3573
      %v3575 = vrot.slane %v3366, 2
      %v3576 = vsel %vm3515, %v3569, %v3575
      %v3577 = vrot.slane %v3451, 2
      %v3578 = vsel %vm3515, %v3571, %v3577
      %v3579 = vrot.slane %v3264, 2
      %v3580 = vsel %vm3515, %v3573, %v3579
      %v3581 = vrot.slane %v3374, 2
      %v3582 = vsel %vm3515, %v3575, %v3581
      %v3583 = vrot.slane %v3453, 2
      %v3584 = vsel %vm3515, %v3577, %v3583
      %v3585 = vrot.slane %v3265, 2
      %v3586 = vsel %vm3515, %v3579, %v3585
      %v3587 = vrot.slane %v3382, 2
      %v3588 = vsel %vm3515, %v3581, %v3587
      %v3589 = vrot.slane %v3455, 2
      %v3590 = vsel %vm3515, %v3583, %v3589
      %v3591 = vrot.slane %v3266, 2
      %v3592 = vsel %vm3515, %v3585, %v3591
      %v3593 = vrot.slane %v3390, 2
      %v3594 = vsel %vm3515, %v3587, %v3593
      %v3595 = vrot.slane %v3457, 2
      %v3596 = vsel %vm3515, %v3589, %v3595
      %v3597 = vrot.slane %v3267, 2
      %v3598 = vsel %vm3515, %v3591, %v3597
      %v3599 = vrot.slane %v3398, 2
      %v3600 = vsel %vm3515, %v3593, %v3599
      %v3601 = vrot.slane %v3459, 2
      %v3602 = vsel %vm3515, %v3595, %v3601
      %v3603 = vrot.slane %v3268, 2
      %v3604 = vsel %vm3515, %v3597, %v3603
      %v3605 = vrot.slane %v3406, 2
      %v3606 = vsel %vm3515, %v3599, %v3605
      %v3607 = vrot.slane %v3461, 2
      %v3608 = vsel %vm3515, %v3601, %v3607
      %v3609 = vrot.slane %v3269, 2
      %v3610 = vsel %vm3515, %v3603, %v3609
      %v3611 = vrot.slane %v3414, 2
      %v3612 = vsel %vm3515, %v3605, %v3611
      %v3613 = vrot.slane %v3463, 2
      %v3614 = vsel %vm3515, %v3607, %v3613
      %v3615 = vrot.slane %v3270, 2
      %v3616 = vsel %vm3515, %v3609, %v3615
      %v3617 = vrot.slane %v3422, 2
      %v3618 = vsel %vm3515, %v3611, %v3617
      %v3619 = vrot.slane %v3465, 2
      %v3620 = vsel %vm3515, %v3613, %v3619
      %v3621 = vrot.slane %v3271, 2
      %v3622 = vsel %vm3515, %v3615, %v3621
      %v3623 = vrot.slane %v3425, 2
      %v3624 = vsel %vm3515, %v3617, %v3623
      %v3625 = vrot.slane %v3464, 2
      %v3626 = vsel %vm3515, %v3619, %v3625
      %v3729 = vunpack.c.l.b16 %v3467
      %v3730 = vunpack.c.l.b16 %v3468
      %v3731 = vunpack.c.l.b16 %v3469
      %v3732 = vunpack.c.l.b16 %v3470
      %v3733 = vunpack.c.l.b16 %v3471
      %v3734 = vunpack.c.l.b16 %v3472
      %v3735 = vunpack.c.l.b16 %v3473
      %v3736 = vunpack.c.l.b16 %v3474
      %v3737 = vunpack.c.l.b16 %v3475
      %v3738 = vunpack.c.l.b16 %v3476
      %v3739 = vunpack.c.l.b16 %v3477
      %v3740 = vunpack.c.l.b16 %v3478
      %v3741 = vunpack.c.l.b16 %v3479
      %v3742 = vunpack.c.l.b16 %v3480
      %v3743 = vunpack.c.l.b16 %v3481
      %v3744 = vunpack.c.l.b16 %v3482
      %v3745 = vunpack.c.l.b16 %v3483
      %v3746 = vunpack.c.l.b16 %v3484
      %v3747 = vunpack.c.l.b16 %v3485
      %v3748 = vunpack.c.l.b16 %v3486
      %v3749 = vunpack.c.l.b16 %v3487
      %v3750 = vunpack.c.l.b16 %v3488
      %v3751 = vunpack.c.l.b16 %v3489
      %v3752 = vunpack.c.l.b16 %v3490
      %v3753 = vunpack.c.l.b16 %v3491
      %v3754 = vunpack.c.l.b16 %v3492
      %v3755 = vunpack.c.l.b16 %v3493
      %v3756 = vunpack.c.l.b16 %v3494
      %v3757 = vunpack.c.l.b16 %v3495
      %v3758 = vunpack.c.l.b16 %v3496
      %v3759 = vunpack.c.l.b16 %v3497
      %v3760 = vunpack.c.l.b16 %v3498
      %v3761 = vunpack.c.l.b16 %v3499
      %v3762 = vunpack.c.l.b16 %v3500
      %v3763 = vunpack.c.l.b16 %v3501
      %v3764 = vunpack.c.l.b16 %v3502
      %v3765 = vunpack.c.l.b16 %v3503
      %v3766 = vunpack.c.l.b16 %v3504
      %v3767 = vunpack.c.l.b16 %v3505
      %v3768 = vunpack.c.l.b16 %v3506
      %v3769 = vunpack.c.l.b16 %v3507
      %v3770 = vunpack.c.l.b16 %v3508
      %v3771 = vunpack.c.l.b16 %v3509
      %v3772 = vunpack.c.l.b16 %v3510
      %v3773 = vunpack.c.l.b16 %v3511
      %v3774 = vunpack.c.l.b16 %v3512
      %v3775 = vunpack.c.l.b16 %v3513
      %v3776 = vunpack.c.l.b16 %v3514
      %v3777 = vpack.c.b16 %v3730, %v3729
      %v3778 = vpack.c.b16 %v3732, %v3731
      %v3779 = vpack.c.b16 %v3734, %v3733
      %v3780 = vpack.c.b16 %v3736, %v3735
      %v3781 = vpack.c.b16 %v3738, %v3737
      %v3782 = vpack.c.b16 %v3740, %v3739
      %v3783 = vpack.c.b16 %v3742, %v3741
      %v3784 = vpack.c.b16 %v3744, %v3743
      %v3785 = vpack.c.b16 %v3746, %v3745
      %v3786 = vpack.c.b16 %v3748, %v3747
      %v3787 = vpack.c.b16 %v3750, %v3749
      %v3788 = vpack.c.b16 %v3752, %v3751
      %v3789 = vpack.c.b16 %v3754, %v3753
      %v3790 = vpack.c.b16 %v3756, %v3755
      %v3791 = vpack.c.b16 %v3758, %v3757
      %v3792 = vpack.c.b16 %v3760, %v3759
      %v3793 = vpack.c.b16 %v3762, %v3761
      %v3794 = vpack.c.b16 %v3764, %v3763
      %v3795 = vpack.c.b16 %v3766, %v3765
      %v3796 = vpack.c.b16 %v3768, %v3767
      %v3797 = vpack.c.b16 %v3770, %v3769
      %v3798 = vpack.c.b16 %v3772, %v3771
      %v3799 = vpack.c.b16 %v3774, %v3773
      %v3800 = vpack.c.b16 %v3776, %v3775
      %3825 = vmatprep.subr.bf16.mxu0 0
      %3826 = vmatpush1.bf16.msra.mxu0 %v3777
      %3827 = vmatprep.subr.bf16.mxu0 0
      %3828 = vmatpush1.bf16.msra.mxu0 %v3778
      %3829 = vmatprep.subr.bf16.mxu0 0
      %3830 = vmatpush1.bf16.msra.mxu0 %v3779
      %3831 = vmatprep.subr.bf16.mxu0 0
      %3832 = vmatpush1.bf16.msra.mxu0 %v3780
      %3833 = vmatprep.subr.bf16.mxu0 0
      %3834 = vmatpush1.bf16.msra.mxu0 %v3781
      %3835 = vmatprep.subr.bf16.mxu0 0
      %3836 = vmatpush1.bf16.msra.mxu0 %v3782
      %3837 = vmatprep.subr.bf16.mxu0 0
      %3838 = vmatpush1.bf16.msra.mxu0 %v3783
      %3839 = vmatprep.subr.bf16.mxu0 0
      %3840 = vmatpush1.bf16.msra.mxu0 %v3784
      %3841 = vmatprep.subr.bf16.mxu0 0
      %3842 = vmatpush1.bf16.msra.mxu0 %v3785
      %3843 = vmatprep.subr.bf16.mxu0 0
      %3844 = vmatpush1.bf16.msra.mxu0 %v3786
      %3845 = vmatprep.subr.bf16.mxu0 0
      %3846 = vmatpush1.bf16.msra.mxu0 %v3787
      %3847 = vmatprep.subr.bf16.mxu0 0
      %3848 = vmatpush1.bf16.msra.mxu0 %v3788
      %3849 = vmatprep.subr.bf16.mxu0 0
      %3850 = vmatpush1.bf16.msra.mxu0 %v3789
      %3851 = vmatprep.subr.bf16.mxu0 0
      %3852 = vmatpush1.bf16.msra.mxu0 %v3790
      %3853 = vmatprep.subr.bf16.mxu0 0
      %3854 = vmatpush1.bf16.msra.mxu0 %v3791
      %3855 = vmatprep.subr.bf16.mxu0 0
      %3856 = vmatpush1.bf16.msra.mxu0 %v3792
      %3857 = vmatprep.mubr.bf16.mxu0 %v3521
      %3858 = vmatmul.mubr.bf16.gmra.mrb[0].mxu0 %v3518
      %v3859 = vpop.f32.mrb[0].mxu0
      %v3860 = vadd.f32 0.0, %v3859
      %v3861 = vpop.f32.mrb[0].mxu0
      %v3862 = vpop.f32.mrb[0].mxu0
      %v3863 = vadd.f32 0.0, %v3862
      %v3864 = vpop.f32.mrb[0].mxu0
      %3865 = vmatprep.mubr.bf16.mxu0 %v3528
      %3866 = vmatmul.mubr.bf16.gmra.mrb[0].mxu0 %v3526
      %v3867 = vpop.f32.mrb[0].mxu0
      %v3868 = vadd.f32 0.0, %v3867
      %v3869 = vpop.f32.mrb[0].mxu0
      %v3870 = vpop.f32.mrb[0].mxu0
      %v3871 = vadd.f32 0.0, %v3870
      %v3872 = vpop.f32.mrb[0].mxu0
      %3873 = vmatprep.mubr.bf16.mxu0 %v3534
      %3874 = vmatmul.mubr.bf16.gmra.mrb[0].mxu0 %v3532
      %v3875 = vpop.f32.mrb[0].mxu0
      %v3876 = vadd.f32 0.0, %v3875
      %v3877 = vpop.f32.mrb[0].mxu0
      %v3878 = vpop.f32.mrb[0].mxu0
      %v3879 = vadd.f32 0.0, %v3878
      %v3880 = vpop.f32.mrb[0].mxu0
      %3881 = vmatprep.mubr.bf16.mxu0 %v3540
      %3882 = vmatmul.mubr.bf16.gmra.mrb[0].mxu0 %v3538
      %v3883 = vpop.f32.mrb[0].mxu0
      %v3884 = vadd.f32 0.0, %v3883
      %v3885 = vpop.f32.mrb[0].mxu0
      %v3886 = vpop.f32.mrb[0].mxu0
      %v3887 = vadd.f32 0.0, %v3886
      %v3888 = vpop.f32.mrb[0].mxu0
      %3889 = vmatprep.mubr.bf16.mxu0 %v3546
      %3890 = vmatmul.mubr.bf16.gmra.mrb[0].mxu0 %v3544
      %v3891 = vpop.f32.mrb[0].mxu0
      %v3892 = vadd.f32 0.0, %v3891
      %v3893 = vpop.f32.mrb[0].mxu0
      %v3894 = vpop.f32.mrb[0].mxu0
      %v3895 = vadd.f32 0.0, %v3894
      %v3896 = vpop.f32.mrb[0].mxu0
      %3897 = vmatprep.mubr.bf16.mxu0 %v3552
      %3898 = vmatmul.mubr.bf16.gmra.mrb[0].mxu0 %v3550
      %v3899 = vpop.f32.mrb[0].mxu0
      %v3900 = vadd.f32 0.0, %v3899
      %v3901 = vpop.f32.mrb[0].mxu0
      %v3902 = vpop.f32.mrb[0].mxu0
      %v3903 = vadd.f32 0.0, %v3902
      %v3904 = vpop.f32.mrb[0].mxu0
      %3905 = vmatprep.mubr.bf16.mxu0 %v3558
      %3906 = vmatmul.mubr.bf16.gmra.mrb[0].mxu0 %v3556
      %v3907 = vpop.f32.mrb[0].mxu0
      %v3908 = vadd.f32 0.0, %v3907
      %v3909 = vpop.f32.mrb[0].mxu0
      %v3910 = vpop.f32.mrb[0].mxu0
      %v3911 = vadd.f32 0.0, %v3910
      %v3912 = vpop.f32.mrb[0].mxu0
      %3913 = vmatprep.mubr.bf16.mxu0 %v3564
      %3914 = vmatmul.mubr.bf16.gmra.mrb[0].mxu0 %v3562
      %v3915 = vpop.f32.mrb[0].mxu0
      %v3916 = vadd.f32 0.0, %v3915
      %v3917 = vpop.f32.mrb[0].mxu0
      %v3918 = vpop.f32.mrb[0].mxu0
      %v3919 = vadd.f32 0.0, %v3918
      %v3920 = vpop.f32.mrb[0].mxu0
      %3921 = vmatprep.mubr.bf16.mxu0 %v3570
      %3922 = vmatmul.mubr.bf16.gmra.mrb[0].mxu0 %v3568
      %v3923 = vpop.f32.mrb[0].mxu0
      %v3924 = vadd.f32 0.0, %v3923
      %v3925 = vpop.f32.mrb[0].mxu0
      %v3926 = vpop.f32.mrb[0].mxu0
      %v3927 = vadd.f32 0.0, %v3926
      %v3928 = vpop.f32.mrb[0].mxu0
      %3929 = vmatprep.mubr.bf16.mxu0 %v3576
      %3930 = vmatmul.mubr.bf16.gmra.mrb[0].mxu0 %v3574
      %v3931 = vpop.f32.mrb[0].mxu0
      %v3932 = vadd.f32 0.0, %v3931
      %v3933 = vpop.f32.mrb[0].mxu0
      %v3934 = vpop.f32.mrb[0].mxu0
      %v3935 = vadd.f32 0.0, %v3934
      %v3936 = vpop.f32.mrb[0].mxu0
      %3937 = vmatprep.mubr.bf16.mxu0 %v3582
      %3938 = vmatmul.mubr.bf16.gmra.mrb[0].mxu0 %v3580
      %v3939 = vpop.f32.mrb[0].mxu0
      %v3940 = vadd.f32 0.0, %v3939
      %v3941 = vpop.f32.mrb[0].mxu0
      %v3942 = vpop.f32.mrb[0].mxu0
      %v3943 = vadd.f32 0.0, %v3942
      %v3944 = vpop.f32.mrb[0].mxu0
      %3945 = vmatprep.mubr.bf16.mxu0 %v3588
      %3946 = vmatmul.mubr.bf16.gmra.mrb[0].mxu0 %v3586
      %v3947 = vpop.f32.mrb[0].mxu0
      %v3948 = vadd.f32 0.0, %v3947
      %v3949 = vpop.f32.mrb[0].mxu0
      %v3950 = vpop.f32.mrb[0].mxu0
      %v3951 = vadd.f32 0.0, %v3950
      %v3952 = vpop.f32.mrb[0].mxu0
      %3953 = vmatprep.mubr.bf16.mxu0 %v3594
      %3954 = vmatmul.mubr.bf16.gmra.mrb[0].mxu0 %v3592
      %v3955 = vpop.f32.mrb[0].mxu0
      %v3956 = vadd.f32 0.0, %v3955
      %v3957 = vpop.f32.mrb[0].mxu0
      %v3958 = vpop.f32.mrb[0].mxu0
      %v3959 = vadd.f32 0.0, %v3958
      %v3960 = vpop.f32.mrb[0].mxu0
      %3961 = vmatprep.mubr.bf16.mxu0 %v3600
      %3962 = vmatmul.mubr.bf16.gmra.mrb[0].mxu0 %v3598
      %v3963 = vpop.f32.mrb[0].mxu0
      %v3964 = vadd.f32 0.0, %v3963
      %v3965 = vpop.f32.mrb[0].mxu0
      %v3966 = vpop.f32.mrb[0].mxu0
      %v3967 = vadd.f32 0.0, %v3966
      %v3968 = vpop.f32.mrb[0].mxu0
      %3969 = vmatprep.mubr.bf16.mxu0 %v3606
      %3970 = vmatmul.mubr.bf16.gmra.mrb[0].mxu0 %v3604
      %v3971 = vpop.f32.mrb[0].mxu0
      %v3972 = vadd.f32 0.0, %v3971
      %v3973 = vpop.f32.mrb[0].mxu0
      %v3974 = vpop.f32.mrb[0].mxu0
      %v3975 = vadd.f32 0.0, %v3974
      %v3976 = vpop.f32.mrb[0].mxu0
      %3977 = vmatprep.mubr.bf16.mxu0 %v3612
      %3978 = vmatmul.mubr.bf16.gmra.mrb[0].mxu0 %v3610
      %v3979 = vpop.f32.mrb[0].mxu0
      %v3980 = vadd.f32 0.0, %v3979
      %v3981 = vpop.f32.mrb[0].mxu0
      %v3982 = vpop.f32.mrb[0].mxu0
      %v3983 = vadd.f32 0.0, %v3982
      %v3984 = vpop.f32.mrb[0].mxu0
      %3985 = vmatprep.mubr.bf16.mxu0 %v3618
      %3986 = vmatmul.mubr.bf16.gmra.mrb[0].mxu0 %v3616
      %v3987 = vpop.f32.mrb[0].mxu0
      %v3988 = vadd.f32 0.0, %v3987
      %v3989 = vpop.f32.mrb[0].mxu0
      %v3990 = vpop.f32.mrb[0].mxu0
      %v3991 = vadd.f32 0.0, %v3990
      %v3992 = vpop.f32.mrb[0].mxu0
      %3993 = vmatprep.mubr.bf16.mxu0 %v3624
      %3994 = vmatmul.mubr.bf16.gmra.mrb[0].mxu0 %v3622
      %v3995 = vpop.f32.mrb[0].mxu0
      %v3996 = vadd.f32 0.0, %v3995
      %v3997 = vpop.f32.mrb[0].mxu0
      %v3998 = vpop.f32.mrb[0].mxu0
      %v3999 = vadd.f32 0.0, %v3998
      %v4000 = vpop.f32.mrb[0].mxu0
      %4001 = vdwg.mxu0
      %4002 = vmatprep.subr.bf16.mxu0 0
      %4003 = vmatpush1.bf16.msra.mxu0 %v3793
      %4004 = vmatprep.subr.bf16.mxu0 0
      %4005 = vmatpush1.bf16.msra.mxu0 %v3794
      %4006 = vmatprep.subr.bf16.mxu0 0
      %4007 = vmatpush1.bf16.msra.mxu0 %v3795
      %4008 = vmatprep.subr.bf16.mxu0 0
      %4009 = vmatpush1.bf16.msra.mxu0 %v3796
      %4010 = vmatprep.subr.bf16.mxu0 0
      %4011 = vmatpush1.bf16.msra.mxu0 %v3797
      %4012 = vmatprep.subr.bf16.mxu0 0
      %4013 = vmatpush1.bf16.msra.mxu0 %v3798
      %4014 = vmatprep.subr.bf16.mxu0 0
      %4015 = vmatpush1.bf16.msra.mxu0 %v3799
      %4016 = vmatprep.subr.bf16.mxu0 0
      %4017 = vmatpush1.bf16.msra.mxu0 %v3800
      %4018 = vmatprep.subr.bf16.mxu0 0
      %4019 = vmatpush1.bf16.msra.mxu0 0
      %4020 = vmatprep.subr.bf16.mxu0 0
      %4021 = vmatpush1.bf16.msra.mxu0 0
      %4022 = vmatprep.subr.bf16.mxu0 0
      %4023 = vmatpush1.bf16.msra.mxu0 0
      %4024 = vmatprep.subr.bf16.mxu0 0
      %4025 = vmatpush1.bf16.msra.mxu0 0
      %4026 = vmatprep.subr.bf16.mxu0 0
      %4027 = vmatpush1.bf16.msra.mxu0 0
      %4028 = vmatprep.subr.bf16.mxu0 0
      %4029 = vmatpush1.bf16.msra.mxu0 0
      %4030 = vmatprep.subr.bf16.mxu0 0
      %4031 = vmatpush1.bf16.msra.mxu0 0
      %4032 = vmatprep.subr.bf16.mxu0 0
      %4033 = vmatpush1.bf16.msra.mxu0 0
      %4034 = vmatprep.mubr.bf16.mxu0 0
      %4035 = vmatmul.mubr.bf16.gmra.mrb[0].mxu0 %v3524
      %v4036 = vpop.f32.mrb[0].mxu0
      %v4037 = vadd.f32 %v3860, %v4036
      %v4038 = vpop.f32.mrb[0].mxu0
      %v4039 = vpop.f32.mrb[0].mxu0
      %v4040 = vadd.f32 %v3863, %v4039
      %v4041 = vpop.f32.mrb[0].mxu0
      %4042 = vmatprep.mubr.bf16.mxu0 0
      %4043 = vmatmul.mubr.bf16.gmra.mrb[0].mxu0 %v3530
      %v4044 = vpop.f32.mrb[0].mxu0
      %v4045 = vadd.f32 %v3868, %v4044
      %v4046 = vpop.f32.mrb[0].mxu0
      %v4047 = vpop.f32.mrb[0].mxu0
      %v4048 = vadd.f32 %v3871, %v4047
      %v4049 = vpop.f32.mrb[0].mxu0
      %4050 = vmatprep.mubr.bf16.mxu0 0
      %4051 = vmatmul.mubr.bf16.gmra.mrb[0].mxu0 %v3536
      %v4052 = vpop.f32.mrb[0].mxu0
      %v4053 = vadd.f32 %v3876, %v4052
      %v4054 = vpop.f32.mrb[0].mxu0
      %v4055 = vpop.f32.mrb[0].mxu0
      %v4056 = vadd.f32 %v3879, %v4055
      %v4057 = vpop.f32.mrb[0].mxu0
      %4058 = vmatprep.mubr.bf16.mxu0 0
      %4059 = vmatmul.mubr.bf16.gmra.mrb[0].mxu0 %v3542
      %v4060 = vpop.f32.mrb[0].mxu0
      %v4061 = vadd.f32 %v3884, %v4060
      %v4062 = vpop.f32.mrb[0].mxu0
      %v4063 = vpop.f32.mrb[0].mxu0
      %v4064 = vadd.f32 %v3887, %v4063
      %v4065 = vpop.f32.mrb[0].mxu0
      %4066 = vmatprep.mubr.bf16.mxu0 0
      %4067 = vmatmul.mubr.bf16.gmra.mrb[0].mxu0 %v3548
      %v4068 = vpop.f32.mrb[0].mxu0
      %v4069 = vadd.f32 %v3892, %v4068
      %v4070 = vpop.f32.mrb[0].mxu0
      %v4071 = vpop.f32.mrb[0].mxu0
      %v4072 = vadd.f32 %v3895, %v4071
      %v4073 = vpop.f32.mrb[0].mxu0
      %4074 = vmatprep.mubr.bf16.mxu0 0
      %4075 = vmatmul.mubr.bf16.gmra.mrb[0].mxu0 %v3554
      %v4076 = vpop.f32.mrb[0].mxu0
      %v4077 = vadd.f32 %v3900, %v4076
      %v4078 = vpop.f32.mrb[0].mxu0
      %v4079 = vpop.f32.mrb[0].mxu0
      %v4080 = vadd.f32 %v3903, %v4079
      %v4081 = vpop.f32.mrb[0].mxu0
      %4082 = vmatprep.mubr.bf16.mxu0 0
      %4083 = vmatmul.mubr.bf16.gmra.mrb[0].mxu0 %v3560
      %v4084 = vpop.f32.mrb[0].mxu0
      %v4085 = vadd.f32 %v3908, %v4084
      %v4086 = vpop.f32.mrb[0].mxu0
      %v4087 = vpop.f32.mrb[0].mxu0
      %v4088 = vadd.f32 %v3911, %v4087
      %v4089 = vpop.f32.mrb[0].mxu0
      %4090 = vmatprep.mubr.bf16.mxu0 0
      %4091 = vmatmul.mubr.bf16.gmra.mrb[0].mxu0 %v3566
      %v4092 = vpop.f32.mrb[0].mxu0
      %v4093 = vadd.f32 %v3916, %v4092
      %v4094 = vpop.f32.mrb[0].mxu0
      %v4095 = vpop.f32.mrb[0].mxu0
      %v4096 = vadd.f32 %v3919, %v4095
      %v4097 = vpop.f32.mrb[0].mxu0
      %4098 = vmatprep.mubr.bf16.mxu0 0
      %4099 = vmatmul.mubr.bf16.gmra.mrb[0].mxu0 %v3572
      %v4100 = vpop.f32.mrb[0].mxu0
      %v4101 = vadd.f32 %v3924, %v4100
      %v4102 = vpop.f32.mrb[0].mxu0
      %v4103 = vpop.f32.mrb[0].mxu0
      %v4104 = vadd.f32 %v3927, %v4103
      %v4105 = vpop.f32.mrb[0].mxu0
      %4106 = vmatprep.mubr.bf16.mxu0 0
      %4107 = vmatmul.mubr.bf16.gmra.mrb[0].mxu0 %v3578
      %v4108 = vpop.f32.mrb[0].mxu0
      %v4109 = vadd.f32 %v3932, %v4108
      %v4110 = vpop.f32.mrb[0].mxu0
      %v4111 = vpop.f32.mrb[0].mxu0
      %v4112 = vadd.f32 %v3935, %v4111
      %v4113 = vpop.f32.mrb[0].mxu0
      %4114 = vmatprep.mubr.bf16.mxu0 0
      %4115 = vmatmul.mubr.bf16.gmra.mrb[0].mxu0 %v3584
      %v4116 = vpop.f32.mrb[0].mxu0
      %v4117 = vadd.f32 %v3940, %v4116
      %v4118 = vpop.f32.mrb[0].mxu0
      %v4119 = vpop.f32.mrb[0].mxu0
      %v4120 = vadd.f32 %v3943, %v4119
      %v4121 = vpop.f32.mrb[0].mxu0
      %4122 = vmatprep.mubr.bf16.mxu0 0
      %4123 = vmatmul.mubr.bf16.gmra.mrb[0].mxu0 %v3590
      %v4124 = vpop.f32.mrb[0].mxu0
      %v4125 = vadd.f32 %v3948, %v4124
      %v4126 = vpop.f32.mrb[0].mxu0
      %v4127 = vpop.f32.mrb[0].mxu0
      %v4128 = vadd.f32 %v3951, %v4127
      %v4129 = vpop.f32.mrb[0].mxu0
      %4130 = vmatprep.mubr.bf16.mxu0 0
      %4131 = vmatmul.mubr.bf16.gmra.mrb[0].mxu0 %v3596
      %v4132 = vpop.f32.mrb[0].mxu0
      %v4133 = vadd.f32 %v3956, %v4132
      %v4134 = vpop.f32.mrb[0].mxu0
      %v4135 = vpop.f32.mrb[0].mxu0
      %v4136 = vadd.f32 %v3959, %v4135
      %v4137 = vpop.f32.mrb[0].mxu0
      %4138 = vmatprep.mubr.bf16.mxu0 0
      %4139 = vmatmul.mubr.bf16.gmra.mrb[0].mxu0 %v3602
      %v4140 = vpop.f32.mrb[0].mxu0
      %v4141 = vadd.f32 %v3964, %v4140
      %v4142 = vpop.f32.mrb[0].mxu0
      %v4143 = vpop.f32.mrb[0].mxu0
      %v4144 = vadd.f32 %v3967, %v4143
      %v4145 = vpop.f32.mrb[0].mxu0
      %4146 = vmatprep.mubr.bf16.mxu0 0
      %4147 = vmatmul.mubr.bf16.gmra.mrb[0].mxu0 %v3608
      %v4148 = vpop.f32.mrb[0].mxu0
      %v4149 = vadd.f32 %v3972, %v4148
      %v4150 = vpop.f32.mrb[0].mxu0
      %v4151 = vpop.f32.mrb[0].mxu0
      %v4152 = vadd.f32 %v3975, %v4151
      %v4153 = vpop.f32.mrb[0].mxu0
      %4154 = vmatprep.mubr.bf16.mxu0 0
      %4155 = vmatmul.mubr.bf16.gmra.mrb[0].mxu0 %v3614
      %v4156 = vpop.f32.mrb[0].mxu0
      %v4157 = vadd.f32 %v3980, %v4156
      %v4158 = vpop.f32.mrb[0].mxu0
      %v4159 = vpop.f32.mrb[0].mxu0
      %v4160 = vadd.f32 %v3983, %v4159
      %v4161 = vpop.f32.mrb[0].mxu0
      %4162 = vmatprep.mubr.bf16.mxu0 0
      %4163 = vmatmul.mubr.bf16.gmra.mrb[0].mxu0 %v3620
      %v4164 = vpop.f32.mrb[0].mxu0
      %v4165 = vadd.f32 %v3988, %v4164
      %v4166 = vpop.f32.mrb[0].mxu0
      %v4167 = vpop.f32.mrb[0].mxu0
      %v4168 = vadd.f32 %v3991, %v4167
      %v4169 = vpop.f32.mrb[0].mxu0
      %4170 = vmatprep.mubr.bf16.mxu0 0
      %4171 = vmatmul.mubr.bf16.gmra.mrb[0].mxu0 %v3626
      %v4172 = vpop.f32.mrb[0].mxu0
      %v4173 = vadd.f32 %v3996, %v4172
      %v4174 = vpop.f32.mrb[0].mxu0
      %v4175 = vpop.f32.mrb[0].mxu0
      %v4176 = vadd.f32 %v3999, %v4175
      %v4177 = vpop.f32.mrb[0].mxu0
      %4178 = vdwg.mxu0
      %v4179 = vld [vmem:[#allocation2] sm:$0xff]
      %v4180 = vld [vmem:[#allocation2 + $0x8] sm:$0xff]
      %v4181 = vld [vmem:[#allocation2 + $0x10] sm:$0xff]
      %v4182 = vld [vmem:[#allocation2 + $0x18] sm:$0xff]
      %v4183 = vld [vmem:[#allocation2 + $0x20] sm:$0xff]
      %v4184 = vld [vmem:[#allocation2 + $0x28] sm:$0xff]
      %v4185 = vld [vmem:[#allocation2 + $0x30] sm:$0xff]
      %v4186 = vld [vmem:[#allocation2 + $0x38] sm:$0xff]
      %v4187 = vld [vmem:[#allocation2 + $0x40] sm:$0xff]
      %v4188 = vld [vmem:[#allocation2 + $0x48] sm:$0xff]
      %v4189 = vld [vmem:[#allocation2 + $0x50] sm:$0xff]
      %v4190 = vld [vmem:[#allocation2 + $0x58] sm:$0xff]
      %v4191 = vld [vmem:[#allocation2 + $0x60] sm:$0xff]
      %v4192 = vld [vmem:[#allocation2 + $0x68] sm:$0xff]
      %v4193 = vld [vmem:[#allocation2 + $0x70] sm:$0xff]
      %v4194 = vld [vmem:[#allocation2 + $0x78] sm:$0xff]
      %v4195 = vld [vmem:[#allocation2 + $0x80] sm:$0xff]
      %v4196 = vld [vmem:[#allocation2 + $0x88] sm:$0xff]
      %v4197 = vld [vmem:[#allocation2 + $0x90] sm:$0xff]
      %v4198 = vld [vmem:[#allocation2 + $0x98] sm:$0xff]
      %v4199 = vld [vmem:[#allocation2 + $0xa0] sm:$0xff]
      %v4200 = vld [vmem:[#allocation2 + $0xa8] sm:$0xff]
      %v4201 = vld [vmem:[#allocation2 + $0xb0] sm:$0xff]
      %v4202 = vld [vmem:[#allocation2 + $0xb8] sm:$0xff]
      %v4203 = vld [vmem:[#allocation2 + $0xc0] sm:$0xff]
      %v4204 = vld [vmem:[#allocation2 + $0xc8] sm:$0xff]
      %v4205 = vld [vmem:[#allocation2 + $0xd0] sm:$0xff]
      %v4206 = vld [vmem:[#allocation2 + $0xd8] sm:$0xff]
      %v4207 = vld [vmem:[#allocation2 + $0xe0] sm:$0xff]
      %v4208 = vld [vmem:[#allocation2 + $0xe8] sm:$0xff]
      %v4209 = vld [vmem:[#allocation2 + $0xf0] sm:$0xff]
      %v4210 = vld [vmem:[#allocation2 + $0xf8] sm:$0xff]
      %v4211 = vld [vmem:[#allocation2 + $0x100] sm:$0xff]
      %v4212 = vld [vmem:[#allocation2 + $0x108] sm:$0xff]
      %v4213 = vld [vmem:[#allocation2 + $0x110] sm:$0xff]
      %v4214 = vld [vmem:[#allocation2 + $0x118] sm:$0xff]
      %v4215 = vadd.f32 %v4179, %v4037
      %v4216 = vadd.f32 %v4180, %v4040
      %v4217 = vadd.f32 %v4181, %v4045
      %v4218 = vadd.f32 %v4182, %v4048
      %v4219 = vadd.f32 %v4183, %v4053
      %v4220 = vadd.f32 %v4184, %v4056
      %v4221 = vadd.f32 %v4185, %v4061
      %v4222 = vadd.f32 %v4186, %v4064
      %v4223 = vadd.f32 %v4187, %v4069
      %v4224 = vadd.f32 %v4188, %v4072
      %v4225 = vadd.f32 %v4189, %v4077
      %v4226 = vadd.f32 %v4190, %v4080
      %v4227 = vadd.f32 %v4191, %v4085
      %v4228 = vadd.f32 %v4192, %v4088
      %v4229 = vadd.f32 %v4193, %v4093
      %v4230 = vadd.f32 %v4194, %v4096
      %v4231 = vadd.f32 %v4195, %v4101
      %v4232 = vadd.f32 %v4196, %v4104
      %v4233 = vadd.f32 %v4197, %v4109
      %v4234 = vadd.f32 %v4198, %v4112
      %v4235 = vadd.f32 %v4199, %v4117
      %v4236 = vadd.f32 %v4200, %v4120
      %v4237 = vadd.f32 %v4201, %v4125
      %v4238 = vadd.f32 %v4202, %v4128
      %v4239 = vadd.f32 %v4203, %v4133
      %v4240 = vadd.f32 %v4204, %v4136
      %v4241 = vadd.f32 %v4205, %v4141
      %v4242 = vadd.f32 %v4206, %v4144
      %v4243 = vadd.f32 %v4207, %v4149
      %v4244 = vadd.f32 %v4208, %v4152
      %v4245 = vadd.f32 %v4209, %v4157
      %v4246 = vadd.f32 %v4210, %v4160
      %v4247 = vadd.f32 %v4211, %v4165
      %v4248 = vadd.f32 %v4212, %v4168
      %v4249 = vadd.f32 %v4213, %v4173
      %v4250 = vadd.f32 %v4214, %v4176
      %4251 = vst [vmem:[#allocation2] sm:$0xff] %v4215
      %4252 = vst [vmem:[#allocation2 + $0x8] sm:$0xff] %v4216
      %4253 = vst [vmem:[#allocation2 + $0x10] sm:$0xff] %v4217
      %4254 = vst [vmem:[#allocation2 + $0x18] sm:$0xff] %v4218
      %4255 = vst [vmem:[#allocation2 + $0x20] sm:$0xff] %v4219
      %4256 = vst [vmem:[#allocation2 + $0x28] sm:$0xff] %v4220
      %4257 = vst [vmem:[#allocation2 + $0x30] sm:$0xff] %v4221
      %4258 = vst [vmem:[#allocation2 + $0x38] sm:$0xff] %v4222
      %4259 = vst [vmem:[#allocation2 + $0x40] sm:$0xff] %v4223
      %4260 = vst [vmem:[#allocation2 + $0x48] sm:$0xff] %v4224
      %4261 = vst [vmem:[#allocation2 + $0x50] sm:$0xff] %v4225
      %4262 = vst [vmem:[#allocation2 + $0x58] sm:$0xff] %v4226
      %4263 = vst [vmem:[#allocation2 + $0x60] sm:$0xff] %v4227
      %4264 = vst [vmem:[#allocation2 + $0x68] sm:$0xff] %v4228
      %4265 = vst [vmem:[#allocation2 + $0x70] sm:$0xff] %v4229
      %4266 = vst [vmem:[#allocation2 + $0x78] sm:$0xff] %v4230
      %4267 = vst [vmem:[#allocation2 + $0x80] sm:$0xff] %v4231
      %4268 = vst [vmem:[#allocation2 + $0x88] sm:$0xff] %v4232
      %4269 = vst [vmem:[#allocation2 + $0x90] sm:$0xff] %v4233
      %4270 = vst [vmem:[#allocation2 + $0x98] sm:$0xff] %v4234
      %4271 = vst [vmem:[#allocation2 + $0xa0] sm:$0xff] %v4235
      %4272 = vst [vmem:[#allocation2 + $0xa8] sm:$0xff] %v4236
      %4273 = vst [vmem:[#allocation2 + $0xb0] sm:$0xff] %v4237
      %4274 = vst [vmem:[#allocation2 + $0xb8] sm:$0xff] %v4238
      %4275 = vst [vmem:[#allocation2 + $0xc0] sm:$0xff] %v4239
      %4276 = vst [vmem:[#allocation2 + $0xc8] sm:$0xff] %v4240
      %4277 = vst [vmem:[#allocation2 + $0xd0] sm:$0xff] %v4241
      %4278 = vst [vmem:[#allocation2 + $0xd8] sm:$0xff] %v4242
      %4279 = vst [vmem:[#allocation2 + $0xe0] sm:$0xff] %v4243
      %4280 = vst [vmem:[#allocation2 + $0xe8] sm:$0xff] %v4244
      %4281 = vst [vmem:[#allocation2 + $0xf0] sm:$0xff] %v4245
      %4282 = vst [vmem:[#allocation2 + $0xf8] sm:$0xff] %v4246
      %4283 = vst [vmem:[#allocation2 + $0x100] sm:$0xff] %v4247
      %4284 = vst [vmem:[#allocation2 + $0x108] sm:$0xff] %v4248
      %4285 = vst [vmem:[#allocation2 + $0x110] sm:$0xff] %v4249
      %4286 = vst [vmem:[#allocation2 + $0x118] sm:$0xff] %v4250
      %v4287 = vld [vmem:[#allocation2] sm:$0xff]
      %v4288 = vld [vmem:[#allocation2 + $0x8] sm:$0xff]
      %v4289 = vld [vmem:[#allocation2 + $0x10] sm:$0xff]
      %v4290 = vld [vmem:[#allocation2 + $0x18] sm:$0xff]
      %v4291 = vld [vmem:[#allocation2 + $0x20] sm:$0xff]
      %v4292 = vld [vmem:[#allocation2 + $0x28] sm:$0xff]
      %v4293 = vld [vmem:[#allocation2 + $0x30] sm:$0xff]
      %v4294 = vld [vmem:[#allocation2 + $0x38] sm:$0xff]
      %v4295 = vld [vmem:[#allocation2 + $0x40] sm:$0xff]
      %v4296 = vld [vmem:[#allocation2 + $0x48] sm:$0xff]
      %v4297 = vld [vmem:[#allocation2 + $0x50] sm:$0xff]
      %v4298 = vld [vmem:[#allocation2 + $0x58] sm:$0xff]
      %v4299 = vld [vmem:[#allocation2 + $0x60] sm:$0xff]
      %v4300 = vld [vmem:[#allocation2 + $0x68] sm:$0xff]
      %v4301 = vld [vmem:[#allocation2 + $0x70] sm:$0xff]
      %v4302 = vld [vmem:[#allocation2 + $0x78] sm:$0xff]
      %v4303 = vld [vmem:[#allocation2 + $0x80] sm:$0xff]
      %v4304 = vld [vmem:[#allocation2 + $0x88] sm:$0xff]
      %v4305 = vld [vmem:[#allocation2 + $0x90] sm:$0xff]
      %v4306 = vld [vmem:[#allocation2 + $0x98] sm:$0xff]
      %v4307 = vld [vmem:[#allocation2 + $0xa0] sm:$0xff]
      %v4308 = vld [vmem:[#allocation2 + $0xa8] sm:$0xff]
      %v4309 = vld [vmem:[#allocation2 + $0xb0] sm:$0xff]
      %v4310 = vld [vmem:[#allocation2 + $0xb8] sm:$0xff]
      %v4311 = vld [vmem:[#allocation2 + $0xc0] sm:$0xff]
      %v4312 = vld [vmem:[#allocation2 + $0xc8] sm:$0xff]
      %v4313 = vld [vmem:[#allocation2 + $0xd0] sm:$0xff]
      %v4314 = vld [vmem:[#allocation2 + $0xd8] sm:$0xff]
      %v4315 = vld [vmem:[#allocation2 + $0xe0] sm:$0xff]
      %v4316 = vld [vmem:[#allocation2 + $0xe8] sm:$0xff]
      %v4317 = vld [vmem:[#allocation2 + $0xf0] sm:$0xff]
      %v4318 = vld [vmem:[#allocation2 + $0xf8] sm:$0xff]
      %v4319 = vld [vmem:[#allocation2 + $0x100] sm:$0xff]
      %v4320 = vld [vmem:[#allocation2 + $0x108] sm:$0xff]
      %v4321 = vld [vmem:[#allocation2 + $0x110] sm:$0xff]
      %v4322 = vld [vmem:[#allocation2 + $0x118] sm:$0xff]
      %v4323 = vld [vmem:[%s2] sm:$0xff]
      %v4324 = vld [vmem:[%s2 + $0x8] sm:$0xff]
      %v4325 = vld [vmem:[%s2 + $0x10] sm:$0xff]
      %v4326 = vld [vmem:[%s2 + $0x18] sm:$0xff]
      %v4327 = vld [vmem:[%s2 + $0x20] sm:$0xff]
      %v4328 = vld [vmem:[%s2 + $0x28] sm:$0xff]
      %v4329 = vld [vmem:[%s2 + $0x30] sm:$0xff]
      %v4330 = vld [vmem:[%s2 + $0x38] sm:$0xff]
      %v4331 = vld [vmem:[%s2 + $0x40] sm:$0xff]
      %v4332 = vld [vmem:[%s2 + $0x48] sm:$0xff]
      %v4333 = vld [vmem:[%s2 + $0x50] sm:$0xff]
      %v4334 = vld [vmem:[%s2 + $0x58] sm:$0xff]
      %v4335 = vld [vmem:[%s2 + $0x60] sm:$0xff]
      %v4336 = vld [vmem:[%s2 + $0x68] sm:$0xff]
      %v4337 = vld [vmem:[%s2 + $0x70] sm:$0xff]
      %v4338 = vld [vmem:[%s2 + $0x78] sm:$0xff]
      %v4339 = vld [vmem:[%s2 + $0x80] sm:$0xff]
      %v4340 = vld [vmem:[%s2 + $0x88] sm:$0xff]
      %v4341 = vld [vmem:[%s2 + $0x90] sm:$0xff]
      %v4342 = vld [vmem:[%s2 + $0x98] sm:$0xff]
      %v4343 = vld [vmem:[%s2 + $0xa0] sm:$0xff]
      %v4344 = vld [vmem:[%s2 + $0xa8] sm:$0xff]
      %v4345 = vld [vmem:[%s2 + $0xb0] sm:$0xff]
      %v4346 = vld [vmem:[%s2 + $0xb8] sm:$0xff]
      %v4347 = vld [vmem:[%s2 + $0xc0] sm:$0xff]
      %v4348 = vld [vmem:[%s2 + $0xc8] sm:$0xff]
      %v4349 = vld [vmem:[%s2 + $0xd0] sm:$0xff]
      %v4350 = vld [vmem:[%s2 + $0xd8] sm:$0xff]
      %v4351 = vld [vmem:[%s2 + $0xe0] sm:$0xff]
      %v4352 = vld [vmem:[%s2 + $0xe8] sm:$0xff]
      %v4353 = vld [vmem:[%s2 + $0xf0] sm:$0xff]
      %v4354 = vld [vmem:[%s2 + $0xf8] sm:$0xff]
      %v4355 = vld [vmem:[%s2 + $0x100] sm:$0xff]
      %v4356 = vld [vmem:[%s2 + $0x108] sm:$0xff]
      %v4357 = vld [vmem:[%s2 + $0x110] sm:$0xff]
      %v4358 = vld [vmem:[%s2 + $0x118] sm:$0xff]
      %4360 = vset.pattern.permute.xlu0 0
      %4361 = vperm.xlu0 %4360, %v4323
      %v4362 = vpop.permute.xlu0 %4361
      %4365 = vset.pattern.permute.xlu0 0
      %4366 = vperm.xlu0 %4365, %v4324
      %v4367 = vpop.permute.xlu0 %4366
      %4370 = vset.pattern.permute.xlu0 0
      %4371 = vperm.xlu0 %4370, %v4325
      %v4372 = vpop.permute.xlu0 %4371
      %4375 = vset.pattern.permute.xlu0 0
      %4376 = vperm.xlu0 %4375, %v4326
      %v4377 = vpop.permute.xlu0 %4376
      %4380 = vset.pattern.permute.xlu0 0
      %4381 = vperm.xlu0 %4380, %v4327
      %v4382 = vpop.permute.xlu0 %4381
      %4385 = vset.pattern.permute.xlu0 0
      %4386 = vperm.xlu0 %4385, %v4328
      %v4387 = vpop.permute.xlu0 %4386
      %4390 = vset.pattern.permute.xlu0 0
      %4391 = vperm.xlu0 %4390, %v4329
      %v4392 = vpop.permute.xlu0 %4391
      %4395 = vset.pattern.permute.xlu0 0
      %4396 = vperm.xlu0 %4395, %v4330
      %v4397 = vpop.permute.xlu0 %4396
      %4400 = vset.pattern.permute.xlu0 0
      %4401 = vperm.xlu0 %4400, %v4331
      %v4402 = vpop.permute.xlu0 %4401
      %4405 = vset.pattern.permute.xlu0 0
      %4406 = vperm.xlu0 %4405, %v4332
      %v4407 = vpop.permute.xlu0 %4406
      %4410 = vset.pattern.permute.xlu0 0
      %4411 = vperm.xlu0 %4410, %v4333
      %v4412 = vpop.permute.xlu0 %4411
      %4415 = vset.pattern.permute.xlu0 0
      %4416 = vperm.xlu0 %4415, %v4334
      %v4417 = vpop.permute.xlu0 %4416
      %4420 = vset.pattern.permute.xlu0 0
      %4421 = vperm.xlu0 %4420, %v4335
      %v4422 = vpop.permute.xlu0 %4421
      %4425 = vset.pattern.permute.xlu0 0
      %4426 = vperm.xlu0 %4425, %v4336
      %v4427 = vpop.permute.xlu0 %4426
      %4430 = vset.pattern.permute.xlu0 0
      %4431 = vperm.xlu0 %4430, %v4337
      %v4432 = vpop.permute.xlu0 %4431
      %4435 = vset.pattern.permute.xlu0 0
      %4436 = vperm.xlu0 %4435, %v4338
      %v4437 = vpop.permute.xlu0 %4436
      %4440 = vset.pattern.permute.xlu0 0
      %4441 = vperm.xlu0 %4440, %v4339
      %v4442 = vpop.permute.xlu0 %4441
      %4445 = vset.pattern.permute.xlu0 0
      %4446 = vperm.xlu0 %4445, %v4340
      %v4447 = vpop.permute.xlu0 %4446
      %4450 = vset.pattern.permute.xlu0 0
      %4451 = vperm.xlu0 %4450, %v4341
      %v4452 = vpop.permute.xlu0 %4451
      %4455 = vset.pattern.permute.xlu0 0
      %4456 = vperm.xlu0 %4455, %v4342
      %v4457 = vpop.permute.xlu0 %4456
      %4460 = vset.pattern.permute.xlu0 0
      %4461 = vperm.xlu0 %4460, %v4343
      %v4462 = vpop.permute.xlu0 %4461
      %4465 = vset.pattern.permute.xlu0 0
      %4466 = vperm.xlu0 %4465, %v4344
      %v4467 = vpop.permute.xlu0 %4466
      %4470 = vset.pattern.permute.xlu0 0
      %4471 = vperm.xlu0 %4470, %v4345
      %v4472 = vpop.permute.xlu0 %4471
      %4475 = vset.pattern.permute.xlu0 0
      %4476 = vperm.xlu0 %4475, %v4346
      %v4477 = vpop.permute.xlu0 %4476
      %4480 = vset.pattern.permute.xlu0 0
      %4481 = vperm.xlu0 %4480, %v4347
      %v4482 = vpop.permute.xlu0 %4481
      %4485 = vset.pattern.permute.xlu0 0
      %4486 = vperm.xlu0 %4485, %v4348
      %v4487 = vpop.permute.xlu0 %4486
      %4490 = vset.pattern.permute.xlu0 0
      %4491 = vperm.xlu0 %4490, %v4349
      %v4492 = vpop.permute.xlu0 %4491
      %4495 = vset.pattern.permute.xlu0 0
      %4496 = vperm.xlu0 %4495, %v4350
      %v4497 = vpop.permute.xlu0 %4496
      %4500 = vset.pattern.permute.xlu0 0
      %4501 = vperm.xlu0 %4500, %v4351
      %v4502 = vpop.permute.xlu0 %4501
      %4505 = vset.pattern.permute.xlu0 0
      %4506 = vperm.xlu0 %4505, %v4352
      %v4507 = vpop.permute.xlu0 %4506
      %4510 = vset.pattern.permute.xlu0 0
      %4511 = vperm.xlu0 %4510, %v4353
      %v4512 = vpop.permute.xlu0 %4511
      %4515 = vset.pattern.permute.xlu0 0
      %4516 = vperm.xlu0 %4515, %v4354
      %v4517 = vpop.permute.xlu0 %4516
      %4520 = vset.pattern.permute.xlu0 0
      %4521 = vperm.xlu0 %4520, %v4355
      %v4522 = vpop.permute.xlu0 %4521
      %4525 = vset.pattern.permute.xlu0 0
      %4526 = vperm.xlu0 %4525, %v4356
      %v4527 = vpop.permute.xlu0 %4526
      %4530 = vset.pattern.permute.xlu0 0
      %4531 = vperm.xlu0 %4530, %v4357
      %v4532 = vpop.permute.xlu0 %4531
      %4535 = vset.pattern.permute.xlu0 0
      %4536 = vperm.xlu0 %4535, %v4358
      %v4537 = vpop.permute.xlu0 %4536
      %v4539 = vmul.f32 %v4287, %v4362
      %v4540 = vmul.f32 %v4288, %v4367
      %v4541 = vmul.f32 %v4289, %v4372
      %v4542 = vmul.f32 %v4290, %v4377
      %v4543 = vmul.f32 %v4291, %v4382
      %v4544 = vmul.f32 %v4292, %v4387
      %v4545 = vmul.f32 %v4293, %v4392
      %v4546 = vmul.f32 %v4294, %v4397
      %v4547 = vmul.f32 %v4295, %v4402
      %v4548 = vmul.f32 %v4296, %v4407
      %v4549 = vmul.f32 %v4297, %v4412
      %v4550 = vmul.f32 %v4298, %v4417
      %v4551 = vmul.f32 %v4299, %v4422
      %v4552 = vmul.f32 %v4300, %v4427
      %v4553 = vmul.f32 %v4301, %v4432
      %v4554 = vmul.f32 %v4302, %v4437
      %v4555 = vmul.f32 %v4303, %v4442
      %v4556 = vmul.f32 %v4304, %v4447
      %v4557 = vmul.f32 %v4305, %v4452
      %v4558 = vmul.f32 %v4306, %v4457
      %v4559 = vmul.f32 %v4307, %v4462
      %v4560 = vmul.f32 %v4308, %v4467
      %v4561 = vmul.f32 %v4309, %v4472
      %v4562 = vmul.f32 %v4310, %v4477
      %v4563 = vmul.f32 %v4311, %v4482
      %v4564 = vmul.f32 %v4312, %v4487
      %v4565 = vmul.f32 %v4313, %v4492
      %v4566 = vmul.f32 %v4314, %v4497
      %v4567 = vmul.f32 %v4315, %v4502
      %v4568 = vmul.f32 %v4316, %v4507
      %v4569 = vmul.f32 %v4317, %v4512
      %v4570 = vmul.f32 %v4318, %v4517
      %v4571 = vmul.f32 %v4319, %v4522
      %v4572 = vmul.f32 %v4320, %v4527
      %v4573 = vmul.f32 %v4321, %v4532
      %v4574 = vmul.f32 %v4322, %v4537
      %v4575 = vadd.f32 %v4539, %v4540
      %v4576 = vadd.f32 %v4575, %v4541
      %v4577 = vadd.f32 %v4576, %v4542
      %v4578 = vadd.f32 %v4577, %v4543
      %v4579 = vadd.f32 %v4578, %v4544
      %v4580 = vadd.f32 %v4579, %v4545
      %v4581 = vadd.f32 %v4580, %v4546
      %v4582 = vadd.f32 %v4581, %v4547
      %v4583 = vadd.f32 %v4582, %v4548
      %v4584 = vadd.f32 %v4583, %v4549
      %v4585 = vadd.f32 %v4584, %v4550
      %v4586 = vadd.f32 %v4585, %v4551
      %v4587 = vadd.f32 %v4586, %v4552
      %v4588 = vadd.f32 %v4587, %v4553
      %v4589 = vadd.f32 %v4588, %v4554
      %v4590 = vadd.f32 %v4589, %v4555
      %v4591 = vadd.f32 %v4590, %v4556
      %v4592 = vadd.f32 %v4591, %v4557
      %v4593 = vadd.f32 %v4592, %v4558
      %v4594 = vadd.f32 %v4593, %v4559
      %v4595 = vadd.f32 %v4594, %v4560
      %v4596 = vadd.f32 %v4595, %v4561
      %v4597 = vadd.f32 %v4596, %v4562
      %v4598 = vadd.f32 %v4597, %v4563
      %v4599 = vadd.f32 %v4598, %v4564
      %v4600 = vadd.f32 %v4599, %v4565
      %v4601 = vadd.f32 %v4600, %v4566
      %v4602 = vadd.f32 %v4601, %v4567
      %v4603 = vadd.f32 %v4602, %v4568
      %v4604 = vadd.f32 %v4603, %v4569
      %v4605 = vadd.f32 %v4604, %v4570
      %v4606 = vadd.f32 %v4605, %v4571
      %v4607 = vadd.f32 %v4606, %v4572
      %v4608 = vadd.f32 %v4607, %v4573
      %v4609 = vadd.f32 %v4608, %v4574
      %v4610 = vrot.slane %v4609, 4
      %v4611 = vadd.f32 %v4609, %v4610
      %v4612 = vrot.slane %v4611, 2
      %v4613 = vadd.f32 %v4611, %v4612
      %v4614 = vrot.slane %v4613, 1
      %v4615 = vadd.f32 %v4613, %v4614
      %4616 = vst [vmem:[%s319] sm:$0x1] %v4615
      %v4617 = vmul.f32 %v4539, %v4287
      %v4618 = vmul.f32 %v4540, %v4288
      %v4619 = vmul.f32 %v4541, %v4289
      %v4620 = vmul.f32 %v4542, %v4290
      %v4621 = vmul.f32 %v4543, %v4291
      %v4622 = vmul.f32 %v4544, %v4292
      %v4623 = vmul.f32 %v4545, %v4293
      %v4624 = vmul.f32 %v4546, %v4294
      %v4625 = vmul.f32 %v4547, %v4295
      %v4626 = vmul.f32 %v4548, %v4296
      %v4627 = vmul.f32 %v4549, %v4297
      %v4628 = vmul.f32 %v4550, %v4298
      %v4629 = vmul.f32 %v4551, %v4299
      %v4630 = vmul.f32 %v4552, %v4300
      %v4631 = vmul.f32 %v4553, %v4301
      %v4632 = vmul.f32 %v4554, %v4302
      %v4633 = vmul.f32 %v4555, %v4303
      %v4634 = vmul.f32 %v4556, %v4304
      %v4635 = vmul.f32 %v4557, %v4305
      %v4636 = vmul.f32 %v4558, %v4306
      %v4637 = vmul.f32 %v4559, %v4307
      %v4638 = vmul.f32 %v4560, %v4308
      %v4639 = vmul.f32 %v4561, %v4309
      %v4640 = vmul.f32 %v4562, %v4310
      %v4641 = vmul.f32 %v4563, %v4311
      %v4642 = vmul.f32 %v4564, %v4312
      %v4643 = vmul.f32 %v4565, %v4313
      %v4644 = vmul.f32 %v4566, %v4314
      %v4645 = vmul.f32 %v4567, %v4315
      %v4646 = vmul.f32 %v4568, %v4316
      %v4647 = vmul.f32 %v4569, %v4317
      %v4648 = vmul.f32 %v4570, %v4318
      %v4649 = vmul.f32 %v4571, %v4319
      %v4650 = vmul.f32 %v4572, %v4320
      %v4651 = vmul.f32 %v4573, %v4321
      %v4652 = vmul.f32 %v4574, %v4322
      %v4653 = vadd.f32 %v4617, %v4618
      %v4654 = vadd.f32 %v4653, %v4619
      %v4655 = vadd.f32 %v4654, %v4620
      %v4656 = vadd.f32 %v4655, %v4621
      %v4657 = vadd.f32 %v4656, %v4622
      %v4658 = vadd.f32 %v4657, %v4623
      %v4659 = vadd.f32 %v4658, %v4624
      %v4660 = vadd.f32 %v4659, %v4625
      %v4661 = vadd.f32 %v4660, %v4626
      %v4662 = vadd.f32 %v4661, %v4627
      %v4663 = vadd.f32 %v4662, %v4628
      %v4664 = vadd.f32 %v4663, %v4629
      %v4665 = vadd.f32 %v4664, %v4630
      %v4666 = vadd.f32 %v4665, %v4631
      %v4667 = vadd.f32 %v4666, %v4632
      %v4668 = vadd.f32 %v4667, %v4633
      %v4669 = vadd.f32 %v4668, %v4634
      %v4670 = vadd.f32 %v4669, %v4635
      %v4671 = vadd.f32 %v4670, %v4636
      %v4672 = vadd.f32 %v4671, %v4637
      %v4673 = vadd.f32 %v4672, %v4638
      %v4674 = vadd.f32 %v4673, %v4639
      %v4675 = vadd.f32 %v4674, %v4640
      %v4676 = vadd.f32 %v4675, %v4641
      %v4677 = vadd.f32 %v4676, %v4642
      %v4678 = vadd.f32 %v4677, %v4643
      %v4679 = vadd.f32 %v4678, %v4644
      %v4680 = vadd.f32 %v4679, %v4645
      %v4681 = vadd.f32 %v4680, %v4646
      %v4682 = vadd.f32 %v4681, %v4647
      %v4683 = vadd.f32 %v4682, %v4648
      %v4684 = vadd.f32 %v4683, %v4649
      %v4685 = vadd.f32 %v4684, %v4650
      %v4686 = vadd.f32 %v4685, %v4651
      %v4687 = vadd.f32 %v4686, %v4652
      %v4688 = vrot.slane %v4687, 4
      %v4689 = vadd.f32 %v4687, %v4688
      %v4690 = vrot.slane %v4689, 2
      %v4691 = vadd.f32 %v4689, %v4690
      %v4692 = vrot.slane %v4691, 1
      %v4693 = vadd.f32 %v4691, %v4692
      %4694 = vst [vmem:[%s322] sm:$0x1] %v4693
      %v4695 = vpack.c.bf16 %v4540, %v4539
      %v4696 = vpack.c.bf16 %v4542, %v4541
      %v4697 = vpack.c.bf16 %v4544, %v4543
      %v4698 = vpack.c.bf16 %v4546, %v4545
      %v4699 = vpack.c.bf16 %v4548, %v4547
      %v4700 = vpack.c.bf16 %v4550, %v4549
      %v4701 = vpack.c.bf16 %v4552, %v4551
      %v4702 = vpack.c.bf16 %v4554, %v4553
      %v4703 = vpack.c.bf16 %v4556, %v4555
      %v4704 = vpack.c.bf16 %v4558, %v4557
      %v4705 = vpack.c.bf16 %v4560, %v4559
      %v4706 = vpack.c.bf16 %v4562, %v4561
      %v4707 = vpack.c.bf16 %v4564, %v4563
      %v4708 = vpack.c.bf16 %v4566, %v4565
      %v4709 = vpack.c.bf16 %v4568, %v4567
      %v4710 = vpack.c.bf16 %v4570, %v4569
      %v4711 = vpack.c.bf16 %v4572, %v4571
      %v4712 = vpack.c.bf16 %v4574, %v4573
      %4713 = vst [vmem:[%s316] sm:$0xf] 0
      %4714 = vst [vmem:[%s316 + $0x4] sm:$0xf] 0
      %vm4715 = vcmask 1041408
      %vm4716 = vsmask.f32 1280
      %vm4717 = vmand %vm4715, %vm4716
      %v4718 = vld [vmem:[%s316 + $0x8] sm:$0x3]
      %v4719 = vsel %vm4717, 0, %v4718
      %4720 = vst [vmem:[%s316 + $0x8] sm:$0x3] %v4719
      %v4739 = vunpack.c.l.b16 %v4695
      %v4740 = vunpack.c.h.b16 %v4695
      %v4741 = vunpack.c.l.b16 %v4696
      %v4742 = vunpack.c.h.b16 %v4696
      %v4743 = vunpack.c.l.b16 %v4697
      %v4744 = vunpack.c.h.b16 %v4697
      %v4745 = vunpack.c.l.b16 %v4698
      %v4746 = vunpack.c.h.b16 %v4698
      %v4747 = vunpack.c.l.b16 %v4699
      %v4748 = vunpack.c.h.b16 %v4699
      %v4749 = vunpack.c.l.b16 %v4700
      %v4750 = vunpack.c.h.b16 %v4700
      %v4751 = vunpack.c.l.b16 %v4701
      %v4752 = vunpack.c.h.b16 %v4701
      %v4753 = vunpack.c.l.b16 %v4702
      %v4754 = vunpack.c.h.b16 %v4702
      %v4755 = vunpack.c.l.b16 %v4703
      %v4756 = vunpack.c.h.b16 %v4703
      %v4757 = vunpack.c.l.b16 %v4704
      %v4758 = vunpack.c.h.b16 %v4704
      %v4759 = vunpack.c.l.b16 %v4705
      %v4760 = vunpack.c.h.b16 %v4705
      %v4761 = vunpack.c.l.b16 %v4706
      %v4762 = vunpack.c.h.b16 %v4706
      %v4763 = vunpack.c.l.b16 %v4707
      %v4764 = vunpack.c.h.b16 %v4707
      %v4765 = vunpack.c.l.b16 %v4708
      %v4766 = vunpack.c.h.b16 %v4708
      %v4767 = vunpack.c.l.b16 %v4709
      %v4768 = vunpack.c.h.b16 %v4709
      %v4769 = vunpack.c.l.b16 %v4710
      %v4770 = vunpack.c.h.b16 %v4710
      %v4771 = vunpack.c.l.b16 %v4711
      %v4772 = vunpack.c.h.b16 %v4711
      %v4773 = vunpack.c.l.b16 %v4712
      %v4774 = vunpack.c.h.b16 %v4712
      %v4775 = vpack.c.b16 %v4739, %v4739
      %v4776 = vpack.c.b16 %v4740, %v4740
      %v4777 = vpack.c.b16 %v4741, %v4741
      %v4778 = vpack.c.b16 %v4742, %v4742
      %v4779 = vpack.c.b16 %v4743, %v4743
      %v4780 = vpack.c.b16 %v4744, %v4744
      %v4781 = vpack.c.b16 %v4745, %v4745
      %v4782 = vpack.c.b16 %v4746, %v4746
      %v4783 = vpack.c.b16 %v4747, %v4747
      %v4784 = vpack.c.b16 %v4748, %v4748
      %v4785 = vpack.c.b16 %v4749, %v4749
      %v4786 = vpack.c.b16 %v4750, %v4750
      %v4787 = vpack.c.b16 %v4751, %v4751
      %v4788 = vpack.c.b16 %v4752, %v4752
      %v4789 = vpack.c.b16 %v4753, %v4753
      %v4790 = vpack.c.b16 %v4754, %v4754
      %v4791 = vpack.c.b16 %v4755, %v4755
      %v4792 = vpack.c.b16 %v4756, %v4756
      %v4793 = vpack.c.b16 %v4757, %v4757
      %v4794 = vpack.c.b16 %v4758, %v4758
      %v4795 = vpack.c.b16 %v4759, %v4759
      %v4796 = vpack.c.b16 %v4760, %v4760
      %v4797 = vpack.c.b16 %v4761, %v4761
      %v4798 = vpack.c.b16 %v4762, %v4762
      %v4799 = vpack.c.b16 %v4763, %v4763
      %v4800 = vpack.c.b16 %v4764, %v4764
      %v4801 = vpack.c.b16 %v4765, %v4765
      %v4802 = vpack.c.b16 %v4766, %v4766
      %v4803 = vpack.c.b16 %v4767, %v4767
      %v4804 = vpack.c.b16 %v4768, %v4768
      %v4805 = vpack.c.b16 %v4769, %v4769
      %v4806 = vpack.c.b16 %v4770, %v4770
      %v4807 = vpack.c.b16 %v4771, %v4771
      %v4808 = vpack.c.b16 %v4772, %v4772
      %v4809 = vpack.c.b16 %v4773, %v4773
      %v4810 = vpack.c.b16 %v4774, %v4774
      %vm4811 = vsmask.f32 5392
      %vm4812 = vmor %vm4716, %vm4811
      %v4814 = vshrl.u32 %v4775, 16
      %v4816 = vrot.slane %v4814, 6
      %v4817 = vshll.u32 %v4775, 16
      %v4819 = vrot.slane %v4817, 7
      %v4820 = vor.u32 %v4816, %v4819
      %v4821 = vrot.slane %v4820, 4
      %v4823 = vshrl.u32 %v4776, 16
      %v4825 = vrot.slane %v4823, 6
      %v4826 = vshll.u32 %v4776, 16
      %v4828 = vrot.slane %v4826, 7
      %v4829 = vor.u32 %v4825, %v4828
      %v4830 = vsel %vm4812, %v4821, %v4829
      %v4831 = vrot.slane %v4829, 4
      %v4833 = vshrl.u32 %v4777, 16
      %v4835 = vrot.slane %v4833, 6
      %v4836 = vshll.u32 %v4777, 16
      %v4838 = vrot.slane %v4836, 7
      %v4839 = vor.u32 %v4835, %v4838
      %v4840 = vsel %vm4812, %v4831, %v4839
      %v4841 = vrot.slane %v4839, 4
      %v4843 = vshrl.u32 %v4778, 16
      %v4845 = vrot.slane %v4843, 6
      %v4846 = vshll.u32 %v4778, 16
      %v4848 = vrot.slane %v4846, 7
      %v4849 = vor.u32 %v4845, %v4848
      %v4850 = vsel %vm4812, %v4841, %v4849
      %v4851 = vrot.slane %v4849, 4
      %v4853 = vshrl.u32 %v4779, 16
      %v4855 = vrot.slane %v4853, 6
      %v4856 = vshll.u32 %v4779, 16
      %v4858 = vrot.slane %v4856, 7
      %v4859 = vor.u32 %v4855, %v4858
      %v4860 = vsel %vm4812, %v4851, %v4859
      %v4861 = vrot.slane %v4859, 4
      %v4863 = vshrl.u32 %v4780, 16
      %v4865 = vrot.slane %v4863, 6
      %v4866 = vshll.u32 %v4780, 16
      %v4868 = vrot.slane %v4866, 7
      %v4869 = vor.u32 %v4865, %v4868
      %v4870 = vsel %vm4812, %v4861, %v4869
      %v4871 = vrot.slane %v4869, 4
      %v4873 = vshrl.u32 %v4781, 16
      %v4875 = vrot.slane %v4873, 6
      %v4876 = vshll.u32 %v4781, 16
      %v4878 = vrot.slane %v4876, 7
      %v4879 = vor.u32 %v4875, %v4878
      %v4880 = vsel %vm4812, %v4871, %v4879
      %v4881 = vrot.slane %v4879, 4
      %v4883 = vshrl.u32 %v4782, 16
      %v4885 = vrot.slane %v4883, 6
      %v4886 = vshll.u32 %v4782, 16
      %v4888 = vrot.slane %v4886, 7
      %v4889 = vor.u32 %v4885, %v4888
      %v4890 = vsel %vm4812, %v4881, %v4889
      %v4891 = vrot.slane %v4889, 4
      %v4893 = vshrl.u32 %v4783, 16
      %v4895 = vrot.slane %v4893, 6
      %v4896 = vshll.u32 %v4783, 16
      %v4898 = vrot.slane %v4896, 7
      %v4899 = vor.u32 %v4895, %v4898
      %v4900 = vsel %vm4812, %v4891, %v4899
      %v4901 = vrot.slane %v4899, 4
      %v4903 = vshrl.u32 %v4784, 16
      %v4905 = vrot.slane %v4903, 6
      %v4906 = vshll.u32 %v4784, 16
      %v4908 = vrot.slane %v4906, 7
      %v4909 = vor.u32 %v4905, %v4908
      %v4910 = vsel %vm4812, %v4901, %v4909
      %v4911 = vrot.slane %v4909, 4
      %v4913 = vshrl.u32 %v4785, 16
      %v4915 = vrot.slane %v4913, 6
      %v4916 = vshll.u32 %v4785, 16
      %v4918 = vrot.slane %v4916, 7
      %v4919 = vor.u32 %v4915, %v4918
      %v4920 = vsel %vm4812, %v4911, %v4919
      %v4921 = vrot.slane %v4919, 4
      %v4923 = vshrl.u32 %v4786, 16
      %v4925 = vrot.slane %v4923, 6
      %v4926 = vshll.u32 %v4786, 16
      %v4928 = vrot.slane %v4926, 7
      %v4929 = vor.u32 %v4925, %v4928
      %v4930 = vsel %vm4812, %v4921, %v4929
      %v4931 = vrot.slane %v4929, 4
      %v4933 = vshrl.u32 %v4787, 16
      %v4935 = vrot.slane %v4933, 6
      %v4936 = vshll.u32 %v4787, 16
      %v4938 = vrot.slane %v4936, 7
      %v4939 = vor.u32 %v4935, %v4938
      %v4940 = vsel %vm4812, %v4931, %v4939
      %v4941 = vrot.slane %v4939, 4
      %v4943 = vshrl.u32 %v4788, 16
      %v4945 = vrot.slane %v4943, 6
      %v4946 = vshll.u32 %v4788, 16
      %v4948 = vrot.slane %v4946, 7
      %v4949 = vor.u32 %v4945, %v4948
      %v4950 = vsel %vm4812, %v4941, %v4949
      %v4951 = vrot.slane %v4949, 4
      %v4953 = vshrl.u32 %v4789, 16
      %v4955 = vrot.slane %v4953, 6
      %v4956 = vshll.u32 %v4789, 16
      %v4958 = vrot.slane %v4956, 7
      %v4959 = vor.u32 %v4955, %v4958
      %v4960 = vsel %vm4812, %v4951, %v4959
      %v4961 = vrot.slane %v4959, 4
      %v4963 = vshrl.u32 %v4790, 16
      %v4965 = vrot.slane %v4963, 6
      %v4966 = vshll.u32 %v4790, 16
      %v4968 = vrot.slane %v4966, 7
      %v4969 = vor.u32 %v4965, %v4968
      %v4970 = vsel %vm4812, %v4961, %v4969
      %v4971 = vrot.slane %v4969, 4
      %v4973 = vshrl.u32 %v4791, 16
      %v4975 = vrot.slane %v4973, 6
      %v4976 = vshll.u32 %v4791, 16
      %v4978 = vrot.slane %v4976, 7
      %v4979 = vor.u32 %v4975, %v4978
      %v4980 = vsel %vm4812, %v4971, %v4979
      %v4981 = vrot.slane %v4979, 4
      %v4983 = vshrl.u32 %v4792, 16
      %v4985 = vrot.slane %v4983, 6
      %v4986 = vshll.u32 %v4792, 16
      %v4988 = vrot.slane %v4986, 7
      %v4989 = vor.u32 %v4985, %v4988
      %v4990 = vsel %vm4812, %v4981, %v4989
      %v4991 = vrot.slane %v4989, 4
      %v4993 = vshrl.u32 %v4793, 16
      %v4995 = vrot.slane %v4993, 6
      %v4996 = vshll.u32 %v4793, 16
      %v4998 = vrot.slane %v4996, 7
      %v4999 = vor.u32 %v4995, %v4998
      %v5000 = vsel %vm4812, %v4991, %v4999
      %v5001 = vrot.slane %v4999, 4
      %v5003 = vshrl.u32 %v4794, 16
      %v5005 = vrot.slane %v5003, 6
      %v5006 = vshll.u32 %v4794, 16
      %v5008 = vrot.slane %v5006, 7
      %v5009 = vor.u32 %v5005, %v5008
      %v5010 = vsel %vm4812, %v5001, %v5009
      %v5011 = vrot.slane %v5009, 4
      %v5013 = vshrl.u32 %v4795, 16
      %v5015 = vrot.slane %v5013, 6
      %v5016 = vshll.u32 %v4795, 16
      %v5018 = vrot.slane %v5016, 7
      %v5019 = vor.u32 %v5015, %v5018
      %v5020 = vsel %vm4812, %v5011, %v5019
      %v5021 = vrot.slane %v5019, 4
      %v5023 = vshrl.u32 %v4796, 16
      %v5025 = vrot.slane %v5023, 6
      %v5026 = vshll.u32 %v4796, 16
      %v5028 = vrot.slane %v5026, 7
      %v5029 = vor.u32 %v5025, %v5028
      %v5030 = vsel %vm4812, %v5021, %v5029
      %v5031 = vrot.slane %v5029, 4
      %v5033 = vshrl.u32 %v4797, 16
      %v5035 = vrot.slane %v5033, 6
      %v5036 = vshll.u32 %v4797, 16
      %v5038 = vrot.slane %v5036, 7
      %v5039 = vor.u32 %v5035, %v5038
      %v5040 = vsel %vm4812, %v5031, %v5039
      %v5041 = vrot.slane %v5039, 4
      %v5043 = vshrl.u32 %v4798, 16
      %v5045 = vrot.slane %v5043, 6
      %v5046 = vshll.u32 %v4798, 16
      %v5048 = vrot.slane %v5046, 7
      %v5049 = vor.u32 %v5045, %v5048
      %v5050 = vsel %vm4812, %v5041, %v5049
      %v5051 = vrot.slane %v5049, 4
      %v5053 = vshrl.u32 %v4799, 16
      %v5055 = vrot.slane %v5053, 6
      %v5056 = vshll.u32 %v4799, 16
      %v5058 = vrot.slane %v5056, 7
      %v5059 = vor.u32 %v5055, %v5058
      %v5060 = vsel %vm4812, %v5051, %v5059
      %v5061 = vrot.slane %v5059, 4
      %v5063 = vshrl.u32 %v4800, 16
      %v5065 = vrot.slane %v5063, 6
      %v5066 = vshll.u32 %v4800, 16
      %v5068 = vrot.slane %v5066, 7
      %v5069 = vor.u32 %v5065, %v5068
      %v5070 = vsel %vm4812, %v5061, %v5069
      %v5071 = vrot.slane %v5069, 4
      %v5073 = vshrl.u32 %v4801, 16
      %v5075 = vrot.slane %v5073, 6
      %v5076 = vshll.u32 %v4801, 16
      %v5078 = vrot.slane %v5076, 7
      %v5079 = vor.u32 %v5075, %v5078
      %v5080 = vsel %vm4812, %v5071, %v5079
      %v5081 = vrot.slane %v5079, 4
      %v5083 = vshrl.u32 %v4802, 16
      %v5085 = vrot.slane %v5083, 6
      %v5086 = vshll.u32 %v4802, 16
      %v5088 = vrot.slane %v5086, 7
      %v5089 = vor.u32 %v5085, %v5088
      %v5090 = vsel %vm4812, %v5081, %v5089
      %v5091 = vrot.slane %v5089, 4
      %v5093 = vshrl.u32 %v4803, 16
      %v5095 = vrot.slane %v5093, 6
      %v5096 = vshll.u32 %v4803, 16
      %v5098 = vrot.slane %v5096, 7
      %v5099 = vor.u32 %v5095, %v5098
      %v5100 = vsel %vm4812, %v5091, %v5099
      %v5101 = vrot.slane %v5099, 4
      %v5103 = vshrl.u32 %v4804, 16
      %v5105 = vrot.slane %v5103, 6
      %v5106 = vshll.u32 %v4804, 16
      %v5108 = vrot.slane %v5106, 7
      %v5109 = vor.u32 %v5105, %v5108
      %v5110 = vsel %vm4812, %v5101, %v5109
      %v5111 = vrot.slane %v5109, 4
      %v5113 = vshrl.u32 %v4805, 16
      %v5115 = vrot.slane %v5113, 6
      %v5116 = vshll.u32 %v4805, 16
      %v5118 = vrot.slane %v5116, 7
      %v5119 = vor.u32 %v5115, %v5118
      %v5120 = vsel %vm4812, %v5111, %v5119
      %v5121 = vrot.slane %v5119, 4
      %v5123 = vshrl.u32 %v4806, 16
      %v5125 = vrot.slane %v5123, 6
      %v5126 = vshll.u32 %v4806, 16
      %v5128 = vrot.slane %v5126, 7
      %v5129 = vor.u32 %v5125, %v5128
      %v5130 = vsel %vm4812, %v5121, %v5129
      %v5131 = vrot.slane %v5129, 4
      %v5133 = vshrl.u32 %v4807, 16
      %v5135 = vrot.slane %v5133, 6
      %v5136 = vshll.u32 %v4807, 16
      %v5138 = vrot.slane %v5136, 7
      %v5139 = vor.u32 %v5135, %v5138
      %v5140 = vsel %vm4812, %v5131, %v5139
      %v5141 = vrot.slane %v5139, 4
      %v5143 = vshrl.u32 %v4808, 16
      %v5145 = vrot.slane %v5143, 6
      %v5146 = vshll.u32 %v4808, 16
      %v5148 = vrot.slane %v5146, 7
      %v5149 = vor.u32 %v5145, %v5148
      %v5150 = vsel %vm4812, %v5141, %v5149
      %v5151 = vrot.slane %v5149, 4
      %v5153 = vshrl.u32 %v4809, 16
      %v5155 = vrot.slane %v5153, 6
      %v5156 = vshll.u32 %v4809, 16
      %v5158 = vrot.slane %v5156, 7
      %v5159 = vor.u32 %v5155, %v5158
      %v5160 = vsel %vm4812, %v5151, %v5159
      %v5161 = vrot.slane %v5159, 4
      %v5163 = vshrl.u32 %v4810, 16
      %v5165 = vrot.slane %v5163, 6
      %v5166 = vshll.u32 %v4810, 16
      %v5168 = vrot.slane %v5166, 7
      %v5169 = vor.u32 %v5165, %v5168
      %v5170 = vsel %vm4812, %v5161, %v5169
      %v5171 = vrot.slane %v5169, 4
      %vm5209 = vcmask 1043457
      %vm5210 = vsmask.f32 7942
      %vm5211 = vmand %vm5209, %vm5210
      %v5212 = vld [vmem:[%s316 + $0x8] sm:$0xe]
      %v5213 = vsel %vm5211, %v4820, %v5212
      %5214 = vst [vmem:[%s316 + $0x8] sm:$0xe] %v5213
      %5215 = vst [vmem:[%s316 + $0xc] sm:$0xf] %v4830
      %5216 = vst [vmem:[%s316 + $0x10] sm:$0xf] %v4840
      %5217 = vst [vmem:[%s316 + $0x14] sm:$0xf] %v4850
      %5218 = vst [vmem:[%s316 + $0x18] sm:$0xf] %v4860
      %5219 = vst [vmem:[%s316 + $0x1c] sm:$0xf] %v4870
      %5220 = vst [vmem:[%s316 + $0x20] sm:$0xf] %v4880
      %5221 = vst [vmem:[%s316 + $0x24] sm:$0xf] %v4890
      %5222 = vst [vmem:[%s316 + $0x28] sm:$0xf] %v4900
      %5223 = vst [vmem:[%s316 + $0x2c] sm:$0xf] %v4910
      %5224 = vst [vmem:[%s316 + $0x30] sm:$0xf] %v4920
      %5225 = vst [vmem:[%s316 + $0x34] sm:$0xf] %v4930
      %5226 = vst [vmem:[%s316 + $0x38] sm:$0xf] %v4940
      %5227 = vst [vmem:[%s316 + $0x3c] sm:$0xf] %v4950
      %5228 = vst [vmem:[%s316 + $0x40] sm:$0xf] %v4960
      %5229 = vst [vmem:[%s316 + $0x44] sm:$0xf] %v4970
      %5230 = vst [vmem:[%s316 + $0x48] sm:$0xf] %v4980
      %5231 = vst [vmem:[%s316 + $0x4c] sm:$0xf] %v4990
      %5232 = vst [vmem:[%s316 + $0x50] sm:$0xf] %v5000
      %5233 = vst [vmem:[%s316 + $0x54] sm:$0xf] %v5010
      %5234 = vst [vmem:[%s316 + $0x58] sm:$0xf] %v5020
      %5235 = vst [vmem:[%s316 + $0x5c] sm:$0xf] %v5030
      %5236 = vst [vmem:[%s316 + $0x60] sm:$0xf] %v5040
      %5237 = vst [vmem:[%s316 + $0x64] sm:$0xf] %v5050
      %5238 = vst [vmem:[%s316 + $0x68] sm:$0xf] %v5060
      %5239 = vst [vmem:[%s316 + $0x6c] sm:$0xf] %v5070
      %5240 = vst [vmem:[%s316 + $0x70] sm:$0xf] %v5080
      %5241 = vst [vmem:[%s316 + $0x74] sm:$0xf] %v5090
      %5242 = vst [vmem:[%s316 + $0x78] sm:$0xf] %v5100
      %5243 = vst [vmem:[%s316 + $0x7c] sm:$0xf] %v5110
      %5244 = vst [vmem:[%s316 + $0x80] sm:$0xf] %v5120
      %5245 = vst [vmem:[%s316 + $0x84] sm:$0xf] %v5130
      %5246 = vst [vmem:[%s316 + $0x88] sm:$0xf] %v5140
      %5247 = vst [vmem:[%s316 + $0x8c] sm:$0xf] %v5150
      %5248 = vst [vmem:[%s316 + $0x90] sm:$0xf] %v5160
      %5249 = vst [vmem:[%s316 + $0x94] sm:$0xf] %v5170
      %v5250 = vld [vmem:[%s316 + $0x98] sm:$0x3]
      %v5251 = vsel %vm4717, %v5171, %v5250
      %5252 = vst [vmem:[%s316 + $0x98] sm:$0x3] %v5251
      %v5253 = vld [vmem:[%s316 + $0x98] sm:$0xe]
      %v5254 = vsel %vm5211, 0, %v5253
      %5255 = vst [vmem:[%s316 + $0x98] sm:$0xe] %v5254
      %5256 = vst [vmem:[%s316 + $0x9c] sm:$0xf] 0
      %5257 = vst [vmem:[%s316 + $0xa0] sm:$0xf] 0
      %5258 = vst [vmem:[%s316 + $0xa4] sm:$0xf] 0
      %5259 = vst [vmem:[%s316 + $0xa8] sm:$0x7] 0
      %p5260 = scmp.lt.s32.totalorder %s20, 1
      %s5261 = scalar_select %p5260, %s20, 1
      %s5262 = smul.addr %s5261, 43
      %s5263 = smul.addr %s5262, 4
      %s5264 = scalar_lea.vmem %s6, %s5263
      %p5265 = scmp.lt.s32.totalorder %s20, 1
      %s5266 = scalar_select %p5265, %s20, 1
      %s5267 = scalar_lea.vmem %s7, %s5266
      %p5268 = scmp.lt.s32.totalorder %s20, 1
      %s5269 = scalar_select %p5268, %s20, 1
      %s5270 = scalar_lea.vmem %s8, %s5269
      // Predicated region
      $region45: #{basic_block_forward.4} parent=43 // pred_check
        %p5271 = pneg %p169
      $region46: #{basic_block_forward.4} parent=43 // pred_check_branch
        %5273 = sbr.rel (%p5271) target = $region48
      $region47: #{basic_block_forward.4} parent=43 // pred_region
        _
      $region48: #{basic_block_forward.4} parent=43 // pred_fallthru
        _
      // Predicated region
      $region49: #{basic_block_forward.4} parent=43 // pred_check
        %p5274 = pneg %p195
      $region50: #{basic_block_forward.4} parent=43 // pred_check_branch
        %5276 = sbr.rel (%p5274) target = $region52
      $region51: #{basic_block_forward.4} parent=43 // pred_region
        _
      $region52: #{basic_block_forward.4} parent=43 // pred_fallthru
        _
      // Predicated region
      $region53: #{basic_block_forward.4} parent=43 // pred_check
        %p5277 = pneg %p221
      $region54: #{basic_block_forward.4} parent=43 // pred_check_branch
        %5279 = sbr.rel (%p5277) target = $region56
      $region55: #{basic_block_forward.4} parent=43 // pred_region
        _
      $region56: #{basic_block_forward.4} parent=43 // pred_fallthru
        _
    $region44: #{basic_block_forward.4} parent=5 // pred_fallthru
      _
    %p5280 = scmp.le.s32.totalorder 2, %s15
    // Predicated region
    $region57: #{basic_block_forward.4} parent=5 // pred_check
      %p5281 = pneg %p5280
    $region58: #{basic_block_forward.4} parent=5 // pred_check_branch
      %5283 = sbr.rel (%p5281) target = $region60
    $region59: #{basic_block_forward.4} parent=5 // pred_region
      %s5284 = ssub.s32 %s15, 2
      // Predicated region
      $region61: #{basic_block_forward.4} parent=59 // pred_check
        %p5285 = pneg %p175
      $region62: #{basic_block_forward.4} parent=59 // pred_check_branch
        %5287 = sbr.rel (%p5285) target = $region64
      $region63: #{basic_block_forward.4} parent=59 // pred_region
        %p5288 = scmp.lt.s32.totalorder %s21, 1
        %s5289 = scalar_select %p5288, %s21, 1
        %s5290 = smul.addr %s5289, 43
        %s5291 = smul.addr %s5290, 4
        %s5292 = scalar_lea.vmem %s6, %s5291
      $region64: #{basic_block_forward.4} parent=59 // pred_fallthru
        _
      // Predicated region
      $region65: #{basic_block_forward.4} parent=59 // pred_check
        %p5293 = pneg %p201
      $region66: #{basic_block_forward.4} parent=59 // pred_check_branch
        %5295 = sbr.rel (%p5293) target = $region68
      $region67: #{basic_block_forward.4} parent=59 // pred_region
        %p5296 = scmp.lt.s32.totalorder %s21, 1
        %s5297 = scalar_select %p5296, %s21, 1
        %s5298 = scalar_lea.vmem %s7, %s5297
      $region68: #{basic_block_forward.4} parent=59 // pred_fallthru
        _
      // Predicated region
      $region69: #{basic_block_forward.4} parent=59 // pred_check
        %p5299 = pneg %p227
      $region70: #{basic_block_forward.4} parent=59 // pred_check_branch
        %5301 = sbr.rel (%p5299) target = $region72
      $region71: #{basic_block_forward.4} parent=59 // pred_region
        %p5302 = scmp.lt.s32.totalorder %s21, 1
        %s5303 = scalar_select %p5302, %s21, 1
        %s5304 = scalar_lea.vmem %s8, %s5303
      $region72: #{basic_block_forward.4} parent=59 // pred_fallthru
        _
    $region60: #{basic_block_forward.4} parent=5 // pred_fallthru
      _
  $region6: #{basic_block_forward.4} parent=0 // loop_footer
    %s19 = sadd.s32 1, %s15
  $region7: #{basic_block_forward.4} parent=0 // loop_footer_branch
    %14 = sbr.rel target = $region3
  $region8: #{basic_block_forward.4} parent=0 // loop_exit
    _

</llo_original>
